<compile_context>
chip_gen: v7x
topology: tpu7x:2x2x1
jax: 0.10.0
libtpu: 0.0.40
codegen_flags: <defaults>
</compile_context>

<pallas_src>
import functools

import jax
import jax.numpy as jnp
from jax import lax
from jax.experimental import pallas as pl
from jax.experimental.pallas import tpu as pltpu


# ----------------------------------------------------------------------------
# Direct 5x5 conv (padding=2, stride=1) + bias + ReLU, one image per grid step.
# ----------------------------------------------------------------------------
def _conv5x5_kernel(x_ref, w_ref, b_ref, o_ref, *, H, W, Cout):
    # x_ref: (1, H+4, W+4, Cin) bf16 (padded image)
    # w_ref: (25, Cin, Cout)    bf16 (taps ordered ky*5+kx)
    # b_ref: (1, Cout)          f32
    # o_ref: (1, H, W, Cout)    bf16
    def row_body(h, carry):
        acc = jnp.zeros((W, Cout), jnp.float32)
        # 25 shifted taps; each is a small MXU dot with K = Cin.
        for ky in range(5):
            for kx in range(5):
                lhs = x_ref[0, h + ky, pl.ds(kx, W), :]            # (W, Cin) bf16
                acc = acc + jnp.dot(lhs, w_ref[ky * 5 + kx],
                                    preferred_element_type=jnp.float32)
        acc = jnp.maximum(acc + b_ref[...], 0.0)                   # f32 epilogue
        o_ref[0, h, :, :] = acc.astype(o_ref.dtype)
        return carry

    lax.fori_loop(0, H, row_body, 0)


def conv5x5_relu(x, w, b):
    """x: (N, H, W, Cin) bf16; w: (25, Cin, Cout) bf16; b: (1, Cout) f32."""
    N, H, W, Cin = x.shape
    Cout = w.shape[-1]
    xp = jnp.pad(x, ((0, 0), (2, 2), (2, 2), (0, 0)))              # pad=2
    Hp, Wp = H + 4, W + 4
    kernel = functools.partial(_conv5x5_kernel, H=H, W=W, Cout=Cout)
    return pl.pallas_call(
        kernel,
        grid=(N,),
        in_specs=[
            pl.BlockSpec((1, Hp, Wp, Cin), lambda n: (n, 0, 0, 0)),
            pl.BlockSpec((25, Cin, Cout), lambda n: (0, 0, 0)),    # resident
            pl.BlockSpec((1, Cout), lambda n: (0, 0)),             # resident
        ],
        out_specs=pl.BlockSpec((1, H, W, Cout), lambda n: (n, 0, 0, 0)),
        out_shape=jax.ShapeDtypeStruct((N, H, W, Cout), jnp.bfloat16),
        compiler_params=pltpu.CompilerParams(
            dimension_semantics=("parallel",)),
    )(xp, w, b)


# ----------------------------------------------------------------------------
# Pooling (k=3, s=2, no padding) — lax.reduce_window per the perf review.
# ----------------------------------------------------------------------------
def max_pool_3x3_s2(x):
    init = jnp.array(-jnp.inf, dtype=x.dtype)
    return lax.reduce_window(x, init, lax.max,
                             (1, 3, 3, 1), (1, 2, 2, 1), "VALID")


def avg_pool_3x3_s2(x):
    s = lax.reduce_window(x.astype(jnp.float32), jnp.float32(0), lax.add,
                          (1, 3, 3, 1), (1, 2, 2, 1), "VALID")
    return (s * (1.0 / 9.0)).astype(x.dtype)


# ----------------------------------------------------------------------------
# Fused fc1 (ReLU) + fc2, lane-dense padded (512 hidden, 128 outputs).
# ----------------------------------------------------------------------------
def _fc_fused_kernel(x_ref, w1_ref, b1_ref, w2_ref, b2_ref, o_ref):
    h = jnp.dot(x_ref[...], w1_ref[...], preferred_element_type=jnp.float32)
    h = jnp.maximum(h + b1_ref[...], 0.0).astype(jnp.bfloat16)
    o = jnp.dot(h, w2_ref[...], preferred_element_type=jnp.float32)
    o_ref[...] = o + b2_ref[...]


def fc_fused(x, w1, b1, w2, b2):
    """x: (M, K1) bf16; w1: (K1, H1) bf16; w2: (H1, N2) bf16; biases (1, *) f32."""
    M, K1 = x.shape
    H1 = w1.shape[1]
    N2 = w2.shape[1]
    if M >= 256 and M % 256 == 0:
        TM = 256
    elif M >= 128 and M % 128 == 0:
        TM = 128
    else:
        TM = M
    return pl.pallas_call(
        _fc_fused_kernel,
        grid=(M // TM,),
        in_specs=[
            pl.BlockSpec((TM, K1), lambda i: (i, 0)),
            pl.BlockSpec((K1, H1), lambda i: (0, 0)),
            pl.BlockSpec((1, H1), lambda i: (0, 0)),
            pl.BlockSpec((H1, N2), lambda i: (0, 0)),
            pl.BlockSpec((1, N2), lambda i: (0, 0)),
        ],
        out_specs=pl.BlockSpec((TM, N2), lambda i: (i, 0)),
        out_shape=jax.ShapeDtypeStruct((M, N2), jnp.float32),
        compiler_params=pltpu.CompilerParams(
            dimension_semantics=("parallel",)),
    )(x, w1, b1, w2, b2)


# ----------------------------------------------------------------------------
# Parameters (deterministic xavier-normal init, bias = 0, like the PyTorch init)
# ----------------------------------------------------------------------------
def xavier_normal(key, shape, fan_in, fan_out):
    std = (2.0 / (fan_in + fan_out)) ** 0.5
    return std * jax.random.normal(key, shape, dtype=jnp.float32)


def init_params(num_binary, key):
    ks = jax.random.split(key, 5)

    def conv_w(k, cin, cout):
        w = xavier_normal(k, (5, 5, cin, cout), cin * 25, cout * 25)
        return w.reshape(25, cin, cout).astype(jnp.bfloat16)       # (ky*5+kx, ci, co)

    p = {}
    p["w1"] = conv_w(ks[0], 3, 32)
    p["b1"] = jnp.zeros((1, 32), jnp.float32)
    p["w2"] = conv_w(ks[1], 32, 32)
    p["b2"] = jnp.zeros((1, 32), jnp.float32)
    p["w3"] = conv_w(ks[2], 32, 64)
    p["b3"] = jnp.zeros((1, 64), jnp.float32)

    hid_pad = 512                                    # 500 -> 512 (lane friendly)
    out_pad = max(128, ((num_binary + 127) // 128) * 128)  # num_binary -> 128

    fc1 = xavier_normal(ks[3], (64 * 3 * 3, 500), 64 * 3 * 3, 500)
    fc1 = jnp.pad(fc1, ((0, 0), (0, hid_pad - 500)))           # zero cols -> inert
    p["fc1_w"] = fc1.astype(jnp.bfloat16)
    p["fc1_b"] = jnp.zeros((1, hid_pad), jnp.float32)

    fc2 = xavier_normal(ks[4], (500, num_binary), 500, num_binary)
    fc2 = jnp.pad(fc2, ((0, hid_pad - 500), (0, out_pad - num_binary)))
    p["fc2_w"] = fc2.astype(jnp.bfloat16)
    p["fc2_b"] = jnp.zeros((1, out_pad), jnp.float32)
    return p


# ----------------------------------------------------------------------------
# Full forward pass (mirrors DSH.forward)
# ----------------------------------------------------------------------------
@functools.partial(jax.jit, static_argnames=("num_binary",))
def dsh_forward(params, x_nchw, *, num_binary):
    x = jnp.transpose(x_nchw, (0, 2, 3, 1)).astype(jnp.bfloat16)   # NCHW -> NHWC bf16
    x = conv5x5_relu(x, params["w1"], params["b1"])                # (N,32,32,32)
    x = max_pool_3x3_s2(x)                                         # (N,15,15,32)
    x = conv5x5_relu(x, params["w2"], params["b2"])                # (N,15,15,32)
    x = avg_pool_3x3_s2(x)                                         # (N, 7, 7,32)
    x = conv5x5_relu(x, params["w3"], params["b3"])                # (N, 7, 7,64)
    x = avg_pool_3x3_s2(x)                                         # (N, 3, 3,64)
    # PyTorch flattens NCHW as (C, H, W); transpose back for the same ordering.
    N = x.shape[0]
    x = jnp.transpose(x, (0, 3, 1, 2)).reshape(N, 64 * 3 * 3)      # (N, 576) bf16
    out = fc_fused(x, params["fc1_w"], params["fc1_b"],
                   params["fc2_w"], params["fc2_b"])               # (N, 128) f32
    return out[:, :num_binary]                                     # (N, num_binary)


if __name__ == "__main__":
    num_binary = 12
    key = jax.random.PRNGKey(0)
    pkey, xkey = jax.random.split(key)

    params = init_params(num_binary, pkey)
    # DSH's fc layer (64*3*3 inputs) implies 32x32 RGB input (CIFAR-sized).
    x = jax.random.normal(xkey, (2, 3, 32, 32), dtype=jnp.float32)

    out = dsh_forward(params, x, num_binary=num_binary)
    out = jax.block_until_ready(out)
    assert out.shape == (2, num_binary), out.shape
    assert bool(jnp.all(jnp.isfinite(out)))
    print("KERNEL_OK")
</pallas_src>

<mosaic_0001>
module attributes {stable_mosaic.version = 11 : i64} {
  func.func @_conv5x5_kernel(%arg0: i32, %arg1: memref<1x36x36x3xbf16, #tpu.memory_space<vmem>>, %arg2: memref<25x3x32xbf16, #tpu.memory_space<vmem>>, %arg3: memref<1x32xf32, #tpu.memory_space<vmem>>, %arg4: memref<1x32x32x32xbf16, #tpu.memory_space<vmem>>) attributes {dimension_semantics = [#tpu.dimension_semantics<parallel>], iteration_bounds = array<i64: 2>, scalar_prefetch = 0 : i64, scratch_operands = 0 : i64, tpu.core_type = #tpu.core_type<tc>, window_params = [{transform_indices = @transform_0, window_bounds = array<i64: 1, 36, 36, 3>}, {pipeline_mode = #tpu.pipeline_mode<synchronous>, transform_indices = @transform_1, window_bounds = array<i64: 25, 3, 32>}, {pipeline_mode = #tpu.pipeline_mode<synchronous>, transform_indices = @transform_2, window_bounds = array<i64: 1, 32>}, {transform_indices = @transform_3, window_bounds = array<i64: 1, 32, 32, 32>}]} {
    %c0_i32 = arith.constant 0 : i32
    %c32_i32 = arith.constant 32 : i32
    %0 = arith.addi %c0_i32, %c32_i32 : i32
    %c1_i32 = arith.constant 1 : i32
    scf.for %arg5 = %c0_i32 to %0 step %c1_i32  : i32 {
      %cst = arith.constant 0.000000e+00 : f32
      %1 = vector.broadcast %cst : f32 to vector<32x32xf32>
      %c0_i32_1 = arith.constant 0 : i32
      %2 = arith.addi %arg5, %c0_i32_1 : i32
      %c0 = arith.constant 0 : index
      %3 = arith.index_cast %2 : i32 to index
      %c0_2 = arith.constant 0 : index
      %c0_3 = arith.constant 0 : index
      %4 = vector.load %arg1[%c0, %3, %c0_2, %c0_3] : memref<1x36x36x3xbf16, #tpu.memory_space<vmem>>, vector<1x1x32x3xbf16>
      %5 = vector.shape_cast %4 : vector<1x1x32x3xbf16> to vector<32x3xbf16>
      %c0_4 = arith.constant 0 : index
      %c0_5 = arith.constant 0 : index
      %c0_6 = arith.constant 0 : index
      %6 = vector.load %arg2[%c0_4, %c0_5, %c0_6] : memref<25x3x32xbf16, #tpu.memory_space<vmem>>, vector<1x3x32xbf16>
      %7 = vector.shape_cast %6 : vector<1x3x32xbf16> to vector<3x32xbf16>
      %cst_7 = arith.constant dense<0.000000e+00> : vector<32x32xf32>
      %8 = tpu.matmul %5, %7, %cst_7 {dimension_numbers = #tpu.dot_dimension_numbers<[1], [0], [0], [1], [0, 0, 1, 1], [], []>} : vector<32x3xbf16>, vector<3x32xbf16>, vector<32x32xf32> -> vector<32x32xf32>
      %9 = arith.addf %1, %8 : vector<32x32xf32>
      %c0_i32_8 = arith.constant 0 : i32
      %10 = arith.addi %arg5, %c0_i32_8 : i32
      %c0_9 = arith.constant 0 : index
      %11 = arith.index_cast %10 : i32 to index
      %c1 = arith.constant 1 : index
      %c0_10 = arith.constant 0 : index
      %12 = vector.load %arg1[%c0_9, %11, %c1, %c0_10] : memref<1x36x36x3xbf16, #tpu.memory_space<vmem>>, vector<1x1x32x3xbf16>
      %13 = vector.shape_cast %12 : vector<1x1x32x3xbf16> to vector<32x3xbf16>
      %c1_11 = arith.constant 1 : index
      %c0_12 = arith.constant 0 : index
      %c0_13 = arith.constant 0 : index
      %14 = vector.load %arg2[%c1_11, %c0_12, %c0_13] : memref<25x3x32xbf16, #tpu.memory_space<vmem>>, vector<1x3x32xbf16>
      %15 = vector.shape_cast %14 : vector<1x3x32xbf16> to vector<3x32xbf16>
      %cst_14 = arith.constant dense<0.000000e+00> : vector<32x32xf32>
      %16 = tpu.matmul %13, %15, %cst_14 {dimension_numbers = #tpu.dot_dimension_numbers<[1], [0], [0], [1], [0, 0, 1, 1], [], []>} : vector<32x3xbf16>, vector<3x32xbf16>, vector<32x32xf32> -> vector<32x32xf32>
      %17 = arith.addf %9, %16 : vector<32x32xf32>
      %c0_i32_15 = arith.constant 0 : i32
      %18 = arith.addi %arg5, %c0_i32_15 : i32
      %c0_16 = arith.constant 0 : index
      %19 = arith.index_cast %18 : i32 to index
      %c2 = arith.constant 2 : index
      %c0_17 = arith.constant 0 : index
      %20 = vector.load %arg1[%c0_16, %19, %c2, %c0_17] : memref<1x36x36x3xbf16, #tpu.memory_space<vmem>>, vector<1x1x32x3xbf16>
      %21 = vector.shape_cast %20 : vector<1x1x32x3xbf16> to vector<32x3xbf16>
      %c2_18 = arith.constant 2 : index
      %c0_19 = arith.constant 0 : index
      %c0_20 = arith.constant 0 : index
      %22 = vector.load %arg2[%c2_18, %c0_19, %c0_20] : memref<25x3x32xbf16, #tpu.memory_space<vmem>>, vector<1x3x32xbf16>
      %23 = vector.shape_cast %22 : vector<1x3x32xbf16> to vector<3x32xbf16>
      %cst_21 = arith.constant dense<0.000000e+00> : vector<32x32xf32>
      %24 = tpu.matmul %21, %23, %cst_21 {dimension_numbers = #tpu.dot_dimension_numbers<[1], [0], [0], [1], [0, 0, 1, 1], [], []>} : vector<32x3xbf16>, vector<3x32xbf16>, vector<32x32xf32> -> vector<32x32xf32>
      %25 = arith.addf %17, %24 : vector<32x32xf32>
      %c0_i32_22 = arith.constant 0 : i32
      %26 = arith.addi %arg5, %c0_i32_22 : i32
      %c0_23 = arith.constant 0 : index
      %27 = arith.index_cast %26 : i32 to index
      %c3 = arith.constant 3 : index
      %c0_24 = arith.constant 0 : index
      %28 = vector.load %arg1[%c0_23, %27, %c3, %c0_24] : memref<1x36x36x3xbf16, #tpu.memory_space<vmem>>, vector<1x1x32x3xbf16>
      %29 = vector.shape_cast %28 : vector<1x1x32x3xbf16> to vector<32x3xbf16>
      %c3_25 = arith.constant 3 : index
      %c0_26 = arith.constant 0 : index
      %c0_27 = arith.constant 0 : index
      %30 = vector.load %arg2[%c3_25, %c0_26, %c0_27] : memref<25x3x32xbf16, #tpu.memory_space<vmem>>, vector<1x3x32xbf16>
      %31 = vector.shape_cast %30 : vector<1x3x32xbf16> to vector<3x32xbf16>
      %cst_28 = arith.constant dense<0.000000e+00> : vector<32x32xf32>
      %32 = tpu.matmul %29, %31, %cst_28 {dimension_numbers = #tpu.dot_dimension_numbers<[1], [0], [0], [1], [0, 0, 1, 1], [], []>} : vector<32x3xbf16>, vector<3x32xbf16>, vector<32x32xf32> -> vector<32x32xf32>
      %33 = arith.addf %25, %32 : vector<32x32xf32>
      %c0_i32_29 = arith.constant 0 : i32
      %34 = arith.addi %arg5, %c0_i32_29 : i32
      %c0_30 = arith.constant 0 : index
      %35 = arith.index_cast %34 : i32 to index
      %c4 = arith.constant 4 : index
      %c0_31 = arith.constant 0 : index
      %36 = vector.load %arg1[%c0_30, %35, %c4, %c0_31] : memref<1x36x36x3xbf16, #tpu.memory_space<vmem>>, vector<1x1x32x3xbf16>
      %37 = vector.shape_cast %36 : vector<1x1x32x3xbf16> to vector<32x3xbf16>
      %c4_32 = arith.constant 4 : index
      %c0_33 = arith.constant 0 : index
      %c0_34 = arith.constant 0 : index
      %38 = vector.load %arg2[%c4_32, %c0_33, %c0_34] : memref<25x3x32xbf16, #tpu.memory_space<vmem>>, vector<1x3x32xbf16>
      %39 = vector.shape_cast %38 : vector<1x3x32xbf16> to vector<3x32xbf16>
      %cst_35 = arith.constant dense<0.000000e+00> : vector<32x32xf32>
      %40 = tpu.matmul %37, %39, %cst_35 {dimension_numbers = #tpu.dot_dimension_numbers<[1], [0], [0], [1], [0, 0, 1, 1], [], []>} : vector<32x3xbf16>, vector<3x32xbf16>, vector<32x32xf32> -> vector<32x32xf32>
      %41 = arith.addf %33, %40 : vector<32x32xf32>
      %c1_i32_36 = arith.constant 1 : i32
      %42 = arith.addi %arg5, %c1_i32_36 : i32
      %c0_37 = arith.constant 0 : index
      %43 = arith.index_cast %42 : i32 to index
      %c0_38 = arith.constant 0 : index
      %c0_39 = arith.constant 0 : index
      %44 = vector.load %arg1[%c0_37, %43, %c0_38, %c0_39] : memref<1x36x36x3xbf16, #tpu.memory_space<vmem>>, vector<1x1x32x3xbf16>
      %45 = vector.shape_cast %44 : vector<1x1x32x3xbf16> to vector<32x3xbf16>
      %c5 = arith.constant 5 : index
      %c0_40 = arith.constant 0 : index
      %c0_41 = arith.constant 0 : index
      %46 = vector.load %arg2[%c5, %c0_40, %c0_41] : memref<25x3x32xbf16, #tpu.memory_space<vmem>>, vector<1x3x32xbf16>
      %47 = vector.shape_cast %46 : vector<1x3x32xbf16> to vector<3x32xbf16>
      %cst_42 = arith.constant dense<0.000000e+00> : vector<32x32xf32>
      %48 = tpu.matmul %45, %47, %cst_42 {dimension_numbers = #tpu.dot_dimension_numbers<[1], [0], [0], [1], [0, 0, 1, 1], [], []>} : vector<32x3xbf16>, vector<3x32xbf16>, vector<32x32xf32> -> vector<32x32xf32>
      %49 = arith.addf %41, %48 : vector<32x32xf32>
      %c1_i32_43 = arith.constant 1 : i32
      %50 = arith.addi %arg5, %c1_i32_43 : i32
      %c0_44 = arith.constant 0 : index
      %51 = arith.index_cast %50 : i32 to index
      %c1_45 = arith.constant 1 : index
      %c0_46 = arith.constant 0 : index
      %52 = vector.load %arg1[%c0_44, %51, %c1_45, %c0_46] : memref<1x36x36x3xbf16, #tpu.memory_space<vmem>>, vector<1x1x32x3xbf16>
      %53 = vector.shape_cast %52 : vector<1x1x32x3xbf16> to vector<32x3xbf16>
      %c6 = arith.constant 6 : index
      %c0_47 = arith.constant 0 : index
      %c0_48 = arith.constant 0 : index
      %54 = vector.load %arg2[%c6, %c0_47, %c0_48] : memref<25x3x32xbf16, #tpu.memory_space<vmem>>, vector<1x3x32xbf16>
      %55 = vector.shape_cast %54 : vector<1x3x32xbf16> to vector<3x32xbf16>
      %cst_49 = arith.constant dense<0.000000e+00> : vector<32x32xf32>
      %56 = tpu.matmul %53, %55, %cst_49 {dimension_numbers = #tpu.dot_dimension_numbers<[1], [0], [0], [1], [0, 0, 1, 1], [], []>} : vector<32x3xbf16>, vector<3x32xbf16>, vector<32x32xf32> -> vector<32x32xf32>
      %57 = arith.addf %49, %56 : vector<32x32xf32>
      %c1_i32_50 = arith.constant 1 : i32
      %58 = arith.addi %arg5, %c1_i32_50 : i32
      %c0_51 = arith.constant 0 : index
      %59 = arith.index_cast %58 : i32 to index
      %c2_52 = arith.constant 2 : index
      %c0_53 = arith.constant 0 : index
      %60 = vector.load %arg1[%c0_51, %59, %c2_52, %c0_53] : memref<1x36x36x3xbf16, #tpu.memory_space<vmem>>, vector<1x1x32x3xbf16>
      %61 = vector.shape_cast %60 : vector<1x1x32x3xbf16> to vector<32x3xbf16>
      %c7 = arith.constant 7 : index
      %c0_54 = arith.constant 0 : index
      %c0_55 = arith.constant 0 : index
      %62 = vector.load %arg2[%c7, %c0_54, %c0_55] : memref<25x3x32xbf16, #tpu.memory_space<vmem>>, vector<1x3x32xbf16>
      %63 = vector.shape_cast %62 : vector<1x3x32xbf16> to vector<3x32xbf16>
      %cst_56 = arith.constant dense<0.000000e+00> : vector<32x32xf32>
      %64 = tpu.matmul %61, %63, %cst_56 {dimension_numbers = #tpu.dot_dimension_numbers<[1], [0], [0], [1], [0, 0, 1, 1], [], []>} : vector<32x3xbf16>, vector<3x32xbf16>, vector<32x32xf32> -> vector<32x32xf32>
      %65 = arith.addf %57, %64 : vector<32x32xf32>
      %c1_i32_57 = arith.constant 1 : i32
      %66 = arith.addi %arg5, %c1_i32_57 : i32
      %c0_58 = arith.constant 0 : index
      %67 = arith.index_cast %66 : i32 to index
      %c3_59 = arith.constant 3 : index
      %c0_60 = arith.constant 0 : index
      %68 = vector.load %arg1[%c0_58, %67, %c3_59, %c0_60] : memref<1x36x36x3xbf16, #tpu.memory_space<vmem>>, vector<1x1x32x3xbf16>
      %69 = vector.shape_cast %68 : vector<1x1x32x3xbf16> to vector<32x3xbf16>
      %c8 = arith.constant 8 : index
      %c0_61 = arith.constant 0 : index
      %c0_62 = arith.constant 0 : index
      %70 = vector.load %arg2[%c8, %c0_61, %c0_62] : memref<25x3x32xbf16, #tpu.memory_space<vmem>>, vector<1x3x32xbf16>
      %71 = vector.shape_cast %70 : vector<1x3x32xbf16> to vector<3x32xbf16>
      %cst_63 = arith.constant dense<0.000000e+00> : vector<32x32xf32>
      %72 = tpu.matmul %69, %71, %cst_63 {dimension_numbers = #tpu.dot_dimension_numbers<[1], [0], [0], [1], [0, 0, 1, 1], [], []>} : vector<32x3xbf16>, vector<3x32xbf16>, vector<32x32xf32> -> vector<32x32xf32>
      %73 = arith.addf %65, %72 : vector<32x32xf32>
      %c1_i32_64 = arith.constant 1 : i32
      %74 = arith.addi %arg5, %c1_i32_64 : i32
      %c0_65 = arith.constant 0 : index
      %75 = arith.index_cast %74 : i32 to index
      %c4_66 = arith.constant 4 : index
      %c0_67 = arith.constant 0 : index
      %76 = vector.load %arg1[%c0_65, %75, %c4_66, %c0_67] : memref<1x36x36x3xbf16, #tpu.memory_space<vmem>>, vector<1x1x32x3xbf16>
      %77 = vector.shape_cast %76 : vector<1x1x32x3xbf16> to vector<32x3xbf16>
      %c9 = arith.constant 9 : index
      %c0_68 = arith.constant 0 : index
      %c0_69 = arith.constant 0 : index
      %78 = vector.load %arg2[%c9, %c0_68, %c0_69] : memref<25x3x32xbf16, #tpu.memory_space<vmem>>, vector<1x3x32xbf16>
      %79 = vector.shape_cast %78 : vector<1x3x32xbf16> to vector<3x32xbf16>
      %cst_70 = arith.constant dense<0.000000e+00> : vector<32x32xf32>
      %80 = tpu.matmul %77, %79, %cst_70 {dimension_numbers = #tpu.dot_dimension_numbers<[1], [0], [0], [1], [0, 0, 1, 1], [], []>} : vector<32x3xbf16>, vector<3x32xbf16>, vector<32x32xf32> -> vector<32x32xf32>
      %81 = arith.addf %73, %80 : vector<32x32xf32>
      %c2_i32 = arith.constant 2 : i32
      %82 = arith.addi %arg5, %c2_i32 : i32
      %c0_71 = arith.constant 0 : index
      %83 = arith.index_cast %82 : i32 to index
      %c0_72 = arith.constant 0 : index
      %c0_73 = arith.constant 0 : index
      %84 = vector.load %arg1[%c0_71, %83, %c0_72, %c0_73] : memref<1x36x36x3xbf16, #tpu.memory_space<vmem>>, vector<1x1x32x3xbf16>
      %85 = vector.shape_cast %84 : vector<1x1x32x3xbf16> to vector<32x3xbf16>
      %c10 = arith.constant 10 : index
      %c0_74 = arith.constant 0 : index
      %c0_75 = arith.constant 0 : index
      %86 = vector.load %arg2[%c10, %c0_74, %c0_75] : memref<25x3x32xbf16, #tpu.memory_space<vmem>>, vector<1x3x32xbf16>
      %87 = vector.shape_cast %86 : vector<1x3x32xbf16> to vector<3x32xbf16>
      %cst_76 = arith.constant dense<0.000000e+00> : vector<32x32xf32>
      %88 = tpu.matmul %85, %87, %cst_76 {dimension_numbers = #tpu.dot_dimension_numbers<[1], [0], [0], [1], [0, 0, 1, 1], [], []>} : vector<32x3xbf16>, vector<3x32xbf16>, vector<32x32xf32> -> vector<32x32xf32>
      %89 = arith.addf %81, %88 : vector<32x32xf32>
      %c2_i32_77 = arith.constant 2 : i32
      %90 = arith.addi %arg5, %c2_i32_77 : i32
      %c0_78 = arith.constant 0 : index
      %91 = arith.index_cast %90 : i32 to index
      %c1_79 = arith.constant 1 : index
      %c0_80 = arith.constant 0 : index
      %92 = vector.load %arg1[%c0_78, %91, %c1_79, %c0_80] : memref<1x36x36x3xbf16, #tpu.memory_space<vmem>>, vector<1x1x32x3xbf16>
      %93 = vector.shape_cast %92 : vector<1x1x32x3xbf16> to vector<32x3xbf16>
      %c11 = arith.constant 11 : index
      %c0_81 = arith.constant 0 : index
      %c0_82 = arith.constant 0 : index
      %94 = vector.load %arg2[%c11, %c0_81, %c0_82] : memref<25x3x32xbf16, #tpu.memory_space<vmem>>, vector<1x3x32xbf16>
      %95 = vector.shape_cast %94 : vector<1x3x32xbf16> to vector<3x32xbf16>
      %cst_83 = arith.constant dense<0.000000e+00> : vector<32x32xf32>
      %96 = tpu.matmul %93, %95, %cst_83 {dimension_numbers = #tpu.dot_dimension_numbers<[1], [0], [0], [1], [0, 0, 1, 1], [], []>} : vector<32x3xbf16>, vector<3x32xbf16>, vector<32x32xf32> -> vector<32x32xf32>
      %97 = arith.addf %89, %96 : vector<32x32xf32>
      %c2_i32_84 = arith.constant 2 : i32
      %98 = arith.addi %arg5, %c2_i32_84 : i32
      %c0_85 = arith.constant 0 : index
      %99 = arith.index_cast %98 : i32 to index
      %c2_86 = arith.constant 2 : index
      %c0_87 = arith.constant 0 : index
      %100 = vector.load %arg1[%c0_85, %99, %c2_86, %c0_87] : memref<1x36x36x3xbf16, #tpu.memory_space<vmem>>, vector<1x1x32x3xbf16>
      %101 = vector.shape_cast %100 : vector<1x1x32x3xbf16> to vector<32x3xbf16>
      %c12 = arith.constant 12 : index
      %c0_88 = arith.constant 0 : index
      %c0_89 = arith.constant 0 : index
      %102 = vector.load %arg2[%c12, %c0_88, %c0_89] : memref<25x3x32xbf16, #tpu.memory_space<vmem>>, vector<1x3x32xbf16>
      %103 = vector.shape_cast %102 : vector<1x3x32xbf16> to vector<3x32xbf16>
      %cst_90 = arith.constant dense<0.000000e+00> : vector<32x32xf32>
      %104 = tpu.matmul %101, %103, %cst_90 {dimension_numbers = #tpu.dot_dimension_numbers<[1], [0], [0], [1], [0, 0, 1, 1], [], []>} : vector<32x3xbf16>, vector<3x32xbf16>, vector<32x32xf32> -> vector<32x32xf32>
      %105 = arith.addf %97, %104 : vector<32x32xf32>
      %c2_i32_91 = arith.constant 2 : i32
      %106 = arith.addi %arg5, %c2_i32_91 : i32
      %c0_92 = arith.constant 0 : index
      %107 = arith.index_cast %106 : i32 to index
      %c3_93 = arith.constant 3 : index
      %c0_94 = arith.constant 0 : index
      %108 = vector.load %arg1[%c0_92, %107, %c3_93, %c0_94] : memref<1x36x36x3xbf16, #tpu.memory_space<vmem>>, vector<1x1x32x3xbf16>
      %109 = vector.shape_cast %108 : vector<1x1x32x3xbf16> to vector<32x3xbf16>
      %c13 = arith.constant 13 : index
      %c0_95 = arith.constant 0 : index
      %c0_96 = arith.constant 0 : index
      %110 = vector.load %arg2[%c13, %c0_95, %c0_96] : memref<25x3x32xbf16, #tpu.memory_space<vmem>>, vector<1x3x32xbf16>
      %111 = vector.shape_cast %110 : vector<1x3x32xbf16> to vector<3x32xbf16>
      %cst_97 = arith.constant dense<0.000000e+00> : vector<32x32xf32>
      %112 = tpu.matmul %109, %111, %cst_97 {dimension_numbers = #tpu.dot_dimension_numbers<[1], [0], [0], [1], [0, 0, 1, 1], [], []>} : vector<32x3xbf16>, vector<3x32xbf16>, vector<32x32xf32> -> vector<32x32xf32>
      %113 = arith.addf %105, %112 : vector<32x32xf32>
      %c2_i32_98 = arith.constant 2 : i32
      %114 = arith.addi %arg5, %c2_i32_98 : i32
      %c0_99 = arith.constant 0 : index
      %115 = arith.index_cast %114 : i32 to index
      %c4_100 = arith.constant 4 : index
      %c0_101 = arith.constant 0 : index
      %116 = vector.load %arg1[%c0_99, %115, %c4_100, %c0_101] : memref<1x36x36x3xbf16, #tpu.memory_space<vmem>>, vector<1x1x32x3xbf16>
      %117 = vector.shape_cast %116 : vector<1x1x32x3xbf16> to vector<32x3xbf16>
      %c14 = arith.constant 14 : index
      %c0_102 = arith.constant 0 : index
      %c0_103 = arith.constant 0 : index
      %118 = vector.load %arg2[%c14, %c0_102, %c0_103] : memref<25x3x32xbf16, #tpu.memory_space<vmem>>, vector<1x3x32xbf16>
      %119 = vector.shape_cast %118 : vector<1x3x32xbf16> to vector<3x32xbf16>
      %cst_104 = arith.constant dense<0.000000e+00> : vector<32x32xf32>
      %120 = tpu.matmul %117, %119, %cst_104 {dimension_numbers = #tpu.dot_dimension_numbers<[1], [0], [0], [1], [0, 0, 1, 1], [], []>} : vector<32x3xbf16>, vector<3x32xbf16>, vector<32x32xf32> -> vector<32x32xf32>
      %121 = arith.addf %113, %120 : vector<32x32xf32>
      %c3_i32 = arith.constant 3 : i32
      %122 = arith.addi %arg5, %c3_i32 : i32
      %c0_105 = arith.constant 0 : index
      %123 = arith.index_cast %122 : i32 to index
      %c0_106 = arith.constant 0 : index
      %c0_107 = arith.constant 0 : index
      %124 = vector.load %arg1[%c0_105, %123, %c0_106, %c0_107] : memref<1x36x36x3xbf16, #tpu.memory_space<vmem>>, vector<1x1x32x3xbf16>
      %125 = vector.shape_cast %124 : vector<1x1x32x3xbf16> to vector<32x3xbf16>
      %c15 = arith.constant 15 : index
      %c0_108 = arith.constant 0 : index
      %c0_109 = arith.constant 0 : index
      %126 = vector.load %arg2[%c15, %c0_108, %c0_109] : memref<25x3x32xbf16, #tpu.memory_space<vmem>>, vector<1x3x32xbf16>
      %127 = vector.shape_cast %126 : vector<1x3x32xbf16> to vector<3x32xbf16>
      %cst_110 = arith.constant dense<0.000000e+00> : vector<32x32xf32>
      %128 = tpu.matmul %125, %127, %cst_110 {dimension_numbers = #tpu.dot_dimension_numbers<[1], [0], [0], [1], [0, 0, 1, 1], [], []>} : vector<32x3xbf16>, vector<3x32xbf16>, vector<32x32xf32> -> vector<32x32xf32>
      %129 = arith.addf %121, %128 : vector<32x32xf32>
      %c3_i32_111 = arith.constant 3 : i32
      %130 = arith.addi %arg5, %c3_i32_111 : i32
      %c0_112 = arith.constant 0 : index
      %131 = arith.index_cast %130 : i32 to index
      %c1_113 = arith.constant 1 : index
      %c0_114 = arith.constant 0 : index
      %132 = vector.load %arg1[%c0_112, %131, %c1_113, %c0_114] : memref<1x36x36x3xbf16, #tpu.memory_space<vmem>>, vector<1x1x32x3xbf16>
      %133 = vector.shape_cast %132 : vector<1x1x32x3xbf16> to vector<32x3xbf16>
      %c16 = arith.constant 16 : index
      %c0_115 = arith.constant 0 : index
      %c0_116 = arith.constant 0 : index
      %134 = vector.load %arg2[%c16, %c0_115, %c0_116] : memref<25x3x32xbf16, #tpu.memory_space<vmem>>, vector<1x3x32xbf16>
      %135 = vector.shape_cast %134 : vector<1x3x32xbf16> to vector<3x32xbf16>
      %cst_117 = arith.constant dense<0.000000e+00> : vector<32x32xf32>
      %136 = tpu.matmul %133, %135, %cst_117 {dimension_numbers = #tpu.dot_dimension_numbers<[1], [0], [0], [1], [0, 0, 1, 1], [], []>} : vector<32x3xbf16>, vector<3x32xbf16>, vector<32x32xf32> -> vector<32x32xf32>
      %137 = arith.addf %129, %136 : vector<32x32xf32>
      %c3_i32_118 = arith.constant 3 : i32
      %138 = arith.addi %arg5, %c3_i32_118 : i32
      %c0_119 = arith.constant 0 : index
      %139 = arith.index_cast %138 : i32 to index
      %c2_120 = arith.constant 2 : index
      %c0_121 = arith.constant 0 : index
      %140 = vector.load %arg1[%c0_119, %139, %c2_120, %c0_121] : memref<1x36x36x3xbf16, #tpu.memory_space<vmem>>, vector<1x1x32x3xbf16>
      %141 = vector.shape_cast %140 : vector<1x1x32x3xbf16> to vector<32x3xbf16>
      %c17 = arith.constant 17 : index
      %c0_122 = arith.constant 0 : index
      %c0_123 = arith.constant 0 : index
      %142 = vector.load %arg2[%c17, %c0_122, %c0_123] : memref<25x3x32xbf16, #tpu.memory_space<vmem>>, vector<1x3x32xbf16>
      %143 = vector.shape_cast %142 : vector<1x3x32xbf16> to vector<3x32xbf16>
      %cst_124 = arith.constant dense<0.000000e+00> : vector<32x32xf32>
      %144 = tpu.matmul %141, %143, %cst_124 {dimension_numbers = #tpu.dot_dimension_numbers<[1], [0], [0], [1], [0, 0, 1, 1], [], []>} : vector<32x3xbf16>, vector<3x32xbf16>, vector<32x32xf32> -> vector<32x32xf32>
      %145 = arith.addf %137, %144 : vector<32x32xf32>
      %c3_i32_125 = arith.constant 3 : i32
      %146 = arith.addi %arg5, %c3_i32_125 : i32
      %c0_126 = arith.constant 0 : index
      %147 = arith.index_cast %146 : i32 to index
      %c3_127 = arith.constant 3 : index
      %c0_128 = arith.constant 0 : index
      %148 = vector.load %arg1[%c0_126, %147, %c3_127, %c0_128] : memref<1x36x36x3xbf16, #tpu.memory_space<vmem>>, vector<1x1x32x3xbf16>
      %149 = vector.shape_cast %148 : vector<1x1x32x3xbf16> to vector<32x3xbf16>
      %c18 = arith.constant 18 : index
      %c0_129 = arith.constant 0 : index
      %c0_130 = arith.constant 0 : index
      %150 = vector.load %arg2[%c18, %c0_129, %c0_130] : memref<25x3x32xbf16, #tpu.memory_space<vmem>>, vector<1x3x32xbf16>
      %151 = vector.shape_cast %150 : vector<1x3x32xbf16> to vector<3x32xbf16>
      %cst_131 = arith.constant dense<0.000000e+00> : vector<32x32xf32>
      %152 = tpu.matmul %149, %151, %cst_131 {dimension_numbers = #tpu.dot_dimension_numbers<[1], [0], [0], [1], [0, 0, 1, 1], [], []>} : vector<32x3xbf16>, vector<3x32xbf16>, vector<32x32xf32> -> vector<32x32xf32>
      %153 = arith.addf %145, %152 : vector<32x32xf32>
      %c3_i32_132 = arith.constant 3 : i32
      %154 = arith.addi %arg5, %c3_i32_132 : i32
      %c0_133 = arith.constant 0 : index
      %155 = arith.index_cast %154 : i32 to index
      %c4_134 = arith.constant 4 : index
      %c0_135 = arith.constant 0 : index
      %156 = vector.load %arg1[%c0_133, %155, %c4_134, %c0_135] : memref<1x36x36x3xbf16, #tpu.memory_space<vmem>>, vector<1x1x32x3xbf16>
      %157 = vector.shape_cast %156 : vector<1x1x32x3xbf16> to vector<32x3xbf16>
      %c19 = arith.constant 19 : index
      %c0_136 = arith.constant 0 : index
      %c0_137 = arith.constant 0 : index
      %158 = vector.load %arg2[%c19, %c0_136, %c0_137] : memref<25x3x32xbf16, #tpu.memory_space<vmem>>, vector<1x3x32xbf16>
      %159 = vector.shape_cast %158 : vector<1x3x32xbf16> to vector<3x32xbf16>
      %cst_138 = arith.constant dense<0.000000e+00> : vector<32x32xf32>
      %160 = tpu.matmul %157, %159, %cst_138 {dimension_numbers = #tpu.dot_dimension_numbers<[1], [0], [0], [1], [0, 0, 1, 1], [], []>} : vector<32x3xbf16>, vector<3x32xbf16>, vector<32x32xf32> -> vector<32x32xf32>
      %161 = arith.addf %153, %160 : vector<32x32xf32>
      %c4_i32 = arith.constant 4 : i32
      %162 = arith.addi %arg5, %c4_i32 : i32
      %c0_139 = arith.constant 0 : index
      %163 = arith.index_cast %162 : i32 to index
      %c0_140 = arith.constant 0 : index
      %c0_141 = arith.constant 0 : index
      %164 = vector.load %arg1[%c0_139, %163, %c0_140, %c0_141] : memref<1x36x36x3xbf16, #tpu.memory_space<vmem>>, vector<1x1x32x3xbf16>
      %165 = vector.shape_cast %164 : vector<1x1x32x3xbf16> to vector<32x3xbf16>
      %c20 = arith.constant 20 : index
      %c0_142 = arith.constant 0 : index
      %c0_143 = arith.constant 0 : index
      %166 = vector.load %arg2[%c20, %c0_142, %c0_143] : memref<25x3x32xbf16, #tpu.memory_space<vmem>>, vector<1x3x32xbf16>
      %167 = vector.shape_cast %166 : vector<1x3x32xbf16> to vector<3x32xbf16>
      %cst_144 = arith.constant dense<0.000000e+00> : vector<32x32xf32>
      %168 = tpu.matmul %165, %167, %cst_144 {dimension_numbers = #tpu.dot_dimension_numbers<[1], [0], [0], [1], [0, 0, 1, 1], [], []>} : vector<32x3xbf16>, vector<3x32xbf16>, vector<32x32xf32> -> vector<32x32xf32>
      %169 = arith.addf %161, %168 : vector<32x32xf32>
      %c4_i32_145 = arith.constant 4 : i32
      %170 = arith.addi %arg5, %c4_i32_145 : i32
      %c0_146 = arith.constant 0 : index
      %171 = arith.index_cast %170 : i32 to index
      %c1_147 = arith.constant 1 : index
      %c0_148 = arith.constant 0 : index
      %172 = vector.load %arg1[%c0_146, %171, %c1_147, %c0_148] : memref<1x36x36x3xbf16, #tpu.memory_space<vmem>>, vector<1x1x32x3xbf16>
      %173 = vector.shape_cast %172 : vector<1x1x32x3xbf16> to vector<32x3xbf16>
      %c21 = arith.constant 21 : index
      %c0_149 = arith.constant 0 : index
      %c0_150 = arith.constant 0 : index
      %174 = vector.load %arg2[%c21, %c0_149, %c0_150] : memref<25x3x32xbf16, #tpu.memory_space<vmem>>, vector<1x3x32xbf16>
      %175 = vector.shape_cast %174 : vector<1x3x32xbf16> to vector<3x32xbf16>
      %cst_151 = arith.constant dense<0.000000e+00> : vector<32x32xf32>
      %176 = tpu.matmul %173, %175, %cst_151 {dimension_numbers = #tpu.dot_dimension_numbers<[1], [0], [0], [1], [0, 0, 1, 1], [], []>} : vector<32x3xbf16>, vector<3x32xbf16>, vector<32x32xf32> -> vector<32x32xf32>
      %177 = arith.addf %169, %176 : vector<32x32xf32>
      %c4_i32_152 = arith.constant 4 : i32
      %178 = arith.addi %arg5, %c4_i32_152 : i32
      %c0_153 = arith.constant 0 : index
      %179 = arith.index_cast %178 : i32 to index
      %c2_154 = arith.constant 2 : index
      %c0_155 = arith.constant 0 : index
      %180 = vector.load %arg1[%c0_153, %179, %c2_154, %c0_155] : memref<1x36x36x3xbf16, #tpu.memory_space<vmem>>, vector<1x1x32x3xbf16>
      %181 = vector.shape_cast %180 : vector<1x1x32x3xbf16> to vector<32x3xbf16>
      %c22 = arith.constant 22 : index
      %c0_156 = arith.constant 0 : index
      %c0_157 = arith.constant 0 : index
      %182 = vector.load %arg2[%c22, %c0_156, %c0_157] : memref<25x3x32xbf16, #tpu.memory_space<vmem>>, vector<1x3x32xbf16>
      %183 = vector.shape_cast %182 : vector<1x3x32xbf16> to vector<3x32xbf16>
      %cst_158 = arith.constant dense<0.000000e+00> : vector<32x32xf32>
      %184 = tpu.matmul %181, %183, %cst_158 {dimension_numbers = #tpu.dot_dimension_numbers<[1], [0], [0], [1], [0, 0, 1, 1], [], []>} : vector<32x3xbf16>, vector<3x32xbf16>, vector<32x32xf32> -> vector<32x32xf32>
      %185 = arith.addf %177, %184 : vector<32x32xf32>
      %c4_i32_159 = arith.constant 4 : i32
      %186 = arith.addi %arg5, %c4_i32_159 : i32
      %c0_160 = arith.constant 0 : index
      %187 = arith.index_cast %186 : i32 to index
      %c3_161 = arith.constant 3 : index
      %c0_162 = arith.constant 0 : index
      %188 = vector.load %arg1[%c0_160, %187, %c3_161, %c0_162] : memref<1x36x36x3xbf16, #tpu.memory_space<vmem>>, vector<1x1x32x3xbf16>
      %189 = vector.shape_cast %188 : vector<1x1x32x3xbf16> to vector<32x3xbf16>
      %c23 = arith.constant 23 : index
      %c0_163 = arith.constant 0 : index
      %c0_164 = arith.constant 0 : index
      %190 = vector.load %arg2[%c23, %c0_163, %c0_164] : memref<25x3x32xbf16, #tpu.memory_space<vmem>>, vector<1x3x32xbf16>
      %191 = vector.shape_cast %190 : vector<1x3x32xbf16> to vector<3x32xbf16>
      %cst_165 = arith.constant dense<0.000000e+00> : vector<32x32xf32>
      %192 = tpu.matmul %189, %191, %cst_165 {dimension_numbers = #tpu.dot_dimension_numbers<[1], [0], [0], [1], [0, 0, 1, 1], [], []>} : vector<32x3xbf16>, vector<3x32xbf16>, vector<32x32xf32> -> vector<32x32xf32>
      %193 = arith.addf %185, %192 : vector<32x32xf32>
      %c4_i32_166 = arith.constant 4 : i32
      %194 = arith.addi %arg5, %c4_i32_166 : i32
      %c0_167 = arith.constant 0 : index
      %195 = arith.index_cast %194 : i32 to index
      %c4_168 = arith.constant 4 : index
      %c0_169 = arith.constant 0 : index
      %196 = vector.load %arg1[%c0_167, %195, %c4_168, %c0_169] : memref<1x36x36x3xbf16, #tpu.memory_space<vmem>>, vector<1x1x32x3xbf16>
      %197 = vector.shape_cast %196 : vector<1x1x32x3xbf16> to vector<32x3xbf16>
      %c24 = arith.constant 24 : index
      %c0_170 = arith.constant 0 : index
      %c0_171 = arith.constant 0 : index
      %198 = vector.load %arg2[%c24, %c0_170, %c0_171] : memref<25x3x32xbf16, #tpu.memory_space<vmem>>, vector<1x3x32xbf16>
      %199 = vector.shape_cast %198 : vector<1x3x32xbf16> to vector<3x32xbf16>
      %cst_172 = arith.constant dense<0.000000e+00> : vector<32x32xf32>
      %200 = tpu.matmul %197, %199, %cst_172 {dimension_numbers = #tpu.dot_dimension_numbers<[1], [0], [0], [1], [0, 0, 1, 1], [], []>} : vector<32x3xbf16>, vector<3x32xbf16>, vector<32x32xf32> -> vector<32x32xf32>
      %201 = arith.addf %193, %200 : vector<32x32xf32>
      %c0_173 = arith.constant 0 : index
      %c0_174 = arith.constant 0 : index
      %202 = vector.load %arg3[%c0_173, %c0_174] : memref<1x32xf32, #tpu.memory_space<vmem>>, vector<1x32xf32>
      %203 = vector.broadcast %202 : vector<1x32xf32> to vector<32x32xf32>
      %204 = arith.addf %201, %203 : vector<32x32xf32>
      %cst_175 = arith.constant 0.000000e+00 : f32
      %205 = vector.broadcast %cst_175 : f32 to vector<32x32xf32>
      %206 = arith.maximumf %204, %205 : vector<32x32xf32>
      %207 = arith.truncf %206 : vector<32x32xf32> to vector<32x32xbf16>
      %c0_176 = arith.constant 0 : index
      %208 = arith.index_cast %arg5 : i32 to index
      %c0_177 = arith.constant 0 : index
      %c0_178 = arith.constant 0 : index
      %209 = vector.load %arg4[%c0_176, %208, %c0_177, %c0_178] : memref<1x32x32x32xbf16, #tpu.memory_space<vmem>>, vector<1x1x32x32xbf16>
      %210 = vector.shape_cast %209 : vector<1x1x32x32xbf16> to vector<32x32xbf16>
      %211 = vector.shape_cast %207 : vector<32x32xbf16> to vector<1x1x32x32xbf16>
      tpu.vector_store %arg4[%c0_176, %208, %c0_177, %c0_178], %211 {strides = array<i32>} : memref<1x32x32x32xbf16, #tpu.memory_space<vmem>>, vector<1x1x32x32xbf16>,
    }
    %c32_i32_0 = arith.constant 32 : i32
    return
  }
  func.func @transform_0(%arg0: i32) -> (i32, i32, i32, i32) {
    %c0_i32 = arith.constant 0 : i32
    %c0_i32_0 = arith.constant 0 : i32
    %c0_i32_1 = arith.constant 0 : i32
    %c0_i32_2 = arith.constant 0 : i32
    return %arg0, %c0_i32, %c0_i32_0, %c0_i32_1 : i32, i32, i32, i32
  }
  func.func @transform_1(%arg0: i32) -> (i32, i32, i32) {
    %c0_i32 = arith.constant 0 : i32
    %c0_i32_0 = arith.constant 0 : i32
    %c0_i32_1 = arith.constant 0 : i32
    %c0_i32_2 = arith.constant 0 : i32
    return %c0_i32, %c0_i32_0, %c0_i32_1 : i32, i32, i32
  }
  func.func @transform_2(%arg0: i32) -> (i32, i32) {
    %c0_i32 = arith.constant 0 : i32
    %c0_i32_0 = arith.constant 0 : i32
    %c0_i32_1 = arith.constant 0 : i32
    return %c0_i32, %c0_i32_0 : i32, i32
  }
  func.func @transform_3(%arg0: i32) -> (i32, i32, i32, i32) {
    %c0_i32 = arith.constant 0 : i32
    %c0_i32_0 = arith.constant 0 : i32
    %c0_i32_1 = arith.constant 0 : i32
    %c0_i32_2 = arith.constant 0 : i32
    return %arg0, %c0_i32, %c0_i32_0, %c0_i32_1 : i32, i32, i32, i32
  }
}

module attributes {stable_mosaic.version = 11 : i64} {
  func.func @_conv5x5_kernel(%arg0: i32, %arg1: memref<1x19x19x32xbf16, #tpu.memory_space<vmem>>, %arg2: memref<25x32x32xbf16, #tpu.memory_space<vmem>>, %arg3: memref<1x32xf32, #tpu.memory_space<vmem>>, %arg4: memref<1x15x15x32xbf16, #tpu.memory_space<vmem>>) attributes {dimension_semantics = [#tpu.dimension_semantics<parallel>], iteration_bounds = array<i64: 2>, scalar_prefetch = 0 : i64, scratch_operands = 0 : i64, tpu.core_type = #tpu.core_type<tc>, window_params = [{transform_indices = @transform_0, window_bounds = array<i64: 1, 19, 19, 32>}, {pipeline_mode = #tpu.pipeline_mode<synchronous>, transform_indices = @transform_1, window_bounds = array<i64: 25, 32, 32>}, {pipeline_mode = #tpu.pipeline_mode<synchronous>, transform_indices = @transform_2, window_bounds = array<i64: 1, 32>}, {transform_indices = @transform_3, window_bounds = array<i64: 1, 15, 15, 32>}]} {
    %c0_i32 = arith.constant 0 : i32
    %c15_i32 = arith.constant 15 : i32
    %0 = arith.addi %c0_i32, %c15_i32 : i32
    %c1_i32 = arith.constant 1 : i32
    scf.for %arg5 = %c0_i32 to %0 step %c1_i32  : i32 {
      %cst = arith.constant 0.000000e+00 : f32
      %1 = vector.broadcast %cst : f32 to vector<15x32xf32>
      %c0_i32_1 = arith.constant 0 : i32
      %2 = arith.addi %arg5, %c0_i32_1 : i32
      %c0 = arith.constant 0 : index
      %3 = arith.index_cast %2 : i32 to index
      %c0_2 = arith.constant 0 : index
      %c0_3 = arith.constant 0 : index
      %4 = vector.load %arg1[%c0, %3, %c0_2, %c0_3] : memref<1x19x19x32xbf16, #tpu.memory_space<vmem>>, vector<1x1x15x32xbf16>
      %5 = vector.shape_cast %4 : vector<1x1x15x32xbf16> to vector<15x32xbf16>
      %c0_4 = arith.constant 0 : index
      %c0_5 = arith.constant 0 : index
      %c0_6 = arith.constant 0 : index
      %6 = vector.load %arg2[%c0_4, %c0_5, %c0_6] : memref<25x32x32xbf16, #tpu.memory_space<vmem>>, vector<1x32x32xbf16>
      %7 = vector.shape_cast %6 : vector<1x32x32xbf16> to vector<32x32xbf16>
      %cst_7 = arith.constant dense<0.000000e+00> : vector<15x32xf32>
      %8 = tpu.matmul %5, %7, %cst_7 {dimension_numbers = #tpu.dot_dimension_numbers<[1], [0], [0], [1], [0, 0, 1, 1], [], []>} : vector<15x32xbf16>, vector<32x32xbf16>, vector<15x32xf32> -> vector<15x32xf32>
      %9 = arith.addf %1, %8 : vector<15x32xf32>
      %c0_i32_8 = arith.constant 0 : i32
      %10 = arith.addi %arg5, %c0_i32_8 : i32
      %c0_9 = arith.constant 0 : index
      %11 = arith.index_cast %10 : i32 to index
      %c1 = arith.constant 1 : index
      %c0_10 = arith.constant 0 : index
      %12 = vector.load %arg1[%c0_9, %11, %c1, %c0_10] : memref<1x19x19x32xbf16, #tpu.memory_space<vmem>>, vector<1x1x15x32xbf16>
      %13 = vector.shape_cast %12 : vector<1x1x15x32xbf16> to vector<15x32xbf16>
      %c1_11 = arith.constant 1 : index
      %c0_12 = arith.constant 0 : index
      %c0_13 = arith.constant 0 : index
      %14 = vector.load %arg2[%c1_11, %c0_12, %c0_13] : memref<25x32x32xbf16, #tpu.memory_space<vmem>>, vector<1x32x32xbf16>
      %15 = vector.shape_cast %14 : vector<1x32x32xbf16> to vector<32x32xbf16>
      %cst_14 = arith.constant dense<0.000000e+00> : vector<15x32xf32>
      %16 = tpu.matmul %13, %15, %cst_14 {dimension_numbers = #tpu.dot_dimension_numbers<[1], [0], [0], [1], [0, 0, 1, 1], [], []>} : vector<15x32xbf16>, vector<32x32xbf16>, vector<15x32xf32> -> vector<15x32xf32>
      %17 = arith.addf %9, %16 : vector<15x32xf32>
      %c0_i32_15 = arith.constant 0 : i32
      %18 = arith.addi %arg5, %c0_i32_15 : i32
      %c0_16 = arith.constant 0 : index
      %19 = arith.index_cast %18 : i32 to index
      %c2 = arith.constant 2 : index
      %c0_17 = arith.constant 0 : index
      %20 = vector.load %arg1[%c0_16, %19, %c2, %c0_17] : memref<1x19x19x32xbf16, #tpu.memory_space<vmem>>, vector<1x1x15x32xbf16>
      %21 = vector.shape_cast %20 : vector<1x1x15x32xbf16> to vector<15x32xbf16>
      %c2_18 = arith.constant 2 : index
      %c0_19 = arith.constant 0 : index
      %c0_20 = arith.constant 0 : index
      %22 = vector.load %arg2[%c2_18, %c0_19, %c0_20] : memref<25x32x32xbf16, #tpu.memory_space<vmem>>, vector<1x32x32xbf16>
      %23 = vector.shape_cast %22 : vector<1x32x32xbf16> to vector<32x32xbf16>
      %cst_21 = arith.constant dense<0.000000e+00> : vector<15x32xf32>
      %24 = tpu.matmul %21, %23, %cst_21 {dimension_numbers = #tpu.dot_dimension_numbers<[1], [0], [0], [1], [0, 0, 1, 1], [], []>} : vector<15x32xbf16>, vector<32x32xbf16>, vector<15x32xf32> -> vector<15x32xf32>
      %25 = arith.addf %17, %24 : vector<15x32xf32>
      %c0_i32_22 = arith.constant 0 : i32
      %26 = arith.addi %arg5, %c0_i32_22 : i32
      %c0_23 = arith.constant 0 : index
      %27 = arith.index_cast %26 : i32 to index
      %c3 = arith.constant 3 : index
      %c0_24 = arith.constant 0 : index
      %28 = vector.load %arg1[%c0_23, %27, %c3, %c0_24] : memref<1x19x19x32xbf16, #tpu.memory_space<vmem>>, vector<1x1x15x32xbf16>
      %29 = vector.shape_cast %28 : vector<1x1x15x32xbf16> to vector<15x32xbf16>
      %c3_25 = arith.constant 3 : index
      %c0_26 = arith.constant 0 : index
      %c0_27 = arith.constant 0 : index
      %30 = vector.load %arg2[%c3_25, %c0_26, %c0_27] : memref<25x32x32xbf16, #tpu.memory_space<vmem>>, vector<1x32x32xbf16>
      %31 = vector.shape_cast %30 : vector<1x32x32xbf16> to vector<32x32xbf16>
      %cst_28 = arith.constant dense<0.000000e+00> : vector<15x32xf32>
      %32 = tpu.matmul %29, %31, %cst_28 {dimension_numbers = #tpu.dot_dimension_numbers<[1], [0], [0], [1], [0, 0, 1, 1], [], []>} : vector<15x32xbf16>, vector<32x32xbf16>, vector<15x32xf32> -> vector<15x32xf32>
      %33 = arith.addf %25, %32 : vector<15x32xf32>
      %c0_i32_29 = arith.constant 0 : i32
      %34 = arith.addi %arg5, %c0_i32_29 : i32
      %c0_30 = arith.constant 0 : index
      %35 = arith.index_cast %34 : i32 to index
      %c4 = arith.constant 4 : index
      %c0_31 = arith.constant 0 : index
      %36 = vector.load %arg1[%c0_30, %35, %c4, %c0_31] : memref<1x19x19x32xbf16, #tpu.memory_space<vmem>>, vector<1x1x15x32xbf16>
      %37 = vector.shape_cast %36 : vector<1x1x15x32xbf16> to vector<15x32xbf16>
      %c4_32 = arith.constant 4 : index
      %c0_33 = arith.constant 0 : index
      %c0_34 = arith.constant 0 : index
      %38 = vector.load %arg2[%c4_32, %c0_33, %c0_34] : memref<25x32x32xbf16, #tpu.memory_space<vmem>>, vector<1x32x32xbf16>
      %39 = vector.shape_cast %38 : vector<1x32x32xbf16> to vector<32x32xbf16>
      %cst_35 = arith.constant dense<0.000000e+00> : vector<15x32xf32>
      %40 = tpu.matmul %37, %39, %cst_35 {dimension_numbers = #tpu.dot_dimension_numbers<[1], [0], [0], [1], [0, 0, 1, 1], [], []>} : vector<15x32xbf16>, vector<32x32xbf16>, vector<15x32xf32> -> vector<15x32xf32>
      %41 = arith.addf %33, %40 : vector<15x32xf32>
      %c1_i32_36 = arith.constant 1 : i32
      %42 = arith.addi %arg5, %c1_i32_36 : i32
      %c0_37 = arith.constant 0 : index
      %43 = arith.index_cast %42 : i32 to index
      %c0_38 = arith.constant 0 : index
      %c0_39 = arith.constant 0 : index
      %44 = vector.load %arg1[%c0_37, %43, %c0_38, %c0_39] : memref<1x19x19x32xbf16, #tpu.memory_space<vmem>>, vector<1x1x15x32xbf16>
      %45 = vector.shape_cast %44 : vector<1x1x15x32xbf16> to vector<15x32xbf16>
      %c5 = arith.constant 5 : index
      %c0_40 = arith.constant 0 : index
      %c0_41 = arith.constant 0 : index
      %46 = vector.load %arg2[%c5, %c0_40, %c0_41] : memref<25x32x32xbf16, #tpu.memory_space<vmem>>, vector<1x32x32xbf16>
      %47 = vector.shape_cast %46 : vector<1x32x32xbf16> to vector<32x32xbf16>
      %cst_42 = arith.constant dense<0.000000e+00> : vector<15x32xf32>
      %48 = tpu.matmul %45, %47, %cst_42 {dimension_numbers = #tpu.dot_dimension_numbers<[1], [0], [0], [1], [0, 0, 1, 1], [], []>} : vector<15x32xbf16>, vector<32x32xbf16>, vector<15x32xf32> -> vector<15x32xf32>
      %49 = arith.addf %41, %48 : vector<15x32xf32>
      %c1_i32_43 = arith.constant 1 : i32
      %50 = arith.addi %arg5, %c1_i32_43 : i32
      %c0_44 = arith.constant 0 : index
      %51 = arith.index_cast %50 : i32 to index
      %c1_45 = arith.constant 1 : index
      %c0_46 = arith.constant 0 : index
      %52 = vector.load %arg1[%c0_44, %51, %c1_45, %c0_46] : memref<1x19x19x32xbf16, #tpu.memory_space<vmem>>, vector<1x1x15x32xbf16>
      %53 = vector.shape_cast %52 : vector<1x1x15x32xbf16> to vector<15x32xbf16>
      %c6 = arith.constant 6 : index
      %c0_47 = arith.constant 0 : index
      %c0_48 = arith.constant 0 : index
      %54 = vector.load %arg2[%c6, %c0_47, %c0_48] : memref<25x32x32xbf16, #tpu.memory_space<vmem>>, vector<1x32x32xbf16>
      %55 = vector.shape_cast %54 : vector<1x32x32xbf16> to vector<32x32xbf16>
      %cst_49 = arith.constant dense<0.000000e+00> : vector<15x32xf32>
      %56 = tpu.matmul %53, %55, %cst_49 {dimension_numbers = #tpu.dot_dimension_numbers<[1], [0], [0], [1], [0, 0, 1, 1], [], []>} : vector<15x32xbf16>, vector<32x32xbf16>, vector<15x32xf32> -> vector<15x32xf32>
      %57 = arith.addf %49, %56 : vector<15x32xf32>
      %c1_i32_50 = arith.constant 1 : i32
      %58 = arith.addi %arg5, %c1_i32_50 : i32
      %c0_51 = arith.constant 0 : index
      %59 = arith.index_cast %58 : i32 to index
      %c2_52 = arith.constant 2 : index
      %c0_53 = arith.constant 0 : index
      %60 = vector.load %arg1[%c0_51, %59, %c2_52, %c0_53] : memref<1x19x19x32xbf16, #tpu.memory_space<vmem>>, vector<1x1x15x32xbf16>
      %61 = vector.shape_cast %60 : vector<1x1x15x32xbf16> to vector<15x32xbf16>
      %c7 = arith.constant 7 : index
      %c0_54 = arith.constant 0 : index
      %c0_55 = arith.constant 0 : index
      %62 = vector.load %arg2[%c7, %c0_54, %c0_55] : memref<25x32x32xbf16, #tpu.memory_space<vmem>>, vector<1x32x32xbf16>
      %63 = vector.shape_cast %62 : vector<1x32x32xbf16> to vector<32x32xbf16>
      %cst_56 = arith.constant dense<0.000000e+00> : vector<15x32xf32>
      %64 = tpu.matmul %61, %63, %cst_56 {dimension_numbers = #tpu.dot_dimension_numbers<[1], [0], [0], [1], [0, 0, 1, 1], [], []>} : vector<15x32xbf16>, vector<32x32xbf16>, vector<15x32xf32> -> vector<15x32xf32>
      %65 = arith.addf %57, %64 : vector<15x32xf32>
      %c1_i32_57 = arith.constant 1 : i32
      %66 = arith.addi %arg5, %c1_i32_57 : i32
      %c0_58 = arith.constant 0 : index
      %67 = arith.index_cast %66 : i32 to index
      %c3_59 = arith.constant 3 : index
      %c0_60 = arith.constant 0 : index
      %68 = vector.load %arg1[%c0_58, %67, %c3_59, %c0_60] : memref<1x19x19x32xbf16, #tpu.memory_space<vmem>>, vector<1x1x15x32xbf16>
      %69 = vector.shape_cast %68 : vector<1x1x15x32xbf16> to vector<15x32xbf16>
      %c8 = arith.constant 8 : index
      %c0_61 = arith.constant 0 : index
      %c0_62 = arith.constant 0 : index
      %70 = vector.load %arg2[%c8, %c0_61, %c0_62] : memref<25x32x32xbf16, #tpu.memory_space<vmem>>, vector<1x32x32xbf16>
      %71 = vector.shape_cast %70 : vector<1x32x32xbf16> to vector<32x32xbf16>
      %cst_63 = arith.constant dense<0.000000e+00> : vector<15x32xf32>
      %72 = tpu.matmul %69, %71, %cst_63 {dimension_numbers = #tpu.dot_dimension_numbers<[1], [0], [0], [1], [0, 0, 1, 1], [], []>} : vector<15x32xbf16>, vector<32x32xbf16>, vector<15x32xf32> -> vector<15x32xf32>
      %73 = arith.addf %65, %72 : vector<15x32xf32>
      %c1_i32_64 = arith.constant 1 : i32
      %74 = arith.addi %arg5, %c1_i32_64 : i32
      %c0_65 = arith.constant 0 : index
      %75 = arith.index_cast %74 : i32 to index
      %c4_66 = arith.constant 4 : index
      %c0_67 = arith.constant 0 : index
      %76 = vector.load %arg1[%c0_65, %75, %c4_66, %c0_67] : memref<1x19x19x32xbf16, #tpu.memory_space<vmem>>, vector<1x1x15x32xbf16>
      %77 = vector.shape_cast %76 : vector<1x1x15x32xbf16> to vector<15x32xbf16>
      %c9 = arith.constant 9 : index
      %c0_68 = arith.constant 0 : index
      %c0_69 = arith.constant 0 : index
      %78 = vector.load %arg2[%c9, %c0_68, %c0_69] : memref<25x32x32xbf16, #tpu.memory_space<vmem>>, vector<1x32x32xbf16>
      %79 = vector.shape_cast %78 : vector<1x32x32xbf16> to vector<32x32xbf16>
      %cst_70 = arith.constant dense<0.000000e+00> : vector<15x32xf32>
      %80 = tpu.matmul %77, %79, %cst_70 {dimension_numbers = #tpu.dot_dimension_numbers<[1], [0], [0], [1], [0, 0, 1, 1], [], []>} : vector<15x32xbf16>, vector<32x32xbf16>, vector<15x32xf32> -> vector<15x32xf32>
      %81 = arith.addf %73, %80 : vector<15x32xf32>
      %c2_i32 = arith.constant 2 : i32
      %82 = arith.addi %arg5, %c2_i32 : i32
      %c0_71 = arith.constant 0 : index
      %83 = arith.index_cast %82 : i32 to index
      %c0_72 = arith.constant 0 : index
      %c0_73 = arith.constant 0 : index
      %84 = vector.load %arg1[%c0_71, %83, %c0_72, %c0_73] : memref<1x19x19x32xbf16, #tpu.memory_space<vmem>>, vector<1x1x15x32xbf16>
      %85 = vector.shape_cast %84 : vector<1x1x15x32xbf16> to vector<15x32xbf16>
      %c10 = arith.constant 10 : index
      %c0_74 = arith.constant 0 : index
      %c0_75 = arith.constant 0 : index
      %86 = vector.load %arg2[%c10, %c0_74, %c0_75] : memref<25x32x32xbf16, #tpu.memory_space<vmem>>, vector<1x32x32xbf16>
      %87 = vector.shape_cast %86 : vector<1x32x32xbf16> to vector<32x32xbf16>
      %cst_76 = arith.constant dense<0.000000e+00> : vector<15x32xf32>
      %88 = tpu.matmul %85, %87, %cst_76 {dimension_numbers = #tpu.dot_dimension_numbers<[1], [0], [0], [1], [0, 0, 1, 1], [], []>} : vector<15x32xbf16>, vector<32x32xbf16>, vector<15x32xf32> -> vector<15x32xf32>
      %89 = arith.addf %81, %88 : vector<15x32xf32>
      %c2_i32_77 = arith.constant 2 : i32
      %90 = arith.addi %arg5, %c2_i32_77 : i32
      %c0_78 = arith.constant 0 : index
      %91 = arith.index_cast %90 : i32 to index
      %c1_79 = arith.constant 1 : index
      %c0_80 = arith.constant 0 : index
      %92 = vector.load %arg1[%c0_78, %91, %c1_79, %c0_80] : memref<1x19x19x32xbf16, #tpu.memory_space<vmem>>, vector<1x1x15x32xbf16>
      %93 = vector.shape_cast %92 : vector<1x1x15x32xbf16> to vector<15x32xbf16>
      %c11 = arith.constant 11 : index
      %c0_81 = arith.constant 0 : index
      %c0_82 = arith.constant 0 : index
      %94 = vector.load %arg2[%c11, %c0_81, %c0_82] : memref<25x32x32xbf16, #tpu.memory_space<vmem>>, vector<1x32x32xbf16>
      %95 = vector.shape_cast %94 : vector<1x32x32xbf16> to vector<32x32xbf16>
      %cst_83 = arith.constant dense<0.000000e+00> : vector<15x32xf32>
      %96 = tpu.matmul %93, %95, %cst_83 {dimension_numbers = #tpu.dot_dimension_numbers<[1], [0], [0], [1], [0, 0, 1, 1], [], []>} : vector<15x32xbf16>, vector<32x32xbf16>, vector<15x32xf32> -> vector<15x32xf32>
      %97 = arith.addf %89, %96 : vector<15x32xf32>
      %c2_i32_84 = arith.constant 2 : i32
      %98 = arith.addi %arg5, %c2_i32_84 : i32
      %c0_85 = arith.constant 0 : index
      %99 = arith.index_cast %98 : i32 to index
      %c2_86 = arith.constant 2 : index
      %c0_87 = arith.constant 0 : index
      %100 = vector.load %arg1[%c0_85, %99, %c2_86, %c0_87] : memref<1x19x19x32xbf16, #tpu.memory_space<vmem>>, vector<1x1x15x32xbf16>
      %101 = vector.shape_cast %100 : vector<1x1x15x32xbf16> to vector<15x32xbf16>
      %c12 = arith.constant 12 : index
      %c0_88 = arith.constant 0 : index
      %c0_89 = arith.constant 0 : index
      %102 = vector.load %arg2[%c12, %c0_88, %c0_89] : memref<25x32x32xbf16, #tpu.memory_space<vmem>>, vector<1x32x32xbf16>
      %103 = vector.shape_cast %102 : vector<1x32x32xbf16> to vector<32x32xbf16>
      %cst_90 = arith.constant dense<0.000000e+00> : vector<15x32xf32>
      %104 = tpu.matmul %101, %103, %cst_90 {dimension_numbers = #tpu.dot_dimension_numbers<[1], [0], [0], [1], [0, 0, 1, 1], [], []>} : vector<15x32xbf16>, vector<32x32xbf16>, vector<15x32xf32> -> vector<15x32xf32>
      %105 = arith.addf %97, %104 : vector<15x32xf32>
      %c2_i32_91 = arith.constant 2 : i32
      %106 = arith.addi %arg5, %c2_i32_91 : i32
      %c0_92 = arith.constant 0 : index
      %107 = arith.index_cast %106 : i32 to index
      %c3_93 = arith.constant 3 : index
      %c0_94 = arith.constant 0 : index
      %108 = vector.load %arg1[%c0_92, %107, %c3_93, %c0_94] : memref<1x19x19x32xbf16, #tpu.memory_space<vmem>>, vector<1x1x15x32xbf16>
      %109 = vector.shape_cast %108 : vector<1x1x15x32xbf16> to vector<15x32xbf16>
      %c13 = arith.constant 13 : index
      %c0_95 = arith.constant 0 : index
      %c0_96 = arith.constant 0 : index
      %110 = vector.load %arg2[%c13, %c0_95, %c0_96] : memref<25x32x32xbf16, #tpu.memory_space<vmem>>, vector<1x32x32xbf16>
      %111 = vector.shape_cast %110 : vector<1x32x32xbf16> to vector<32x32xbf16>
      %cst_97 = arith.constant dense<0.000000e+00> : vector<15x32xf32>
      %112 = tpu.matmul %109, %111, %cst_97 {dimension_numbers = #tpu.dot_dimension_numbers<[1], [0], [0], [1], [0, 0, 1, 1], [], []>} : vector<15x32xbf16>, vector<32x32xbf16>, vector<15x32xf32> -> vector<15x32xf32>
      %113 = arith.addf %105, %112 : vector<15x32xf32>
      %c2_i32_98 = arith.constant 2 : i32
      %114 = arith.addi %arg5, %c2_i32_98 : i32
      %c0_99 = arith.constant 0 : index
      %115 = arith.index_cast %114 : i32 to index
      %c4_100 = arith.constant 4 : index
      %c0_101 = arith.constant 0 : index
      %116 = vector.load %arg1[%c0_99, %115, %c4_100, %c0_101] : memref<1x19x19x32xbf16, #tpu.memory_space<vmem>>, vector<1x1x15x32xbf16>
      %117 = vector.shape_cast %116 : vector<1x1x15x32xbf16> to vector<15x32xbf16>
      %c14 = arith.constant 14 : index
      %c0_102 = arith.constant 0 : index
      %c0_103 = arith.constant 0 : index
      %118 = vector.load %arg2[%c14, %c0_102, %c0_103] : memref<25x32x32xbf16, #tpu.memory_space<vmem>>, vector<1x32x32xbf16>
      %119 = vector.shape_cast %118 : vector<1x32x32xbf16> to vector<32x32xbf16>
      %cst_104 = arith.constant dense<0.000000e+00> : vector<15x32xf32>
      %120 = tpu.matmul %117, %119, %cst_104 {dimension_numbers = #tpu.dot_dimension_numbers<[1], [0], [0], [1], [0, 0, 1, 1], [], []>} : vector<15x32xbf16>, vector<32x32xbf16>, vector<15x32xf32> -> vector<15x32xf32>
      %121 = arith.addf %113, %120 : vector<15x32xf32>
      %c3_i32 = arith.constant 3 : i32
      %122 = arith.addi %arg5, %c3_i32 : i32
      %c0_105 = arith.constant 0 : index
      %123 = arith.index_cast %122 : i32 to index
      %c0_106 = arith.constant 0 : index
      %c0_107 = arith.constant 0 : index
      %124 = vector.load %arg1[%c0_105, %123, %c0_106, %c0_107] : memref<1x19x19x32xbf16, #tpu.memory_space<vmem>>, vector<1x1x15x32xbf16>
      %125 = vector.shape_cast %124 : vector<1x1x15x32xbf16> to vector<15x32xbf16>
      %c15 = arith.constant 15 : index
      %c0_108 = arith.constant 0 : index
      %c0_109 = arith.constant 0 : index
      %126 = vector.load %arg2[%c15, %c0_108, %c0_109] : memref<25x32x32xbf16, #tpu.memory_space<vmem>>, vector<1x32x32xbf16>
      %127 = vector.shape_cast %126 : vector<1x32x32xbf16> to vector<32x32xbf16>
      %cst_110 = arith.constant dense<0.000000e+00> : vector<15x32xf32>
      %128 = tpu.matmul %125, %127, %cst_110 {dimension_numbers = #tpu.dot_dimension_numbers<[1], [0], [0], [1], [0, 0, 1, 1], [], []>} : vector<15x32xbf16>, vector<32x32xbf16>, vector<15x32xf32> -> vector<15x32xf32>
      %129 = arith.addf %121, %128 : vector<15x32xf32>
      %c3_i32_111 = arith.constant 3 : i32
      %130 = arith.addi %arg5, %c3_i32_111 : i32
      %c0_112 = arith.constant 0 : index
      %131 = arith.index_cast %130 : i32 to index
      %c1_113 = arith.constant 1 : index
      %c0_114 = arith.constant 0 : index
      %132 = vector.load %arg1[%c0_112, %131, %c1_113, %c0_114] : memref<1x19x19x32xbf16, #tpu.memory_space<vmem>>, vector<1x1x15x32xbf16>
      %133 = vector.shape_cast %132 : vector<1x1x15x32xbf16> to vector<15x32xbf16>
      %c16 = arith.constant 16 : index
      %c0_115 = arith.constant 0 : index
      %c0_116 = arith.constant 0 : index
      %134 = vector.load %arg2[%c16, %c0_115, %c0_116] : memref<25x32x32xbf16, #tpu.memory_space<vmem>>, vector<1x32x32xbf16>
      %135 = vector.shape_cast %134 : vector<1x32x32xbf16> to vector<32x32xbf16>
      %cst_117 = arith.constant dense<0.000000e+00> : vector<15x32xf32>
      %136 = tpu.matmul %133, %135, %cst_117 {dimension_numbers = #tpu.dot_dimension_numbers<[1], [0], [0], [1], [0, 0, 1, 1], [], []>} : vector<15x32xbf16>, vector<32x32xbf16>, vector<15x32xf32> -> vector<15x32xf32>
      %137 = arith.addf %129, %136 : vector<15x32xf32>
      %c3_i32_118 = arith.constant 3 : i32
      %138 = arith.addi %arg5, %c3_i32_118 : i32
      %c0_119 = arith.constant 0 : index
      %139 = arith.index_cast %138 : i32 to index
      %c2_120 = arith.constant 2 : index
      %c0_121 = arith.constant 0 : index
      %140 = vector.load %arg1[%c0_119, %139, %c2_120, %c0_121] : memref<1x19x19x32xbf16, #tpu.memory_space<vmem>>, vector<1x1x15x32xbf16>
      %141 = vector.shape_cast %140 : vector<1x1x15x32xbf16> to vector<15x32xbf16>
      %c17 = arith.constant 17 : index
      %c0_122 = arith.constant 0 : index
      %c0_123 = arith.constant 0 : index
      %142 = vector.load %arg2[%c17, %c0_122, %c0_123] : memref<25x32x32xbf16, #tpu.memory_space<vmem>>, vector<1x32x32xbf16>
      %143 = vector.shape_cast %142 : vector<1x32x32xbf16> to vector<32x32xbf16>
      %cst_124 = arith.constant dense<0.000000e+00> : vector<15x32xf32>
      %144 = tpu.matmul %141, %143, %cst_124 {dimension_numbers = #tpu.dot_dimension_numbers<[1], [0], [0], [1], [0, 0, 1, 1], [], []>} : vector<15x32xbf16>, vector<32x32xbf16>, vector<15x32xf32> -> vector<15x32xf32>
      %145 = arith.addf %137, %144 : vector<15x32xf32>
      %c3_i32_125 = arith.constant 3 : i32
      %146 = arith.addi %arg5, %c3_i32_125 : i32
      %c0_126 = arith.constant 0 : index
      %147 = arith.index_cast %146 : i32 to index
      %c3_127 = arith.constant 3 : index
      %c0_128 = arith.constant 0 : index
      %148 = vector.load %arg1[%c0_126, %147, %c3_127, %c0_128] : memref<1x19x19x32xbf16, #tpu.memory_space<vmem>>, vector<1x1x15x32xbf16>
      %149 = vector.shape_cast %148 : vector<1x1x15x32xbf16> to vector<15x32xbf16>
      %c18 = arith.constant 18 : index
      %c0_129 = arith.constant 0 : index
      %c0_130 = arith.constant 0 : index
      %150 = vector.load %arg2[%c18, %c0_129, %c0_130] : memref<25x32x32xbf16, #tpu.memory_space<vmem>>, vector<1x32x32xbf16>
      %151 = vector.shape_cast %150 : vector<1x32x32xbf16> to vector<32x32xbf16>
      %cst_131 = arith.constant dense<0.000000e+00> : vector<15x32xf32>
      %152 = tpu.matmul %149, %151, %cst_131 {dimension_numbers = #tpu.dot_dimension_numbers<[1], [0], [0], [1], [0, 0, 1, 1], [], []>} : vector<15x32xbf16>, vector<32x32xbf16>, vector<15x32xf32> -> vector<15x32xf32>
      %153 = arith.addf %145, %152 : vector<15x32xf32>
      %c3_i32_132 = arith.constant 3 : i32
      %154 = arith.addi %arg5, %c3_i32_132 : i32
      %c0_133 = arith.constant 0 : index
      %155 = arith.index_cast %154 : i32 to index
      %c4_134 = arith.constant 4 : index
      %c0_135 = arith.constant 0 : index
      %156 = vector.load %arg1[%c0_133, %155, %c4_134, %c0_135] : memref<1x19x19x32xbf16, #tpu.memory_space<vmem>>, vector<1x1x15x32xbf16>
      %157 = vector.shape_cast %156 : vector<1x1x15x32xbf16> to vector<15x32xbf16>
      %c19 = arith.constant 19 : index
      %c0_136 = arith.constant 0 : index
      %c0_137 = arith.constant 0 : index
      %158 = vector.load %arg2[%c19, %c0_136, %c0_137] : memref<25x32x32xbf16, #tpu.memory_space<vmem>>, vector<1x32x32xbf16>
      %159 = vector.shape_cast %158 : vector<1x32x32xbf16> to vector<32x32xbf16>
      %cst_138 = arith.constant dense<0.000000e+00> : vector<15x32xf32>
      %160 = tpu.matmul %157, %159, %cst_138 {dimension_numbers = #tpu.dot_dimension_numbers<[1], [0], [0], [1], [0, 0, 1, 1], [], []>} : vector<15x32xbf16>, vector<32x32xbf16>, vector<15x32xf32> -> vector<15x32xf32>
      %161 = arith.addf %153, %160 : vector<15x32xf32>
      %c4_i32 = arith.constant 4 : i32
      %162 = arith.addi %arg5, %c4_i32 : i32
      %c0_139 = arith.constant 0 : index
      %163 = arith.index_cast %162 : i32 to index
      %c0_140 = arith.constant 0 : index
      %c0_141 = arith.constant 0 : index
      %164 = vector.load %arg1[%c0_139, %163, %c0_140, %c0_141] : memref<1x19x19x32xbf16, #tpu.memory_space<vmem>>, vector<1x1x15x32xbf16>
      %165 = vector.shape_cast %164 : vector<1x1x15x32xbf16> to vector<15x32xbf16>
      %c20 = arith.constant 20 : index
      %c0_142 = arith.constant 0 : index
      %c0_143 = arith.constant 0 : index
      %166 = vector.load %arg2[%c20, %c0_142, %c0_143] : memref<25x32x32xbf16, #tpu.memory_space<vmem>>, vector<1x32x32xbf16>
      %167 = vector.shape_cast %166 : vector<1x32x32xbf16> to vector<32x32xbf16>
      %cst_144 = arith.constant dense<0.000000e+00> : vector<15x32xf32>
      %168 = tpu.matmul %165, %167, %cst_144 {dimension_numbers = #tpu.dot_dimension_numbers<[1], [0], [0], [1], [0, 0, 1, 1], [], []>} : vector<15x32xbf16>, vector<32x32xbf16>, vector<15x32xf32> -> vector<15x32xf32>
      %169 = arith.addf %161, %168 : vector<15x32xf32>
      %c4_i32_145 = arith.constant 4 : i32
      %170 = arith.addi %arg5, %c4_i32_145 : i32
      %c0_146 = arith.constant 0 : index
      %171 = arith.index_cast %170 : i32 to index
      %c1_147 = arith.constant 1 : index
      %c0_148 = arith.constant 0 : index
      %172 = vector.load %arg1[%c0_146, %171, %c1_147, %c0_148] : memref<1x19x19x32xbf16, #tpu.memory_space<vmem>>, vector<1x1x15x32xbf16>
      %173 = vector.shape_cast %172 : vector<1x1x15x32xbf16> to vector<15x32xbf16>
      %c21 = arith.constant 21 : index
      %c0_149 = arith.constant 0 : index
      %c0_150 = arith.constant 0 : index
      %174 = vector.load %arg2[%c21, %c0_149, %c0_150] : memref<25x32x32xbf16, #tpu.memory_space<vmem>>, vector<1x32x32xbf16>
      %175 = vector.shape_cast %174 : vector<1x32x32xbf16> to vector<32x32xbf16>
      %cst_151 = arith.constant dense<0.000000e+00> : vector<15x32xf32>
      %176 = tpu.matmul %173, %175, %cst_151 {dimension_numbers = #tpu.dot_dimension_numbers<[1], [0], [0], [1], [0, 0, 1, 1], [], []>} : vector<15x32xbf16>, vector<32x32xbf16>, vector<15x32xf32> -> vector<15x32xf32>
      %177 = arith.addf %169, %176 : vector<15x32xf32>
      %c4_i32_152 = arith.constant 4 : i32
      %178 = arith.addi %arg5, %c4_i32_152 : i32
      %c0_153 = arith.constant 0 : index
      %179 = arith.index_cast %178 : i32 to index
      %c2_154 = arith.constant 2 : index
      %c0_155 = arith.constant 0 : index
      %180 = vector.load %arg1[%c0_153, %179, %c2_154, %c0_155] : memref<1x19x19x32xbf16, #tpu.memory_space<vmem>>, vector<1x1x15x32xbf16>
      %181 = vector.shape_cast %180 : vector<1x1x15x32xbf16> to vector<15x32xbf16>
      %c22 = arith.constant 22 : index
      %c0_156 = arith.constant 0 : index
      %c0_157 = arith.constant 0 : index
      %182 = vector.load %arg2[%c22, %c0_156, %c0_157] : memref<25x32x32xbf16, #tpu.memory_space<vmem>>, vector<1x32x32xbf16>
      %183 = vector.shape_cast %182 : vector<1x32x32xbf16> to vector<32x32xbf16>
      %cst_158 = arith.constant dense<0.000000e+00> : vector<15x32xf32>
      %184 = tpu.matmul %181, %183, %cst_158 {dimension_numbers = #tpu.dot_dimension_numbers<[1], [0], [0], [1], [0, 0, 1, 1], [], []>} : vector<15x32xbf16>, vector<32x32xbf16>, vector<15x32xf32> -> vector<15x32xf32>
      %185 = arith.addf %177, %184 : vector<15x32xf32>
      %c4_i32_159 = arith.constant 4 : i32
      %186 = arith.addi %arg5, %c4_i32_159 : i32
      %c0_160 = arith.constant 0 : index
      %187 = arith.index_cast %186 : i32 to index
      %c3_161 = arith.constant 3 : index
      %c0_162 = arith.constant 0 : index
      %188 = vector.load %arg1[%c0_160, %187, %c3_161, %c0_162] : memref<1x19x19x32xbf16, #tpu.memory_space<vmem>>, vector<1x1x15x32xbf16>
      %189 = vector.shape_cast %188 : vector<1x1x15x32xbf16> to vector<15x32xbf16>
      %c23 = arith.constant 23 : index
      %c0_163 = arith.constant 0 : index
      %c0_164 = arith.constant 0 : index
      %190 = vector.load %arg2[%c23, %c0_163, %c0_164] : memref<25x32x32xbf16, #tpu.memory_space<vmem>>, vector<1x32x32xbf16>
      %191 = vector.shape_cast %190 : vector<1x32x32xbf16> to vector<32x32xbf16>
      %cst_165 = arith.constant dense<0.000000e+00> : vector<15x32xf32>
      %192 = tpu.matmul %189, %191, %cst_165 {dimension_numbers = #tpu.dot_dimension_numbers<[1], [0], [0], [1], [0, 0, 1, 1], [], []>} : vector<15x32xbf16>, vector<32x32xbf16>, vector<15x32xf32> -> vector<15x32xf32>
      %193 = arith.addf %185, %192 : vector<15x32xf32>
      %c4_i32_166 = arith.constant 4 : i32
      %194 = arith.addi %arg5, %c4_i32_166 : i32
      %c0_167 = arith.constant 0 : index
      %195 = arith.index_cast %194 : i32 to index
      %c4_168 = arith.constant 4 : index
      %c0_169 = arith.constant 0 : index
      %196 = vector.load %arg1[%c0_167, %195, %c4_168, %c0_169] : memref<1x19x19x32xbf16, #tpu.memory_space<vmem>>, vector<1x1x15x32xbf16>
      %197 = vector.shape_cast %196 : vector<1x1x15x32xbf16> to vector<15x32xbf16>
      %c24 = arith.constant 24 : index
      %c0_170 = arith.constant 0 : index
      %c0_171 = arith.constant 0 : index
      %198 = vector.load %arg2[%c24, %c0_170, %c0_171] : memref<25x32x32xbf16, #tpu.memory_space<vmem>>, vector<1x32x32xbf16>
      %199 = vector.shape_cast %198 : vector<1x32x32xbf16> to vector<32x32xbf16>
      %cst_172 = arith.constant dense<0.000000e+00> : vector<15x32xf32>
      %200 = tpu.matmul %197, %199, %cst_172 {dimension_numbers = #tpu.dot_dimension_numbers<[1], [0], [0], [1], [0, 0, 1, 1], [], []>} : vector<15x32xbf16>, vector<32x32xbf16>, vector<15x32xf32> -> vector<15x32xf32>
      %201 = arith.addf %193, %200 : vector<15x32xf32>
      %c0_173 = arith.constant 0 : index
      %c0_174 = arith.constant 0 : index
      %202 = vector.load %arg3[%c0_173, %c0_174] : memref<1x32xf32, #tpu.memory_space<vmem>>, vector<1x32xf32>
      %203 = vector.broadcast %202 : vector<1x32xf32> to vector<15x32xf32>
      %204 = arith.addf %201, %203 : vector<15x32xf32>
      %cst_175 = arith.constant 0.000000e+00 : f32
      %205 = vector.broadcast %cst_175 : f32 to vector<15x32xf32>
      %206 = arith.maximumf %204, %205 : vector<15x32xf32>
      %207 = arith.truncf %206 : vector<15x32xf32> to vector<15x32xbf16>
      %c0_176 = arith.constant 0 : index
      %208 = arith.index_cast %arg5 : i32 to index
      %c0_177 = arith.constant 0 : index
      %c0_178 = arith.constant 0 : index
      %209 = vector.load %arg4[%c0_176, %208, %c0_177, %c0_178] : memref<1x15x15x32xbf16, #tpu.memory_space<vmem>>, vector<1x1x15x32xbf16>
      %210 = vector.shape_cast %209 : vector<1x1x15x32xbf16> to vector<15x32xbf16>
      %211 = vector.shape_cast %207 : vector<15x32xbf16> to vector<1x1x15x32xbf16>
      tpu.vector_store %arg4[%c0_176, %208, %c0_177, %c0_178], %211 {strides = array<i32>} : memref<1x15x15x32xbf16, #tpu.memory_space<vmem>>, vector<1x1x15x32xbf16>,
    }
    %c15_i32_0 = arith.constant 15 : i32
    return
  }
  func.func @transform_0(%arg0: i32) -> (i32, i32, i32, i32) {
    %c0_i32 = arith.constant 0 : i32
    %c0_i32_0 = arith.constant 0 : i32
    %c0_i32_1 = arith.constant 0 : i32
    %c0_i32_2 = arith.constant 0 : i32
    return %arg0, %c0_i32, %c0_i32_0, %c0_i32_1 : i32, i32, i32, i32
  }
  func.func @transform_1(%arg0: i32) -> (i32, i32, i32) {
    %c0_i32 = arith.constant 0 : i32
    %c0_i32_0 = arith.constant 0 : i32
    %c0_i32_1 = arith.constant 0 : i32
    %c0_i32_2 = arith.constant 0 : i32
    return %c0_i32, %c0_i32_0, %c0_i32_1 : i32, i32, i32
  }
  func.func @transform_2(%arg0: i32) -> (i32, i32) {
    %c0_i32 = arith.constant 0 : i32
    %c0_i32_0 = arith.constant 0 : i32
    %c0_i32_1 = arith.constant 0 : i32
    return %c0_i32, %c0_i32_0 : i32, i32
  }
  func.func @transform_3(%arg0: i32) -> (i32, i32, i32, i32) {
    %c0_i32 = arith.constant 0 : i32
    %c0_i32_0 = arith.constant 0 : i32
    %c0_i32_1 = arith.constant 0 : i32
    %c0_i32_2 = arith.constant 0 : i32
    return %arg0, %c0_i32, %c0_i32_0, %c0_i32_1 : i32, i32, i32, i32
  }
}

module attributes {stable_mosaic.version = 11 : i64} {
  func.func @_conv5x5_kernel(%arg0: i32, %arg1: memref<1x11x11x32xbf16, #tpu.memory_space<vmem>>, %arg2: memref<25x32x64xbf16, #tpu.memory_space<vmem>>, %arg3: memref<1x64xf32, #tpu.memory_space<vmem>>, %arg4: memref<1x7x7x64xbf16, #tpu.memory_space<vmem>>) attributes {dimension_semantics = [#tpu.dimension_semantics<parallel>], iteration_bounds = array<i64: 2>, scalar_prefetch = 0 : i64, scratch_operands = 0 : i64, tpu.core_type = #tpu.core_type<tc>, window_params = [{transform_indices = @transform_0, window_bounds = array<i64: 1, 11, 11, 32>}, {pipeline_mode = #tpu.pipeline_mode<synchronous>, transform_indices = @transform_1, window_bounds = array<i64: 25, 32, 64>}, {pipeline_mode = #tpu.pipeline_mode<synchronous>, transform_indices = @transform_2, window_bounds = array<i64: 1, 64>}, {transform_indices = @transform_3, window_bounds = array<i64: 1, 7, 7, 64>}]} {
    %c0_i32 = arith.constant 0 : i32
    %c7_i32 = arith.constant 7 : i32
    %0 = arith.addi %c0_i32, %c7_i32 : i32
    %c1_i32 = arith.constant 1 : i32
    scf.for %arg5 = %c0_i32 to %0 step %c1_i32  : i32 {
      %cst = arith.constant 0.000000e+00 : f32
      %1 = vector.broadcast %cst : f32 to vector<7x64xf32>
      %c0_i32_1 = arith.constant 0 : i32
      %2 = arith.addi %arg5, %c0_i32_1 : i32
      %c0 = arith.constant 0 : index
      %3 = arith.index_cast %2 : i32 to index
      %c0_2 = arith.constant 0 : index
      %c0_3 = arith.constant 0 : index
      %4 = vector.load %arg1[%c0, %3, %c0_2, %c0_3] : memref<1x11x11x32xbf16, #tpu.memory_space<vmem>>, vector<1x1x7x32xbf16>
      %5 = vector.shape_cast %4 : vector<1x1x7x32xbf16> to vector<7x32xbf16>
      %c0_4 = arith.constant 0 : index
      %c0_5 = arith.constant 0 : index
      %c0_6 = arith.constant 0 : index
      %6 = vector.load %arg2[%c0_4, %c0_5, %c0_6] : memref<25x32x64xbf16, #tpu.memory_space<vmem>>, vector<1x32x64xbf16>
      %7 = vector.shape_cast %6 : vector<1x32x64xbf16> to vector<32x64xbf16>
      %cst_7 = arith.constant dense<0.000000e+00> : vector<7x64xf32>
      %8 = tpu.matmul %5, %7, %cst_7 {dimension_numbers = #tpu.dot_dimension_numbers<[1], [0], [0], [1], [0, 0, 1, 1], [], []>} : vector<7x32xbf16>, vector<32x64xbf16>, vector<7x64xf32> -> vector<7x64xf32>
      %9 = arith.addf %1, %8 : vector<7x64xf32>
      %c0_i32_8 = arith.constant 0 : i32
      %10 = arith.addi %arg5, %c0_i32_8 : i32
      %c0_9 = arith.constant 0 : index
      %11 = arith.index_cast %10 : i32 to index
      %c1 = arith.constant 1 : index
      %c0_10 = arith.constant 0 : index
      %12 = vector.load %arg1[%c0_9, %11, %c1, %c0_10] : memref<1x11x11x32xbf16, #tpu.memory_space<vmem>>, vector<1x1x7x32xbf16>
      %13 = vector.shape_cast %12 : vector<1x1x7x32xbf16> to vector<7x32xbf16>
      %c1_11 = arith.constant 1 : index
      %c0_12 = arith.constant 0 : index
      %c0_13 = arith.constant 0 : index
      %14 = vector.load %arg2[%c1_11, %c0_12, %c0_13] : memref<25x32x64xbf16, #tpu.memory_space<vmem>>, vector<1x32x64xbf16>
      %15 = vector.shape_cast %14 : vector<1x32x64xbf16> to vector<32x64xbf16>
      %cst_14 = arith.constant dense<0.000000e+00> : vector<7x64xf32>
      %16 = tpu.matmul %13, %15, %cst_14 {dimension_numbers = #tpu.dot_dimension_numbers<[1], [0], [0], [1], [0, 0, 1, 1], [], []>} : vector<7x32xbf16>, vector<32x64xbf16>, vector<7x64xf32> -> vector<7x64xf32>
      %17 = arith.addf %9, %16 : vector<7x64xf32>
      %c0_i32_15 = arith.constant 0 : i32
      %18 = arith.addi %arg5, %c0_i32_15 : i32
      %c0_16 = arith.constant 0 : index
      %19 = arith.index_cast %18 : i32 to index
      %c2 = arith.constant 2 : index
      %c0_17 = arith.constant 0 : index
      %20 = vector.load %arg1[%c0_16, %19, %c2, %c0_17] : memref<1x11x11x32xbf16, #tpu.memory_space<vmem>>, vector<1x1x7x32xbf16>
      %21 = vector.shape_cast %20 : vector<1x1x7x32xbf16> to vector<7x32xbf16>
      %c2_18 = arith.constant 2 : index
      %c0_19 = arith.constant 0 : index
      %c0_20 = arith.constant 0 : index
      %22 = vector.load %arg2[%c2_18, %c0_19, %c0_20] : memref<25x32x64xbf16, #tpu.memory_space<vmem>>, vector<1x32x64xbf16>
      %23 = vector.shape_cast %22 : vector<1x32x64xbf16> to vector<32x64xbf16>
      %cst_21 = arith.constant dense<0.000000e+00> : vector<7x64xf32>
      %24 = tpu.matmul %21, %23, %cst_21 {dimension_numbers = #tpu.dot_dimension_numbers<[1], [0], [0], [1], [0, 0, 1, 1], [], []>} : vector<7x32xbf16>, vector<32x64xbf16>, vector<7x64xf32> -> vector<7x64xf32>
      %25 = arith.addf %17, %24 : vector<7x64xf32>
      %c0_i32_22 = arith.constant 0 : i32
      %26 = arith.addi %arg5, %c0_i32_22 : i32
      %c0_23 = arith.constant 0 : index
      %27 = arith.index_cast %26 : i32 to index
      %c3 = arith.constant 3 : index
      %c0_24 = arith.constant 0 : index
      %28 = vector.load %arg1[%c0_23, %27, %c3, %c0_24] : memref<1x11x11x32xbf16, #tpu.memory_space<vmem>>, vector<1x1x7x32xbf16>
      %29 = vector.shape_cast %28 : vector<1x1x7x32xbf16> to vector<7x32xbf16>
      %c3_25 = arith.constant 3 : index
      %c0_26 = arith.constant 0 : index
      %c0_27 = arith.constant 0 : index
      %30 = vector.load %arg2[%c3_25, %c0_26, %c0_27] : memref<25x32x64xbf16, #tpu.memory_space<vmem>>, vector<1x32x64xbf16>
      %31 = vector.shape_cast %30 : vector<1x32x64xbf16> to vector<32x64xbf16>
      %cst_28 = arith.constant dense<0.000000e+00> : vector<7x64xf32>
      %32 = tpu.matmul %29, %31, %cst_28 {dimension_numbers = #tpu.dot_dimension_numbers<[1], [0], [0], [1], [0, 0, 1, 1], [], []>} : vector<7x32xbf16>, vector<32x64xbf16>, vector<7x64xf32> -> vector<7x64xf32>
      %33 = arith.addf %25, %32 : vector<7x64xf32>
      %c0_i32_29 = arith.constant 0 : i32
      %34 = arith.addi %arg5, %c0_i32_29 : i32
      %c0_30 = arith.constant 0 : index
      %35 = arith.index_cast %34 : i32 to index
      %c4 = arith.constant 4 : index
      %c0_31 = arith.constant 0 : index
      %36 = vector.load %arg1[%c0_30, %35, %c4, %c0_31] : memref<1x11x11x32xbf16, #tpu.memory_space<vmem>>, vector<1x1x7x32xbf16>
      %37 = vector.shape_cast %36 : vector<1x1x7x32xbf16> to vector<7x32xbf16>
      %c4_32 = arith.constant 4 : index
      %c0_33 = arith.constant 0 : index
      %c0_34 = arith.constant 0 : index
      %38 = vector.load %arg2[%c4_32, %c0_33, %c0_34] : memref<25x32x64xbf16, #tpu.memory_space<vmem>>, vector<1x32x64xbf16>
      %39 = vector.shape_cast %38 : vector<1x32x64xbf16> to vector<32x64xbf16>
      %cst_35 = arith.constant dense<0.000000e+00> : vector<7x64xf32>
      %40 = tpu.matmul %37, %39, %cst_35 {dimension_numbers = #tpu.dot_dimension_numbers<[1], [0], [0], [1], [0, 0, 1, 1], [], []>} : vector<7x32xbf16>, vector<32x64xbf16>, vector<7x64xf32> -> vector<7x64xf32>
      %41 = arith.addf %33, %40 : vector<7x64xf32>
      %c1_i32_36 = arith.constant 1 : i32
      %42 = arith.addi %arg5, %c1_i32_36 : i32
      %c0_37 = arith.constant 0 : index
      %43 = arith.index_cast %42 : i32 to index
      %c0_38 = arith.constant 0 : index
      %c0_39 = arith.constant 0 : index
      %44 = vector.load %arg1[%c0_37, %43, %c0_38, %c0_39] : memref<1x11x11x32xbf16, #tpu.memory_space<vmem>>, vector<1x1x7x32xbf16>
      %45 = vector.shape_cast %44 : vector<1x1x7x32xbf16> to vector<7x32xbf16>
      %c5 = arith.constant 5 : index
      %c0_40 = arith.constant 0 : index
      %c0_41 = arith.constant 0 : index
      %46 = vector.load %arg2[%c5, %c0_40, %c0_41] : memref<25x32x64xbf16, #tpu.memory_space<vmem>>, vector<1x32x64xbf16>
      %47 = vector.shape_cast %46 : vector<1x32x64xbf16> to vector<32x64xbf16>
      %cst_42 = arith.constant dense<0.000000e+00> : vector<7x64xf32>
      %48 = tpu.matmul %45, %47, %cst_42 {dimension_numbers = #tpu.dot_dimension_numbers<[1], [0], [0], [1], [0, 0, 1, 1], [], []>} : vector<7x32xbf16>, vector<32x64xbf16>, vector<7x64xf32> -> vector<7x64xf32>
      %49 = arith.addf %41, %48 : vector<7x64xf32>
      %c1_i32_43 = arith.constant 1 : i32
      %50 = arith.addi %arg5, %c1_i32_43 : i32
      %c0_44 = arith.constant 0 : index
      %51 = arith.index_cast %50 : i32 to index
      %c1_45 = arith.constant 1 : index
      %c0_46 = arith.constant 0 : index
      %52 = vector.load %arg1[%c0_44, %51, %c1_45, %c0_46] : memref<1x11x11x32xbf16, #tpu.memory_space<vmem>>, vector<1x1x7x32xbf16>
      %53 = vector.shape_cast %52 : vector<1x1x7x32xbf16> to vector<7x32xbf16>
      %c6 = arith.constant 6 : index
      %c0_47 = arith.constant 0 : index
      %c0_48 = arith.constant 0 : index
      %54 = vector.load %arg2[%c6, %c0_47, %c0_48] : memref<25x32x64xbf16, #tpu.memory_space<vmem>>, vector<1x32x64xbf16>
      %55 = vector.shape_cast %54 : vector<1x32x64xbf16> to vector<32x64xbf16>
      %cst_49 = arith.constant dense<0.000000e+00> : vector<7x64xf32>
      %56 = tpu.matmul %53, %55, %cst_49 {dimension_numbers = #tpu.dot_dimension_numbers<[1], [0], [0], [1], [0, 0, 1, 1], [], []>} : vector<7x32xbf16>, vector<32x64xbf16>, vector<7x64xf32> -> vector<7x64xf32>
      %57 = arith.addf %49, %56 : vector<7x64xf32>
      %c1_i32_50 = arith.constant 1 : i32
      %58 = arith.addi %arg5, %c1_i32_50 : i32
      %c0_51 = arith.constant 0 : index
      %59 = arith.index_cast %58 : i32 to index
      %c2_52 = arith.constant 2 : index
      %c0_53 = arith.constant 0 : index
      %60 = vector.load %arg1[%c0_51, %59, %c2_52, %c0_53] : memref<1x11x11x32xbf16, #tpu.memory_space<vmem>>, vector<1x1x7x32xbf16>
      %61 = vector.shape_cast %60 : vector<1x1x7x32xbf16> to vector<7x32xbf16>
      %c7 = arith.constant 7 : index
      %c0_54 = arith.constant 0 : index
      %c0_55 = arith.constant 0 : index
      %62 = vector.load %arg2[%c7, %c0_54, %c0_55] : memref<25x32x64xbf16, #tpu.memory_space<vmem>>, vector<1x32x64xbf16>
      %63 = vector.shape_cast %62 : vector<1x32x64xbf16> to vector<32x64xbf16>
      %cst_56 = arith.constant dense<0.000000e+00> : vector<7x64xf32>
      %64 = tpu.matmul %61, %63, %cst_56 {dimension_numbers = #tpu.dot_dimension_numbers<[1], [0], [0], [1], [0, 0, 1, 1], [], []>} : vector<7x32xbf16>, vector<32x64xbf16>, vector<7x64xf32> -> vector<7x64xf32>
      %65 = arith.addf %57, %64 : vector<7x64xf32>
      %c1_i32_57 = arith.constant 1 : i32
      %66 = arith.addi %arg5, %c1_i32_57 : i32
      %c0_58 = arith.constant 0 : index
      %67 = arith.index_cast %66 : i32 to index
      %c3_59 = arith.constant 3 : index
      %c0_60 = arith.constant 0 : index
      %68 = vector.load %arg1[%c0_58, %67, %c3_59, %c0_60] : memref<1x11x11x32xbf16, #tpu.memory_space<vmem>>, vector<1x1x7x32xbf16>
      %69 = vector.shape_cast %68 : vector<1x1x7x32xbf16> to vector<7x32xbf16>
      %c8 = arith.constant 8 : index
      %c0_61 = arith.constant 0 : index
      %c0_62 = arith.constant 0 : index
      %70 = vector.load %arg2[%c8, %c0_61, %c0_62] : memref<25x32x64xbf16, #tpu.memory_space<vmem>>, vector<1x32x64xbf16>
      %71 = vector.shape_cast %70 : vector<1x32x64xbf16> to vector<32x64xbf16>
      %cst_63 = arith.constant dense<0.000000e+00> : vector<7x64xf32>
      %72 = tpu.matmul %69, %71, %cst_63 {dimension_numbers = #tpu.dot_dimension_numbers<[1], [0], [0], [1], [0, 0, 1, 1], [], []>} : vector<7x32xbf16>, vector<32x64xbf16>, vector<7x64xf32> -> vector<7x64xf32>
      %73 = arith.addf %65, %72 : vector<7x64xf32>
      %c1_i32_64 = arith.constant 1 : i32
      %74 = arith.addi %arg5, %c1_i32_64 : i32
      %c0_65 = arith.constant 0 : index
      %75 = arith.index_cast %74 : i32 to index
      %c4_66 = arith.constant 4 : index
      %c0_67 = arith.constant 0 : index
      %76 = vector.load %arg1[%c0_65, %75, %c4_66, %c0_67] : memref<1x11x11x32xbf16, #tpu.memory_space<vmem>>, vector<1x1x7x32xbf16>
      %77 = vector.shape_cast %76 : vector<1x1x7x32xbf16> to vector<7x32xbf16>
      %c9 = arith.constant 9 : index
      %c0_68 = arith.constant 0 : index
      %c0_69 = arith.constant 0 : index
      %78 = vector.load %arg2[%c9, %c0_68, %c0_69] : memref<25x32x64xbf16, #tpu.memory_space<vmem>>, vector<1x32x64xbf16>
      %79 = vector.shape_cast %78 : vector<1x32x64xbf16> to vector<32x64xbf16>
      %cst_70 = arith.constant dense<0.000000e+00> : vector<7x64xf32>
      %80 = tpu.matmul %77, %79, %cst_70 {dimension_numbers = #tpu.dot_dimension_numbers<[1], [0], [0], [1], [0, 0, 1, 1], [], []>} : vector<7x32xbf16>, vector<32x64xbf16>, vector<7x64xf32> -> vector<7x64xf32>
      %81 = arith.addf %73, %80 : vector<7x64xf32>
      %c2_i32 = arith.constant 2 : i32
      %82 = arith.addi %arg5, %c2_i32 : i32
      %c0_71 = arith.constant 0 : index
      %83 = arith.index_cast %82 : i32 to index
      %c0_72 = arith.constant 0 : index
      %c0_73 = arith.constant 0 : index
      %84 = vector.load %arg1[%c0_71, %83, %c0_72, %c0_73] : memref<1x11x11x32xbf16, #tpu.memory_space<vmem>>, vector<1x1x7x32xbf16>
      %85 = vector.shape_cast %84 : vector<1x1x7x32xbf16> to vector<7x32xbf16>
      %c10 = arith.constant 10 : index
      %c0_74 = arith.constant 0 : index
      %c0_75 = arith.constant 0 : index
      %86 = vector.load %arg2[%c10, %c0_74, %c0_75] : memref<25x32x64xbf16, #tpu.memory_space<vmem>>, vector<1x32x64xbf16>
      %87 = vector.shape_cast %86 : vector<1x32x64xbf16> to vector<32x64xbf16>
      %cst_76 = arith.constant dense<0.000000e+00> : vector<7x64xf32>
      %88 = tpu.matmul %85, %87, %cst_76 {dimension_numbers = #tpu.dot_dimension_numbers<[1], [0], [0], [1], [0, 0, 1, 1], [], []>} : vector<7x32xbf16>, vector<32x64xbf16>, vector<7x64xf32> -> vector<7x64xf32>
      %89 = arith.addf %81, %88 : vector<7x64xf32>
      %c2_i32_77 = arith.constant 2 : i32
      %90 = arith.addi %arg5, %c2_i32_77 : i32
      %c0_78 = arith.constant 0 : index
      %91 = arith.index_cast %90 : i32 to index
      %c1_79 = arith.constant 1 : index
      %c0_80 = arith.constant 0 : index
      %92 = vector.load %arg1[%c0_78, %91, %c1_79, %c0_80] : memref<1x11x11x32xbf16, #tpu.memory_space<vmem>>, vector<1x1x7x32xbf16>
      %93 = vector.shape_cast %92 : vector<1x1x7x32xbf16> to vector<7x32xbf16>
      %c11 = arith.constant 11 : index
      %c0_81 = arith.constant 0 : index
      %c0_82 = arith.constant 0 : index
      %94 = vector.load %arg2[%c11, %c0_81, %c0_82] : memref<25x32x64xbf16, #tpu.memory_space<vmem>>, vector<1x32x64xbf16>
      %95 = vector.shape_cast %94 : vector<1x32x64xbf16> to vector<32x64xbf16>
      %cst_83 = arith.constant dense<0.000000e+00> : vector<7x64xf32>
      %96 = tpu.matmul %93, %95, %cst_83 {dimension_numbers = #tpu.dot_dimension_numbers<[1], [0], [0], [1], [0, 0, 1, 1], [], []>} : vector<7x32xbf16>, vector<32x64xbf16>, vector<7x64xf32> -> vector<7x64xf32>
      %97 = arith.addf %89, %96 : vector<7x64xf32>
      %c2_i32_84 = arith.constant 2 : i32
      %98 = arith.addi %arg5, %c2_i32_84 : i32
      %c0_85 = arith.constant 0 : index
      %99 = arith.index_cast %98 : i32 to index
      %c2_86 = arith.constant 2 : index
      %c0_87 = arith.constant 0 : index
      %100 = vector.load %arg1[%c0_85, %99, %c2_86, %c0_87] : memref<1x11x11x32xbf16, #tpu.memory_space<vmem>>, vector<1x1x7x32xbf16>
      %101 = vector.shape_cast %100 : vector<1x1x7x32xbf16> to vector<7x32xbf16>
      %c12 = arith.constant 12 : index
      %c0_88 = arith.constant 0 : index
      %c0_89 = arith.constant 0 : index
      %102 = vector.load %arg2[%c12, %c0_88, %c0_89] : memref<25x32x64xbf16, #tpu.memory_space<vmem>>, vector<1x32x64xbf16>
      %103 = vector.shape_cast %102 : vector<1x32x64xbf16> to vector<32x64xbf16>
      %cst_90 = arith.constant dense<0.000000e+00> : vector<7x64xf32>
      %104 = tpu.matmul %101, %103, %cst_90 {dimension_numbers = #tpu.dot_dimension_numbers<[1], [0], [0], [1], [0, 0, 1, 1], [], []>} : vector<7x32xbf16>, vector<32x64xbf16>, vector<7x64xf32> -> vector<7x64xf32>
      %105 = arith.addf %97, %104 : vector<7x64xf32>
      %c2_i32_91 = arith.constant 2 : i32
      %106 = arith.addi %arg5, %c2_i32_91 : i32
      %c0_92 = arith.constant 0 : index
      %107 = arith.index_cast %106 : i32 to index
      %c3_93 = arith.constant 3 : index
      %c0_94 = arith.constant 0 : index
      %108 = vector.load %arg1[%c0_92, %107, %c3_93, %c0_94] : memref<1x11x11x32xbf16, #tpu.memory_space<vmem>>, vector<1x1x7x32xbf16>
      %109 = vector.shape_cast %108 : vector<1x1x7x32xbf16> to vector<7x32xbf16>
      %c13 = arith.constant 13 : index
      %c0_95 = arith.constant 0 : index
      %c0_96 = arith.constant 0 : index
      %110 = vector.load %arg2[%c13, %c0_95, %c0_96] : memref<25x32x64xbf16, #tpu.memory_space<vmem>>, vector<1x32x64xbf16>
      %111 = vector.shape_cast %110 : vector<1x32x64xbf16> to vector<32x64xbf16>
      %cst_97 = arith.constant dense<0.000000e+00> : vector<7x64xf32>
      %112 = tpu.matmul %109, %111, %cst_97 {dimension_numbers = #tpu.dot_dimension_numbers<[1], [0], [0], [1], [0, 0, 1, 1], [], []>} : vector<7x32xbf16>, vector<32x64xbf16>, vector<7x64xf32> -> vector<7x64xf32>
      %113 = arith.addf %105, %112 : vector<7x64xf32>
      %c2_i32_98 = arith.constant 2 : i32
      %114 = arith.addi %arg5, %c2_i32_98 : i32
      %c0_99 = arith.constant 0 : index
      %115 = arith.index_cast %114 : i32 to index
      %c4_100 = arith.constant 4 : index
      %c0_101 = arith.constant 0 : index
      %116 = vector.load %arg1[%c0_99, %115, %c4_100, %c0_101] : memref<1x11x11x32xbf16, #tpu.memory_space<vmem>>, vector<1x1x7x32xbf16>
      %117 = vector.shape_cast %116 : vector<1x1x7x32xbf16> to vector<7x32xbf16>
      %c14 = arith.constant 14 : index
      %c0_102 = arith.constant 0 : index
      %c0_103 = arith.constant 0 : index
      %118 = vector.load %arg2[%c14, %c0_102, %c0_103] : memref<25x32x64xbf16, #tpu.memory_space<vmem>>, vector<1x32x64xbf16>
      %119 = vector.shape_cast %118 : vector<1x32x64xbf16> to vector<32x64xbf16>
      %cst_104 = arith.constant dense<0.000000e+00> : vector<7x64xf32>
      %120 = tpu.matmul %117, %119, %cst_104 {dimension_numbers = #tpu.dot_dimension_numbers<[1], [0], [0], [1], [0, 0, 1, 1], [], []>} : vector<7x32xbf16>, vector<32x64xbf16>, vector<7x64xf32> -> vector<7x64xf32>
      %121 = arith.addf %113, %120 : vector<7x64xf32>
      %c3_i32 = arith.constant 3 : i32
      %122 = arith.addi %arg5, %c3_i32 : i32
      %c0_105 = arith.constant 0 : index
      %123 = arith.index_cast %122 : i32 to index
      %c0_106 = arith.constant 0 : index
      %c0_107 = arith.constant 0 : index
      %124 = vector.load %arg1[%c0_105, %123, %c0_106, %c0_107] : memref<1x11x11x32xbf16, #tpu.memory_space<vmem>>, vector<1x1x7x32xbf16>
      %125 = vector.shape_cast %124 : vector<1x1x7x32xbf16> to vector<7x32xbf16>
      %c15 = arith.constant 15 : index
      %c0_108 = arith.constant 0 : index
      %c0_109 = arith.constant 0 : index
      %126 = vector.load %arg2[%c15, %c0_108, %c0_109] : memref<25x32x64xbf16, #tpu.memory_space<vmem>>, vector<1x32x64xbf16>
      %127 = vector.shape_cast %126 : vector<1x32x64xbf16> to vector<32x64xbf16>
      %cst_110 = arith.constant dense<0.000000e+00> : vector<7x64xf32>
      %128 = tpu.matmul %125, %127, %cst_110 {dimension_numbers = #tpu.dot_dimension_numbers<[1], [0], [0], [1], [0, 0, 1, 1], [], []>} : vector<7x32xbf16>, vector<32x64xbf16>, vector<7x64xf32> -> vector<7x64xf32>
      %129 = arith.addf %121, %128 : vector<7x64xf32>
      %c3_i32_111 = arith.constant 3 : i32
      %130 = arith.addi %arg5, %c3_i32_111 : i32
      %c0_112 = arith.constant 0 : index
      %131 = arith.index_cast %130 : i32 to index
      %c1_113 = arith.constant 1 : index
      %c0_114 = arith.constant 0 : index
      %132 = vector.load %arg1[%c0_112, %131, %c1_113, %c0_114] : memref<1x11x11x32xbf16, #tpu.memory_space<vmem>>, vector<1x1x7x32xbf16>
      %133 = vector.shape_cast %132 : vector<1x1x7x32xbf16> to vector<7x32xbf16>
      %c16 = arith.constant 16 : index
      %c0_115 = arith.constant 0 : index
      %c0_116 = arith.constant 0 : index
      %134 = vector.load %arg2[%c16, %c0_115, %c0_116] : memref<25x32x64xbf16, #tpu.memory_space<vmem>>, vector<1x32x64xbf16>
      %135 = vector.shape_cast %134 : vector<1x32x64xbf16> to vector<32x64xbf16>
      %cst_117 = arith.constant dense<0.000000e+00> : vector<7x64xf32>
      %136 = tpu.matmul %133, %135, %cst_117 {dimension_numbers = #tpu.dot_dimension_numbers<[1], [0], [0], [1], [0, 0, 1, 1], [], []>} : vector<7x32xbf16>, vector<32x64xbf16>, vector<7x64xf32> -> vector<7x64xf32>
      %137 = arith.addf %129, %136 : vector<7x64xf32>
      %c3_i32_118 = arith.constant 3 : i32
      %138 = arith.addi %arg5, %c3_i32_118 : i32
      %c0_119 = arith.constant 0 : index
      %139 = arith.index_cast %138 : i32 to index
      %c2_120 = arith.constant 2 : index
      %c0_121 = arith.constant 0 : index
      %140 = vector.load %arg1[%c0_119, %139, %c2_120, %c0_121] : memref<1x11x11x32xbf16, #tpu.memory_space<vmem>>, vector<1x1x7x32xbf16>
      %141 = vector.shape_cast %140 : vector<1x1x7x32xbf16> to vector<7x32xbf16>
      %c17 = arith.constant 17 : index
      %c0_122 = arith.constant 0 : index
      %c0_123 = arith.constant 0 : index
      %142 = vector.load %arg2[%c17, %c0_122, %c0_123] : memref<25x32x64xbf16, #tpu.memory_space<vmem>>, vector<1x32x64xbf16>
      %143 = vector.shape_cast %142 : vector<1x32x64xbf16> to vector<32x64xbf16>
      %cst_124 = arith.constant dense<0.000000e+00> : vector<7x64xf32>
      %144 = tpu.matmul %141, %143, %cst_124 {dimension_numbers = #tpu.dot_dimension_numbers<[1], [0], [0], [1], [0, 0, 1, 1], [], []>} : vector<7x32xbf16>, vector<32x64xbf16>, vector<7x64xf32> -> vector<7x64xf32>
      %145 = arith.addf %137, %144 : vector<7x64xf32>
      %c3_i32_125 = arith.constant 3 : i32
      %146 = arith.addi %arg5, %c3_i32_125 : i32
      %c0_126 = arith.constant 0 : index
      %147 = arith.index_cast %146 : i32 to index
      %c3_127 = arith.constant 3 : index
      %c0_128 = arith.constant 0 : index
      %148 = vector.load %arg1[%c0_126, %147, %c3_127, %c0_128] : memref<1x11x11x32xbf16, #tpu.memory_space<vmem>>, vector<1x1x7x32xbf16>
      %149 = vector.shape_cast %148 : vector<1x1x7x32xbf16> to vector<7x32xbf16>
      %c18 = arith.constant 18 : index
      %c0_129 = arith.constant 0 : index
      %c0_130 = arith.constant 0 : index
      %150 = vector.load %arg2[%c18, %c0_129, %c0_130] : memref<25x32x64xbf16, #tpu.memory_space<vmem>>, vector<1x32x64xbf16>
      %151 = vector.shape_cast %150 : vector<1x32x64xbf16> to vector<32x64xbf16>
      %cst_131 = arith.constant dense<0.000000e+00> : vector<7x64xf32>
      %152 = tpu.matmul %149, %151, %cst_131 {dimension_numbers = #tpu.dot_dimension_numbers<[1], [0], [0], [1], [0, 0, 1, 1], [], []>} : vector<7x32xbf16>, vector<32x64xbf16>, vector<7x64xf32> -> vector<7x64xf32>
      %153 = arith.addf %145, %152 : vector<7x64xf32>
      %c3_i32_132 = arith.constant 3 : i32
      %154 = arith.addi %arg5, %c3_i32_132 : i32
      %c0_133 = arith.constant 0 : index
      %155 = arith.index_cast %154 : i32 to index
      %c4_134 = arith.constant 4 : index
      %c0_135 = arith.constant 0 : index
      %156 = vector.load %arg1[%c0_133, %155, %c4_134, %c0_135] : memref<1x11x11x32xbf16, #tpu.memory_space<vmem>>, vector<1x1x7x32xbf16>
      %157 = vector.shape_cast %156 : vector<1x1x7x32xbf16> to vector<7x32xbf16>
      %c19 = arith.constant 19 : index
      %c0_136 = arith.constant 0 : index
      %c0_137 = arith.constant 0 : index
      %158 = vector.load %arg2[%c19, %c0_136, %c0_137] : memref<25x32x64xbf16, #tpu.memory_space<vmem>>, vector<1x32x64xbf16>
      %159 = vector.shape_cast %158 : vector<1x32x64xbf16> to vector<32x64xbf16>
      %cst_138 = arith.constant dense<0.000000e+00> : vector<7x64xf32>
      %160 = tpu.matmul %157, %159, %cst_138 {dimension_numbers = #tpu.dot_dimension_numbers<[1], [0], [0], [1], [0, 0, 1, 1], [], []>} : vector<7x32xbf16>, vector<32x64xbf16>, vector<7x64xf32> -> vector<7x64xf32>
      %161 = arith.addf %153, %160 : vector<7x64xf32>
      %c4_i32 = arith.constant 4 : i32
      %162 = arith.addi %arg5, %c4_i32 : i32
      %c0_139 = arith.constant 0 : index
      %163 = arith.index_cast %162 : i32 to index
      %c0_140 = arith.constant 0 : index
      %c0_141 = arith.constant 0 : index
      %164 = vector.load %arg1[%c0_139, %163, %c0_140, %c0_141] : memref<1x11x11x32xbf16, #tpu.memory_space<vmem>>, vector<1x1x7x32xbf16>
      %165 = vector.shape_cast %164 : vector<1x1x7x32xbf16> to vector<7x32xbf16>
      %c20 = arith.constant 20 : index
      %c0_142 = arith.constant 0 : index
      %c0_143 = arith.constant 0 : index
      %166 = vector.load %arg2[%c20, %c0_142, %c0_143] : memref<25x32x64xbf16, #tpu.memory_space<vmem>>, vector<1x32x64xbf16>
      %167 = vector.shape_cast %166 : vector<1x32x64xbf16> to vector<32x64xbf16>
      %cst_144 = arith.constant dense<0.000000e+00> : vector<7x64xf32>
      %168 = tpu.matmul %165, %167, %cst_144 {dimension_numbers = #tpu.dot_dimension_numbers<[1], [0], [0], [1], [0, 0, 1, 1], [], []>} : vector<7x32xbf16>, vector<32x64xbf16>, vector<7x64xf32> -> vector<7x64xf32>
      %169 = arith.addf %161, %168 : vector<7x64xf32>
      %c4_i32_145 = arith.constant 4 : i32
      %170 = arith.addi %arg5, %c4_i32_145 : i32
      %c0_146 = arith.constant 0 : index
      %171 = arith.index_cast %170 : i32 to index
      %c1_147 = arith.constant 1 : index
      %c0_148 = arith.constant 0 : index
      %172 = vector.load %arg1[%c0_146, %171, %c1_147, %c0_148] : memref<1x11x11x32xbf16, #tpu.memory_space<vmem>>, vector<1x1x7x32xbf16>
      %173 = vector.shape_cast %172 : vector<1x1x7x32xbf16> to vector<7x32xbf16>
      %c21 = arith.constant 21 : index
      %c0_149 = arith.constant 0 : index
      %c0_150 = arith.constant 0 : index
      %174 = vector.load %arg2[%c21, %c0_149, %c0_150] : memref<25x32x64xbf16, #tpu.memory_space<vmem>>, vector<1x32x64xbf16>
      %175 = vector.shape_cast %174 : vector<1x32x64xbf16> to vector<32x64xbf16>
      %cst_151 = arith.constant dense<0.000000e+00> : vector<7x64xf32>
      %176 = tpu.matmul %173, %175, %cst_151 {dimension_numbers = #tpu.dot_dimension_numbers<[1], [0], [0], [1], [0, 0, 1, 1], [], []>} : vector<7x32xbf16>, vector<32x64xbf16>, vector<7x64xf32> -> vector<7x64xf32>
      %177 = arith.addf %169, %176 : vector<7x64xf32>
      %c4_i32_152 = arith.constant 4 : i32
      %178 = arith.addi %arg5, %c4_i32_152 : i32
      %c0_153 = arith.constant 0 : index
      %179 = arith.index_cast %178 : i32 to index
      %c2_154 = arith.constant 2 : index
      %c0_155 = arith.constant 0 : index
      %180 = vector.load %arg1[%c0_153, %179, %c2_154, %c0_155] : memref<1x11x11x32xbf16, #tpu.memory_space<vmem>>, vector<1x1x7x32xbf16>
      %181 = vector.shape_cast %180 : vector<1x1x7x32xbf16> to vector<7x32xbf16>
      %c22 = arith.constant 22 : index
      %c0_156 = arith.constant 0 : index
      %c0_157 = arith.constant 0 : index
      %182 = vector.load %arg2[%c22, %c0_156, %c0_157] : memref<25x32x64xbf16, #tpu.memory_space<vmem>>, vector<1x32x64xbf16>
      %183 = vector.shape_cast %182 : vector<1x32x64xbf16> to vector<32x64xbf16>
      %cst_158 = arith.constant dense<0.000000e+00> : vector<7x64xf32>
      %184 = tpu.matmul %181, %183, %cst_158 {dimension_numbers = #tpu.dot_dimension_numbers<[1], [0], [0], [1], [0, 0, 1, 1], [], []>} : vector<7x32xbf16>, vector<32x64xbf16>, vector<7x64xf32> -> vector<7x64xf32>
      %185 = arith.addf %177, %184 : vector<7x64xf32>
      %c4_i32_159 = arith.constant 4 : i32
      %186 = arith.addi %arg5, %c4_i32_159 : i32
      %c0_160 = arith.constant 0 : index
      %187 = arith.index_cast %186 : i32 to index
      %c3_161 = arith.constant 3 : index
      %c0_162 = arith.constant 0 : index
      %188 = vector.load %arg1[%c0_160, %187, %c3_161, %c0_162] : memref<1x11x11x32xbf16, #tpu.memory_space<vmem>>, vector<1x1x7x32xbf16>
      %189 = vector.shape_cast %188 : vector<1x1x7x32xbf16> to vector<7x32xbf16>
      %c23 = arith.constant 23 : index
      %c0_163 = arith.constant 0 : index
      %c0_164 = arith.constant 0 : index
      %190 = vector.load %arg2[%c23, %c0_163, %c0_164] : memref<25x32x64xbf16, #tpu.memory_space<vmem>>, vector<1x32x64xbf16>
      %191 = vector.shape_cast %190 : vector<1x32x64xbf16> to vector<32x64xbf16>
      %cst_165 = arith.constant dense<0.000000e+00> : vector<7x64xf32>
      %192 = tpu.matmul %189, %191, %cst_165 {dimension_numbers = #tpu.dot_dimension_numbers<[1], [0], [0], [1], [0, 0, 1, 1], [], []>} : vector<7x32xbf16>, vector<32x64xbf16>, vector<7x64xf32> -> vector<7x64xf32>
      %193 = arith.addf %185, %192 : vector<7x64xf32>
      %c4_i32_166 = arith.constant 4 : i32
      %194 = arith.addi %arg5, %c4_i32_166 : i32
      %c0_167 = arith.constant 0 : index
      %195 = arith.index_cast %194 : i32 to index
      %c4_168 = arith.constant 4 : index
      %c0_169 = arith.constant 0 : index
      %196 = vector.load %arg1[%c0_167, %195, %c4_168, %c0_169] : memref<1x11x11x32xbf16, #tpu.memory_space<vmem>>, vector<1x1x7x32xbf16>
      %197 = vector.shape_cast %196 : vector<1x1x7x32xbf16> to vector<7x32xbf16>
      %c24 = arith.constant 24 : index
      %c0_170 = arith.constant 0 : index
      %c0_171 = arith.constant 0 : index
      %198 = vector.load %arg2[%c24, %c0_170, %c0_171] : memref<25x32x64xbf16, #tpu.memory_space<vmem>>, vector<1x32x64xbf16>
      %199 = vector.shape_cast %198 : vector<1x32x64xbf16> to vector<32x64xbf16>
      %cst_172 = arith.constant dense<0.000000e+00> : vector<7x64xf32>
      %200 = tpu.matmul %197, %199, %cst_172 {dimension_numbers = #tpu.dot_dimension_numbers<[1], [0], [0], [1], [0, 0, 1, 1], [], []>} : vector<7x32xbf16>, vector<32x64xbf16>, vector<7x64xf32> -> vector<7x64xf32>
      %201 = arith.addf %193, %200 : vector<7x64xf32>
      %c0_173 = arith.constant 0 : index
      %c0_174 = arith.constant 0 : index
      %202 = vector.load %arg3[%c0_173, %c0_174] : memref<1x64xf32, #tpu.memory_space<vmem>>, vector<1x64xf32>
      %203 = vector.broadcast %202 : vector<1x64xf32> to vector<7x64xf32>
      %204 = arith.addf %201, %203 : vector<7x64xf32>
      %cst_175 = arith.constant 0.000000e+00 : f32
      %205 = vector.broadcast %cst_175 : f32 to vector<7x64xf32>
      %206 = arith.maximumf %204, %205 : vector<7x64xf32>
      %207 = arith.truncf %206 : vector<7x64xf32> to vector<7x64xbf16>
      %c0_176 = arith.constant 0 : index
      %208 = arith.index_cast %arg5 : i32 to index
      %c0_177 = arith.constant 0 : index
      %c0_178 = arith.constant 0 : index
      %209 = vector.load %arg4[%c0_176, %208, %c0_177, %c0_178] : memref<1x7x7x64xbf16, #tpu.memory_space<vmem>>, vector<1x1x7x64xbf16>
      %210 = vector.shape_cast %209 : vector<1x1x7x64xbf16> to vector<7x64xbf16>
      %211 = vector.shape_cast %207 : vector<7x64xbf16> to vector<1x1x7x64xbf16>
      tpu.vector_store %arg4[%c0_176, %208, %c0_177, %c0_178], %211 {strides = array<i32>} : memref<1x7x7x64xbf16, #tpu.memory_space<vmem>>, vector<1x1x7x64xbf16>,
    }
    %c7_i32_0 = arith.constant 7 : i32
    return
  }
  func.func @transform_0(%arg0: i32) -> (i32, i32, i32, i32) {
    %c0_i32 = arith.constant 0 : i32
    %c0_i32_0 = arith.constant 0 : i32
    %c0_i32_1 = arith.constant 0 : i32
    %c0_i32_2 = arith.constant 0 : i32
    return %arg0, %c0_i32, %c0_i32_0, %c0_i32_1 : i32, i32, i32, i32
  }
  func.func @transform_1(%arg0: i32) -> (i32, i32, i32) {
    %c0_i32 = arith.constant 0 : i32
    %c0_i32_0 = arith.constant 0 : i32
    %c0_i32_1 = arith.constant 0 : i32
    %c0_i32_2 = arith.constant 0 : i32
    return %c0_i32, %c0_i32_0, %c0_i32_1 : i32, i32, i32
  }
  func.func @transform_2(%arg0: i32) -> (i32, i32) {
    %c0_i32 = arith.constant 0 : i32
    %c0_i32_0 = arith.constant 0 : i32
    %c0_i32_1 = arith.constant 0 : i32
    return %c0_i32, %c0_i32_0 : i32, i32
  }
  func.func @transform_3(%arg0: i32) -> (i32, i32, i32, i32) {
    %c0_i32 = arith.constant 0 : i32
    %c0_i32_0 = arith.constant 0 : i32
    %c0_i32_1 = arith.constant 0 : i32
    %c0_i32_2 = arith.constant 0 : i32
    return %arg0, %c0_i32, %c0_i32_0, %c0_i32_1 : i32, i32, i32, i32
  }
}

module attributes {stable_mosaic.version = 11 : i64} {
  func.func @_fc_fused_kernel(%arg0: i32, %arg1: memref<2x576xbf16, #tpu.memory_space<vmem>>, %arg2: memref<576x512xbf16, #tpu.memory_space<vmem>>, %arg3: memref<1x512xf32, #tpu.memory_space<vmem>>, %arg4: memref<512x128xbf16, #tpu.memory_space<vmem>>, %arg5: memref<1x128xf32, #tpu.memory_space<vmem>>, %arg6: memref<2x128xf32, #tpu.memory_space<vmem>>) attributes {dimension_semantics = [#tpu.dimension_semantics<parallel>], iteration_bounds = array<i64: 1>, scalar_prefetch = 0 : i64, scratch_operands = 0 : i64, tpu.core_type = #tpu.core_type<tc>, window_params = [{transform_indices = @transform_0, window_bounds = array<i64: 2, 576>}, {pipeline_mode = #tpu.pipeline_mode<synchronous>, transform_indices = @transform_1, window_bounds = array<i64: 576, 512>}, {pipeline_mode = #tpu.pipeline_mode<synchronous>, transform_indices = @transform_2, window_bounds = array<i64: 1, 512>}, {pipeline_mode = #tpu.pipeline_mode<synchronous>, transform_indices = @transform_3, window_bounds = array<i64: 512, 128>}, {pipeline_mode = #tpu.pipeline_mode<synchronous>, transform_indices = @transform_4, window_bounds = array<i64: 1, 128>}, {transform_indices = @transform_5, window_bounds = array<i64: 2, 128>}]} {
    %c0 = arith.constant 0 : index
    %c0_0 = arith.constant 0 : index
    %0 = vector.load %arg1[%c0, %c0_0] : memref<2x576xbf16, #tpu.memory_space<vmem>>, vector<2x576xbf16>
    %c0_1 = arith.constant 0 : index
    %c0_2 = arith.constant 0 : index
    %1 = vector.load %arg2[%c0_1, %c0_2] : memref<576x512xbf16, #tpu.memory_space<vmem>>, vector<576x512xbf16>
    %cst = arith.constant dense<0.000000e+00> : vector<2x512xf32>
    %2 = tpu.matmul %0, %1, %cst {dimension_numbers = #tpu.dot_dimension_numbers<[1], [0], [0], [1], [0, 0, 1, 1], [], []>} : vector<2x576xbf16>, vector<576x512xbf16>, vector<2x512xf32> -> vector<2x512xf32>
    %c0_3 = arith.constant 0 : index
    %c0_4 = arith.constant 0 : index
    %3 = vector.load %arg3[%c0_3, %c0_4] : memref<1x512xf32, #tpu.memory_space<vmem>>, vector<1x512xf32>
    %4 = vector.broadcast %3 : vector<1x512xf32> to vector<2x512xf32>
    %5 = arith.addf %2, %4 : vector<2x512xf32>
    %cst_5 = arith.constant 0.000000e+00 : f32
    %6 = vector.broadcast %cst_5 : f32 to vector<2x512xf32>
    %7 = arith.maximumf %5, %6 : vector<2x512xf32>
    %8 = arith.truncf %7 : vector<2x512xf32> to vector<2x512xbf16>
    %c0_6 = arith.constant 0 : index
    %c0_7 = arith.constant 0 : index
    %9 = vector.load %arg4[%c0_6, %c0_7] : memref<512x128xbf16, #tpu.memory_space<vmem>>, vector<512x128xbf16>
    %cst_8 = arith.constant dense<0.000000e+00> : vector<2x128xf32>
    %10 = tpu.matmul %8, %9, %cst_8 {dimension_numbers = #tpu.dot_dimension_numbers<[1], [0], [0], [1], [0, 0, 1, 1], [], []>} : vector<2x512xbf16>, vector<512x128xbf16>, vector<2x128xf32> -> vector<2x128xf32>
    %c0_9 = arith.constant 0 : index
    %c0_10 = arith.constant 0 : index
    %11 = vector.load %arg5[%c0_9, %c0_10] : memref<1x128xf32, #tpu.memory_space<vmem>>, vector<1x128xf32>
    %12 = vector.broadcast %11 : vector<1x128xf32> to vector<2x128xf32>
    %13 = arith.addf %10, %12 : vector<2x128xf32>
    %c0_11 = arith.constant 0 : index
    %c0_12 = arith.constant 0 : index
    %14 = vector.load %arg6[%c0_11, %c0_12] : memref<2x128xf32, #tpu.memory_space<vmem>>, vector<2x128xf32>
    tpu.vector_store %arg6[%c0_11, %c0_12], %13 {strides = array<i32>} : memref<2x128xf32, #tpu.memory_space<vmem>>, vector<2x128xf32>,
    return
  }
  func.func @transform_0(%arg0: i32) -> (i32, i32) {
    %c0_i32 = arith.constant 0 : i32
    %c0_i32_0 = arith.constant 0 : i32
    return %arg0, %c0_i32 : i32, i32
  }
  func.func @transform_1(%arg0: i32) -> (i32, i32) {
    %c0_i32 = arith.constant 0 : i32
    %c0_i32_0 = arith.constant 0 : i32
    %c0_i32_1 = arith.constant 0 : i32
    return %c0_i32, %c0_i32_0 : i32, i32
  }
  func.func @transform_2(%arg0: i32) -> (i32, i32) {
    %c0_i32 = arith.constant 0 : i32
    %c0_i32_0 = arith.constant 0 : i32
    %c0_i32_1 = arith.constant 0 : i32
    return %c0_i32, %c0_i32_0 : i32, i32
  }
  func.func @transform_3(%arg0: i32) -> (i32, i32) {
    %c0_i32 = arith.constant 0 : i32
    %c0_i32_0 = arith.constant 0 : i32
    %c0_i32_1 = arith.constant 0 : i32
    return %c0_i32, %c0_i32_0 : i32, i32
  }
  func.func @transform_4(%arg0: i32) -> (i32, i32) {
    %c0_i32 = arith.constant 0 : i32
    %c0_i32_0 = arith.constant 0 : i32
    %c0_i32_1 = arith.constant 0 : i32
    return %c0_i32, %c0_i32_0 : i32, i32
  }
  func.func @transform_5(%arg0: i32) -> (i32, i32) {
    %c0_i32 = arith.constant 0 : i32
    %c0_i32_0 = arith.constant 0 : i32
    return %arg0, %c0_i32 : i32, i32
  }
}

</mosaic_0001>

<llo_original>
// kernel: dsh_forward.4
$region0: #{dsh_forward.4}
  #allocation0 [shape = 'u32[]', space=smem, size = 0x4, offset = 0x4, fixed_abs, tag = 'smem constant byte address 0x4 - core index']
  #allocation1 [shape = 'u32[144,128]{1,0:T(1,128)}', space=vmem, size = 0x12000, scoped, tag = 'internal scratch']
  %s0 = inlined_call_operand.vmem [shape: bf16[2,36,36,3], index: 0, kind: input, shape index: {}]
  %s1 = inlined_call_operand.vmem [shape: bf16[25,3,32], index: 1, kind: input, shape index: {}]
  %s2 = inlined_call_operand.vmem [shape: f32[1,32], index: 2, kind: input, shape index: {}]
  %s3 = inlined_call_operand.vmem [shape: bf16[2,32,32,32], index: 3, kind: output, shape index: {}]
  %s4 = sld [smem:[#allocation0]]
  $region52: #{dsh_forward.4} parent=0
    _
  %s6 = ssub.s32 1, %s4
  %s7 = scalar_select 0, %s6, %s4
  loop: start=0, step=1, limit=4
  $region2: #{dsh_forward.4} parent=0 // loop_pre_header
    _
  $region3: #{dsh_forward.4} parent=0 // loop_header
    %s9 = sphi 0, %s13
    %p10 = scmp.ge.s32.totalorder %s9, 4
    %s19 = sphi 0, %s21
    %s22 = sphi 0, %s19
    %s23 = sphi 0, %s22
    %s39 = sphi 0, %s23
    %s43 = sphi 0, %s43
    %s45 = sphi 0, %s43
    %s46 = sphi 0, %s45
    %s60 = sphi 0, %s46
    %s64 = sphi 0, %s64
    %s66 = sphi 0, %s64
    %s67 = sphi 0, %s66
    %s81 = sphi 0, %s67
    %s87 = sphi 0, %s89
    %s90 = sphi 0, %s87
    %s91 = sphi 0, %s90
    %s107 = sphi 0, %s91
  $region4: #{dsh_forward.4} parent=0 // loop_header_branch
    %12 = sbr.rel (%p10) target = $region8
  $region5: #{dsh_forward.4} parent=0 // loop_body
    %s14 = ssub.s32 %s9, 1
    %s15 = ssub.s32 %s9, 2
    %s16 = sadd.s32 %s9, 1
    %s17 = ssub.s32 %s9, %s16
    %p18 = scmp.eq.s32.totalorder %s17, 0
    %s20 = sadd.s32 %s19, 1
    %s21 = scalar_select %p18, %s19, %s20
    %p24 = pneg %p18
    %p25 = scmp.eq.s32.totalorder %s9, 1
    %p26 = por %p24, %p25
    %p27 = scmp.ne.s32.totalorder %s19, %s22
    %p28 = scmp.eq.s32.totalorder %s9, 0
    %p29 = por %p27, %p28
    %p30 = scmp.ne.s32.totalorder %s19, %s22
    %p31 = scmp.eq.s32.totalorder %s14, 1
    %p32 = por %p30, %p31
    %p33 = scmp.ne.s32.totalorder %s22, %s23
    %p34 = scmp.eq.s32.totalorder %s14, 0
    %p35 = por %p33, %p34
    %p36 = scmp.ne.s32.totalorder %s22, %s23
    %p37 = scmp.eq.s32.totalorder %s15, 1
    %p38 = por %p36, %p37
    %p40 = scmp.ne.s32.totalorder %s23, %s39
    %p41 = scmp.eq.s32.totalorder %s15, 0
    %p42 = por %p40, %p41
    %s44 = sadd.s32 %s43, 1
    %p47 = scmp.eq.s32.totalorder %s9, 1
    %p48 = scmp.ne.s32.totalorder %s43, %s45
    %p49 = scmp.eq.s32.totalorder %s9, 0
    %p50 = por %p48, %p49
    %p51 = scmp.ne.s32.totalorder %s43, %s45
    %p52 = scmp.eq.s32.totalorder %s14, 1
    %p53 = por %p51, %p52
    %p54 = scmp.ne.s32.totalorder %s45, %s46
    %p55 = scmp.eq.s32.totalorder %s14, 0
    %p56 = por %p54, %p55
    %p57 = scmp.ne.s32.totalorder %s45, %s46
    %p58 = scmp.eq.s32.totalorder %s15, 1
    %p59 = por %p57, %p58
    %p61 = scmp.ne.s32.totalorder %s46, %s60
    %p62 = scmp.eq.s32.totalorder %s15, 0
    %p63 = por %p61, %p62
    %s65 = sadd.s32 %s64, 1
    %p68 = scmp.eq.s32.totalorder %s9, 1
    %p69 = scmp.ne.s32.totalorder %s64, %s66
    %p70 = scmp.eq.s32.totalorder %s9, 0
    %p71 = por %p69, %p70
    %p72 = scmp.ne.s32.totalorder %s64, %s66
    %p73 = scmp.eq.s32.totalorder %s14, 1
    %p74 = por %p72, %p73
    %p75 = scmp.ne.s32.totalorder %s66, %s67
    %p76 = scmp.eq.s32.totalorder %s14, 0
    %p77 = por %p75, %p76
    %p78 = scmp.ne.s32.totalorder %s66, %s67
    %p79 = scmp.eq.s32.totalorder %s15, 1
    %p80 = por %p78, %p79
    %p82 = scmp.ne.s32.totalorder %s67, %s81
    %p83 = scmp.eq.s32.totalorder %s15, 0
    %p84 = por %p82, %p83
    %s85 = ssub.s32 %s9, %s16
    %p86 = scmp.eq.s32.totalorder %s85, 0
    %s88 = sadd.s32 %s87, 1
    %s89 = scalar_select %p86, %s87, %s88
    %p92 = pneg %p86
    %p93 = scmp.eq.s32.totalorder %s9, 1
    %p94 = por %p92, %p93
    %p95 = scmp.ne.s32.totalorder %s87, %s90
    %p96 = scmp.eq.s32.totalorder %s9, 0
    %p97 = por %p95, %p96
    %p98 = scmp.ne.s32.totalorder %s87, %s90
    %p99 = scmp.eq.s32.totalorder %s14, 1
    %p100 = por %p98, %p99
    %p101 = scmp.ne.s32.totalorder %s90, %s91
    %p102 = scmp.eq.s32.totalorder %s14, 0
    %p103 = por %p101, %p102
    %p104 = scmp.ne.s32.totalorder %s90, %s91
    %p105 = scmp.eq.s32.totalorder %s15, 1
    %p106 = por %p104, %p105
    %p108 = scmp.ne.s32.totalorder %s91, %s107
    %p109 = scmp.eq.s32.totalorder %s15, 0
    %p110 = por %p108, %p109
    %p111 = scmp.le.s32.totalorder 1, %s9
    %p112 = scmp.lt.s32.totalorder %s9, 3
    %p113 = pnand %p111, %p112
    %p114 = pneg %p113
    // Predicated region
    $region9: #{dsh_forward.4} parent=5 // pred_check
      _
    $region10: #{dsh_forward.4} parent=5 // pred_check_branch
      %116 = sbr.rel (%p113) target = $region12
    $region11: #{dsh_forward.4} parent=5 // pred_region
      %s117 = ssub.s32 %s9, 1
      // Predicated region
      $region13: #{dsh_forward.4} parent=11 // pred_check
        %p118 = pneg %p56
      $region14: #{dsh_forward.4} parent=11 // pred_check_branch
        %120 = sbr.rel (%p118) target = $region16
      $region15: #{dsh_forward.4} parent=11 // pred_region
        _
      $region16: #{dsh_forward.4} parent=11 // pred_fallthru
        _
      // Predicated region
      $region17: #{dsh_forward.4} parent=11 // pred_check
        %p121 = pneg %p77
      $region18: #{dsh_forward.4} parent=11 // pred_check_branch
        %123 = sbr.rel (%p121) target = $region20
      $region19: #{dsh_forward.4} parent=11 // pred_region
        _
      $region20: #{dsh_forward.4} parent=11 // pred_fallthru
        _
    $region12: #{dsh_forward.4} parent=5 // pred_fallthru
      _
    %p124 = scmp.lt.s32.totalorder %s9, 2
    // Predicated region
    $region21: #{dsh_forward.4} parent=5 // pred_check
      %p125 = pneg %p124
    $region22: #{dsh_forward.4} parent=5 // pred_check_branch
      %127 = sbr.rel (%p125) target = $region24
    $region23: #{dsh_forward.4} parent=5 // pred_region
      // Predicated region
      $region25: #{dsh_forward.4} parent=23 // pred_check
        %p128 = pneg %p29
      $region26: #{dsh_forward.4} parent=23 // pred_check_branch
        %130 = sbr.rel (%p128) target = $region28
      $region27: #{dsh_forward.4} parent=23 // pred_region
        %p131 = scmp.lt.s32.totalorder %s9, 1
        %s132 = scalar_select %p131, %s9, 1
        %s133 = smul.addr %s132, 180
        %s134 = smul.addr %s133, 4
        %s135 = scalar_lea.vmem %s0, %s134
      $region28: #{dsh_forward.4} parent=23 // pred_fallthru
        _
    $region24: #{dsh_forward.4} parent=5 // pred_fallthru
      _
    %p136 = scmp.le.s32.totalorder 1, %s9
    %p137 = scmp.lt.s32.totalorder %s9, 3
    %p138 = pnand %p136, %p137
    %p139 = pneg %p138
    // Predicated region
    $region29: #{dsh_forward.4} parent=5 // pred_check
      _
    $region30: #{dsh_forward.4} parent=5 // pred_check_branch
      %141 = sbr.rel (%p138) target = $region32
    $region31: #{dsh_forward.4} parent=5 // pred_region
      %s142 = ssub.s32 %s9, 1
      %p143 = scmp.lt.s32.totalorder %s14, 1
      %s144 = scalar_select %p143, %s14, 1
      %s145 = smul.addr %s144, 180
      %s146 = smul.addr %s145, 4
      %s147 = scalar_lea.vmem %s0, %s146
      %p148 = pneg %p35
      %p149 = pneg %p32
      %p150 = pneg %p56
      %p151 = pneg %p53
      %p152 = pneg %p77
      %p153 = pneg %p74
      %p154 = pneg %p103
      %p155 = pneg %p100
      %p156 = scmp.lt.s32.totalorder %s14, 1
      %s157 = scalar_select %p156, %s14, 1
      %s158 = smul.addr %s157, 128
      %s159 = smul.addr %s158, 4
      %s160 = scalar_lea.vmem %s3, %s159
      %p161 = scmp.lt.s32.totalorder %s14, 1
      %s162 = scalar_select %p161, %s14, 1
      %s163 = smul.addr %s162, 180
      %s164 = smul.addr %s163, 4
      %s165 = scalar_lea.vmem %s0, %s164
      %p166 = scmp.lt.s32.totalorder %s14, 1
      %s167 = scalar_select %p166, %s14, 1
      %s168 = smul.addr %s167, 128
      %s169 = smul.addr %s168, 4
      %s170 = scalar_lea.vmem %s3, %s169
      loop: start=0, step=1, limit=32
      $region33: #{dsh_forward.4} parent=31 // loop_pre_header
        _
      $region34: #{dsh_forward.4} parent=31 // loop_header
        %s173 = sphi 0, %s177
        %p174 = scmp.ge.s32.totalorder %s173, 32
      $region35: #{dsh_forward.4} parent=31 // loop_header_branch
        %176 = sbr.rel (%p174) target = $region39
      $region36: #{dsh_forward.4} parent=31 // loop_body
        %s178 = smul.u32 %s173, 5
        %s179 = smul.addr %s178, 4
        %s180 = scalar_lea.vmem %s165, %s179
        %v181 = vld [vmem:[%s180] sm:$0xf]
        %v182 = vld [vmem:[%s180 + $0x4] sm:$0xf]
        %v183 = vld [vmem:[%s180 + $0x8] sm:$0xf]
        %v184 = vld [vmem:[%s180 + $0xc] sm:$0xf]
        %v185 = vld [vmem:[%s1] sm:$0x3]
        %v186 = vld [vmem:[%s180 + $0x10] sm:$0x1]
        %s187 = scalar_lea.vmem %s1, 2
        %v188 = vld [vmem:[%s187] sm:$0x3]
        %v194 = vunpack.c.l.b16 %v181
        %v195 = vunpack.c.l.b16 %v182
        %v196 = vunpack.c.l.b16 %v183
        %v197 = vunpack.c.l.b16 %v184
        %v198 = vunpack.c.l.b16 %v186
        %v199 = vpack.c.b16 %v195, %v194
        %v200 = vpack.c.b16 %v197, %v196
        %v201 = vpack.c.b16 %v198, %v198
        %vm202 = vsmask.f32 7424
        %v204 = vshrl.u32 %v199, 16
        %v206 = vshll.u32 %v199, 16
        %v208 = vrot.slane %v206, 1
        %v209 = vor.u32 %v204, %v208
        %v211 = vshll.u32 %v200, 16
        %v213 = vrot.slane %v211, 1
        %v214 = vsel %vm202, %v209, %v213
        %v215 = vshrl.u32 %v200, 16
        %v217 = vor.u32 %v215, %v213
        %v219 = vshll.u32 %v201, 16
        %v221 = vrot.slane %v219, 1
        %v222 = vsel %vm202, %v217, %v221
        %vm223 = vcmask 23552
        %v225 = vsel %vm223, %v214, 0
        %v228 = vsel %vm223, %v222, 0
        %vm230 = vcmask 1040384
        %vm231 = vcmask 1041408
        %v232 = vsel %vm230, 4294967295, 65535
        %v233 = vsel %vm231, %v232, 0
        %v235 = vand.u32 %v188, %v233
        %237 = vmatprep.subr.bf16.mxu0 0
        %238 = vmatpush1.bf16.msra.mxu0 %v235
        %239 = vmatprep.subr.bf16.mxu0 0
        %240 = vmatpush1.bf16.msra.mxu0 0
        %241 = vmatprep.subr.bf16.mxu0 0
        %242 = vmatpush1.bf16.msra.mxu0 0
        %243 = vmatprep.subr.bf16.mxu0 0
        %244 = vmatpush1.bf16.msra.mxu0 0
        %245 = vmatprep.subr.bf16.mxu0 0
        %246 = vmatpush1.bf16.msra.mxu0 0
        %247 = vmatprep.subr.bf16.mxu0 0
        %248 = vmatpush1.bf16.msra.mxu0 0
        %249 = vmatprep.subr.bf16.mxu0 0
        %250 = vmatpush1.bf16.msra.mxu0 0
        %251 = vmatprep.subr.bf16.mxu0 0
        %252 = vmatpush1.bf16.msra.mxu0 0
        %253 = vmatprep.subr.bf16.mxu0 0
        %254 = vmatpush1.bf16.msra.mxu0 0
        %255 = vmatprep.subr.bf16.mxu0 0
        %256 = vmatpush1.bf16.msra.mxu0 0
        %257 = vmatprep.subr.bf16.mxu0 0
        %258 = vmatpush1.bf16.msra.mxu0 0
        %259 = vmatprep.subr.bf16.mxu0 0
        %260 = vmatpush1.bf16.msra.mxu0 0
        %261 = vmatprep.subr.bf16.mxu0 0
        %262 = vmatpush1.bf16.msra.mxu0 0
        %263 = vmatprep.subr.bf16.mxu0 0
        %264 = vmatpush1.bf16.msra.mxu0 0
        %265 = vmatprep.subr.bf16.mxu0 0
        %266 = vmatpush1.bf16.msra.mxu0 0
        %267 = vmatprep.subr.bf16.mxu0 0
        %268 = vmatpush1.bf16.msra.mxu0 0
        %269 = vmatprep.mubr.bf16.mxu0 0
        %270 = vmatmul.mubr.bf16.gmra.mrb[0].mxu0 %v225
        %v271 = vpop.f32.mrb[0].mxu0
        %v272 = vadd.f32 0.0, %v271
        %v273 = vpop.f32.mrb[0].mxu0
        %v274 = vpop.f32.mrb[0].mxu0
        %v275 = vadd.f32 0.0, %v274
        %v276 = vpop.f32.mrb[0].mxu0
        %277 = vmatprep.mubr.bf16.mxu0 0
        %278 = vmatmul.mubr.bf16.gmra.mrb[0].mxu0 %v228
        %v279 = vpop.f32.mrb[0].mxu0
        %v280 = vadd.f32 0.0, %v279
        %v281 = vpop.f32.mrb[0].mxu0
        %v282 = vpop.f32.mrb[0].mxu0
        %v283 = vadd.f32 0.0, %v282
        %v284 = vpop.f32.mrb[0].mxu0
        %285 = vdwg.mxu0
        %v286 = vsel %vm223, %v199, 0
        %v288 = vsel %vm223, %v200, 0
        %v291 = vand.u32 %v185, %v233
        %293 = vmatprep.subr.bf16.mxu0 0
        %294 = vmatpush1.bf16.msra.mxu0 %v291
        %295 = vmatprep.subr.bf16.mxu0 0
        %296 = vmatpush1.bf16.msra.mxu0 0
        %297 = vmatprep.subr.bf16.mxu0 0
        %298 = vmatpush1.bf16.msra.mxu0 0
        %299 = vmatprep.subr.bf16.mxu0 0
        %300 = vmatpush1.bf16.msra.mxu0 0
        %301 = vmatprep.subr.bf16.mxu0 0
        %302 = vmatpush1.bf16.msra.mxu0 0
        %303 = vmatprep.subr.bf16.mxu0 0
        %304 = vmatpush1.bf16.msra.mxu0 0
        %305 = vmatprep.subr.bf16.mxu0 0
        %306 = vmatpush1.bf16.msra.mxu0 0
        %307 = vmatprep.subr.bf16.mxu0 0
        %308 = vmatpush1.bf16.msra.mxu0 0
        %309 = vmatprep.subr.bf16.mxu0 0
        %310 = vmatpush1.bf16.msra.mxu0 0
        %311 = vmatprep.subr.bf16.mxu0 0
        %312 = vmatpush1.bf16.msra.mxu0 0
        %313 = vmatprep.subr.bf16.mxu0 0
        %314 = vmatpush1.bf16.msra.mxu0 0
        %315 = vmatprep.subr.bf16.mxu0 0
        %316 = vmatpush1.bf16.msra.mxu0 0
        %317 = vmatprep.subr.bf16.mxu0 0
        %318 = vmatpush1.bf16.msra.mxu0 0
        %319 = vmatprep.subr.bf16.mxu0 0
        %320 = vmatpush1.bf16.msra.mxu0 0
        %321 = vmatprep.subr.bf16.mxu0 0
        %322 = vmatpush1.bf16.msra.mxu0 0
        %323 = vmatprep.subr.bf16.mxu0 0
        %324 = vmatpush1.bf16.msra.mxu0 0
        %325 = vmatprep.mubr.bf16.mxu0 0
        %326 = vmatmul.mubr.bf16.gmra.mrb[0].mxu0 %v286
        %v327 = vpop.f32.mrb[0].mxu0
        %v328 = vadd.f32 %v272, %v327
        %v329 = vpop.f32.mrb[0].mxu0
        %v330 = vpop.f32.mrb[0].mxu0
        %v331 = vadd.f32 %v275, %v330
        %v332 = vpop.f32.mrb[0].mxu0
        %333 = vmatprep.mubr.bf16.mxu0 0
        %334 = vmatmul.mubr.bf16.gmra.mrb[0].mxu0 %v288
        %v335 = vpop.f32.mrb[0].mxu0
        %v336 = vadd.f32 %v280, %v335
        %v337 = vpop.f32.mrb[0].mxu0
        %v338 = vpop.f32.mrb[0].mxu0
        %v339 = vadd.f32 %v283, %v338
        %v340 = vpop.f32.mrb[0].mxu0
        %341 = vdwg.mxu0
        %v342 = vld [vmem:[%s180] sm:$0xe]
        %s343 = scalar_lea.vmem %s1, 4
        %v344 = vld [vmem:[%s343] sm:$0x3]
        %v346 = vunpack.c.l.b16 %v342
        %v347 = vpack.c.b16 %v195, %v346
        %vm348 = vcmask 1046528
        %v349 = vrot.slane %v347, 1
        %v350 = vrot.slane %v200, 1
        %v351 = vsel %vm348, %v349, %v350
        %v352 = vrot.slane %v201, 1
        %v353 = vsel %vm348, %v350, %v352
        %v355 = vsel %vm223, %v351, 0
        %v358 = vsel %vm223, %v353, 0
        %v361 = vand.u32 %v344, %v233
        %363 = vmatprep.subr.bf16.mxu0 0
        %364 = vmatpush1.bf16.msra.mxu0 %v361
        %365 = vmatprep.subr.bf16.mxu0 0
        %366 = vmatpush1.bf16.msra.mxu0 0
        %367 = vmatprep.subr.bf16.mxu0 0
        %368 = vmatpush1.bf16.msra.mxu0 0
        %369 = vmatprep.subr.bf16.mxu0 0
        %370 = vmatpush1.bf16.msra.mxu0 0
        %371 = vmatprep.subr.bf16.mxu0 0
        %372 = vmatpush1.bf16.msra.mxu0 0
        %373 = vmatprep.subr.bf16.mxu0 0
        %374 = vmatpush1.bf16.msra.mxu0 0
        %375 = vmatprep.subr.bf16.mxu0 0
        %376 = vmatpush1.bf16.msra.mxu0 0
        %377 = vmatprep.subr.bf16.mxu0 0
        %378 = vmatpush1.bf16.msra.mxu0 0
        %379 = vmatprep.subr.bf16.mxu0 0
        %380 = vmatpush1.bf16.msra.mxu0 0
        %381 = vmatprep.subr.bf16.mxu0 0
        %382 = vmatpush1.bf16.msra.mxu0 0
        %383 = vmatprep.subr.bf16.mxu0 0
        %384 = vmatpush1.bf16.msra.mxu0 0
        %385 = vmatprep.subr.bf16.mxu0 0
        %386 = vmatpush1.bf16.msra.mxu0 0
        %387 = vmatprep.subr.bf16.mxu0 0
        %388 = vmatpush1.bf16.msra.mxu0 0
        %389 = vmatprep.subr.bf16.mxu0 0
        %390 = vmatpush1.bf16.msra.mxu0 0
        %391 = vmatprep.subr.bf16.mxu0 0
        %392 = vmatpush1.bf16.msra.mxu0 0
        %393 = vmatprep.subr.bf16.mxu0 0
        %394 = vmatpush1.bf16.msra.mxu0 0
        %395 = vmatprep.mubr.bf16.mxu0 0
        %396 = vmatmul.mubr.bf16.gmra.mrb[0].mxu0 %v355
        %v397 = vpop.f32.mrb[0].mxu0
        %v398 = vadd.f32 0.0, %v397
        %v399 = vpop.f32.mrb[0].mxu0
        %v400 = vpop.f32.mrb[0].mxu0
        %v401 = vadd.f32 0.0, %v400
        %v402 = vpop.f32.mrb[0].mxu0
        %403 = vmatprep.mubr.bf16.mxu0 0
        %404 = vmatmul.mubr.bf16.gmra.mrb[0].mxu0 %v358
        %v405 = vpop.f32.mrb[0].mxu0
        %v406 = vadd.f32 0.0, %v405
        %v407 = vpop.f32.mrb[0].mxu0
        %v408 = vpop.f32.mrb[0].mxu0
        %v409 = vadd.f32 0.0, %v408
        %v410 = vpop.f32.mrb[0].mxu0
        %411 = vdwg.mxu0
        %v412 = vadd.f32 %v328, %v398
        %v413 = vadd.f32 %v331, %v401
        %v414 = vadd.f32 %v336, %v406
        %v415 = vadd.f32 %v339, %v409
        %v416 = vld [vmem:[%s180 + $0x10] sm:$0x3]
        %s417 = scalar_lea.vmem %s1, 6
        %v418 = vld [vmem:[%s417] sm:$0x3]
        %v420 = vunpack.c.l.b16 %v416
        %v421 = vpack.c.b16 %v420, %v420
        %vm422 = vsmask.f32 6400
        %v424 = vshrl.u32 %v347, 16
        %v426 = vrot.slane %v424, 1
        %v427 = vshll.u32 %v347, 16
        %v429 = vrot.slane %v427, 2
        %v430 = vor.u32 %v426, %v429
        %v431 = vrot.slane %v215, 1
        %v432 = vrot.slane %v211, 2
        %v433 = vor.u32 %v431, %v432
        %v434 = vsel %vm422, %v430, %v433
        %v436 = vshrl.u32 %v421, 16
        %v438 = vrot.slane %v436, 1
        %v439 = vshll.u32 %v421, 16
        %v441 = vrot.slane %v439, 2
        %v442 = vor.u32 %v438, %v441
        %v443 = vsel %vm422, %v433, %v442
        %v445 = vsel %vm223, %v434, 0
        %v448 = vsel %vm223, %v443, 0
        %v451 = vand.u32 %v418, %v233
        %453 = vmatprep.subr.bf16.mxu0 0
        %454 = vmatpush1.bf16.msra.mxu0 %v451
        %455 = vmatprep.subr.bf16.mxu0 0
        %456 = vmatpush1.bf16.msra.mxu0 0
        %457 = vmatprep.subr.bf16.mxu0 0
        %458 = vmatpush1.bf16.msra.mxu0 0
        %459 = vmatprep.subr.bf16.mxu0 0
        %460 = vmatpush1.bf16.msra.mxu0 0
        %461 = vmatprep.subr.bf16.mxu0 0
        %462 = vmatpush1.bf16.msra.mxu0 0
        %463 = vmatprep.subr.bf16.mxu0 0
        %464 = vmatpush1.bf16.msra.mxu0 0
        %465 = vmatprep.subr.bf16.mxu0 0
        %466 = vmatpush1.bf16.msra.mxu0 0
        %467 = vmatprep.subr.bf16.mxu0 0
        %468 = vmatpush1.bf16.msra.mxu0 0
        %469 = vmatprep.subr.bf16.mxu0 0
        %470 = vmatpush1.bf16.msra.mxu0 0
        %471 = vmatprep.subr.bf16.mxu0 0
        %472 = vmatpush1.bf16.msra.mxu0 0
        %473 = vmatprep.subr.bf16.mxu0 0
        %474 = vmatpush1.bf16.msra.mxu0 0
        %475 = vmatprep.subr.bf16.mxu0 0
        %476 = vmatpush1.bf16.msra.mxu0 0
        %477 = vmatprep.subr.bf16.mxu0 0
        %478 = vmatpush1.bf16.msra.mxu0 0
        %479 = vmatprep.subr.bf16.mxu0 0
        %480 = vmatpush1.bf16.msra.mxu0 0
        %481 = vmatprep.subr.bf16.mxu0 0
        %482 = vmatpush1.bf16.msra.mxu0 0
        %483 = vmatprep.subr.bf16.mxu0 0
        %484 = vmatpush1.bf16.msra.mxu0 0
        %485 = vmatprep.mubr.bf16.mxu0 0
        %486 = vmatmul.mubr.bf16.gmra.mrb[0].mxu0 %v445
        %v487 = vpop.f32.mrb[0].mxu0
        %v488 = vadd.f32 0.0, %v487
        %v489 = vpop.f32.mrb[0].mxu0
        %v490 = vpop.f32.mrb[0].mxu0
        %v491 = vadd.f32 0.0, %v490
        %v492 = vpop.f32.mrb[0].mxu0
        %493 = vmatprep.mubr.bf16.mxu0 0
        %494 = vmatmul.mubr.bf16.gmra.mrb[0].mxu0 %v448
        %v495 = vpop.f32.mrb[0].mxu0
        %v496 = vadd.f32 0.0, %v495
        %v497 = vpop.f32.mrb[0].mxu0
        %v498 = vpop.f32.mrb[0].mxu0
        %v499 = vadd.f32 0.0, %v498
        %v500 = vpop.f32.mrb[0].mxu0
        %501 = vdwg.mxu0
        %v502 = vadd.f32 %v412, %v488
        %v503 = vadd.f32 %v413, %v491
        %v504 = vadd.f32 %v414, %v496
        %v505 = vadd.f32 %v415, %v499
        %v506 = vld [vmem:[%s180] sm:$0xc]
        %s507 = scalar_lea.vmem %s1, 8
        %v508 = vld [vmem:[%s507] sm:$0x3]
        %v510 = vunpack.c.l.b16 %v506
        %v511 = vpack.c.b16 %v195, %v510
        %vm512 = vcmask 1045504
        %v513 = vrot.slane %v511, 2
        %v514 = vrot.slane %v200, 2
        %v515 = vsel %vm512, %v513, %v514
        %v516 = vrot.slane %v421, 2
        %v517 = vsel %vm512, %v514, %v516
        %v519 = vsel %vm223, %v515, 0
        %v522 = vsel %vm223, %v517, 0
        %v525 = vand.u32 %v508, %v233
        %527 = vmatprep.subr.bf16.mxu0 0
        %528 = vmatpush1.bf16.msra.mxu0 %v525
        %529 = vmatprep.subr.bf16.mxu0 0
        %530 = vmatpush1.bf16.msra.mxu0 0
        %531 = vmatprep.subr.bf16.mxu0 0
        %532 = vmatpush1.bf16.msra.mxu0 0
        %533 = vmatprep.subr.bf16.mxu0 0
        %534 = vmatpush1.bf16.msra.mxu0 0
        %535 = vmatprep.subr.bf16.mxu0 0
        %536 = vmatpush1.bf16.msra.mxu0 0
        %537 = vmatprep.subr.bf16.mxu0 0
        %538 = vmatpush1.bf16.msra.mxu0 0
        %539 = vmatprep.subr.bf16.mxu0 0
        %540 = vmatpush1.bf16.msra.mxu0 0
        %541 = vmatprep.subr.bf16.mxu0 0
        %542 = vmatpush1.bf16.msra.mxu0 0
        %543 = vmatprep.subr.bf16.mxu0 0
        %544 = vmatpush1.bf16.msra.mxu0 0
        %545 = vmatprep.subr.bf16.mxu0 0
        %546 = vmatpush1.bf16.msra.mxu0 0
        %547 = vmatprep.subr.bf16.mxu0 0
        %548 = vmatpush1.bf16.msra.mxu0 0
        %549 = vmatprep.subr.bf16.mxu0 0
        %550 = vmatpush1.bf16.msra.mxu0 0
        %551 = vmatprep.subr.bf16.mxu0 0
        %552 = vmatpush1.bf16.msra.mxu0 0
        %553 = vmatprep.subr.bf16.mxu0 0
        %554 = vmatpush1.bf16.msra.mxu0 0
        %555 = vmatprep.subr.bf16.mxu0 0
        %556 = vmatpush1.bf16.msra.mxu0 0
        %557 = vmatprep.subr.bf16.mxu0 0
        %558 = vmatpush1.bf16.msra.mxu0 0
        %559 = vmatprep.mubr.bf16.mxu0 0
        %560 = vmatmul.mubr.bf16.gmra.mrb[0].mxu0 %v519
        %v561 = vpop.f32.mrb[0].mxu0
        %v562 = vadd.f32 0.0, %v561
        %v563 = vpop.f32.mrb[0].mxu0
        %v564 = vpop.f32.mrb[0].mxu0
        %v565 = vadd.f32 0.0, %v564
        %v566 = vpop.f32.mrb[0].mxu0
        %567 = vmatprep.mubr.bf16.mxu0 0
        %568 = vmatmul.mubr.bf16.gmra.mrb[0].mxu0 %v522
        %v569 = vpop.f32.mrb[0].mxu0
        %v570 = vadd.f32 0.0, %v569
        %v571 = vpop.f32.mrb[0].mxu0
        %v572 = vpop.f32.mrb[0].mxu0
        %v573 = vadd.f32 0.0, %v572
        %v574 = vpop.f32.mrb[0].mxu0
        %575 = vdwg.mxu0
        %v576 = vadd.f32 %v502, %v562
        %v577 = vadd.f32 %v503, %v565
        %v578 = vadd.f32 %v504, %v570
        %v579 = vadd.f32 %v505, %v573
        %s580 = sadd.s32 %s173, 1
        %s581 = smul.u32 %s580, 5
        %s582 = smul.addr %s581, 4
        %s583 = scalar_lea.vmem %s165, %s582
        %v584 = vld [vmem:[%s583] sm:$0xf]
        %v585 = vld [vmem:[%s583 + $0x4] sm:$0xf]
        %v586 = vld [vmem:[%s583 + $0x8] sm:$0xf]
        %v587 = vld [vmem:[%s583 + $0xc] sm:$0xf]
        %s588 = scalar_lea.vmem %s1, 10
        %v589 = vld [vmem:[%s588] sm:$0x3]
        %v594 = vunpack.c.l.b16 %v584
        %v595 = vunpack.c.l.b16 %v585
        %v596 = vunpack.c.l.b16 %v586
        %v597 = vunpack.c.l.b16 %v587
        %v598 = vpack.c.b16 %v595, %v594
        %v599 = vpack.c.b16 %v597, %v596
        %v601 = vsel %vm223, %v598, 0
        %v604 = vsel %vm223, %v599, 0
        %v607 = vand.u32 %v589, %v233
        %609 = vmatprep.subr.bf16.mxu0 0
        %610 = vmatpush1.bf16.msra.mxu0 %v607
        %611 = vmatprep.subr.bf16.mxu0 0
        %612 = vmatpush1.bf16.msra.mxu0 0
        %613 = vmatprep.subr.bf16.mxu0 0
        %614 = vmatpush1.bf16.msra.mxu0 0
        %615 = vmatprep.subr.bf16.mxu0 0
        %616 = vmatpush1.bf16.msra.mxu0 0
        %617 = vmatprep.subr.bf16.mxu0 0
        %618 = vmatpush1.bf16.msra.mxu0 0
        %619 = vmatprep.subr.bf16.mxu0 0
        %620 = vmatpush1.bf16.msra.mxu0 0
        %621 = vmatprep.subr.bf16.mxu0 0
        %622 = vmatpush1.bf16.msra.mxu0 0
        %623 = vmatprep.subr.bf16.mxu0 0
        %624 = vmatpush1.bf16.msra.mxu0 0
        %625 = vmatprep.subr.bf16.mxu0 0
        %626 = vmatpush1.bf16.msra.mxu0 0
        %627 = vmatprep.subr.bf16.mxu0 0
        %628 = vmatpush1.bf16.msra.mxu0 0
        %629 = vmatprep.subr.bf16.mxu0 0
        %630 = vmatpush1.bf16.msra.mxu0 0
        %631 = vmatprep.subr.bf16.mxu0 0
        %632 = vmatpush1.bf16.msra.mxu0 0
        %633 = vmatprep.subr.bf16.mxu0 0
        %634 = vmatpush1.bf16.msra.mxu0 0
        %635 = vmatprep.subr.bf16.mxu0 0
        %636 = vmatpush1.bf16.msra.mxu0 0
        %637 = vmatprep.subr.bf16.mxu0 0
        %638 = vmatpush1.bf16.msra.mxu0 0
        %639 = vmatprep.subr.bf16.mxu0 0
        %640 = vmatpush1.bf16.msra.mxu0 0
        %641 = vmatprep.mubr.bf16.mxu0 0
        %642 = vmatmul.mubr.bf16.gmra.mrb[0].mxu0 %v601
        %v643 = vpop.f32.mrb[0].mxu0
        %v644 = vadd.f32 0.0, %v643
        %v645 = vpop.f32.mrb[0].mxu0
        %v646 = vpop.f32.mrb[0].mxu0
        %v647 = vadd.f32 0.0, %v646
        %v648 = vpop.f32.mrb[0].mxu0
        %649 = vmatprep.mubr.bf16.mxu0 0
        %650 = vmatmul.mubr.bf16.gmra.mrb[0].mxu0 %v604
        %v651 = vpop.f32.mrb[0].mxu0
        %v652 = vadd.f32 0.0, %v651
        %v653 = vpop.f32.mrb[0].mxu0
        %v654 = vpop.f32.mrb[0].mxu0
        %v655 = vadd.f32 0.0, %v654
        %v656 = vpop.f32.mrb[0].mxu0
        %657 = vdwg.mxu0
        %v658 = vadd.f32 %v576, %v644
        %v659 = vadd.f32 %v577, %v647
        %v660 = vadd.f32 %v578, %v652
        %v661 = vadd.f32 %v579, %v655
        %v662 = vld [vmem:[%s583] sm:$0xf]
        %v663 = vld [vmem:[%s583 + $0x4] sm:$0xf]
        %v664 = vld [vmem:[%s583 + $0x8] sm:$0xf]
        %v665 = vld [vmem:[%s583 + $0xc] sm:$0xf]
        %v666 = vld [vmem:[%s583 + $0x10] sm:$0x1]
        %s667 = scalar_lea.vmem %s1, 12
        %v668 = vld [vmem:[%s667] sm:$0x3]
        %v674 = vunpack.c.l.b16 %v662
        %v675 = vunpack.c.l.b16 %v663
        %v676 = vunpack.c.l.b16 %v664
        %v677 = vunpack.c.l.b16 %v665
        %v678 = vunpack.c.l.b16 %v666
        %v679 = vpack.c.b16 %v675, %v674
        %v680 = vpack.c.b16 %v677, %v676
        %v681 = vpack.c.b16 %v678, %v678
        %v683 = vshrl.u32 %v679, 16
        %v685 = vshll.u32 %v679, 16
        %v687 = vrot.slane %v685, 1
        %v688 = vor.u32 %v683, %v687
        %v690 = vshll.u32 %v680, 16
        %v692 = vrot.slane %v690, 1
        %v693 = vsel %vm202, %v688, %v692
        %v694 = vshrl.u32 %v680, 16
        %v696 = vor.u32 %v694, %v692
        %v698 = vshll.u32 %v681, 16
        %v700 = vrot.slane %v698, 1
        %v701 = vsel %vm202, %v696, %v700
        %v703 = vsel %vm223, %v693, 0
        %v706 = vsel %vm223, %v701, 0
        %v709 = vand.u32 %v668, %v233
        %711 = vmatprep.subr.bf16.mxu0 0
        %712 = vmatpush1.bf16.msra.mxu0 %v709
        %713 = vmatprep.subr.bf16.mxu0 0
        %714 = vmatpush1.bf16.msra.mxu0 0
        %715 = vmatprep.subr.bf16.mxu0 0
        %716 = vmatpush1.bf16.msra.mxu0 0
        %717 = vmatprep.subr.bf16.mxu0 0
        %718 = vmatpush1.bf16.msra.mxu0 0
        %719 = vmatprep.subr.bf16.mxu0 0
        %720 = vmatpush1.bf16.msra.mxu0 0
        %721 = vmatprep.subr.bf16.mxu0 0
        %722 = vmatpush1.bf16.msra.mxu0 0
        %723 = vmatprep.subr.bf16.mxu0 0
        %724 = vmatpush1.bf16.msra.mxu0 0
        %725 = vmatprep.subr.bf16.mxu0 0
        %726 = vmatpush1.bf16.msra.mxu0 0
        %727 = vmatprep.subr.bf16.mxu0 0
        %728 = vmatpush1.bf16.msra.mxu0 0
        %729 = vmatprep.subr.bf16.mxu0 0
        %730 = vmatpush1.bf16.msra.mxu0 0
        %731 = vmatprep.subr.bf16.mxu0 0
        %732 = vmatpush1.bf16.msra.mxu0 0
        %733 = vmatprep.subr.bf16.mxu0 0
        %734 = vmatpush1.bf16.msra.mxu0 0
        %735 = vmatprep.subr.bf16.mxu0 0
        %736 = vmatpush1.bf16.msra.mxu0 0
        %737 = vmatprep.subr.bf16.mxu0 0
        %738 = vmatpush1.bf16.msra.mxu0 0
        %739 = vmatprep.subr.bf16.mxu0 0
        %740 = vmatpush1.bf16.msra.mxu0 0
        %741 = vmatprep.subr.bf16.mxu0 0
        %742 = vmatpush1.bf16.msra.mxu0 0
        %743 = vmatprep.mubr.bf16.mxu0 0
        %744 = vmatmul.mubr.bf16.gmra.mrb[0].mxu0 %v703
        %v745 = vpop.f32.mrb[0].mxu0
        %v746 = vadd.f32 0.0, %v745
        %v747 = vpop.f32.mrb[0].mxu0
        %v748 = vpop.f32.mrb[0].mxu0
        %v749 = vadd.f32 0.0, %v748
        %v750 = vpop.f32.mrb[0].mxu0
        %751 = vmatprep.mubr.bf16.mxu0 0
        %752 = vmatmul.mubr.bf16.gmra.mrb[0].mxu0 %v706
        %v753 = vpop.f32.mrb[0].mxu0
        %v754 = vadd.f32 0.0, %v753
        %v755 = vpop.f32.mrb[0].mxu0
        %v756 = vpop.f32.mrb[0].mxu0
        %v757 = vadd.f32 0.0, %v756
        %v758 = vpop.f32.mrb[0].mxu0
        %759 = vdwg.mxu0
        %v760 = vadd.f32 %v658, %v746
        %v761 = vadd.f32 %v659, %v749
        %v762 = vadd.f32 %v660, %v754
        %v763 = vadd.f32 %v661, %v757
        %v764 = vld [vmem:[%s583] sm:$0xe]
        %s765 = scalar_lea.vmem %s1, 14
        %v766 = vld [vmem:[%s765] sm:$0x3]
        %v768 = vunpack.c.l.b16 %v764
        %v769 = vpack.c.b16 %v675, %v768
        %v770 = vrot.slane %v769, 1
        %v771 = vrot.slane %v680, 1
        %v772 = vsel %vm348, %v770, %v771
        %v773 = vrot.slane %v681, 1
        %v774 = vsel %vm348, %v771, %v773
        %v776 = vsel %vm223, %v772, 0
        %v779 = vsel %vm223, %v774, 0
        %v782 = vand.u32 %v766, %v233
        %784 = vmatprep.subr.bf16.mxu0 0
        %785 = vmatpush1.bf16.msra.mxu0 %v782
        %786 = vmatprep.subr.bf16.mxu0 0
        %787 = vmatpush1.bf16.msra.mxu0 0
        %788 = vmatprep.subr.bf16.mxu0 0
        %789 = vmatpush1.bf16.msra.mxu0 0
        %790 = vmatprep.subr.bf16.mxu0 0
        %791 = vmatpush1.bf16.msra.mxu0 0
        %792 = vmatprep.subr.bf16.mxu0 0
        %793 = vmatpush1.bf16.msra.mxu0 0
        %794 = vmatprep.subr.bf16.mxu0 0
        %795 = vmatpush1.bf16.msra.mxu0 0
        %796 = vmatprep.subr.bf16.mxu0 0
        %797 = vmatpush1.bf16.msra.mxu0 0
        %798 = vmatprep.subr.bf16.mxu0 0
        %799 = vmatpush1.bf16.msra.mxu0 0
        %800 = vmatprep.subr.bf16.mxu0 0
        %801 = vmatpush1.bf16.msra.mxu0 0
        %802 = vmatprep.subr.bf16.mxu0 0
        %803 = vmatpush1.bf16.msra.mxu0 0
        %804 = vmatprep.subr.bf16.mxu0 0
        %805 = vmatpush1.bf16.msra.mxu0 0
        %806 = vmatprep.subr.bf16.mxu0 0
        %807 = vmatpush1.bf16.msra.mxu0 0
        %808 = vmatprep.subr.bf16.mxu0 0
        %809 = vmatpush1.bf16.msra.mxu0 0
        %810 = vmatprep.subr.bf16.mxu0 0
        %811 = vmatpush1.bf16.msra.mxu0 0
        %812 = vmatprep.subr.bf16.mxu0 0
        %813 = vmatpush1.bf16.msra.mxu0 0
        %814 = vmatprep.subr.bf16.mxu0 0
        %815 = vmatpush1.bf16.msra.mxu0 0
        %816 = vmatprep.mubr.bf16.mxu0 0
        %817 = vmatmul.mubr.bf16.gmra.mrb[0].mxu0 %v776
        %v818 = vpop.f32.mrb[0].mxu0
        %v819 = vadd.f32 0.0, %v818
        %v820 = vpop.f32.mrb[0].mxu0
        %v821 = vpop.f32.mrb[0].mxu0
        %v822 = vadd.f32 0.0, %v821
        %v823 = vpop.f32.mrb[0].mxu0
        %824 = vmatprep.mubr.bf16.mxu0 0
        %825 = vmatmul.mubr.bf16.gmra.mrb[0].mxu0 %v779
        %v826 = vpop.f32.mrb[0].mxu0
        %v827 = vadd.f32 0.0, %v826
        %v828 = vpop.f32.mrb[0].mxu0
        %v829 = vpop.f32.mrb[0].mxu0
        %v830 = vadd.f32 0.0, %v829
        %v831 = vpop.f32.mrb[0].mxu0
        %832 = vdwg.mxu0
        %v833 = vadd.f32 %v760, %v819
        %v834 = vadd.f32 %v761, %v822
        %v835 = vadd.f32 %v762, %v827
        %v836 = vadd.f32 %v763, %v830
        %v837 = vld [vmem:[%s583 + $0x10] sm:$0x3]
        %s838 = scalar_lea.vmem %s1, 16
        %v839 = vld [vmem:[%s838] sm:$0x3]
        %v841 = vunpack.c.l.b16 %v837
        %v842 = vpack.c.b16 %v841, %v841
        %v844 = vshrl.u32 %v769, 16
        %v846 = vrot.slane %v844, 1
        %v847 = vshll.u32 %v769, 16
        %v849 = vrot.slane %v847, 2
        %v850 = vor.u32 %v846, %v849
        %v851 = vrot.slane %v694, 1
        %v852 = vrot.slane %v690, 2
        %v853 = vor.u32 %v851, %v852
        %v854 = vsel %vm422, %v850, %v853
        %v856 = vshrl.u32 %v842, 16
        %v858 = vrot.slane %v856, 1
        %v859 = vshll.u32 %v842, 16
        %v861 = vrot.slane %v859, 2
        %v862 = vor.u32 %v858, %v861
        %v863 = vsel %vm422, %v853, %v862
        %v865 = vsel %vm223, %v854, 0
        %v868 = vsel %vm223, %v863, 0
        %v871 = vand.u32 %v839, %v233
        %873 = vmatprep.subr.bf16.mxu0 0
        %874 = vmatpush1.bf16.msra.mxu0 %v871
        %875 = vmatprep.subr.bf16.mxu0 0
        %876 = vmatpush1.bf16.msra.mxu0 0
        %877 = vmatprep.subr.bf16.mxu0 0
        %878 = vmatpush1.bf16.msra.mxu0 0
        %879 = vmatprep.subr.bf16.mxu0 0
        %880 = vmatpush1.bf16.msra.mxu0 0
        %881 = vmatprep.subr.bf16.mxu0 0
        %882 = vmatpush1.bf16.msra.mxu0 0
        %883 = vmatprep.subr.bf16.mxu0 0
        %884 = vmatpush1.bf16.msra.mxu0 0
        %885 = vmatprep.subr.bf16.mxu0 0
        %886 = vmatpush1.bf16.msra.mxu0 0
        %887 = vmatprep.subr.bf16.mxu0 0
        %888 = vmatpush1.bf16.msra.mxu0 0
        %889 = vmatprep.subr.bf16.mxu0 0
        %890 = vmatpush1.bf16.msra.mxu0 0
        %891 = vmatprep.subr.bf16.mxu0 0
        %892 = vmatpush1.bf16.msra.mxu0 0
        %893 = vmatprep.subr.bf16.mxu0 0
        %894 = vmatpush1.bf16.msra.mxu0 0
        %895 = vmatprep.subr.bf16.mxu0 0
        %896 = vmatpush1.bf16.msra.mxu0 0
        %897 = vmatprep.subr.bf16.mxu0 0
        %898 = vmatpush1.bf16.msra.mxu0 0
        %899 = vmatprep.subr.bf16.mxu0 0
        %900 = vmatpush1.bf16.msra.mxu0 0
        %901 = vmatprep.subr.bf16.mxu0 0
        %902 = vmatpush1.bf16.msra.mxu0 0
        %903 = vmatprep.subr.bf16.mxu0 0
        %904 = vmatpush1.bf16.msra.mxu0 0
        %905 = vmatprep.mubr.bf16.mxu0 0
        %906 = vmatmul.mubr.bf16.gmra.mrb[0].mxu0 %v865
        %v907 = vpop.f32.mrb[0].mxu0
        %v908 = vadd.f32 0.0, %v907
        %v909 = vpop.f32.mrb[0].mxu0
        %v910 = vpop.f32.mrb[0].mxu0
        %v911 = vadd.f32 0.0, %v910
        %v912 = vpop.f32.mrb[0].mxu0
        %913 = vmatprep.mubr.bf16.mxu0 0
        %914 = vmatmul.mubr.bf16.gmra.mrb[0].mxu0 %v868
        %v915 = vpop.f32.mrb[0].mxu0
        %v916 = vadd.f32 0.0, %v915
        %v917 = vpop.f32.mrb[0].mxu0
        %v918 = vpop.f32.mrb[0].mxu0
        %v919 = vadd.f32 0.0, %v918
        %v920 = vpop.f32.mrb[0].mxu0
        %921 = vdwg.mxu0
        %v922 = vadd.f32 %v833, %v908
        %v923 = vadd.f32 %v834, %v911
        %v924 = vadd.f32 %v835, %v916
        %v925 = vadd.f32 %v836, %v919
        %v926 = vld [vmem:[%s583] sm:$0xc]
        %s927 = scalar_lea.vmem %s1, 18
        %v928 = vld [vmem:[%s927] sm:$0x3]
        %v930 = vunpack.c.l.b16 %v926
        %v931 = vpack.c.b16 %v675, %v930
        %v932 = vrot.slane %v931, 2
        %v933 = vrot.slane %v680, 2
        %v934 = vsel %vm512, %v932, %v933
        %v935 = vrot.slane %v842, 2
        %v936 = vsel %vm512, %v933, %v935
        %v938 = vsel %vm223, %v934, 0
        %v941 = vsel %vm223, %v936, 0
        %v944 = vand.u32 %v928, %v233
        %946 = vmatprep.subr.bf16.mxu0 0
        %947 = vmatpush1.bf16.msra.mxu0 %v944
        %948 = vmatprep.subr.bf16.mxu0 0
        %949 = vmatpush1.bf16.msra.mxu0 0
        %950 = vmatprep.subr.bf16.mxu0 0
        %951 = vmatpush1.bf16.msra.mxu0 0
        %952 = vmatprep.subr.bf16.mxu0 0
        %953 = vmatpush1.bf16.msra.mxu0 0
        %954 = vmatprep.subr.bf16.mxu0 0
        %955 = vmatpush1.bf16.msra.mxu0 0
        %956 = vmatprep.subr.bf16.mxu0 0
        %957 = vmatpush1.bf16.msra.mxu0 0
        %958 = vmatprep.subr.bf16.mxu0 0
        %959 = vmatpush1.bf16.msra.mxu0 0
        %960 = vmatprep.subr.bf16.mxu0 0
        %961 = vmatpush1.bf16.msra.mxu0 0
        %962 = vmatprep.subr.bf16.mxu0 0
        %963 = vmatpush1.bf16.msra.mxu0 0
        %964 = vmatprep.subr.bf16.mxu0 0
        %965 = vmatpush1.bf16.msra.mxu0 0
        %966 = vmatprep.subr.bf16.mxu0 0
        %967 = vmatpush1.bf16.msra.mxu0 0
        %968 = vmatprep.subr.bf16.mxu0 0
        %969 = vmatpush1.bf16.msra.mxu0 0
        %970 = vmatprep.subr.bf16.mxu0 0
        %971 = vmatpush1.bf16.msra.mxu0 0
        %972 = vmatprep.subr.bf16.mxu0 0
        %973 = vmatpush1.bf16.msra.mxu0 0
        %974 = vmatprep.subr.bf16.mxu0 0
        %975 = vmatpush1.bf16.msra.mxu0 0
        %976 = vmatprep.subr.bf16.mxu0 0
        %977 = vmatpush1.bf16.msra.mxu0 0
        %978 = vmatprep.mubr.bf16.mxu0 0
        %979 = vmatmul.mubr.bf16.gmra.mrb[0].mxu0 %v938
        %v980 = vpop.f32.mrb[0].mxu0
        %v981 = vadd.f32 0.0, %v980
        %v982 = vpop.f32.mrb[0].mxu0
        %v983 = vpop.f32.mrb[0].mxu0
        %v984 = vadd.f32 0.0, %v983
        %v985 = vpop.f32.mrb[0].mxu0
        %986 = vmatprep.mubr.bf16.mxu0 0
        %987 = vmatmul.mubr.bf16.gmra.mrb[0].mxu0 %v941
        %v988 = vpop.f32.mrb[0].mxu0
        %v989 = vadd.f32 0.0, %v988
        %v990 = vpop.f32.mrb[0].mxu0
        %v991 = vpop.f32.mrb[0].mxu0
        %v992 = vadd.f32 0.0, %v991
        %v993 = vpop.f32.mrb[0].mxu0
        %994 = vdwg.mxu0
        %v995 = vadd.f32 %v922, %v981
        %v996 = vadd.f32 %v923, %v984
        %v997 = vadd.f32 %v924, %v989
        %v998 = vadd.f32 %v925, %v992
        %s999 = sadd.s32 %s173, 2
        %s1000 = smul.u32 %s999, 5
        %s1001 = smul.addr %s1000, 4
        %s1002 = scalar_lea.vmem %s165, %s1001
        %v1003 = vld [vmem:[%s1002] sm:$0xf]
        %v1004 = vld [vmem:[%s1002 + $0x4] sm:$0xf]
        %v1005 = vld [vmem:[%s1002 + $0x8] sm:$0xf]
        %v1006 = vld [vmem:[%s1002 + $0xc] sm:$0xf]
        %s1007 = scalar_lea.vmem %s1, 20
        %v1008 = vld [vmem:[%s1007] sm:$0x3]
        %v1013 = vunpack.c.l.b16 %v1003
        %v1014 = vunpack.c.l.b16 %v1004
        %v1015 = vunpack.c.l.b16 %v1005
        %v1016 = vunpack.c.l.b16 %v1006
        %v1017 = vpack.c.b16 %v1014, %v1013
        %v1018 = vpack.c.b16 %v1016, %v1015
        %v1020 = vsel %vm223, %v1017, 0
        %v1023 = vsel %vm223, %v1018, 0
        %v1026 = vand.u32 %v1008, %v233
        %1028 = vmatprep.subr.bf16.mxu0 0
        %1029 = vmatpush1.bf16.msra.mxu0 %v1026
        %1030 = vmatprep.subr.bf16.mxu0 0
        %1031 = vmatpush1.bf16.msra.mxu0 0
        %1032 = vmatprep.subr.bf16.mxu0 0
        %1033 = vmatpush1.bf16.msra.mxu0 0
        %1034 = vmatprep.subr.bf16.mxu0 0
        %1035 = vmatpush1.bf16.msra.mxu0 0
        %1036 = vmatprep.subr.bf16.mxu0 0
        %1037 = vmatpush1.bf16.msra.mxu0 0
        %1038 = vmatprep.subr.bf16.mxu0 0
        %1039 = vmatpush1.bf16.msra.mxu0 0
        %1040 = vmatprep.subr.bf16.mxu0 0
        %1041 = vmatpush1.bf16.msra.mxu0 0
        %1042 = vmatprep.subr.bf16.mxu0 0
        %1043 = vmatpush1.bf16.msra.mxu0 0
        %1044 = vmatprep.subr.bf16.mxu0 0
        %1045 = vmatpush1.bf16.msra.mxu0 0
        %1046 = vmatprep.subr.bf16.mxu0 0
        %1047 = vmatpush1.bf16.msra.mxu0 0
        %1048 = vmatprep.subr.bf16.mxu0 0
        %1049 = vmatpush1.bf16.msra.mxu0 0
        %1050 = vmatprep.subr.bf16.mxu0 0
        %1051 = vmatpush1.bf16.msra.mxu0 0
        %1052 = vmatprep.subr.bf16.mxu0 0
        %1053 = vmatpush1.bf16.msra.mxu0 0
        %1054 = vmatprep.subr.bf16.mxu0 0
        %1055 = vmatpush1.bf16.msra.mxu0 0
        %1056 = vmatprep.subr.bf16.mxu0 0
        %1057 = vmatpush1.bf16.msra.mxu0 0
        %1058 = vmatprep.subr.bf16.mxu0 0
        %1059 = vmatpush1.bf16.msra.mxu0 0
        %1060 = vmatprep.mubr.bf16.mxu0 0
        %1061 = vmatmul.mubr.bf16.gmra.mrb[0].mxu0 %v1020
        %v1062 = vpop.f32.mrb[0].mxu0
        %v1063 = vadd.f32 0.0, %v1062
        %v1064 = vpop.f32.mrb[0].mxu0
        %v1065 = vpop.f32.mrb[0].mxu0
        %v1066 = vadd.f32 0.0, %v1065
        %v1067 = vpop.f32.mrb[0].mxu0
        %1068 = vmatprep.mubr.bf16.mxu0 0
        %1069 = vmatmul.mubr.bf16.gmra.mrb[0].mxu0 %v1023
        %v1070 = vpop.f32.mrb[0].mxu0
        %v1071 = vadd.f32 0.0, %v1070
        %v1072 = vpop.f32.mrb[0].mxu0
        %v1073 = vpop.f32.mrb[0].mxu0
        %v1074 = vadd.f32 0.0, %v1073
        %v1075 = vpop.f32.mrb[0].mxu0
        %1076 = vdwg.mxu0
        %v1077 = vadd.f32 %v995, %v1063
        %v1078 = vadd.f32 %v996, %v1066
        %v1079 = vadd.f32 %v997, %v1071
        %v1080 = vadd.f32 %v998, %v1074
        %v1081 = vld [vmem:[%s1002] sm:$0xf]
        %v1082 = vld [vmem:[%s1002 + $0x4] sm:$0xf]
        %v1083 = vld [vmem:[%s1002 + $0x8] sm:$0xf]
        %v1084 = vld [vmem:[%s1002 + $0xc] sm:$0xf]
        %v1085 = vld [vmem:[%s1002 + $0x10] sm:$0x1]
        %s1086 = scalar_lea.vmem %s1, 22
        %v1087 = vld [vmem:[%s1086] sm:$0x3]
        %v1093 = vunpack.c.l.b16 %v1081
        %v1094 = vunpack.c.l.b16 %v1082
        %v1095 = vunpack.c.l.b16 %v1083
        %v1096 = vunpack.c.l.b16 %v1084
        %v1097 = vunpack.c.l.b16 %v1085
        %v1098 = vpack.c.b16 %v1094, %v1093
        %v1099 = vpack.c.b16 %v1096, %v1095
        %v1100 = vpack.c.b16 %v1097, %v1097
        %v1102 = vshrl.u32 %v1098, 16
        %v1104 = vshll.u32 %v1098, 16
        %v1106 = vrot.slane %v1104, 1
        %v1107 = vor.u32 %v1102, %v1106
        %v1109 = vshll.u32 %v1099, 16
        %v1111 = vrot.slane %v1109, 1
        %v1112 = vsel %vm202, %v1107, %v1111
        %v1113 = vshrl.u32 %v1099, 16
        %v1115 = vor.u32 %v1113, %v1111
        %v1117 = vshll.u32 %v1100, 16
        %v1119 = vrot.slane %v1117, 1
        %v1120 = vsel %vm202, %v1115, %v1119
        %v1122 = vsel %vm223, %v1112, 0
        %v1125 = vsel %vm223, %v1120, 0
        %v1128 = vand.u32 %v1087, %v233
        %1130 = vmatprep.subr.bf16.mxu0 0
        %1131 = vmatpush1.bf16.msra.mxu0 %v1128
        %1132 = vmatprep.subr.bf16.mxu0 0
        %1133 = vmatpush1.bf16.msra.mxu0 0
        %1134 = vmatprep.subr.bf16.mxu0 0
        %1135 = vmatpush1.bf16.msra.mxu0 0
        %1136 = vmatprep.subr.bf16.mxu0 0
        %1137 = vmatpush1.bf16.msra.mxu0 0
        %1138 = vmatprep.subr.bf16.mxu0 0
        %1139 = vmatpush1.bf16.msra.mxu0 0
        %1140 = vmatprep.subr.bf16.mxu0 0
        %1141 = vmatpush1.bf16.msra.mxu0 0
        %1142 = vmatprep.subr.bf16.mxu0 0
        %1143 = vmatpush1.bf16.msra.mxu0 0
        %1144 = vmatprep.subr.bf16.mxu0 0
        %1145 = vmatpush1.bf16.msra.mxu0 0
        %1146 = vmatprep.subr.bf16.mxu0 0
        %1147 = vmatpush1.bf16.msra.mxu0 0
        %1148 = vmatprep.subr.bf16.mxu0 0
        %1149 = vmatpush1.bf16.msra.mxu0 0
        %1150 = vmatprep.subr.bf16.mxu0 0
        %1151 = vmatpush1.bf16.msra.mxu0 0
        %1152 = vmatprep.subr.bf16.mxu0 0
        %1153 = vmatpush1.bf16.msra.mxu0 0
        %1154 = vmatprep.subr.bf16.mxu0 0
        %1155 = vmatpush1.bf16.msra.mxu0 0
        %1156 = vmatprep.subr.bf16.mxu0 0
        %1157 = vmatpush1.bf16.msra.mxu0 0
        %1158 = vmatprep.subr.bf16.mxu0 0
        %1159 = vmatpush1.bf16.msra.mxu0 0
        %1160 = vmatprep.subr.bf16.mxu0 0
        %1161 = vmatpush1.bf16.msra.mxu0 0
        %1162 = vmatprep.mubr.bf16.mxu0 0
        %1163 = vmatmul.mubr.bf16.gmra.mrb[0].mxu0 %v1122
        %v1164 = vpop.f32.mrb[0].mxu0
        %v1165 = vadd.f32 0.0, %v1164
        %v1166 = vpop.f32.mrb[0].mxu0
        %v1167 = vpop.f32.mrb[0].mxu0
        %v1168 = vadd.f32 0.0, %v1167
        %v1169 = vpop.f32.mrb[0].mxu0
        %1170 = vmatprep.mubr.bf16.mxu0 0
        %1171 = vmatmul.mubr.bf16.gmra.mrb[0].mxu0 %v1125
        %v1172 = vpop.f32.mrb[0].mxu0
        %v1173 = vadd.f32 0.0, %v1172
        %v1174 = vpop.f32.mrb[0].mxu0
        %v1175 = vpop.f32.mrb[0].mxu0
        %v1176 = vadd.f32 0.0, %v1175
        %v1177 = vpop.f32.mrb[0].mxu0
        %1178 = vdwg.mxu0
        %v1179 = vadd.f32 %v1077, %v1165
        %v1180 = vadd.f32 %v1078, %v1168
        %v1181 = vadd.f32 %v1079, %v1173
        %v1182 = vadd.f32 %v1080, %v1176
        %v1183 = vld [vmem:[%s1002] sm:$0xe]
        %s1184 = scalar_lea.vmem %s1, 24
        %v1185 = vld [vmem:[%s1184] sm:$0x3]
        %v1187 = vunpack.c.l.b16 %v1183
        %v1188 = vpack.c.b16 %v1094, %v1187
        %v1189 = vrot.slane %v1188, 1
        %v1190 = vrot.slane %v1099, 1
        %v1191 = vsel %vm348, %v1189, %v1190
        %v1192 = vrot.slane %v1100, 1
        %v1193 = vsel %vm348, %v1190, %v1192
        %v1195 = vsel %vm223, %v1191, 0
        %v1198 = vsel %vm223, %v1193, 0
        %v1201 = vand.u32 %v1185, %v233
        %1203 = vmatprep.subr.bf16.mxu0 0
        %1204 = vmatpush1.bf16.msra.mxu0 %v1201
        %1205 = vmatprep.subr.bf16.mxu0 0
        %1206 = vmatpush1.bf16.msra.mxu0 0
        %1207 = vmatprep.subr.bf16.mxu0 0
        %1208 = vmatpush1.bf16.msra.mxu0 0
        %1209 = vmatprep.subr.bf16.mxu0 0
        %1210 = vmatpush1.bf16.msra.mxu0 0
        %1211 = vmatprep.subr.bf16.mxu0 0
        %1212 = vmatpush1.bf16.msra.mxu0 0
        %1213 = vmatprep.subr.bf16.mxu0 0
        %1214 = vmatpush1.bf16.msra.mxu0 0
        %1215 = vmatprep.subr.bf16.mxu0 0
        %1216 = vmatpush1.bf16.msra.mxu0 0
        %1217 = vmatprep.subr.bf16.mxu0 0
        %1218 = vmatpush1.bf16.msra.mxu0 0
        %1219 = vmatprep.subr.bf16.mxu0 0
        %1220 = vmatpush1.bf16.msra.mxu0 0
        %1221 = vmatprep.subr.bf16.mxu0 0
        %1222 = vmatpush1.bf16.msra.mxu0 0
        %1223 = vmatprep.subr.bf16.mxu0 0
        %1224 = vmatpush1.bf16.msra.mxu0 0
        %1225 = vmatprep.subr.bf16.mxu0 0
        %1226 = vmatpush1.bf16.msra.mxu0 0
        %1227 = vmatprep.subr.bf16.mxu0 0
        %1228 = vmatpush1.bf16.msra.mxu0 0
        %1229 = vmatprep.subr.bf16.mxu0 0
        %1230 = vmatpush1.bf16.msra.mxu0 0
        %1231 = vmatprep.subr.bf16.mxu0 0
        %1232 = vmatpush1.bf16.msra.mxu0 0
        %1233 = vmatprep.subr.bf16.mxu0 0
        %1234 = vmatpush1.bf16.msra.mxu0 0
        %1235 = vmatprep.mubr.bf16.mxu0 0
        %1236 = vmatmul.mubr.bf16.gmra.mrb[0].mxu0 %v1195
        %v1237 = vpop.f32.mrb[0].mxu0
        %v1238 = vadd.f32 0.0, %v1237
        %v1239 = vpop.f32.mrb[0].mxu0
        %v1240 = vpop.f32.mrb[0].mxu0
        %v1241 = vadd.f32 0.0, %v1240
        %v1242 = vpop.f32.mrb[0].mxu0
        %1243 = vmatprep.mubr.bf16.mxu0 0
        %1244 = vmatmul.mubr.bf16.gmra.mrb[0].mxu0 %v1198
        %v1245 = vpop.f32.mrb[0].mxu0
        %v1246 = vadd.f32 0.0, %v1245
        %v1247 = vpop.f32.mrb[0].mxu0
        %v1248 = vpop.f32.mrb[0].mxu0
        %v1249 = vadd.f32 0.0, %v1248
        %v1250 = vpop.f32.mrb[0].mxu0
        %1251 = vdwg.mxu0
        %v1252 = vadd.f32 %v1179, %v1238
        %v1253 = vadd.f32 %v1180, %v1241
        %v1254 = vadd.f32 %v1181, %v1246
        %v1255 = vadd.f32 %v1182, %v1249
        %v1256 = vld [vmem:[%s1002 + $0x10] sm:$0x3]
        %s1257 = scalar_lea.vmem %s1, 26
        %v1258 = vld [vmem:[%s1257] sm:$0x3]
        %v1260 = vunpack.c.l.b16 %v1256
        %v1261 = vpack.c.b16 %v1260, %v1260
        %v1263 = vshrl.u32 %v1188, 16
        %v1265 = vrot.slane %v1263, 1
        %v1266 = vshll.u32 %v1188, 16
        %v1268 = vrot.slane %v1266, 2
        %v1269 = vor.u32 %v1265, %v1268
        %v1270 = vrot.slane %v1113, 1
        %v1271 = vrot.slane %v1109, 2
        %v1272 = vor.u32 %v1270, %v1271
        %v1273 = vsel %vm422, %v1269, %v1272
        %v1275 = vshrl.u32 %v1261, 16
        %v1277 = vrot.slane %v1275, 1
        %v1278 = vshll.u32 %v1261, 16
        %v1280 = vrot.slane %v1278, 2
        %v1281 = vor.u32 %v1277, %v1280
        %v1282 = vsel %vm422, %v1272, %v1281
        %v1284 = vsel %vm223, %v1273, 0
        %v1287 = vsel %vm223, %v1282, 0
        %v1290 = vand.u32 %v1258, %v233
        %1292 = vmatprep.subr.bf16.mxu0 0
        %1293 = vmatpush1.bf16.msra.mxu0 %v1290
        %1294 = vmatprep.subr.bf16.mxu0 0
        %1295 = vmatpush1.bf16.msra.mxu0 0
        %1296 = vmatprep.subr.bf16.mxu0 0
        %1297 = vmatpush1.bf16.msra.mxu0 0
        %1298 = vmatprep.subr.bf16.mxu0 0
        %1299 = vmatpush1.bf16.msra.mxu0 0
        %1300 = vmatprep.subr.bf16.mxu0 0
        %1301 = vmatpush1.bf16.msra.mxu0 0
        %1302 = vmatprep.subr.bf16.mxu0 0
        %1303 = vmatpush1.bf16.msra.mxu0 0
        %1304 = vmatprep.subr.bf16.mxu0 0
        %1305 = vmatpush1.bf16.msra.mxu0 0
        %1306 = vmatprep.subr.bf16.mxu0 0
        %1307 = vmatpush1.bf16.msra.mxu0 0
        %1308 = vmatprep.subr.bf16.mxu0 0
        %1309 = vmatpush1.bf16.msra.mxu0 0
        %1310 = vmatprep.subr.bf16.mxu0 0
        %1311 = vmatpush1.bf16.msra.mxu0 0
        %1312 = vmatprep.subr.bf16.mxu0 0
        %1313 = vmatpush1.bf16.msra.mxu0 0
        %1314 = vmatprep.subr.bf16.mxu0 0
        %1315 = vmatpush1.bf16.msra.mxu0 0
        %1316 = vmatprep.subr.bf16.mxu0 0
        %1317 = vmatpush1.bf16.msra.mxu0 0
        %1318 = vmatprep.subr.bf16.mxu0 0
        %1319 = vmatpush1.bf16.msra.mxu0 0
        %1320 = vmatprep.subr.bf16.mxu0 0
        %1321 = vmatpush1.bf16.msra.mxu0 0
        %1322 = vmatprep.subr.bf16.mxu0 0
        %1323 = vmatpush1.bf16.msra.mxu0 0
        %1324 = vmatprep.mubr.bf16.mxu0 0
        %1325 = vmatmul.mubr.bf16.gmra.mrb[0].mxu0 %v1284
        %v1326 = vpop.f32.mrb[0].mxu0
        %v1327 = vadd.f32 0.0, %v1326
        %v1328 = vpop.f32.mrb[0].mxu0
        %v1329 = vpop.f32.mrb[0].mxu0
        %v1330 = vadd.f32 0.0, %v1329
        %v1331 = vpop.f32.mrb[0].mxu0
        %1332 = vmatprep.mubr.bf16.mxu0 0
        %1333 = vmatmul.mubr.bf16.gmra.mrb[0].mxu0 %v1287
        %v1334 = vpop.f32.mrb[0].mxu0
        %v1335 = vadd.f32 0.0, %v1334
        %v1336 = vpop.f32.mrb[0].mxu0
        %v1337 = vpop.f32.mrb[0].mxu0
        %v1338 = vadd.f32 0.0, %v1337
        %v1339 = vpop.f32.mrb[0].mxu0
        %1340 = vdwg.mxu0
        %v1341 = vadd.f32 %v1252, %v1327
        %v1342 = vadd.f32 %v1253, %v1330
        %v1343 = vadd.f32 %v1254, %v1335
        %v1344 = vadd.f32 %v1255, %v1338
        %v1345 = vld [vmem:[%s1002] sm:$0xc]
        %s1346 = scalar_lea.vmem %s1, 28
        %v1347 = vld [vmem:[%s1346] sm:$0x3]
        %v1349 = vunpack.c.l.b16 %v1345
        %v1350 = vpack.c.b16 %v1094, %v1349
        %v1351 = vrot.slane %v1350, 2
        %v1352 = vrot.slane %v1099, 2
        %v1353 = vsel %vm512, %v1351, %v1352
        %v1354 = vrot.slane %v1261, 2
        %v1355 = vsel %vm512, %v1352, %v1354
        %v1357 = vsel %vm223, %v1353, 0
        %v1360 = vsel %vm223, %v1355, 0
        %v1363 = vand.u32 %v1347, %v233
        %1365 = vmatprep.subr.bf16.mxu0 0
        %1366 = vmatpush1.bf16.msra.mxu0 %v1363
        %1367 = vmatprep.subr.bf16.mxu0 0
        %1368 = vmatpush1.bf16.msra.mxu0 0
        %1369 = vmatprep.subr.bf16.mxu0 0
        %1370 = vmatpush1.bf16.msra.mxu0 0
        %1371 = vmatprep.subr.bf16.mxu0 0
        %1372 = vmatpush1.bf16.msra.mxu0 0
        %1373 = vmatprep.subr.bf16.mxu0 0
        %1374 = vmatpush1.bf16.msra.mxu0 0
        %1375 = vmatprep.subr.bf16.mxu0 0
        %1376 = vmatpush1.bf16.msra.mxu0 0
        %1377 = vmatprep.subr.bf16.mxu0 0
        %1378 = vmatpush1.bf16.msra.mxu0 0
        %1379 = vmatprep.subr.bf16.mxu0 0
        %1380 = vmatpush1.bf16.msra.mxu0 0
        %1381 = vmatprep.subr.bf16.mxu0 0
        %1382 = vmatpush1.bf16.msra.mxu0 0
        %1383 = vmatprep.subr.bf16.mxu0 0
        %1384 = vmatpush1.bf16.msra.mxu0 0
        %1385 = vmatprep.subr.bf16.mxu0 0
        %1386 = vmatpush1.bf16.msra.mxu0 0
        %1387 = vmatprep.subr.bf16.mxu0 0
        %1388 = vmatpush1.bf16.msra.mxu0 0
        %1389 = vmatprep.subr.bf16.mxu0 0
        %1390 = vmatpush1.bf16.msra.mxu0 0
        %1391 = vmatprep.subr.bf16.mxu0 0
        %1392 = vmatpush1.bf16.msra.mxu0 0
        %1393 = vmatprep.subr.bf16.mxu0 0
        %1394 = vmatpush1.bf16.msra.mxu0 0
        %1395 = vmatprep.subr.bf16.mxu0 0
        %1396 = vmatpush1.bf16.msra.mxu0 0
        %1397 = vmatprep.mubr.bf16.mxu0 0
        %1398 = vmatmul.mubr.bf16.gmra.mrb[0].mxu0 %v1357
        %v1399 = vpop.f32.mrb[0].mxu0
        %v1400 = vadd.f32 0.0, %v1399
        %v1401 = vpop.f32.mrb[0].mxu0
        %v1402 = vpop.f32.mrb[0].mxu0
        %v1403 = vadd.f32 0.0, %v1402
        %v1404 = vpop.f32.mrb[0].mxu0
        %1405 = vmatprep.mubr.bf16.mxu0 0
        %1406 = vmatmul.mubr.bf16.gmra.mrb[0].mxu0 %v1360
        %v1407 = vpop.f32.mrb[0].mxu0
        %v1408 = vadd.f32 0.0, %v1407
        %v1409 = vpop.f32.mrb[0].mxu0
        %v1410 = vpop.f32.mrb[0].mxu0
        %v1411 = vadd.f32 0.0, %v1410
        %v1412 = vpop.f32.mrb[0].mxu0
        %1413 = vdwg.mxu0
        %v1414 = vadd.f32 %v1341, %v1400
        %v1415 = vadd.f32 %v1342, %v1403
        %v1416 = vadd.f32 %v1343, %v1408
        %v1417 = vadd.f32 %v1344, %v1411
        %s1418 = sadd.s32 %s173, 3
        %s1419 = smul.u32 %s1418, 5
        %s1420 = smul.addr %s1419, 4
        %s1421 = scalar_lea.vmem %s165, %s1420
        %v1422 = vld [vmem:[%s1421] sm:$0xf]
        %v1423 = vld [vmem:[%s1421 + $0x4] sm:$0xf]
        %v1424 = vld [vmem:[%s1421 + $0x8] sm:$0xf]
        %v1425 = vld [vmem:[%s1421 + $0xc] sm:$0xf]
        %s1426 = scalar_lea.vmem %s1, 30
        %v1427 = vld [vmem:[%s1426] sm:$0x3]
        %v1432 = vunpack.c.l.b16 %v1422
        %v1433 = vunpack.c.l.b16 %v1423
        %v1434 = vunpack.c.l.b16 %v1424
        %v1435 = vunpack.c.l.b16 %v1425
        %v1436 = vpack.c.b16 %v1433, %v1432
        %v1437 = vpack.c.b16 %v1435, %v1434
        %v1439 = vsel %vm223, %v1436, 0
        %v1442 = vsel %vm223, %v1437, 0
        %v1445 = vand.u32 %v1427, %v233
        %1447 = vmatprep.subr.bf16.mxu0 0
        %1448 = vmatpush1.bf16.msra.mxu0 %v1445
        %1449 = vmatprep.subr.bf16.mxu0 0
        %1450 = vmatpush1.bf16.msra.mxu0 0
        %1451 = vmatprep.subr.bf16.mxu0 0
        %1452 = vmatpush1.bf16.msra.mxu0 0
        %1453 = vmatprep.subr.bf16.mxu0 0
        %1454 = vmatpush1.bf16.msra.mxu0 0
        %1455 = vmatprep.subr.bf16.mxu0 0
        %1456 = vmatpush1.bf16.msra.mxu0 0
        %1457 = vmatprep.subr.bf16.mxu0 0
        %1458 = vmatpush1.bf16.msra.mxu0 0
        %1459 = vmatprep.subr.bf16.mxu0 0
        %1460 = vmatpush1.bf16.msra.mxu0 0
        %1461 = vmatprep.subr.bf16.mxu0 0
        %1462 = vmatpush1.bf16.msra.mxu0 0
        %1463 = vmatprep.subr.bf16.mxu0 0
        %1464 = vmatpush1.bf16.msra.mxu0 0
        %1465 = vmatprep.subr.bf16.mxu0 0
        %1466 = vmatpush1.bf16.msra.mxu0 0
        %1467 = vmatprep.subr.bf16.mxu0 0
        %1468 = vmatpush1.bf16.msra.mxu0 0
        %1469 = vmatprep.subr.bf16.mxu0 0
        %1470 = vmatpush1.bf16.msra.mxu0 0
        %1471 = vmatprep.subr.bf16.mxu0 0
        %1472 = vmatpush1.bf16.msra.mxu0 0
        %1473 = vmatprep.subr.bf16.mxu0 0
        %1474 = vmatpush1.bf16.msra.mxu0 0
        %1475 = vmatprep.subr.bf16.mxu0 0
        %1476 = vmatpush1.bf16.msra.mxu0 0
        %1477 = vmatprep.subr.bf16.mxu0 0
        %1478 = vmatpush1.bf16.msra.mxu0 0
        %1479 = vmatprep.mubr.bf16.mxu0 0
        %1480 = vmatmul.mubr.bf16.gmra.mrb[0].mxu0 %v1439
        %v1481 = vpop.f32.mrb[0].mxu0
        %v1482 = vadd.f32 0.0, %v1481
        %v1483 = vpop.f32.mrb[0].mxu0
        %v1484 = vpop.f32.mrb[0].mxu0
        %v1485 = vadd.f32 0.0, %v1484
        %v1486 = vpop.f32.mrb[0].mxu0
        %1487 = vmatprep.mubr.bf16.mxu0 0
        %1488 = vmatmul.mubr.bf16.gmra.mrb[0].mxu0 %v1442
        %v1489 = vpop.f32.mrb[0].mxu0
        %v1490 = vadd.f32 0.0, %v1489
        %v1491 = vpop.f32.mrb[0].mxu0
        %v1492 = vpop.f32.mrb[0].mxu0
        %v1493 = vadd.f32 0.0, %v1492
        %v1494 = vpop.f32.mrb[0].mxu0
        %1495 = vdwg.mxu0
        %v1496 = vadd.f32 %v1414, %v1482
        %v1497 = vadd.f32 %v1415, %v1485
        %v1498 = vadd.f32 %v1416, %v1490
        %v1499 = vadd.f32 %v1417, %v1493
        %v1500 = vld [vmem:[%s1421] sm:$0xf]
        %v1501 = vld [vmem:[%s1421 + $0x4] sm:$0xf]
        %v1502 = vld [vmem:[%s1421 + $0x8] sm:$0xf]
        %v1503 = vld [vmem:[%s1421 + $0xc] sm:$0xf]
        %v1504 = vld [vmem:[%s1421 + $0x10] sm:$0x1]
        %s1505 = scalar_lea.vmem %s1, 32
        %v1506 = vld [vmem:[%s1505] sm:$0x3]
        %v1512 = vunpack.c.l.b16 %v1500
        %v1513 = vunpack.c.l.b16 %v1501
        %v1514 = vunpack.c.l.b16 %v1502
        %v1515 = vunpack.c.l.b16 %v1503
        %v1516 = vunpack.c.l.b16 %v1504
        %v1517 = vpack.c.b16 %v1513, %v1512
        %v1518 = vpack.c.b16 %v1515, %v1514
        %v1519 = vpack.c.b16 %v1516, %v1516
        %v1521 = vshrl.u32 %v1517, 16
        %v1523 = vshll.u32 %v1517, 16
        %v1525 = vrot.slane %v1523, 1
        %v1526 = vor.u32 %v1521, %v1525
        %v1528 = vshll.u32 %v1518, 16
        %v1530 = vrot.slane %v1528, 1
        %v1531 = vsel %vm202, %v1526, %v1530
        %v1532 = vshrl.u32 %v1518, 16
        %v1534 = vor.u32 %v1532, %v1530
        %v1536 = vshll.u32 %v1519, 16
        %v1538 = vrot.slane %v1536, 1
        %v1539 = vsel %vm202, %v1534, %v1538
        %v1541 = vsel %vm223, %v1531, 0
        %v1544 = vsel %vm223, %v1539, 0
        %v1547 = vand.u32 %v1506, %v233
        %1549 = vmatprep.subr.bf16.mxu0 0
        %1550 = vmatpush1.bf16.msra.mxu0 %v1547
        %1551 = vmatprep.subr.bf16.mxu0 0
        %1552 = vmatpush1.bf16.msra.mxu0 0
        %1553 = vmatprep.subr.bf16.mxu0 0
        %1554 = vmatpush1.bf16.msra.mxu0 0
        %1555 = vmatprep.subr.bf16.mxu0 0
        %1556 = vmatpush1.bf16.msra.mxu0 0
        %1557 = vmatprep.subr.bf16.mxu0 0
        %1558 = vmatpush1.bf16.msra.mxu0 0
        %1559 = vmatprep.subr.bf16.mxu0 0
        %1560 = vmatpush1.bf16.msra.mxu0 0
        %1561 = vmatprep.subr.bf16.mxu0 0
        %1562 = vmatpush1.bf16.msra.mxu0 0
        %1563 = vmatprep.subr.bf16.mxu0 0
        %1564 = vmatpush1.bf16.msra.mxu0 0
        %1565 = vmatprep.subr.bf16.mxu0 0
        %1566 = vmatpush1.bf16.msra.mxu0 0
        %1567 = vmatprep.subr.bf16.mxu0 0
        %1568 = vmatpush1.bf16.msra.mxu0 0
        %1569 = vmatprep.subr.bf16.mxu0 0
        %1570 = vmatpush1.bf16.msra.mxu0 0
        %1571 = vmatprep.subr.bf16.mxu0 0
        %1572 = vmatpush1.bf16.msra.mxu0 0
        %1573 = vmatprep.subr.bf16.mxu0 0
        %1574 = vmatpush1.bf16.msra.mxu0 0
        %1575 = vmatprep.subr.bf16.mxu0 0
        %1576 = vmatpush1.bf16.msra.mxu0 0
        %1577 = vmatprep.subr.bf16.mxu0 0
        %1578 = vmatpush1.bf16.msra.mxu0 0
        %1579 = vmatprep.subr.bf16.mxu0 0
        %1580 = vmatpush1.bf16.msra.mxu0 0
        %1581 = vmatprep.mubr.bf16.mxu0 0
        %1582 = vmatmul.mubr.bf16.gmra.mrb[0].mxu0 %v1541
        %v1583 = vpop.f32.mrb[0].mxu0
        %v1584 = vadd.f32 0.0, %v1583
        %v1585 = vpop.f32.mrb[0].mxu0
        %v1586 = vpop.f32.mrb[0].mxu0
        %v1587 = vadd.f32 0.0, %v1586
        %v1588 = vpop.f32.mrb[0].mxu0
        %1589 = vmatprep.mubr.bf16.mxu0 0
        %1590 = vmatmul.mubr.bf16.gmra.mrb[0].mxu0 %v1544
        %v1591 = vpop.f32.mrb[0].mxu0
        %v1592 = vadd.f32 0.0, %v1591
        %v1593 = vpop.f32.mrb[0].mxu0
        %v1594 = vpop.f32.mrb[0].mxu0
        %v1595 = vadd.f32 0.0, %v1594
        %v1596 = vpop.f32.mrb[0].mxu0
        %1597 = vdwg.mxu0
        %v1598 = vadd.f32 %v1496, %v1584
        %v1599 = vadd.f32 %v1497, %v1587
        %v1600 = vadd.f32 %v1498, %v1592
        %v1601 = vadd.f32 %v1499, %v1595
        %v1602 = vld [vmem:[%s1421] sm:$0xe]
        %s1603 = scalar_lea.vmem %s1, 34
        %v1604 = vld [vmem:[%s1603] sm:$0x3]
        %v1606 = vunpack.c.l.b16 %v1602
        %v1607 = vpack.c.b16 %v1513, %v1606
        %v1608 = vrot.slane %v1607, 1
        %v1609 = vrot.slane %v1518, 1
        %v1610 = vsel %vm348, %v1608, %v1609
        %v1611 = vrot.slane %v1519, 1
        %v1612 = vsel %vm348, %v1609, %v1611
        %v1614 = vsel %vm223, %v1610, 0
        %v1617 = vsel %vm223, %v1612, 0
        %v1620 = vand.u32 %v1604, %v233
        %1622 = vmatprep.subr.bf16.mxu0 0
        %1623 = vmatpush1.bf16.msra.mxu0 %v1620
        %1624 = vmatprep.subr.bf16.mxu0 0
        %1625 = vmatpush1.bf16.msra.mxu0 0
        %1626 = vmatprep.subr.bf16.mxu0 0
        %1627 = vmatpush1.bf16.msra.mxu0 0
        %1628 = vmatprep.subr.bf16.mxu0 0
        %1629 = vmatpush1.bf16.msra.mxu0 0
        %1630 = vmatprep.subr.bf16.mxu0 0
        %1631 = vmatpush1.bf16.msra.mxu0 0
        %1632 = vmatprep.subr.bf16.mxu0 0
        %1633 = vmatpush1.bf16.msra.mxu0 0
        %1634 = vmatprep.subr.bf16.mxu0 0
        %1635 = vmatpush1.bf16.msra.mxu0 0
        %1636 = vmatprep.subr.bf16.mxu0 0
        %1637 = vmatpush1.bf16.msra.mxu0 0
        %1638 = vmatprep.subr.bf16.mxu0 0
        %1639 = vmatpush1.bf16.msra.mxu0 0
        %1640 = vmatprep.subr.bf16.mxu0 0
        %1641 = vmatpush1.bf16.msra.mxu0 0
        %1642 = vmatprep.subr.bf16.mxu0 0
        %1643 = vmatpush1.bf16.msra.mxu0 0
        %1644 = vmatprep.subr.bf16.mxu0 0
        %1645 = vmatpush1.bf16.msra.mxu0 0
        %1646 = vmatprep.subr.bf16.mxu0 0
        %1647 = vmatpush1.bf16.msra.mxu0 0
        %1648 = vmatprep.subr.bf16.mxu0 0
        %1649 = vmatpush1.bf16.msra.mxu0 0
        %1650 = vmatprep.subr.bf16.mxu0 0
        %1651 = vmatpush1.bf16.msra.mxu0 0
        %1652 = vmatprep.subr.bf16.mxu0 0
        %1653 = vmatpush1.bf16.msra.mxu0 0
        %1654 = vmatprep.mubr.bf16.mxu0 0
        %1655 = vmatmul.mubr.bf16.gmra.mrb[0].mxu0 %v1614
        %v1656 = vpop.f32.mrb[0].mxu0
        %v1657 = vadd.f32 0.0, %v1656
        %v1658 = vpop.f32.mrb[0].mxu0
        %v1659 = vpop.f32.mrb[0].mxu0
        %v1660 = vadd.f32 0.0, %v1659
        %v1661 = vpop.f32.mrb[0].mxu0
        %1662 = vmatprep.mubr.bf16.mxu0 0
        %1663 = vmatmul.mubr.bf16.gmra.mrb[0].mxu0 %v1617
        %v1664 = vpop.f32.mrb[0].mxu0
        %v1665 = vadd.f32 0.0, %v1664
        %v1666 = vpop.f32.mrb[0].mxu0
        %v1667 = vpop.f32.mrb[0].mxu0
        %v1668 = vadd.f32 0.0, %v1667
        %v1669 = vpop.f32.mrb[0].mxu0
        %1670 = vdwg.mxu0
        %v1671 = vadd.f32 %v1598, %v1657
        %v1672 = vadd.f32 %v1599, %v1660
        %v1673 = vadd.f32 %v1600, %v1665
        %v1674 = vadd.f32 %v1601, %v1668
        %v1675 = vld [vmem:[%s1421 + $0x10] sm:$0x3]
        %s1676 = scalar_lea.vmem %s1, 36
        %v1677 = vld [vmem:[%s1676] sm:$0x3]
        %v1679 = vunpack.c.l.b16 %v1675
        %v1680 = vpack.c.b16 %v1679, %v1679
        %v1682 = vshrl.u32 %v1607, 16
        %v1684 = vrot.slane %v1682, 1
        %v1685 = vshll.u32 %v1607, 16
        %v1687 = vrot.slane %v1685, 2
        %v1688 = vor.u32 %v1684, %v1687
        %v1689 = vrot.slane %v1532, 1
        %v1690 = vrot.slane %v1528, 2
        %v1691 = vor.u32 %v1689, %v1690
        %v1692 = vsel %vm422, %v1688, %v1691
        %v1694 = vshrl.u32 %v1680, 16
        %v1696 = vrot.slane %v1694, 1
        %v1697 = vshll.u32 %v1680, 16
        %v1699 = vrot.slane %v1697, 2
        %v1700 = vor.u32 %v1696, %v1699
        %v1701 = vsel %vm422, %v1691, %v1700
        %v1703 = vsel %vm223, %v1692, 0
        %v1706 = vsel %vm223, %v1701, 0
        %v1709 = vand.u32 %v1677, %v233
        %1711 = vmatprep.subr.bf16.mxu0 0
        %1712 = vmatpush1.bf16.msra.mxu0 %v1709
        %1713 = vmatprep.subr.bf16.mxu0 0
        %1714 = vmatpush1.bf16.msra.mxu0 0
        %1715 = vmatprep.subr.bf16.mxu0 0
        %1716 = vmatpush1.bf16.msra.mxu0 0
        %1717 = vmatprep.subr.bf16.mxu0 0
        %1718 = vmatpush1.bf16.msra.mxu0 0
        %1719 = vmatprep.subr.bf16.mxu0 0
        %1720 = vmatpush1.bf16.msra.mxu0 0
        %1721 = vmatprep.subr.bf16.mxu0 0
        %1722 = vmatpush1.bf16.msra.mxu0 0
        %1723 = vmatprep.subr.bf16.mxu0 0
        %1724 = vmatpush1.bf16.msra.mxu0 0
        %1725 = vmatprep.subr.bf16.mxu0 0
        %1726 = vmatpush1.bf16.msra.mxu0 0
        %1727 = vmatprep.subr.bf16.mxu0 0
        %1728 = vmatpush1.bf16.msra.mxu0 0
        %1729 = vmatprep.subr.bf16.mxu0 0
        %1730 = vmatpush1.bf16.msra.mxu0 0
        %1731 = vmatprep.subr.bf16.mxu0 0
        %1732 = vmatpush1.bf16.msra.mxu0 0
        %1733 = vmatprep.subr.bf16.mxu0 0
        %1734 = vmatpush1.bf16.msra.mxu0 0
        %1735 = vmatprep.subr.bf16.mxu0 0
        %1736 = vmatpush1.bf16.msra.mxu0 0
        %1737 = vmatprep.subr.bf16.mxu0 0
        %1738 = vmatpush1.bf16.msra.mxu0 0
        %1739 = vmatprep.subr.bf16.mxu0 0
        %1740 = vmatpush1.bf16.msra.mxu0 0
        %1741 = vmatprep.subr.bf16.mxu0 0
        %1742 = vmatpush1.bf16.msra.mxu0 0
        %1743 = vmatprep.mubr.bf16.mxu0 0
        %1744 = vmatmul.mubr.bf16.gmra.mrb[0].mxu0 %v1703
        %v1745 = vpop.f32.mrb[0].mxu0
        %v1746 = vadd.f32 0.0, %v1745
        %v1747 = vpop.f32.mrb[0].mxu0
        %v1748 = vpop.f32.mrb[0].mxu0
        %v1749 = vadd.f32 0.0, %v1748
        %v1750 = vpop.f32.mrb[0].mxu0
        %1751 = vmatprep.mubr.bf16.mxu0 0
        %1752 = vmatmul.mubr.bf16.gmra.mrb[0].mxu0 %v1706
        %v1753 = vpop.f32.mrb[0].mxu0
        %v1754 = vadd.f32 0.0, %v1753
        %v1755 = vpop.f32.mrb[0].mxu0
        %v1756 = vpop.f32.mrb[0].mxu0
        %v1757 = vadd.f32 0.0, %v1756
        %v1758 = vpop.f32.mrb[0].mxu0
        %1759 = vdwg.mxu0
        %v1760 = vadd.f32 %v1671, %v1746
        %v1761 = vadd.f32 %v1672, %v1749
        %v1762 = vadd.f32 %v1673, %v1754
        %v1763 = vadd.f32 %v1674, %v1757
        %v1764 = vld [vmem:[%s1421] sm:$0xc]
        %s1765 = scalar_lea.vmem %s1, 38
        %v1766 = vld [vmem:[%s1765] sm:$0x3]
        %v1768 = vunpack.c.l.b16 %v1764
        %v1769 = vpack.c.b16 %v1513, %v1768
        %v1770 = vrot.slane %v1769, 2
        %v1771 = vrot.slane %v1518, 2
        %v1772 = vsel %vm512, %v1770, %v1771
        %v1773 = vrot.slane %v1680, 2
        %v1774 = vsel %vm512, %v1771, %v1773
        %v1776 = vsel %vm223, %v1772, 0
        %v1779 = vsel %vm223, %v1774, 0
        %v1782 = vand.u32 %v1766, %v233
        %1784 = vmatprep.subr.bf16.mxu0 0
        %1785 = vmatpush1.bf16.msra.mxu0 %v1782
        %1786 = vmatprep.subr.bf16.mxu0 0
        %1787 = vmatpush1.bf16.msra.mxu0 0
        %1788 = vmatprep.subr.bf16.mxu0 0
        %1789 = vmatpush1.bf16.msra.mxu0 0
        %1790 = vmatprep.subr.bf16.mxu0 0
        %1791 = vmatpush1.bf16.msra.mxu0 0
        %1792 = vmatprep.subr.bf16.mxu0 0
        %1793 = vmatpush1.bf16.msra.mxu0 0
        %1794 = vmatprep.subr.bf16.mxu0 0
        %1795 = vmatpush1.bf16.msra.mxu0 0
        %1796 = vmatprep.subr.bf16.mxu0 0
        %1797 = vmatpush1.bf16.msra.mxu0 0
        %1798 = vmatprep.subr.bf16.mxu0 0
        %1799 = vmatpush1.bf16.msra.mxu0 0
        %1800 = vmatprep.subr.bf16.mxu0 0
        %1801 = vmatpush1.bf16.msra.mxu0 0
        %1802 = vmatprep.subr.bf16.mxu0 0
        %1803 = vmatpush1.bf16.msra.mxu0 0
        %1804 = vmatprep.subr.bf16.mxu0 0
        %1805 = vmatpush1.bf16.msra.mxu0 0
        %1806 = vmatprep.subr.bf16.mxu0 0
        %1807 = vmatpush1.bf16.msra.mxu0 0
        %1808 = vmatprep.subr.bf16.mxu0 0
        %1809 = vmatpush1.bf16.msra.mxu0 0
        %1810 = vmatprep.subr.bf16.mxu0 0
        %1811 = vmatpush1.bf16.msra.mxu0 0
        %1812 = vmatprep.subr.bf16.mxu0 0
        %1813 = vmatpush1.bf16.msra.mxu0 0
        %1814 = vmatprep.subr.bf16.mxu0 0
        %1815 = vmatpush1.bf16.msra.mxu0 0
        %1816 = vmatprep.mubr.bf16.mxu0 0
        %1817 = vmatmul.mubr.bf16.gmra.mrb[0].mxu0 %v1776
        %v1818 = vpop.f32.mrb[0].mxu0
        %v1819 = vadd.f32 0.0, %v1818
        %v1820 = vpop.f32.mrb[0].mxu0
        %v1821 = vpop.f32.mrb[0].mxu0
        %v1822 = vadd.f32 0.0, %v1821
        %v1823 = vpop.f32.mrb[0].mxu0
        %1824 = vmatprep.mubr.bf16.mxu0 0
        %1825 = vmatmul.mubr.bf16.gmra.mrb[0].mxu0 %v1779
        %v1826 = vpop.f32.mrb[0].mxu0
        %v1827 = vadd.f32 0.0, %v1826
        %v1828 = vpop.f32.mrb[0].mxu0
        %v1829 = vpop.f32.mrb[0].mxu0
        %v1830 = vadd.f32 0.0, %v1829
        %v1831 = vpop.f32.mrb[0].mxu0
        %1832 = vdwg.mxu0
        %v1833 = vadd.f32 %v1760, %v1819
        %v1834 = vadd.f32 %v1761, %v1822
        %v1835 = vadd.f32 %v1762, %v1827
        %v1836 = vadd.f32 %v1763, %v1830
        %s1837 = sadd.s32 %s173, 4
        %s1838 = smul.u32 %s1837, 5
        %s1839 = smul.addr %s1838, 4
        %s1840 = scalar_lea.vmem %s165, %s1839
        %v1841 = vld [vmem:[%s1840] sm:$0xf]
        %v1842 = vld [vmem:[%s1840 + $0x4] sm:$0xf]
        %v1843 = vld [vmem:[%s1840 + $0x8] sm:$0xf]
        %v1844 = vld [vmem:[%s1840 + $0xc] sm:$0xf]
        %s1845 = scalar_lea.vmem %s1, 40
        %v1846 = vld [vmem:[%s1845] sm:$0x3]
        %v1851 = vunpack.c.l.b16 %v1841
        %v1852 = vunpack.c.l.b16 %v1842
        %v1853 = vunpack.c.l.b16 %v1843
        %v1854 = vunpack.c.l.b16 %v1844
        %v1855 = vpack.c.b16 %v1852, %v1851
        %v1856 = vpack.c.b16 %v1854, %v1853
        %v1858 = vsel %vm223, %v1855, 0
        %v1861 = vsel %vm223, %v1856, 0
        %v1864 = vand.u32 %v1846, %v233
        %1866 = vmatprep.subr.bf16.mxu0 0
        %1867 = vmatpush1.bf16.msra.mxu0 %v1864
        %1868 = vmatprep.subr.bf16.mxu0 0
        %1869 = vmatpush1.bf16.msra.mxu0 0
        %1870 = vmatprep.subr.bf16.mxu0 0
        %1871 = vmatpush1.bf16.msra.mxu0 0
        %1872 = vmatprep.subr.bf16.mxu0 0
        %1873 = vmatpush1.bf16.msra.mxu0 0
        %1874 = vmatprep.subr.bf16.mxu0 0
        %1875 = vmatpush1.bf16.msra.mxu0 0
        %1876 = vmatprep.subr.bf16.mxu0 0
        %1877 = vmatpush1.bf16.msra.mxu0 0
        %1878 = vmatprep.subr.bf16.mxu0 0
        %1879 = vmatpush1.bf16.msra.mxu0 0
        %1880 = vmatprep.subr.bf16.mxu0 0
        %1881 = vmatpush1.bf16.msra.mxu0 0
        %1882 = vmatprep.subr.bf16.mxu0 0
        %1883 = vmatpush1.bf16.msra.mxu0 0
        %1884 = vmatprep.subr.bf16.mxu0 0
        %1885 = vmatpush1.bf16.msra.mxu0 0
        %1886 = vmatprep.subr.bf16.mxu0 0
        %1887 = vmatpush1.bf16.msra.mxu0 0
        %1888 = vmatprep.subr.bf16.mxu0 0
        %1889 = vmatpush1.bf16.msra.mxu0 0
        %1890 = vmatprep.subr.bf16.mxu0 0
        %1891 = vmatpush1.bf16.msra.mxu0 0
        %1892 = vmatprep.subr.bf16.mxu0 0
        %1893 = vmatpush1.bf16.msra.mxu0 0
        %1894 = vmatprep.subr.bf16.mxu0 0
        %1895 = vmatpush1.bf16.msra.mxu0 0
        %1896 = vmatprep.subr.bf16.mxu0 0
        %1897 = vmatpush1.bf16.msra.mxu0 0
        %1898 = vmatprep.mubr.bf16.mxu0 0
        %1899 = vmatmul.mubr.bf16.gmra.mrb[0].mxu0 %v1858
        %v1900 = vpop.f32.mrb[0].mxu0
        %v1901 = vadd.f32 0.0, %v1900
        %v1902 = vpop.f32.mrb[0].mxu0
        %v1903 = vpop.f32.mrb[0].mxu0
        %v1904 = vadd.f32 0.0, %v1903
        %v1905 = vpop.f32.mrb[0].mxu0
        %1906 = vmatprep.mubr.bf16.mxu0 0
        %1907 = vmatmul.mubr.bf16.gmra.mrb[0].mxu0 %v1861
        %v1908 = vpop.f32.mrb[0].mxu0
        %v1909 = vadd.f32 0.0, %v1908
        %v1910 = vpop.f32.mrb[0].mxu0
        %v1911 = vpop.f32.mrb[0].mxu0
        %v1912 = vadd.f32 0.0, %v1911
        %v1913 = vpop.f32.mrb[0].mxu0
        %1914 = vdwg.mxu0
        %v1915 = vadd.f32 %v1833, %v1901
        %v1916 = vadd.f32 %v1834, %v1904
        %v1917 = vadd.f32 %v1835, %v1909
        %v1918 = vadd.f32 %v1836, %v1912
        %v1919 = vld [vmem:[%s1840] sm:$0xf]
        %v1920 = vld [vmem:[%s1840 + $0x4] sm:$0xf]
        %v1921 = vld [vmem:[%s1840 + $0x8] sm:$0xf]
        %v1922 = vld [vmem:[%s1840 + $0xc] sm:$0xf]
        %v1923 = vld [vmem:[%s1840 + $0x10] sm:$0x1]
        %s1924 = scalar_lea.vmem %s1, 42
        %v1925 = vld [vmem:[%s1924] sm:$0x3]
        %v1931 = vunpack.c.l.b16 %v1919
        %v1932 = vunpack.c.l.b16 %v1920
        %v1933 = vunpack.c.l.b16 %v1921
        %v1934 = vunpack.c.l.b16 %v1922
        %v1935 = vunpack.c.l.b16 %v1923
        %v1936 = vpack.c.b16 %v1932, %v1931
        %v1937 = vpack.c.b16 %v1934, %v1933
        %v1938 = vpack.c.b16 %v1935, %v1935
        %v1940 = vshrl.u32 %v1936, 16
        %v1942 = vshll.u32 %v1936, 16
        %v1944 = vrot.slane %v1942, 1
        %v1945 = vor.u32 %v1940, %v1944
        %v1947 = vshll.u32 %v1937, 16
        %v1949 = vrot.slane %v1947, 1
        %v1950 = vsel %vm202, %v1945, %v1949
        %v1951 = vshrl.u32 %v1937, 16
        %v1953 = vor.u32 %v1951, %v1949
        %v1955 = vshll.u32 %v1938, 16
        %v1957 = vrot.slane %v1955, 1
        %v1958 = vsel %vm202, %v1953, %v1957
        %v1960 = vsel %vm223, %v1950, 0
        %v1963 = vsel %vm223, %v1958, 0
        %v1966 = vand.u32 %v1925, %v233
        %1968 = vmatprep.subr.bf16.mxu0 0
        %1969 = vmatpush1.bf16.msra.mxu0 %v1966
        %1970 = vmatprep.subr.bf16.mxu0 0
        %1971 = vmatpush1.bf16.msra.mxu0 0
        %1972 = vmatprep.subr.bf16.mxu0 0
        %1973 = vmatpush1.bf16.msra.mxu0 0
        %1974 = vmatprep.subr.bf16.mxu0 0
        %1975 = vmatpush1.bf16.msra.mxu0 0
        %1976 = vmatprep.subr.bf16.mxu0 0
        %1977 = vmatpush1.bf16.msra.mxu0 0
        %1978 = vmatprep.subr.bf16.mxu0 0
        %1979 = vmatpush1.bf16.msra.mxu0 0
        %1980 = vmatprep.subr.bf16.mxu0 0
        %1981 = vmatpush1.bf16.msra.mxu0 0
        %1982 = vmatprep.subr.bf16.mxu0 0
        %1983 = vmatpush1.bf16.msra.mxu0 0
        %1984 = vmatprep.subr.bf16.mxu0 0
        %1985 = vmatpush1.bf16.msra.mxu0 0
        %1986 = vmatprep.subr.bf16.mxu0 0
        %1987 = vmatpush1.bf16.msra.mxu0 0
        %1988 = vmatprep.subr.bf16.mxu0 0
        %1989 = vmatpush1.bf16.msra.mxu0 0
        %1990 = vmatprep.subr.bf16.mxu0 0
        %1991 = vmatpush1.bf16.msra.mxu0 0
        %1992 = vmatprep.subr.bf16.mxu0 0
        %1993 = vmatpush1.bf16.msra.mxu0 0
        %1994 = vmatprep.subr.bf16.mxu0 0
        %1995 = vmatpush1.bf16.msra.mxu0 0
        %1996 = vmatprep.subr.bf16.mxu0 0
        %1997 = vmatpush1.bf16.msra.mxu0 0
        %1998 = vmatprep.subr.bf16.mxu0 0
        %1999 = vmatpush1.bf16.msra.mxu0 0
        %2000 = vmatprep.mubr.bf16.mxu0 0
        %2001 = vmatmul.mubr.bf16.gmra.mrb[0].mxu0 %v1960
        %v2002 = vpop.f32.mrb[0].mxu0
        %v2003 = vadd.f32 0.0, %v2002
        %v2004 = vpop.f32.mrb[0].mxu0
        %v2005 = vpop.f32.mrb[0].mxu0
        %v2006 = vadd.f32 0.0, %v2005
        %v2007 = vpop.f32.mrb[0].mxu0
        %2008 = vmatprep.mubr.bf16.mxu0 0
        %2009 = vmatmul.mubr.bf16.gmra.mrb[0].mxu0 %v1963
        %v2010 = vpop.f32.mrb[0].mxu0
        %v2011 = vadd.f32 0.0, %v2010
        %v2012 = vpop.f32.mrb[0].mxu0
        %v2013 = vpop.f32.mrb[0].mxu0
        %v2014 = vadd.f32 0.0, %v2013
        %v2015 = vpop.f32.mrb[0].mxu0
        %2016 = vdwg.mxu0
        %v2017 = vadd.f32 %v1915, %v2003
        %v2018 = vadd.f32 %v1916, %v2006
        %v2019 = vadd.f32 %v1917, %v2011
        %v2020 = vadd.f32 %v1918, %v2014
        %v2021 = vld [vmem:[%s1840] sm:$0xe]
        %s2022 = scalar_lea.vmem %s1, 44
        %v2023 = vld [vmem:[%s2022] sm:$0x3]
        %v2025 = vunpack.c.l.b16 %v2021
        %v2026 = vpack.c.b16 %v1932, %v2025
        %v2027 = vrot.slane %v2026, 1
        %v2028 = vrot.slane %v1937, 1
        %v2029 = vsel %vm348, %v2027, %v2028
        %v2030 = vrot.slane %v1938, 1
        %v2031 = vsel %vm348, %v2028, %v2030
        %v2033 = vsel %vm223, %v2029, 0
        %v2036 = vsel %vm223, %v2031, 0
        %v2039 = vand.u32 %v2023, %v233
        %2041 = vmatprep.subr.bf16.mxu0 0
        %2042 = vmatpush1.bf16.msra.mxu0 %v2039
        %2043 = vmatprep.subr.bf16.mxu0 0
        %2044 = vmatpush1.bf16.msra.mxu0 0
        %2045 = vmatprep.subr.bf16.mxu0 0
        %2046 = vmatpush1.bf16.msra.mxu0 0
        %2047 = vmatprep.subr.bf16.mxu0 0
        %2048 = vmatpush1.bf16.msra.mxu0 0
        %2049 = vmatprep.subr.bf16.mxu0 0
        %2050 = vmatpush1.bf16.msra.mxu0 0
        %2051 = vmatprep.subr.bf16.mxu0 0
        %2052 = vmatpush1.bf16.msra.mxu0 0
        %2053 = vmatprep.subr.bf16.mxu0 0
        %2054 = vmatpush1.bf16.msra.mxu0 0
        %2055 = vmatprep.subr.bf16.mxu0 0
        %2056 = vmatpush1.bf16.msra.mxu0 0
        %2057 = vmatprep.subr.bf16.mxu0 0
        %2058 = vmatpush1.bf16.msra.mxu0 0
        %2059 = vmatprep.subr.bf16.mxu0 0
        %2060 = vmatpush1.bf16.msra.mxu0 0
        %2061 = vmatprep.subr.bf16.mxu0 0
        %2062 = vmatpush1.bf16.msra.mxu0 0
        %2063 = vmatprep.subr.bf16.mxu0 0
        %2064 = vmatpush1.bf16.msra.mxu0 0
        %2065 = vmatprep.subr.bf16.mxu0 0
        %2066 = vmatpush1.bf16.msra.mxu0 0
        %2067 = vmatprep.subr.bf16.mxu0 0
        %2068 = vmatpush1.bf16.msra.mxu0 0
        %2069 = vmatprep.subr.bf16.mxu0 0
        %2070 = vmatpush1.bf16.msra.mxu0 0
        %2071 = vmatprep.subr.bf16.mxu0 0
        %2072 = vmatpush1.bf16.msra.mxu0 0
        %2073 = vmatprep.mubr.bf16.mxu0 0
        %2074 = vmatmul.mubr.bf16.gmra.mrb[0].mxu0 %v2033
        %v2075 = vpop.f32.mrb[0].mxu0
        %v2076 = vadd.f32 0.0, %v2075
        %v2077 = vpop.f32.mrb[0].mxu0
        %v2078 = vpop.f32.mrb[0].mxu0
        %v2079 = vadd.f32 0.0, %v2078
        %v2080 = vpop.f32.mrb[0].mxu0
        %2081 = vmatprep.mubr.bf16.mxu0 0
        %2082 = vmatmul.mubr.bf16.gmra.mrb[0].mxu0 %v2036
        %v2083 = vpop.f32.mrb[0].mxu0
        %v2084 = vadd.f32 0.0, %v2083
        %v2085 = vpop.f32.mrb[0].mxu0
        %v2086 = vpop.f32.mrb[0].mxu0
        %v2087 = vadd.f32 0.0, %v2086
        %v2088 = vpop.f32.mrb[0].mxu0
        %2089 = vdwg.mxu0
        %v2090 = vadd.f32 %v2017, %v2076
        %v2091 = vadd.f32 %v2018, %v2079
        %v2092 = vadd.f32 %v2019, %v2084
        %v2093 = vadd.f32 %v2020, %v2087
        %v2094 = vld [vmem:[%s1840 + $0x10] sm:$0x3]
        %s2095 = scalar_lea.vmem %s1, 46
        %v2096 = vld [vmem:[%s2095] sm:$0x3]
        %v2098 = vunpack.c.l.b16 %v2094
        %v2099 = vpack.c.b16 %v2098, %v2098
        %v2101 = vshrl.u32 %v2026, 16
        %v2103 = vrot.slane %v2101, 1
        %v2104 = vshll.u32 %v2026, 16
        %v2106 = vrot.slane %v2104, 2
        %v2107 = vor.u32 %v2103, %v2106
        %v2108 = vrot.slane %v1951, 1
        %v2109 = vrot.slane %v1947, 2
        %v2110 = vor.u32 %v2108, %v2109
        %v2111 = vsel %vm422, %v2107, %v2110
        %v2113 = vshrl.u32 %v2099, 16
        %v2115 = vrot.slane %v2113, 1
        %v2116 = vshll.u32 %v2099, 16
        %v2118 = vrot.slane %v2116, 2
        %v2119 = vor.u32 %v2115, %v2118
        %v2120 = vsel %vm422, %v2110, %v2119
        %v2122 = vsel %vm223, %v2111, 0
        %v2125 = vsel %vm223, %v2120, 0
        %v2128 = vand.u32 %v2096, %v233
        %2130 = vmatprep.subr.bf16.mxu0 0
        %2131 = vmatpush1.bf16.msra.mxu0 %v2128
        %2132 = vmatprep.subr.bf16.mxu0 0
        %2133 = vmatpush1.bf16.msra.mxu0 0
        %2134 = vmatprep.subr.bf16.mxu0 0
        %2135 = vmatpush1.bf16.msra.mxu0 0
        %2136 = vmatprep.subr.bf16.mxu0 0
        %2137 = vmatpush1.bf16.msra.mxu0 0
        %2138 = vmatprep.subr.bf16.mxu0 0
        %2139 = vmatpush1.bf16.msra.mxu0 0
        %2140 = vmatprep.subr.bf16.mxu0 0
        %2141 = vmatpush1.bf16.msra.mxu0 0
        %2142 = vmatprep.subr.bf16.mxu0 0
        %2143 = vmatpush1.bf16.msra.mxu0 0
        %2144 = vmatprep.subr.bf16.mxu0 0
        %2145 = vmatpush1.bf16.msra.mxu0 0
        %2146 = vmatprep.subr.bf16.mxu0 0
        %2147 = vmatpush1.bf16.msra.mxu0 0
        %2148 = vmatprep.subr.bf16.mxu0 0
        %2149 = vmatpush1.bf16.msra.mxu0 0
        %2150 = vmatprep.subr.bf16.mxu0 0
        %2151 = vmatpush1.bf16.msra.mxu0 0
        %2152 = vmatprep.subr.bf16.mxu0 0
        %2153 = vmatpush1.bf16.msra.mxu0 0
        %2154 = vmatprep.subr.bf16.mxu0 0
        %2155 = vmatpush1.bf16.msra.mxu0 0
        %2156 = vmatprep.subr.bf16.mxu0 0
        %2157 = vmatpush1.bf16.msra.mxu0 0
        %2158 = vmatprep.subr.bf16.mxu0 0
        %2159 = vmatpush1.bf16.msra.mxu0 0
        %2160 = vmatprep.subr.bf16.mxu0 0
        %2161 = vmatpush1.bf16.msra.mxu0 0
        %2162 = vmatprep.mubr.bf16.mxu0 0
        %2163 = vmatmul.mubr.bf16.gmra.mrb[0].mxu0 %v2122
        %v2164 = vpop.f32.mrb[0].mxu0
        %v2165 = vadd.f32 0.0, %v2164
        %v2166 = vpop.f32.mrb[0].mxu0
        %v2167 = vpop.f32.mrb[0].mxu0
        %v2168 = vadd.f32 0.0, %v2167
        %v2169 = vpop.f32.mrb[0].mxu0
        %2170 = vmatprep.mubr.bf16.mxu0 0
        %2171 = vmatmul.mubr.bf16.gmra.mrb[0].mxu0 %v2125
        %v2172 = vpop.f32.mrb[0].mxu0
        %v2173 = vadd.f32 0.0, %v2172
        %v2174 = vpop.f32.mrb[0].mxu0
        %v2175 = vpop.f32.mrb[0].mxu0
        %v2176 = vadd.f32 0.0, %v2175
        %v2177 = vpop.f32.mrb[0].mxu0
        %2178 = vdwg.mxu0
        %v2179 = vadd.f32 %v2090, %v2165
        %v2180 = vadd.f32 %v2091, %v2168
        %v2181 = vadd.f32 %v2092, %v2173
        %v2182 = vadd.f32 %v2093, %v2176
        %v2183 = vld [vmem:[%s1840] sm:$0xc]
        %s2184 = scalar_lea.vmem %s1, 48
        %v2185 = vld [vmem:[%s2184] sm:$0x3]
        %v2187 = vunpack.c.l.b16 %v2183
        %v2188 = vpack.c.b16 %v1932, %v2187
        %v2189 = vrot.slane %v2188, 2
        %v2190 = vrot.slane %v1937, 2
        %v2191 = vsel %vm512, %v2189, %v2190
        %v2192 = vrot.slane %v2099, 2
        %v2193 = vsel %vm512, %v2190, %v2192
        %v2195 = vsel %vm223, %v2191, 0
        %v2198 = vsel %vm223, %v2193, 0
        %v2201 = vand.u32 %v2185, %v233
        %2203 = vmatprep.subr.bf16.mxu0 0
        %2204 = vmatpush1.bf16.msra.mxu0 %v2201
        %2205 = vmatprep.subr.bf16.mxu0 0
        %2206 = vmatpush1.bf16.msra.mxu0 0
        %2207 = vmatprep.subr.bf16.mxu0 0
        %2208 = vmatpush1.bf16.msra.mxu0 0
        %2209 = vmatprep.subr.bf16.mxu0 0
        %2210 = vmatpush1.bf16.msra.mxu0 0
        %2211 = vmatprep.subr.bf16.mxu0 0
        %2212 = vmatpush1.bf16.msra.mxu0 0
        %2213 = vmatprep.subr.bf16.mxu0 0
        %2214 = vmatpush1.bf16.msra.mxu0 0
        %2215 = vmatprep.subr.bf16.mxu0 0
        %2216 = vmatpush1.bf16.msra.mxu0 0
        %2217 = vmatprep.subr.bf16.mxu0 0
        %2218 = vmatpush1.bf16.msra.mxu0 0
        %2219 = vmatprep.subr.bf16.mxu0 0
        %2220 = vmatpush1.bf16.msra.mxu0 0
        %2221 = vmatprep.subr.bf16.mxu0 0
        %2222 = vmatpush1.bf16.msra.mxu0 0
        %2223 = vmatprep.subr.bf16.mxu0 0
        %2224 = vmatpush1.bf16.msra.mxu0 0
        %2225 = vmatprep.subr.bf16.mxu0 0
        %2226 = vmatpush1.bf16.msra.mxu0 0
        %2227 = vmatprep.subr.bf16.mxu0 0
        %2228 = vmatpush1.bf16.msra.mxu0 0
        %2229 = vmatprep.subr.bf16.mxu0 0
        %2230 = vmatpush1.bf16.msra.mxu0 0
        %2231 = vmatprep.subr.bf16.mxu0 0
        %2232 = vmatpush1.bf16.msra.mxu0 0
        %2233 = vmatprep.subr.bf16.mxu0 0
        %2234 = vmatpush1.bf16.msra.mxu0 0
        %2235 = vmatprep.mubr.bf16.mxu0 0
        %2236 = vmatmul.mubr.bf16.gmra.mrb[0].mxu0 %v2195
        %v2237 = vpop.f32.mrb[0].mxu0
        %v2238 = vadd.f32 0.0, %v2237
        %v2239 = vpop.f32.mrb[0].mxu0
        %v2240 = vpop.f32.mrb[0].mxu0
        %v2241 = vadd.f32 0.0, %v2240
        %v2242 = vpop.f32.mrb[0].mxu0
        %2243 = vmatprep.mubr.bf16.mxu0 0
        %2244 = vmatmul.mubr.bf16.gmra.mrb[0].mxu0 %v2198
        %v2245 = vpop.f32.mrb[0].mxu0
        %v2246 = vadd.f32 0.0, %v2245
        %v2247 = vpop.f32.mrb[0].mxu0
        %v2248 = vpop.f32.mrb[0].mxu0
        %v2249 = vadd.f32 0.0, %v2248
        %v2250 = vpop.f32.mrb[0].mxu0
        %2251 = vdwg.mxu0
        %v2252 = vadd.f32 %v2179, %v2238
        %v2253 = vadd.f32 %v2180, %v2241
        %v2254 = vadd.f32 %v2181, %v2246
        %v2255 = vadd.f32 %v2182, %v2249
        %v2256 = vld [vmem:[%s2] sm:$0x1]
        %v2258 = vlaneseq
        %v2259 = vshrl.u32 %v2258, 7
        %v2260 = vsub.s32 0, %v2259
        %v2261 = vrot.slane %v2256, %v2260
        %v2263 = vadd.f32 %v2252, %v2261
        %v2264 = vadd.f32 %v2253, %v2261
        %v2265 = vadd.f32 %v2254, %v2261
        %v2266 = vadd.f32 %v2255, %v2261
        %v2267 = vmax.f32 %v2263, 0.0
        %v2268 = vmax.f32 %v2264, 0.0
        %v2269 = vmax.f32 %v2265, 0.0
        %v2270 = vmax.f32 %v2266, 0.0
        %v2271 = vpack.c.bf16 %v2268, %v2267
        %v2272 = vpack.c.bf16 %v2270, %v2269
        %v2275 = vunpack.c.l.b16 %v2271
        %v2276 = vunpack.c.h.b16 %v2271
        %v2277 = vunpack.c.l.b16 %v2272
        %v2278 = vunpack.c.h.b16 %v2272
        %v2279 = vpack.c.b16 %v2275, %v2275
        %v2280 = vpack.c.b16 %v2276, %v2276
        %v2281 = vpack.c.b16 %v2277, %v2277
        %v2282 = vpack.c.b16 %v2278, %v2278
        %s2287 = smul.u32 %s173, 4
        %s2288 = smul.addr %s2287, 4
        %s2289 = scalar_lea.vmem %s170, %s2288
        %vm2290 = vcmask 257024
        %2291 = vst.msk [vmem:[%s2289] sm:$0xf] %vm2290, %v2279
        %2292 = vst.msk [vmem:[%s2289 + $0x4] sm:$0xf] %vm2290, %v2280
        %2293 = vst.msk [vmem:[%s2289 + $0x8] sm:$0xf] %vm2290, %v2281
        %2294 = vst.msk [vmem:[%s2289 + $0xc] sm:$0xf] %vm2290, %v2282
      $region37: #{dsh_forward.4} parent=31 // loop_footer
        %s177 = sadd.s32 1, %s173
      $region38: #{dsh_forward.4} parent=31 // loop_footer_branch
        %172 = sbr.rel target = $region34
      $region39: #{dsh_forward.4} parent=31 // loop_exit
        _
      %p2295 = scmp.lt.s32.totalorder %s14, 1
      %s2296 = scalar_select %p2295, %s14, 1
      %s2297 = smul.addr %s2296, 128
      %s2298 = smul.addr %s2297, 4
      %s2299 = scalar_lea.vmem %s3, %s2298
      // Predicated region
      $region40: #{dsh_forward.4} parent=31 // pred_check
        %p2300 = pneg %p100
      $region41: #{dsh_forward.4} parent=31 // pred_check_branch
        %2302 = sbr.rel (%p2300) target = $region43
      $region42: #{dsh_forward.4} parent=31 // pred_region
        _
      $region43: #{dsh_forward.4} parent=31 // pred_fallthru
        _
    $region32: #{dsh_forward.4} parent=5 // pred_fallthru
      _
    %p2303 = scmp.le.s32.totalorder 2, %s9
    // Predicated region
    $region44: #{dsh_forward.4} parent=5 // pred_check
      %p2304 = pneg %p2303
    $region45: #{dsh_forward.4} parent=5 // pred_check_branch
      %2306 = sbr.rel (%p2304) target = $region47
    $region46: #{dsh_forward.4} parent=5 // pred_region
      %s2307 = ssub.s32 %s9, 2
      // Predicated region
      $region48: #{dsh_forward.4} parent=46 // pred_check
        %p2308 = pneg %p106
      $region49: #{dsh_forward.4} parent=46 // pred_check_branch
        %2310 = sbr.rel (%p2308) target = $region51
      $region50: #{dsh_forward.4} parent=46 // pred_region
        %p2311 = scmp.lt.s32.totalorder %s15, 1
        %s2312 = scalar_select %p2311, %s15, 1
        %s2313 = smul.addr %s2312, 128
        %s2314 = smul.addr %s2313, 4
        %s2315 = scalar_lea.vmem %s3, %s2314
      $region51: #{dsh_forward.4} parent=46 // pred_fallthru
        _
    $region47: #{dsh_forward.4} parent=5 // pred_fallthru
      _
  $region6: #{dsh_forward.4} parent=0 // loop_footer
    %s13 = sadd.s32 1, %s9
  $region7: #{dsh_forward.4} parent=0 // loop_footer_branch
    %8 = sbr.rel target = $region3
  $region8: #{dsh_forward.4} parent=0 // loop_exit
    _

// kernel: dsh_forward.5
$region0: #{dsh_forward.5}
  #allocation0 [shape = 'u32[]', space=smem, size = 0x4, offset = 0x4, fixed_abs, tag = 'smem constant byte address 0x4 - core index']
  #allocation1 [shape = 'u32[144,128]{1,0:T(1,128)}', space=vmem, size = 0x12000, scoped, tag = 'internal scratch']
  %s0 = inlined_call_operand.vmem [shape: bf16[2,19,19,32], index: 0, kind: input, shape index: {}]
  %s1 = inlined_call_operand.vmem [shape: bf16[25,32,32], index: 1, kind: input, shape index: {}]
  %s2 = inlined_call_operand.vmem [shape: f32[1,32], index: 2, kind: input, shape index: {}]
  %s3 = inlined_call_operand.vmem [shape: bf16[2,15,15,32], index: 3, kind: output, shape index: {}]
  %s4 = sld [smem:[#allocation0]]
  $region52: #{dsh_forward.5} parent=0
    _
  %s6 = ssub.s32 1, %s4
  %s7 = scalar_select 0, %s6, %s4
  loop: start=0, step=1, limit=4
  $region2: #{dsh_forward.5} parent=0 // loop_pre_header
    _
  $region3: #{dsh_forward.5} parent=0 // loop_header
    %s9 = sphi 0, %s13
    %p10 = scmp.ge.s32.totalorder %s9, 4
    %s19 = sphi 0, %s21
    %s22 = sphi 0, %s19
    %s23 = sphi 0, %s22
    %s39 = sphi 0, %s23
    %s43 = sphi 0, %s43
    %s45 = sphi 0, %s43
    %s46 = sphi 0, %s45
    %s60 = sphi 0, %s46
    %s64 = sphi 0, %s64
    %s66 = sphi 0, %s64
    %s67 = sphi 0, %s66
    %s81 = sphi 0, %s67
    %s87 = sphi 0, %s89
    %s90 = sphi 0, %s87
    %s91 = sphi 0, %s90
    %s107 = sphi 0, %s91
  $region4: #{dsh_forward.5} parent=0 // loop_header_branch
    %12 = sbr.rel (%p10) target = $region8
  $region5: #{dsh_forward.5} parent=0 // loop_body
    %s14 = ssub.s32 %s9, 1
    %s15 = ssub.s32 %s9, 2
    %s16 = sadd.s32 %s9, 1
    %s17 = ssub.s32 %s9, %s16
    %p18 = scmp.eq.s32.totalorder %s17, 0
    %s20 = sadd.s32 %s19, 1
    %s21 = scalar_select %p18, %s19, %s20
    %p24 = pneg %p18
    %p25 = scmp.eq.s32.totalorder %s9, 1
    %p26 = por %p24, %p25
    %p27 = scmp.ne.s32.totalorder %s19, %s22
    %p28 = scmp.eq.s32.totalorder %s9, 0
    %p29 = por %p27, %p28
    %p30 = scmp.ne.s32.totalorder %s19, %s22
    %p31 = scmp.eq.s32.totalorder %s14, 1
    %p32 = por %p30, %p31
    %p33 = scmp.ne.s32.totalorder %s22, %s23
    %p34 = scmp.eq.s32.totalorder %s14, 0
    %p35 = por %p33, %p34
    %p36 = scmp.ne.s32.totalorder %s22, %s23
    %p37 = scmp.eq.s32.totalorder %s15, 1
    %p38 = por %p36, %p37
    %p40 = scmp.ne.s32.totalorder %s23, %s39
    %p41 = scmp.eq.s32.totalorder %s15, 0
    %p42 = por %p40, %p41
    %s44 = sadd.s32 %s43, 1
    %p47 = scmp.eq.s32.totalorder %s9, 1
    %p48 = scmp.ne.s32.totalorder %s43, %s45
    %p49 = scmp.eq.s32.totalorder %s9, 0
    %p50 = por %p48, %p49
    %p51 = scmp.ne.s32.totalorder %s43, %s45
    %p52 = scmp.eq.s32.totalorder %s14, 1
    %p53 = por %p51, %p52
    %p54 = scmp.ne.s32.totalorder %s45, %s46
    %p55 = scmp.eq.s32.totalorder %s14, 0
    %p56 = por %p54, %p55
    %p57 = scmp.ne.s32.totalorder %s45, %s46
    %p58 = scmp.eq.s32.totalorder %s15, 1
    %p59 = por %p57, %p58
    %p61 = scmp.ne.s32.totalorder %s46, %s60
    %p62 = scmp.eq.s32.totalorder %s15, 0
    %p63 = por %p61, %p62
    %s65 = sadd.s32 %s64, 1
    %p68 = scmp.eq.s32.totalorder %s9, 1
    %p69 = scmp.ne.s32.totalorder %s64, %s66
    %p70 = scmp.eq.s32.totalorder %s9, 0
    %p71 = por %p69, %p70
    %p72 = scmp.ne.s32.totalorder %s64, %s66
    %p73 = scmp.eq.s32.totalorder %s14, 1
    %p74 = por %p72, %p73
    %p75 = scmp.ne.s32.totalorder %s66, %s67
    %p76 = scmp.eq.s32.totalorder %s14, 0
    %p77 = por %p75, %p76
    %p78 = scmp.ne.s32.totalorder %s66, %s67
    %p79 = scmp.eq.s32.totalorder %s15, 1
    %p80 = por %p78, %p79
    %p82 = scmp.ne.s32.totalorder %s67, %s81
    %p83 = scmp.eq.s32.totalorder %s15, 0
    %p84 = por %p82, %p83
    %s85 = ssub.s32 %s9, %s16
    %p86 = scmp.eq.s32.totalorder %s85, 0
    %s88 = sadd.s32 %s87, 1
    %s89 = scalar_select %p86, %s87, %s88
    %p92 = pneg %p86
    %p93 = scmp.eq.s32.totalorder %s9, 1
    %p94 = por %p92, %p93
    %p95 = scmp.ne.s32.totalorder %s87, %s90
    %p96 = scmp.eq.s32.totalorder %s9, 0
    %p97 = por %p95, %p96
    %p98 = scmp.ne.s32.totalorder %s87, %s90
    %p99 = scmp.eq.s32.totalorder %s14, 1
    %p100 = por %p98, %p99
    %p101 = scmp.ne.s32.totalorder %s90, %s91
    %p102 = scmp.eq.s32.totalorder %s14, 0
    %p103 = por %p101, %p102
    %p104 = scmp.ne.s32.totalorder %s90, %s91
    %p105 = scmp.eq.s32.totalorder %s15, 1
    %p106 = por %p104, %p105
    %p108 = scmp.ne.s32.totalorder %s91, %s107
    %p109 = scmp.eq.s32.totalorder %s15, 0
    %p110 = por %p108, %p109
    %p111 = scmp.le.s32.totalorder 1, %s9
    %p112 = scmp.lt.s32.totalorder %s9, 3
    %p113 = pnand %p111, %p112
    %p114 = pneg %p113
    // Predicated region
    $region9: #{dsh_forward.5} parent=5 // pred_check
      _
    $region10: #{dsh_forward.5} parent=5 // pred_check_branch
      %116 = sbr.rel (%p113) target = $region12
    $region11: #{dsh_forward.5} parent=5 // pred_region
      %s117 = ssub.s32 %s9, 1
      // Predicated region
      $region13: #{dsh_forward.5} parent=11 // pred_check
        %p118 = pneg %p56
      $region14: #{dsh_forward.5} parent=11 // pred_check_branch
        %120 = sbr.rel (%p118) target = $region16
      $region15: #{dsh_forward.5} parent=11 // pred_region
        _
      $region16: #{dsh_forward.5} parent=11 // pred_fallthru
        _
      // Predicated region
      $region17: #{dsh_forward.5} parent=11 // pred_check
        %p121 = pneg %p77
      $region18: #{dsh_forward.5} parent=11 // pred_check_branch
        %123 = sbr.rel (%p121) target = $region20
      $region19: #{dsh_forward.5} parent=11 // pred_region
        _
      $region20: #{dsh_forward.5} parent=11 // pred_fallthru
        _
    $region12: #{dsh_forward.5} parent=5 // pred_fallthru
      _
    %p124 = scmp.lt.s32.totalorder %s9, 2
    // Predicated region
    $region21: #{dsh_forward.5} parent=5 // pred_check
      %p125 = pneg %p124
    $region22: #{dsh_forward.5} parent=5 // pred_check_branch
      %127 = sbr.rel (%p125) target = $region24
    $region23: #{dsh_forward.5} parent=5 // pred_region
      // Predicated region
      $region25: #{dsh_forward.5} parent=23 // pred_check
        %p128 = pneg %p29
      $region26: #{dsh_forward.5} parent=23 // pred_check_branch
        %130 = sbr.rel (%p128) target = $region28
      $region27: #{dsh_forward.5} parent=23 // pred_region
        %p131 = scmp.lt.s32.totalorder %s9, 1
        %s132 = scalar_select %p131, %s9, 1
        %s133 = smul.addr %s132, 57
        %s134 = smul.addr %s133, 4
        %s135 = scalar_lea.vmem %s0, %s134
      $region28: #{dsh_forward.5} parent=23 // pred_fallthru
        _
    $region24: #{dsh_forward.5} parent=5 // pred_fallthru
      _
    %p136 = scmp.le.s32.totalorder 1, %s9
    %p137 = scmp.lt.s32.totalorder %s9, 3
    %p138 = pnand %p136, %p137
    %p139 = pneg %p138
    // Predicated region
    $region29: #{dsh_forward.5} parent=5 // pred_check
      _
    $region30: #{dsh_forward.5} parent=5 // pred_check_branch
      %141 = sbr.rel (%p138) target = $region32
    $region31: #{dsh_forward.5} parent=5 // pred_region
      %s142 = ssub.s32 %s9, 1
      %p143 = scmp.lt.s32.totalorder %s14, 1
      %s144 = scalar_select %p143, %s14, 1
      %s145 = smul.addr %s144, 57
      %s146 = smul.addr %s145, 4
      %s147 = scalar_lea.vmem %s0, %s146
      %p148 = pneg %p35
      %p149 = pneg %p32
      %p150 = pneg %p56
      %p151 = pneg %p53
      %p152 = pneg %p77
      %p153 = pneg %p74
      %p154 = pneg %p103
      %p155 = pneg %p100
      %p156 = scmp.lt.s32.totalorder %s14, 1
      %s157 = scalar_select %p156, %s14, 1
      %s158 = smul.addr %s157, 30
      %s159 = smul.addr %s158, 4
      %s160 = scalar_lea.vmem %s3, %s159
      %p161 = scmp.lt.s32.totalorder %s14, 1
      %s162 = scalar_select %p161, %s14, 1
      %s163 = smul.addr %s162, 57
      %s164 = smul.addr %s163, 4
      %s165 = scalar_lea.vmem %s0, %s164
      %p166 = scmp.lt.s32.totalorder %s14, 1
      %s167 = scalar_select %p166, %s14, 1
      %s168 = smul.addr %s167, 30
      %s169 = smul.addr %s168, 4
      %s170 = scalar_lea.vmem %s3, %s169
      loop: start=0, step=1, limit=15
      $region33: #{dsh_forward.5} parent=31 // loop_pre_header
        _
      $region34: #{dsh_forward.5} parent=31 // loop_header
        %s173 = sphi 0, %s177
        %p174 = scmp.ge.s32.totalorder %s173, 15
      $region35: #{dsh_forward.5} parent=31 // loop_header_branch
        %176 = sbr.rel (%p174) target = $region39
      $region36: #{dsh_forward.5} parent=31 // loop_body
        %s178 = smul.u32 %s173, 3
        %s179 = smul.addr %s178, 4
        %s180 = scalar_lea.vmem %s165, %s179
        %v181 = vld [vmem:[%s180] sm:$0xf]
        %v182 = vld [vmem:[%s180 + $0x4] sm:$0xf]
        %v183 = vld [vmem:[%s1] sm:$0xf]
        %v184 = vld [vmem:[%s1 + $0x4] sm:$0xf]
        %v185 = vld [vmem:[%s1 + $0x8] sm:$0xf]
        %v186 = vld [vmem:[%s1 + $0xc] sm:$0xf]
        %s187 = scalar_lea.vmem %s1, 16
        %v188 = vld [vmem:[%s187] sm:$0xf]
        %v189 = vld [vmem:[%s187 + $0x4] sm:$0xf]
        %v190 = vld [vmem:[%s187 + $0x8] sm:$0xf]
        %v191 = vld [vmem:[%s187 + $0xc] sm:$0xf]
        %v194 = vunpack.c.l.b16 %v181
        %v195 = vunpack.c.l.b16 %v182
        %v196 = vpack.c.b16 %v195, %v194
        %v198 = vshrl.u32 %v196, 16
        %v200 = vshll.u32 %v196, 16
        %v202 = vrot.slane %v200, 1
        %v203 = vor.u32 %v198, %v202
        %v208 = vunpack.c.l.b16 %v188
        %v209 = vunpack.c.l.b16 %v189
        %v210 = vunpack.c.l.b16 %v190
        %v211 = vunpack.c.l.b16 %v191
        %v212 = vpack.c.b16 %v209, %v208
        %v213 = vpack.c.b16 %v211, %v210
        %vm216 = vcmask 261120
        %v218 = vsel %vm216, %v203, 0
        %220 = vmatprep.subr.bf16.mxu0 0
        %221 = vmatpush1.bf16.msra.mxu0 %v212
        %222 = vmatprep.subr.bf16.mxu0 0
        %223 = vmatpush1.bf16.msra.mxu0 %v213
        %224 = vmatprep.subr.bf16.mxu0 0
        %225 = vmatpush1.bf16.msra.mxu0 0
        %226 = vmatprep.subr.bf16.mxu0 0
        %227 = vmatpush1.bf16.msra.mxu0 0
        %228 = vmatprep.subr.bf16.mxu0 0
        %229 = vmatpush1.bf16.msra.mxu0 0
        %230 = vmatprep.subr.bf16.mxu0 0
        %231 = vmatpush1.bf16.msra.mxu0 0
        %232 = vmatprep.subr.bf16.mxu0 0
        %233 = vmatpush1.bf16.msra.mxu0 0
        %234 = vmatprep.subr.bf16.mxu0 0
        %235 = vmatpush1.bf16.msra.mxu0 0
        %236 = vmatprep.subr.bf16.mxu0 0
        %237 = vmatpush1.bf16.msra.mxu0 0
        %238 = vmatprep.subr.bf16.mxu0 0
        %239 = vmatpush1.bf16.msra.mxu0 0
        %240 = vmatprep.subr.bf16.mxu0 0
        %241 = vmatpush1.bf16.msra.mxu0 0
        %242 = vmatprep.subr.bf16.mxu0 0
        %243 = vmatpush1.bf16.msra.mxu0 0
        %244 = vmatprep.subr.bf16.mxu0 0
        %245 = vmatpush1.bf16.msra.mxu0 0
        %246 = vmatprep.subr.bf16.mxu0 0
        %247 = vmatpush1.bf16.msra.mxu0 0
        %248 = vmatprep.subr.bf16.mxu0 0
        %249 = vmatpush1.bf16.msra.mxu0 0
        %250 = vmatprep.subr.bf16.mxu0 0
        %251 = vmatpush1.bf16.msra.mxu0 0
        %252 = vmatprep.mubr.bf16.mxu0 0
        %253 = vmatmul.mubr.bf16.gmra.mrb[0].mxu0 %v218
        %v254 = vpop.f32.mrb[0].mxu0
        %v255 = vadd.f32 0.0, %v254
        %v256 = vpop.f32.mrb[0].mxu0
        %v257 = vpop.f32.mrb[0].mxu0
        %v258 = vadd.f32 0.0, %v257
        %v259 = vpop.f32.mrb[0].mxu0
        %260 = vdwg.mxu0
        %v265 = vunpack.c.l.b16 %v183
        %v266 = vunpack.c.l.b16 %v184
        %v267 = vunpack.c.l.b16 %v185
        %v268 = vunpack.c.l.b16 %v186
        %v269 = vpack.c.b16 %v266, %v265
        %v270 = vpack.c.b16 %v268, %v267
        %v273 = vsel %vm216, %v196, 0
        %275 = vmatprep.subr.bf16.mxu0 0
        %276 = vmatpush1.bf16.msra.mxu0 %v269
        %277 = vmatprep.subr.bf16.mxu0 0
        %278 = vmatpush1.bf16.msra.mxu0 %v270
        %279 = vmatprep.subr.bf16.mxu0 0
        %280 = vmatpush1.bf16.msra.mxu0 0
        %281 = vmatprep.subr.bf16.mxu0 0
        %282 = vmatpush1.bf16.msra.mxu0 0
        %283 = vmatprep.subr.bf16.mxu0 0
        %284 = vmatpush1.bf16.msra.mxu0 0
        %285 = vmatprep.subr.bf16.mxu0 0
        %286 = vmatpush1.bf16.msra.mxu0 0
        %287 = vmatprep.subr.bf16.mxu0 0
        %288 = vmatpush1.bf16.msra.mxu0 0
        %289 = vmatprep.subr.bf16.mxu0 0
        %290 = vmatpush1.bf16.msra.mxu0 0
        %291 = vmatprep.subr.bf16.mxu0 0
        %292 = vmatpush1.bf16.msra.mxu0 0
        %293 = vmatprep.subr.bf16.mxu0 0
        %294 = vmatpush1.bf16.msra.mxu0 0
        %295 = vmatprep.subr.bf16.mxu0 0
        %296 = vmatpush1.bf16.msra.mxu0 0
        %297 = vmatprep.subr.bf16.mxu0 0
        %298 = vmatpush1.bf16.msra.mxu0 0
        %299 = vmatprep.subr.bf16.mxu0 0
        %300 = vmatpush1.bf16.msra.mxu0 0
        %301 = vmatprep.subr.bf16.mxu0 0
        %302 = vmatpush1.bf16.msra.mxu0 0
        %303 = vmatprep.subr.bf16.mxu0 0
        %304 = vmatpush1.bf16.msra.mxu0 0
        %305 = vmatprep.subr.bf16.mxu0 0
        %306 = vmatpush1.bf16.msra.mxu0 0
        %307 = vmatprep.mubr.bf16.mxu0 0
        %308 = vmatmul.mubr.bf16.gmra.mrb[0].mxu0 %v273
        %v309 = vpop.f32.mrb[0].mxu0
        %v310 = vadd.f32 %v255, %v309
        %v311 = vpop.f32.mrb[0].mxu0
        %v312 = vpop.f32.mrb[0].mxu0
        %v313 = vadd.f32 %v258, %v312
        %v314 = vpop.f32.mrb[0].mxu0
        %315 = vdwg.mxu0
        %v316 = vld [vmem:[%s180] sm:$0xe]
        %v317 = vld [vmem:[%s180 + $0x4] sm:$0xf]
        %v318 = vld [vmem:[%s180 + $0x8] sm:$0x1]
        %s319 = scalar_lea.vmem %s1, 32
        %v320 = vld [vmem:[%s319] sm:$0xf]
        %v321 = vld [vmem:[%s319 + $0x4] sm:$0xf]
        %v322 = vld [vmem:[%s319 + $0x8] sm:$0xf]
        %v323 = vld [vmem:[%s319 + $0xc] sm:$0xf]
        %v327 = vunpack.c.l.b16 %v316
        %v328 = vunpack.c.l.b16 %v317
        %v329 = vunpack.c.l.b16 %v318
        %v330 = vpack.c.b16 %v328, %v327
        %v331 = vpack.c.b16 %v329, %v329
        %vm332 = vcmask 1046528
        %v333 = vrot.slane %v330, 1
        %v334 = vrot.slane %v331, 1
        %v335 = vsel %vm332, %v333, %v334
        %v340 = vunpack.c.l.b16 %v320
        %v341 = vunpack.c.l.b16 %v321
        %v342 = vunpack.c.l.b16 %v322
        %v343 = vunpack.c.l.b16 %v323
        %v344 = vpack.c.b16 %v341, %v340
        %v345 = vpack.c.b16 %v343, %v342
        %v349 = vsel %vm216, %v335, 0
        %351 = vmatprep.subr.bf16.mxu0 0
        %352 = vmatpush1.bf16.msra.mxu0 %v344
        %353 = vmatprep.subr.bf16.mxu0 0
        %354 = vmatpush1.bf16.msra.mxu0 %v345
        %355 = vmatprep.subr.bf16.mxu0 0
        %356 = vmatpush1.bf16.msra.mxu0 0
        %357 = vmatprep.subr.bf16.mxu0 0
        %358 = vmatpush1.bf16.msra.mxu0 0
        %359 = vmatprep.subr.bf16.mxu0 0
        %360 = vmatpush1.bf16.msra.mxu0 0
        %361 = vmatprep.subr.bf16.mxu0 0
        %362 = vmatpush1.bf16.msra.mxu0 0
        %363 = vmatprep.subr.bf16.mxu0 0
        %364 = vmatpush1.bf16.msra.mxu0 0
        %365 = vmatprep.subr.bf16.mxu0 0
        %366 = vmatpush1.bf16.msra.mxu0 0
        %367 = vmatprep.subr.bf16.mxu0 0
        %368 = vmatpush1.bf16.msra.mxu0 0
        %369 = vmatprep.subr.bf16.mxu0 0
        %370 = vmatpush1.bf16.msra.mxu0 0
        %371 = vmatprep.subr.bf16.mxu0 0
        %372 = vmatpush1.bf16.msra.mxu0 0
        %373 = vmatprep.subr.bf16.mxu0 0
        %374 = vmatpush1.bf16.msra.mxu0 0
        %375 = vmatprep.subr.bf16.mxu0 0
        %376 = vmatpush1.bf16.msra.mxu0 0
        %377 = vmatprep.subr.bf16.mxu0 0
        %378 = vmatpush1.bf16.msra.mxu0 0
        %379 = vmatprep.subr.bf16.mxu0 0
        %380 = vmatpush1.bf16.msra.mxu0 0
        %381 = vmatprep.subr.bf16.mxu0 0
        %382 = vmatpush1.bf16.msra.mxu0 0
        %383 = vmatprep.mubr.bf16.mxu0 0
        %384 = vmatmul.mubr.bf16.gmra.mrb[0].mxu0 %v349
        %v385 = vpop.f32.mrb[0].mxu0
        %v386 = vadd.f32 0.0, %v385
        %v387 = vpop.f32.mrb[0].mxu0
        %v388 = vpop.f32.mrb[0].mxu0
        %v389 = vadd.f32 0.0, %v388
        %v390 = vpop.f32.mrb[0].mxu0
        %391 = vdwg.mxu0
        %v392 = vadd.f32 %v310, %v386
        %v393 = vadd.f32 %v313, %v389
        %s394 = scalar_lea.vmem %s1, 48
        %v395 = vld [vmem:[%s394] sm:$0xf]
        %v396 = vld [vmem:[%s394 + $0x4] sm:$0xf]
        %v397 = vld [vmem:[%s394 + $0x8] sm:$0xf]
        %v398 = vld [vmem:[%s394 + $0xc] sm:$0xf]
        %vm399 = vsmask.f32 6400
        %v401 = vshrl.u32 %v330, 16
        %v403 = vrot.slane %v401, 1
        %v404 = vshll.u32 %v330, 16
        %v406 = vrot.slane %v404, 2
        %v407 = vor.u32 %v403, %v406
        %v409 = vshrl.u32 %v331, 16
        %v411 = vrot.slane %v409, 1
        %v412 = vshll.u32 %v331, 16
        %v414 = vrot.slane %v412, 2
        %v415 = vor.u32 %v411, %v414
        %v416 = vsel %vm399, %v407, %v415
        %v421 = vunpack.c.l.b16 %v395
        %v422 = vunpack.c.l.b16 %v396
        %v423 = vunpack.c.l.b16 %v397
        %v424 = vunpack.c.l.b16 %v398
        %v425 = vpack.c.b16 %v422, %v421
        %v426 = vpack.c.b16 %v424, %v423
        %v430 = vsel %vm216, %v416, 0
        %432 = vmatprep.subr.bf16.mxu0 0
        %433 = vmatpush1.bf16.msra.mxu0 %v425
        %434 = vmatprep.subr.bf16.mxu0 0
        %435 = vmatpush1.bf16.msra.mxu0 %v426
        %436 = vmatprep.subr.bf16.mxu0 0
        %437 = vmatpush1.bf16.msra.mxu0 0
        %438 = vmatprep.subr.bf16.mxu0 0
        %439 = vmatpush1.bf16.msra.mxu0 0
        %440 = vmatprep.subr.bf16.mxu0 0
        %441 = vmatpush1.bf16.msra.mxu0 0
        %442 = vmatprep.subr.bf16.mxu0 0
        %443 = vmatpush1.bf16.msra.mxu0 0
        %444 = vmatprep.subr.bf16.mxu0 0
        %445 = vmatpush1.bf16.msra.mxu0 0
        %446 = vmatprep.subr.bf16.mxu0 0
        %447 = vmatpush1.bf16.msra.mxu0 0
        %448 = vmatprep.subr.bf16.mxu0 0
        %449 = vmatpush1.bf16.msra.mxu0 0
        %450 = vmatprep.subr.bf16.mxu0 0
        %451 = vmatpush1.bf16.msra.mxu0 0
        %452 = vmatprep.subr.bf16.mxu0 0
        %453 = vmatpush1.bf16.msra.mxu0 0
        %454 = vmatprep.subr.bf16.mxu0 0
        %455 = vmatpush1.bf16.msra.mxu0 0
        %456 = vmatprep.subr.bf16.mxu0 0
        %457 = vmatpush1.bf16.msra.mxu0 0
        %458 = vmatprep.subr.bf16.mxu0 0
        %459 = vmatpush1.bf16.msra.mxu0 0
        %460 = vmatprep.subr.bf16.mxu0 0
        %461 = vmatpush1.bf16.msra.mxu0 0
        %462 = vmatprep.subr.bf16.mxu0 0
        %463 = vmatpush1.bf16.msra.mxu0 0
        %464 = vmatprep.mubr.bf16.mxu0 0
        %465 = vmatmul.mubr.bf16.gmra.mrb[0].mxu0 %v430
        %v466 = vpop.f32.mrb[0].mxu0
        %v467 = vadd.f32 0.0, %v466
        %v468 = vpop.f32.mrb[0].mxu0
        %v469 = vpop.f32.mrb[0].mxu0
        %v470 = vadd.f32 0.0, %v469
        %v471 = vpop.f32.mrb[0].mxu0
        %472 = vdwg.mxu0
        %v473 = vadd.f32 %v392, %v467
        %v474 = vadd.f32 %v393, %v470
        %v475 = vld [vmem:[%s180] sm:$0xc]
        %v476 = vld [vmem:[%s180 + $0x8] sm:$0x3]
        %s477 = scalar_lea.vmem %s1, 64
        %v478 = vld [vmem:[%s477] sm:$0xf]
        %v479 = vld [vmem:[%s477 + $0x4] sm:$0xf]
        %v480 = vld [vmem:[%s477 + $0x8] sm:$0xf]
        %v481 = vld [vmem:[%s477 + $0xc] sm:$0xf]
        %v484 = vunpack.c.l.b16 %v475
        %v485 = vunpack.c.l.b16 %v476
        %v486 = vpack.c.b16 %v328, %v484
        %v487 = vpack.c.b16 %v485, %v485
        %vm488 = vcmask 1045504
        %v489 = vrot.slane %v486, 2
        %v490 = vrot.slane %v487, 2
        %v491 = vsel %vm488, %v489, %v490
        %v496 = vunpack.c.l.b16 %v478
        %v497 = vunpack.c.l.b16 %v479
        %v498 = vunpack.c.l.b16 %v480
        %v499 = vunpack.c.l.b16 %v481
        %v500 = vpack.c.b16 %v497, %v496
        %v501 = vpack.c.b16 %v499, %v498
        %v505 = vsel %vm216, %v491, 0
        %507 = vmatprep.subr.bf16.mxu0 0
        %508 = vmatpush1.bf16.msra.mxu0 %v500
        %509 = vmatprep.subr.bf16.mxu0 0
        %510 = vmatpush1.bf16.msra.mxu0 %v501
        %511 = vmatprep.subr.bf16.mxu0 0
        %512 = vmatpush1.bf16.msra.mxu0 0
        %513 = vmatprep.subr.bf16.mxu0 0
        %514 = vmatpush1.bf16.msra.mxu0 0
        %515 = vmatprep.subr.bf16.mxu0 0
        %516 = vmatpush1.bf16.msra.mxu0 0
        %517 = vmatprep.subr.bf16.mxu0 0
        %518 = vmatpush1.bf16.msra.mxu0 0
        %519 = vmatprep.subr.bf16.mxu0 0
        %520 = vmatpush1.bf16.msra.mxu0 0
        %521 = vmatprep.subr.bf16.mxu0 0
        %522 = vmatpush1.bf16.msra.mxu0 0
        %523 = vmatprep.subr.bf16.mxu0 0
        %524 = vmatpush1.bf16.msra.mxu0 0
        %525 = vmatprep.subr.bf16.mxu0 0
        %526 = vmatpush1.bf16.msra.mxu0 0
        %527 = vmatprep.subr.bf16.mxu0 0
        %528 = vmatpush1.bf16.msra.mxu0 0
        %529 = vmatprep.subr.bf16.mxu0 0
        %530 = vmatpush1.bf16.msra.mxu0 0
        %531 = vmatprep.subr.bf16.mxu0 0
        %532 = vmatpush1.bf16.msra.mxu0 0
        %533 = vmatprep.subr.bf16.mxu0 0
        %534 = vmatpush1.bf16.msra.mxu0 0
        %535 = vmatprep.subr.bf16.mxu0 0
        %536 = vmatpush1.bf16.msra.mxu0 0
        %537 = vmatprep.subr.bf16.mxu0 0
        %538 = vmatpush1.bf16.msra.mxu0 0
        %539 = vmatprep.mubr.bf16.mxu0 0
        %540 = vmatmul.mubr.bf16.gmra.mrb[0].mxu0 %v505
        %v541 = vpop.f32.mrb[0].mxu0
        %v542 = vadd.f32 0.0, %v541
        %v543 = vpop.f32.mrb[0].mxu0
        %v544 = vpop.f32.mrb[0].mxu0
        %v545 = vadd.f32 0.0, %v544
        %v546 = vpop.f32.mrb[0].mxu0
        %547 = vdwg.mxu0
        %v548 = vadd.f32 %v473, %v542
        %v549 = vadd.f32 %v474, %v545
        %s550 = sadd.s32 %s173, 1
        %s551 = smul.u32 %s550, 3
        %s552 = smul.addr %s551, 4
        %s553 = scalar_lea.vmem %s165, %s552
        %v554 = vld [vmem:[%s553] sm:$0xf]
        %v555 = vld [vmem:[%s553 + $0x4] sm:$0xf]
        %s556 = scalar_lea.vmem %s1, 80
        %v557 = vld [vmem:[%s556] sm:$0xf]
        %v558 = vld [vmem:[%s556 + $0x4] sm:$0xf]
        %v559 = vld [vmem:[%s556 + $0x8] sm:$0xf]
        %v560 = vld [vmem:[%s556 + $0xc] sm:$0xf]
        %v563 = vunpack.c.l.b16 %v554
        %v564 = vunpack.c.l.b16 %v555
        %v565 = vpack.c.b16 %v564, %v563
        %v570 = vunpack.c.l.b16 %v557
        %v571 = vunpack.c.l.b16 %v558
        %v572 = vunpack.c.l.b16 %v559
        %v573 = vunpack.c.l.b16 %v560
        %v574 = vpack.c.b16 %v571, %v570
        %v575 = vpack.c.b16 %v573, %v572
        %v579 = vsel %vm216, %v565, 0
        %581 = vmatprep.subr.bf16.mxu0 0
        %582 = vmatpush1.bf16.msra.mxu0 %v574
        %583 = vmatprep.subr.bf16.mxu0 0
        %584 = vmatpush1.bf16.msra.mxu0 %v575
        %585 = vmatprep.subr.bf16.mxu0 0
        %586 = vmatpush1.bf16.msra.mxu0 0
        %587 = vmatprep.subr.bf16.mxu0 0
        %588 = vmatpush1.bf16.msra.mxu0 0
        %589 = vmatprep.subr.bf16.mxu0 0
        %590 = vmatpush1.bf16.msra.mxu0 0
        %591 = vmatprep.subr.bf16.mxu0 0
        %592 = vmatpush1.bf16.msra.mxu0 0
        %593 = vmatprep.subr.bf16.mxu0 0
        %594 = vmatpush1.bf16.msra.mxu0 0
        %595 = vmatprep.subr.bf16.mxu0 0
        %596 = vmatpush1.bf16.msra.mxu0 0
        %597 = vmatprep.subr.bf16.mxu0 0
        %598 = vmatpush1.bf16.msra.mxu0 0
        %599 = vmatprep.subr.bf16.mxu0 0
        %600 = vmatpush1.bf16.msra.mxu0 0
        %601 = vmatprep.subr.bf16.mxu0 0
        %602 = vmatpush1.bf16.msra.mxu0 0
        %603 = vmatprep.subr.bf16.mxu0 0
        %604 = vmatpush1.bf16.msra.mxu0 0
        %605 = vmatprep.subr.bf16.mxu0 0
        %606 = vmatpush1.bf16.msra.mxu0 0
        %607 = vmatprep.subr.bf16.mxu0 0
        %608 = vmatpush1.bf16.msra.mxu0 0
        %609 = vmatprep.subr.bf16.mxu0 0
        %610 = vmatpush1.bf16.msra.mxu0 0
        %611 = vmatprep.subr.bf16.mxu0 0
        %612 = vmatpush1.bf16.msra.mxu0 0
        %613 = vmatprep.mubr.bf16.mxu0 0
        %614 = vmatmul.mubr.bf16.gmra.mrb[0].mxu0 %v579
        %v615 = vpop.f32.mrb[0].mxu0
        %v616 = vadd.f32 0.0, %v615
        %v617 = vpop.f32.mrb[0].mxu0
        %v618 = vpop.f32.mrb[0].mxu0
        %v619 = vadd.f32 0.0, %v618
        %v620 = vpop.f32.mrb[0].mxu0
        %621 = vdwg.mxu0
        %v622 = vadd.f32 %v548, %v616
        %v623 = vadd.f32 %v549, %v619
        %s624 = scalar_lea.vmem %s1, 96
        %v625 = vld [vmem:[%s624] sm:$0xf]
        %v626 = vld [vmem:[%s624 + $0x4] sm:$0xf]
        %v627 = vld [vmem:[%s624 + $0x8] sm:$0xf]
        %v628 = vld [vmem:[%s624 + $0xc] sm:$0xf]
        %v629 = vshrl.u32 %v565, 16
        %v631 = vshll.u32 %v565, 16
        %v633 = vrot.slane %v631, 1
        %v634 = vor.u32 %v629, %v633
        %v639 = vunpack.c.l.b16 %v625
        %v640 = vunpack.c.l.b16 %v626
        %v641 = vunpack.c.l.b16 %v627
        %v642 = vunpack.c.l.b16 %v628
        %v643 = vpack.c.b16 %v640, %v639
        %v644 = vpack.c.b16 %v642, %v641
        %v648 = vsel %vm216, %v634, 0
        %650 = vmatprep.subr.bf16.mxu0 0
        %651 = vmatpush1.bf16.msra.mxu0 %v643
        %652 = vmatprep.subr.bf16.mxu0 0
        %653 = vmatpush1.bf16.msra.mxu0 %v644
        %654 = vmatprep.subr.bf16.mxu0 0
        %655 = vmatpush1.bf16.msra.mxu0 0
        %656 = vmatprep.subr.bf16.mxu0 0
        %657 = vmatpush1.bf16.msra.mxu0 0
        %658 = vmatprep.subr.bf16.mxu0 0
        %659 = vmatpush1.bf16.msra.mxu0 0
        %660 = vmatprep.subr.bf16.mxu0 0
        %661 = vmatpush1.bf16.msra.mxu0 0
        %662 = vmatprep.subr.bf16.mxu0 0
        %663 = vmatpush1.bf16.msra.mxu0 0
        %664 = vmatprep.subr.bf16.mxu0 0
        %665 = vmatpush1.bf16.msra.mxu0 0
        %666 = vmatprep.subr.bf16.mxu0 0
        %667 = vmatpush1.bf16.msra.mxu0 0
        %668 = vmatprep.subr.bf16.mxu0 0
        %669 = vmatpush1.bf16.msra.mxu0 0
        %670 = vmatprep.subr.bf16.mxu0 0
        %671 = vmatpush1.bf16.msra.mxu0 0
        %672 = vmatprep.subr.bf16.mxu0 0
        %673 = vmatpush1.bf16.msra.mxu0 0
        %674 = vmatprep.subr.bf16.mxu0 0
        %675 = vmatpush1.bf16.msra.mxu0 0
        %676 = vmatprep.subr.bf16.mxu0 0
        %677 = vmatpush1.bf16.msra.mxu0 0
        %678 = vmatprep.subr.bf16.mxu0 0
        %679 = vmatpush1.bf16.msra.mxu0 0
        %680 = vmatprep.subr.bf16.mxu0 0
        %681 = vmatpush1.bf16.msra.mxu0 0
        %682 = vmatprep.mubr.bf16.mxu0 0
        %683 = vmatmul.mubr.bf16.gmra.mrb[0].mxu0 %v648
        %v684 = vpop.f32.mrb[0].mxu0
        %v685 = vadd.f32 0.0, %v684
        %v686 = vpop.f32.mrb[0].mxu0
        %v687 = vpop.f32.mrb[0].mxu0
        %v688 = vadd.f32 0.0, %v687
        %v689 = vpop.f32.mrb[0].mxu0
        %690 = vdwg.mxu0
        %v691 = vadd.f32 %v622, %v685
        %v692 = vadd.f32 %v623, %v688
        %v693 = vld [vmem:[%s553] sm:$0xe]
        %v694 = vld [vmem:[%s553 + $0x4] sm:$0xf]
        %v695 = vld [vmem:[%s553 + $0x8] sm:$0x1]
        %s696 = scalar_lea.vmem %s1, 112
        %v697 = vld [vmem:[%s696] sm:$0xf]
        %v698 = vld [vmem:[%s696 + $0x4] sm:$0xf]
        %v699 = vld [vmem:[%s696 + $0x8] sm:$0xf]
        %v700 = vld [vmem:[%s696 + $0xc] sm:$0xf]
        %v704 = vunpack.c.l.b16 %v693
        %v705 = vunpack.c.l.b16 %v694
        %v706 = vunpack.c.l.b16 %v695
        %v707 = vpack.c.b16 %v705, %v704
        %v708 = vpack.c.b16 %v706, %v706
        %v709 = vrot.slane %v707, 1
        %v710 = vrot.slane %v708, 1
        %v711 = vsel %vm332, %v709, %v710
        %v716 = vunpack.c.l.b16 %v697
        %v717 = vunpack.c.l.b16 %v698
        %v718 = vunpack.c.l.b16 %v699
        %v719 = vunpack.c.l.b16 %v700
        %v720 = vpack.c.b16 %v717, %v716
        %v721 = vpack.c.b16 %v719, %v718
        %v725 = vsel %vm216, %v711, 0
        %727 = vmatprep.subr.bf16.mxu0 0
        %728 = vmatpush1.bf16.msra.mxu0 %v720
        %729 = vmatprep.subr.bf16.mxu0 0
        %730 = vmatpush1.bf16.msra.mxu0 %v721
        %731 = vmatprep.subr.bf16.mxu0 0
        %732 = vmatpush1.bf16.msra.mxu0 0
        %733 = vmatprep.subr.bf16.mxu0 0
        %734 = vmatpush1.bf16.msra.mxu0 0
        %735 = vmatprep.subr.bf16.mxu0 0
        %736 = vmatpush1.bf16.msra.mxu0 0
        %737 = vmatprep.subr.bf16.mxu0 0
        %738 = vmatpush1.bf16.msra.mxu0 0
        %739 = vmatprep.subr.bf16.mxu0 0
        %740 = vmatpush1.bf16.msra.mxu0 0
        %741 = vmatprep.subr.bf16.mxu0 0
        %742 = vmatpush1.bf16.msra.mxu0 0
        %743 = vmatprep.subr.bf16.mxu0 0
        %744 = vmatpush1.bf16.msra.mxu0 0
        %745 = vmatprep.subr.bf16.mxu0 0
        %746 = vmatpush1.bf16.msra.mxu0 0
        %747 = vmatprep.subr.bf16.mxu0 0
        %748 = vmatpush1.bf16.msra.mxu0 0
        %749 = vmatprep.subr.bf16.mxu0 0
        %750 = vmatpush1.bf16.msra.mxu0 0
        %751 = vmatprep.subr.bf16.mxu0 0
        %752 = vmatpush1.bf16.msra.mxu0 0
        %753 = vmatprep.subr.bf16.mxu0 0
        %754 = vmatpush1.bf16.msra.mxu0 0
        %755 = vmatprep.subr.bf16.mxu0 0
        %756 = vmatpush1.bf16.msra.mxu0 0
        %757 = vmatprep.subr.bf16.mxu0 0
        %758 = vmatpush1.bf16.msra.mxu0 0
        %759 = vmatprep.mubr.bf16.mxu0 0
        %760 = vmatmul.mubr.bf16.gmra.mrb[0].mxu0 %v725
        %v761 = vpop.f32.mrb[0].mxu0
        %v762 = vadd.f32 0.0, %v761
        %v763 = vpop.f32.mrb[0].mxu0
        %v764 = vpop.f32.mrb[0].mxu0
        %v765 = vadd.f32 0.0, %v764
        %v766 = vpop.f32.mrb[0].mxu0
        %767 = vdwg.mxu0
        %v768 = vadd.f32 %v691, %v762
        %v769 = vadd.f32 %v692, %v765
        %s770 = scalar_lea.vmem %s1, 128
        %v771 = vld [vmem:[%s770] sm:$0xf]
        %v772 = vld [vmem:[%s770 + $0x4] sm:$0xf]
        %v773 = vld [vmem:[%s770 + $0x8] sm:$0xf]
        %v774 = vld [vmem:[%s770 + $0xc] sm:$0xf]
        %v776 = vshrl.u32 %v707, 16
        %v778 = vrot.slane %v776, 1
        %v779 = vshll.u32 %v707, 16
        %v781 = vrot.slane %v779, 2
        %v782 = vor.u32 %v778, %v781
        %v784 = vshrl.u32 %v708, 16
        %v786 = vrot.slane %v784, 1
        %v787 = vshll.u32 %v708, 16
        %v789 = vrot.slane %v787, 2
        %v790 = vor.u32 %v786, %v789
        %v791 = vsel %vm399, %v782, %v790
        %v796 = vunpack.c.l.b16 %v771
        %v797 = vunpack.c.l.b16 %v772
        %v798 = vunpack.c.l.b16 %v773
        %v799 = vunpack.c.l.b16 %v774
        %v800 = vpack.c.b16 %v797, %v796
        %v801 = vpack.c.b16 %v799, %v798
        %v805 = vsel %vm216, %v791, 0
        %807 = vmatprep.subr.bf16.mxu0 0
        %808 = vmatpush1.bf16.msra.mxu0 %v800
        %809 = vmatprep.subr.bf16.mxu0 0
        %810 = vmatpush1.bf16.msra.mxu0 %v801
        %811 = vmatprep.subr.bf16.mxu0 0
        %812 = vmatpush1.bf16.msra.mxu0 0
        %813 = vmatprep.subr.bf16.mxu0 0
        %814 = vmatpush1.bf16.msra.mxu0 0
        %815 = vmatprep.subr.bf16.mxu0 0
        %816 = vmatpush1.bf16.msra.mxu0 0
        %817 = vmatprep.subr.bf16.mxu0 0
        %818 = vmatpush1.bf16.msra.mxu0 0
        %819 = vmatprep.subr.bf16.mxu0 0
        %820 = vmatpush1.bf16.msra.mxu0 0
        %821 = vmatprep.subr.bf16.mxu0 0
        %822 = vmatpush1.bf16.msra.mxu0 0
        %823 = vmatprep.subr.bf16.mxu0 0
        %824 = vmatpush1.bf16.msra.mxu0 0
        %825 = vmatprep.subr.bf16.mxu0 0
        %826 = vmatpush1.bf16.msra.mxu0 0
        %827 = vmatprep.subr.bf16.mxu0 0
        %828 = vmatpush1.bf16.msra.mxu0 0
        %829 = vmatprep.subr.bf16.mxu0 0
        %830 = vmatpush1.bf16.msra.mxu0 0
        %831 = vmatprep.subr.bf16.mxu0 0
        %832 = vmatpush1.bf16.msra.mxu0 0
        %833 = vmatprep.subr.bf16.mxu0 0
        %834 = vmatpush1.bf16.msra.mxu0 0
        %835 = vmatprep.subr.bf16.mxu0 0
        %836 = vmatpush1.bf16.msra.mxu0 0
        %837 = vmatprep.subr.bf16.mxu0 0
        %838 = vmatpush1.bf16.msra.mxu0 0
        %839 = vmatprep.mubr.bf16.mxu0 0
        %840 = vmatmul.mubr.bf16.gmra.mrb[0].mxu0 %v805
        %v841 = vpop.f32.mrb[0].mxu0
        %v842 = vadd.f32 0.0, %v841
        %v843 = vpop.f32.mrb[0].mxu0
        %v844 = vpop.f32.mrb[0].mxu0
        %v845 = vadd.f32 0.0, %v844
        %v846 = vpop.f32.mrb[0].mxu0
        %847 = vdwg.mxu0
        %v848 = vadd.f32 %v768, %v842
        %v849 = vadd.f32 %v769, %v845
        %v850 = vld [vmem:[%s553] sm:$0xc]
        %v851 = vld [vmem:[%s553 + $0x8] sm:$0x3]
        %s852 = scalar_lea.vmem %s1, 144
        %v853 = vld [vmem:[%s852] sm:$0xf]
        %v854 = vld [vmem:[%s852 + $0x4] sm:$0xf]
        %v855 = vld [vmem:[%s852 + $0x8] sm:$0xf]
        %v856 = vld [vmem:[%s852 + $0xc] sm:$0xf]
        %v859 = vunpack.c.l.b16 %v850
        %v860 = vunpack.c.l.b16 %v851
        %v861 = vpack.c.b16 %v705, %v859
        %v862 = vpack.c.b16 %v860, %v860
        %v863 = vrot.slane %v861, 2
        %v864 = vrot.slane %v862, 2
        %v865 = vsel %vm488, %v863, %v864
        %v870 = vunpack.c.l.b16 %v853
        %v871 = vunpack.c.l.b16 %v854
        %v872 = vunpack.c.l.b16 %v855
        %v873 = vunpack.c.l.b16 %v856
        %v874 = vpack.c.b16 %v871, %v870
        %v875 = vpack.c.b16 %v873, %v872
        %v879 = vsel %vm216, %v865, 0
        %881 = vmatprep.subr.bf16.mxu0 0
        %882 = vmatpush1.bf16.msra.mxu0 %v874
        %883 = vmatprep.subr.bf16.mxu0 0
        %884 = vmatpush1.bf16.msra.mxu0 %v875
        %885 = vmatprep.subr.bf16.mxu0 0
        %886 = vmatpush1.bf16.msra.mxu0 0
        %887 = vmatprep.subr.bf16.mxu0 0
        %888 = vmatpush1.bf16.msra.mxu0 0
        %889 = vmatprep.subr.bf16.mxu0 0
        %890 = vmatpush1.bf16.msra.mxu0 0
        %891 = vmatprep.subr.bf16.mxu0 0
        %892 = vmatpush1.bf16.msra.mxu0 0
        %893 = vmatprep.subr.bf16.mxu0 0
        %894 = vmatpush1.bf16.msra.mxu0 0
        %895 = vmatprep.subr.bf16.mxu0 0
        %896 = vmatpush1.bf16.msra.mxu0 0
        %897 = vmatprep.subr.bf16.mxu0 0
        %898 = vmatpush1.bf16.msra.mxu0 0
        %899 = vmatprep.subr.bf16.mxu0 0
        %900 = vmatpush1.bf16.msra.mxu0 0
        %901 = vmatprep.subr.bf16.mxu0 0
        %902 = vmatpush1.bf16.msra.mxu0 0
        %903 = vmatprep.subr.bf16.mxu0 0
        %904 = vmatpush1.bf16.msra.mxu0 0
        %905 = vmatprep.subr.bf16.mxu0 0
        %906 = vmatpush1.bf16.msra.mxu0 0
        %907 = vmatprep.subr.bf16.mxu0 0
        %908 = vmatpush1.bf16.msra.mxu0 0
        %909 = vmatprep.subr.bf16.mxu0 0
        %910 = vmatpush1.bf16.msra.mxu0 0
        %911 = vmatprep.subr.bf16.mxu0 0
        %912 = vmatpush1.bf16.msra.mxu0 0
        %913 = vmatprep.mubr.bf16.mxu0 0
        %914 = vmatmul.mubr.bf16.gmra.mrb[0].mxu0 %v879
        %v915 = vpop.f32.mrb[0].mxu0
        %v916 = vadd.f32 0.0, %v915
        %v917 = vpop.f32.mrb[0].mxu0
        %v918 = vpop.f32.mrb[0].mxu0
        %v919 = vadd.f32 0.0, %v918
        %v920 = vpop.f32.mrb[0].mxu0
        %921 = vdwg.mxu0
        %v922 = vadd.f32 %v848, %v916
        %v923 = vadd.f32 %v849, %v919
        %s924 = sadd.s32 %s173, 2
        %s925 = smul.u32 %s924, 3
        %s926 = smul.addr %s925, 4
        %s927 = scalar_lea.vmem %s165, %s926
        %v928 = vld [vmem:[%s927] sm:$0xf]
        %v929 = vld [vmem:[%s927 + $0x4] sm:$0xf]
        %s930 = scalar_lea.vmem %s1, 160
        %v931 = vld [vmem:[%s930] sm:$0xf]
        %v932 = vld [vmem:[%s930 + $0x4] sm:$0xf]
        %v933 = vld [vmem:[%s930 + $0x8] sm:$0xf]
        %v934 = vld [vmem:[%s930 + $0xc] sm:$0xf]
        %v937 = vunpack.c.l.b16 %v928
        %v938 = vunpack.c.l.b16 %v929
        %v939 = vpack.c.b16 %v938, %v937
        %v944 = vunpack.c.l.b16 %v931
        %v945 = vunpack.c.l.b16 %v932
        %v946 = vunpack.c.l.b16 %v933
        %v947 = vunpack.c.l.b16 %v934
        %v948 = vpack.c.b16 %v945, %v944
        %v949 = vpack.c.b16 %v947, %v946
        %v953 = vsel %vm216, %v939, 0
        %955 = vmatprep.subr.bf16.mxu0 0
        %956 = vmatpush1.bf16.msra.mxu0 %v948
        %957 = vmatprep.subr.bf16.mxu0 0
        %958 = vmatpush1.bf16.msra.mxu0 %v949
        %959 = vmatprep.subr.bf16.mxu0 0
        %960 = vmatpush1.bf16.msra.mxu0 0
        %961 = vmatprep.subr.bf16.mxu0 0
        %962 = vmatpush1.bf16.msra.mxu0 0
        %963 = vmatprep.subr.bf16.mxu0 0
        %964 = vmatpush1.bf16.msra.mxu0 0
        %965 = vmatprep.subr.bf16.mxu0 0
        %966 = vmatpush1.bf16.msra.mxu0 0
        %967 = vmatprep.subr.bf16.mxu0 0
        %968 = vmatpush1.bf16.msra.mxu0 0
        %969 = vmatprep.subr.bf16.mxu0 0
        %970 = vmatpush1.bf16.msra.mxu0 0
        %971 = vmatprep.subr.bf16.mxu0 0
        %972 = vmatpush1.bf16.msra.mxu0 0
        %973 = vmatprep.subr.bf16.mxu0 0
        %974 = vmatpush1.bf16.msra.mxu0 0
        %975 = vmatprep.subr.bf16.mxu0 0
        %976 = vmatpush1.bf16.msra.mxu0 0
        %977 = vmatprep.subr.bf16.mxu0 0
        %978 = vmatpush1.bf16.msra.mxu0 0
        %979 = vmatprep.subr.bf16.mxu0 0
        %980 = vmatpush1.bf16.msra.mxu0 0
        %981 = vmatprep.subr.bf16.mxu0 0
        %982 = vmatpush1.bf16.msra.mxu0 0
        %983 = vmatprep.subr.bf16.mxu0 0
        %984 = vmatpush1.bf16.msra.mxu0 0
        %985 = vmatprep.subr.bf16.mxu0 0
        %986 = vmatpush1.bf16.msra.mxu0 0
        %987 = vmatprep.mubr.bf16.mxu0 0
        %988 = vmatmul.mubr.bf16.gmra.mrb[0].mxu0 %v953
        %v989 = vpop.f32.mrb[0].mxu0
        %v990 = vadd.f32 0.0, %v989
        %v991 = vpop.f32.mrb[0].mxu0
        %v992 = vpop.f32.mrb[0].mxu0
        %v993 = vadd.f32 0.0, %v992
        %v994 = vpop.f32.mrb[0].mxu0
        %995 = vdwg.mxu0
        %v996 = vadd.f32 %v922, %v990
        %v997 = vadd.f32 %v923, %v993
        %s998 = scalar_lea.vmem %s1, 176
        %v999 = vld [vmem:[%s998] sm:$0xf]
        %v1000 = vld [vmem:[%s998 + $0x4] sm:$0xf]
        %v1001 = vld [vmem:[%s998 + $0x8] sm:$0xf]
        %v1002 = vld [vmem:[%s998 + $0xc] sm:$0xf]
        %v1003 = vshrl.u32 %v939, 16
        %v1005 = vshll.u32 %v939, 16
        %v1007 = vrot.slane %v1005, 1
        %v1008 = vor.u32 %v1003, %v1007
        %v1013 = vunpack.c.l.b16 %v999
        %v1014 = vunpack.c.l.b16 %v1000
        %v1015 = vunpack.c.l.b16 %v1001
        %v1016 = vunpack.c.l.b16 %v1002
        %v1017 = vpack.c.b16 %v1014, %v1013
        %v1018 = vpack.c.b16 %v1016, %v1015
        %v1022 = vsel %vm216, %v1008, 0
        %1024 = vmatprep.subr.bf16.mxu0 0
        %1025 = vmatpush1.bf16.msra.mxu0 %v1017
        %1026 = vmatprep.subr.bf16.mxu0 0
        %1027 = vmatpush1.bf16.msra.mxu0 %v1018
        %1028 = vmatprep.subr.bf16.mxu0 0
        %1029 = vmatpush1.bf16.msra.mxu0 0
        %1030 = vmatprep.subr.bf16.mxu0 0
        %1031 = vmatpush1.bf16.msra.mxu0 0
        %1032 = vmatprep.subr.bf16.mxu0 0
        %1033 = vmatpush1.bf16.msra.mxu0 0
        %1034 = vmatprep.subr.bf16.mxu0 0
        %1035 = vmatpush1.bf16.msra.mxu0 0
        %1036 = vmatprep.subr.bf16.mxu0 0
        %1037 = vmatpush1.bf16.msra.mxu0 0
        %1038 = vmatprep.subr.bf16.mxu0 0
        %1039 = vmatpush1.bf16.msra.mxu0 0
        %1040 = vmatprep.subr.bf16.mxu0 0
        %1041 = vmatpush1.bf16.msra.mxu0 0
        %1042 = vmatprep.subr.bf16.mxu0 0
        %1043 = vmatpush1.bf16.msra.mxu0 0
        %1044 = vmatprep.subr.bf16.mxu0 0
        %1045 = vmatpush1.bf16.msra.mxu0 0
        %1046 = vmatprep.subr.bf16.mxu0 0
        %1047 = vmatpush1.bf16.msra.mxu0 0
        %1048 = vmatprep.subr.bf16.mxu0 0
        %1049 = vmatpush1.bf16.msra.mxu0 0
        %1050 = vmatprep.subr.bf16.mxu0 0
        %1051 = vmatpush1.bf16.msra.mxu0 0
        %1052 = vmatprep.subr.bf16.mxu0 0
        %1053 = vmatpush1.bf16.msra.mxu0 0
        %1054 = vmatprep.subr.bf16.mxu0 0
        %1055 = vmatpush1.bf16.msra.mxu0 0
        %1056 = vmatprep.mubr.bf16.mxu0 0
        %1057 = vmatmul.mubr.bf16.gmra.mrb[0].mxu0 %v1022
        %v1058 = vpop.f32.mrb[0].mxu0
        %v1059 = vadd.f32 0.0, %v1058
        %v1060 = vpop.f32.mrb[0].mxu0
        %v1061 = vpop.f32.mrb[0].mxu0
        %v1062 = vadd.f32 0.0, %v1061
        %v1063 = vpop.f32.mrb[0].mxu0
        %1064 = vdwg.mxu0
        %v1065 = vadd.f32 %v996, %v1059
        %v1066 = vadd.f32 %v997, %v1062
        %v1067 = vld [vmem:[%s927] sm:$0xe]
        %v1068 = vld [vmem:[%s927 + $0x4] sm:$0xf]
        %v1069 = vld [vmem:[%s927 + $0x8] sm:$0x1]
        %s1070 = scalar_lea.vmem %s1, 192
        %v1071 = vld [vmem:[%s1070] sm:$0xf]
        %v1072 = vld [vmem:[%s1070 + $0x4] sm:$0xf]
        %v1073 = vld [vmem:[%s1070 + $0x8] sm:$0xf]
        %v1074 = vld [vmem:[%s1070 + $0xc] sm:$0xf]
        %v1078 = vunpack.c.l.b16 %v1067
        %v1079 = vunpack.c.l.b16 %v1068
        %v1080 = vunpack.c.l.b16 %v1069
        %v1081 = vpack.c.b16 %v1079, %v1078
        %v1082 = vpack.c.b16 %v1080, %v1080
        %v1083 = vrot.slane %v1081, 1
        %v1084 = vrot.slane %v1082, 1
        %v1085 = vsel %vm332, %v1083, %v1084
        %v1090 = vunpack.c.l.b16 %v1071
        %v1091 = vunpack.c.l.b16 %v1072
        %v1092 = vunpack.c.l.b16 %v1073
        %v1093 = vunpack.c.l.b16 %v1074
        %v1094 = vpack.c.b16 %v1091, %v1090
        %v1095 = vpack.c.b16 %v1093, %v1092
        %v1099 = vsel %vm216, %v1085, 0
        %1101 = vmatprep.subr.bf16.mxu0 0
        %1102 = vmatpush1.bf16.msra.mxu0 %v1094
        %1103 = vmatprep.subr.bf16.mxu0 0
        %1104 = vmatpush1.bf16.msra.mxu0 %v1095
        %1105 = vmatprep.subr.bf16.mxu0 0
        %1106 = vmatpush1.bf16.msra.mxu0 0
        %1107 = vmatprep.subr.bf16.mxu0 0
        %1108 = vmatpush1.bf16.msra.mxu0 0
        %1109 = vmatprep.subr.bf16.mxu0 0
        %1110 = vmatpush1.bf16.msra.mxu0 0
        %1111 = vmatprep.subr.bf16.mxu0 0
        %1112 = vmatpush1.bf16.msra.mxu0 0
        %1113 = vmatprep.subr.bf16.mxu0 0
        %1114 = vmatpush1.bf16.msra.mxu0 0
        %1115 = vmatprep.subr.bf16.mxu0 0
        %1116 = vmatpush1.bf16.msra.mxu0 0
        %1117 = vmatprep.subr.bf16.mxu0 0
        %1118 = vmatpush1.bf16.msra.mxu0 0
        %1119 = vmatprep.subr.bf16.mxu0 0
        %1120 = vmatpush1.bf16.msra.mxu0 0
        %1121 = vmatprep.subr.bf16.mxu0 0
        %1122 = vmatpush1.bf16.msra.mxu0 0
        %1123 = vmatprep.subr.bf16.mxu0 0
        %1124 = vmatpush1.bf16.msra.mxu0 0
        %1125 = vmatprep.subr.bf16.mxu0 0
        %1126 = vmatpush1.bf16.msra.mxu0 0
        %1127 = vmatprep.subr.bf16.mxu0 0
        %1128 = vmatpush1.bf16.msra.mxu0 0
        %1129 = vmatprep.subr.bf16.mxu0 0
        %1130 = vmatpush1.bf16.msra.mxu0 0
        %1131 = vmatprep.subr.bf16.mxu0 0
        %1132 = vmatpush1.bf16.msra.mxu0 0
        %1133 = vmatprep.mubr.bf16.mxu0 0
        %1134 = vmatmul.mubr.bf16.gmra.mrb[0].mxu0 %v1099
        %v1135 = vpop.f32.mrb[0].mxu0
        %v1136 = vadd.f32 0.0, %v1135
        %v1137 = vpop.f32.mrb[0].mxu0
        %v1138 = vpop.f32.mrb[0].mxu0
        %v1139 = vadd.f32 0.0, %v1138
        %v1140 = vpop.f32.mrb[0].mxu0
        %1141 = vdwg.mxu0
        %v1142 = vadd.f32 %v1065, %v1136
        %v1143 = vadd.f32 %v1066, %v1139
        %s1144 = scalar_lea.vmem %s1, 208
        %v1145 = vld [vmem:[%s1144] sm:$0xf]
        %v1146 = vld [vmem:[%s1144 + $0x4] sm:$0xf]
        %v1147 = vld [vmem:[%s1144 + $0x8] sm:$0xf]
        %v1148 = vld [vmem:[%s1144 + $0xc] sm:$0xf]
        %v1150 = vshrl.u32 %v1081, 16
        %v1152 = vrot.slane %v1150, 1
        %v1153 = vshll.u32 %v1081, 16
        %v1155 = vrot.slane %v1153, 2
        %v1156 = vor.u32 %v1152, %v1155
        %v1158 = vshrl.u32 %v1082, 16
        %v1160 = vrot.slane %v1158, 1
        %v1161 = vshll.u32 %v1082, 16
        %v1163 = vrot.slane %v1161, 2
        %v1164 = vor.u32 %v1160, %v1163
        %v1165 = vsel %vm399, %v1156, %v1164
        %v1170 = vunpack.c.l.b16 %v1145
        %v1171 = vunpack.c.l.b16 %v1146
        %v1172 = vunpack.c.l.b16 %v1147
        %v1173 = vunpack.c.l.b16 %v1148
        %v1174 = vpack.c.b16 %v1171, %v1170
        %v1175 = vpack.c.b16 %v1173, %v1172
        %v1179 = vsel %vm216, %v1165, 0
        %1181 = vmatprep.subr.bf16.mxu0 0
        %1182 = vmatpush1.bf16.msra.mxu0 %v1174
        %1183 = vmatprep.subr.bf16.mxu0 0
        %1184 = vmatpush1.bf16.msra.mxu0 %v1175
        %1185 = vmatprep.subr.bf16.mxu0 0
        %1186 = vmatpush1.bf16.msra.mxu0 0
        %1187 = vmatprep.subr.bf16.mxu0 0
        %1188 = vmatpush1.bf16.msra.mxu0 0
        %1189 = vmatprep.subr.bf16.mxu0 0
        %1190 = vmatpush1.bf16.msra.mxu0 0
        %1191 = vmatprep.subr.bf16.mxu0 0
        %1192 = vmatpush1.bf16.msra.mxu0 0
        %1193 = vmatprep.subr.bf16.mxu0 0
        %1194 = vmatpush1.bf16.msra.mxu0 0
        %1195 = vmatprep.subr.bf16.mxu0 0
        %1196 = vmatpush1.bf16.msra.mxu0 0
        %1197 = vmatprep.subr.bf16.mxu0 0
        %1198 = vmatpush1.bf16.msra.mxu0 0
        %1199 = vmatprep.subr.bf16.mxu0 0
        %1200 = vmatpush1.bf16.msra.mxu0 0
        %1201 = vmatprep.subr.bf16.mxu0 0
        %1202 = vmatpush1.bf16.msra.mxu0 0
        %1203 = vmatprep.subr.bf16.mxu0 0
        %1204 = vmatpush1.bf16.msra.mxu0 0
        %1205 = vmatprep.subr.bf16.mxu0 0
        %1206 = vmatpush1.bf16.msra.mxu0 0
        %1207 = vmatprep.subr.bf16.mxu0 0
        %1208 = vmatpush1.bf16.msra.mxu0 0
        %1209 = vmatprep.subr.bf16.mxu0 0
        %1210 = vmatpush1.bf16.msra.mxu0 0
        %1211 = vmatprep.subr.bf16.mxu0 0
        %1212 = vmatpush1.bf16.msra.mxu0 0
        %1213 = vmatprep.mubr.bf16.mxu0 0
        %1214 = vmatmul.mubr.bf16.gmra.mrb[0].mxu0 %v1179
        %v1215 = vpop.f32.mrb[0].mxu0
        %v1216 = vadd.f32 0.0, %v1215
        %v1217 = vpop.f32.mrb[0].mxu0
        %v1218 = vpop.f32.mrb[0].mxu0
        %v1219 = vadd.f32 0.0, %v1218
        %v1220 = vpop.f32.mrb[0].mxu0
        %1221 = vdwg.mxu0
        %v1222 = vadd.f32 %v1142, %v1216
        %v1223 = vadd.f32 %v1143, %v1219
        %v1224 = vld [vmem:[%s927] sm:$0xc]
        %v1225 = vld [vmem:[%s927 + $0x8] sm:$0x3]
        %s1226 = scalar_lea.vmem %s1, 224
        %v1227 = vld [vmem:[%s1226] sm:$0xf]
        %v1228 = vld [vmem:[%s1226 + $0x4] sm:$0xf]
        %v1229 = vld [vmem:[%s1226 + $0x8] sm:$0xf]
        %v1230 = vld [vmem:[%s1226 + $0xc] sm:$0xf]
        %v1233 = vunpack.c.l.b16 %v1224
        %v1234 = vunpack.c.l.b16 %v1225
        %v1235 = vpack.c.b16 %v1079, %v1233
        %v1236 = vpack.c.b16 %v1234, %v1234
        %v1237 = vrot.slane %v1235, 2
        %v1238 = vrot.slane %v1236, 2
        %v1239 = vsel %vm488, %v1237, %v1238
        %v1244 = vunpack.c.l.b16 %v1227
        %v1245 = vunpack.c.l.b16 %v1228
        %v1246 = vunpack.c.l.b16 %v1229
        %v1247 = vunpack.c.l.b16 %v1230
        %v1248 = vpack.c.b16 %v1245, %v1244
        %v1249 = vpack.c.b16 %v1247, %v1246
        %v1253 = vsel %vm216, %v1239, 0
        %1255 = vmatprep.subr.bf16.mxu0 0
        %1256 = vmatpush1.bf16.msra.mxu0 %v1248
        %1257 = vmatprep.subr.bf16.mxu0 0
        %1258 = vmatpush1.bf16.msra.mxu0 %v1249
        %1259 = vmatprep.subr.bf16.mxu0 0
        %1260 = vmatpush1.bf16.msra.mxu0 0
        %1261 = vmatprep.subr.bf16.mxu0 0
        %1262 = vmatpush1.bf16.msra.mxu0 0
        %1263 = vmatprep.subr.bf16.mxu0 0
        %1264 = vmatpush1.bf16.msra.mxu0 0
        %1265 = vmatprep.subr.bf16.mxu0 0
        %1266 = vmatpush1.bf16.msra.mxu0 0
        %1267 = vmatprep.subr.bf16.mxu0 0
        %1268 = vmatpush1.bf16.msra.mxu0 0
        %1269 = vmatprep.subr.bf16.mxu0 0
        %1270 = vmatpush1.bf16.msra.mxu0 0
        %1271 = vmatprep.subr.bf16.mxu0 0
        %1272 = vmatpush1.bf16.msra.mxu0 0
        %1273 = vmatprep.subr.bf16.mxu0 0
        %1274 = vmatpush1.bf16.msra.mxu0 0
        %1275 = vmatprep.subr.bf16.mxu0 0
        %1276 = vmatpush1.bf16.msra.mxu0 0
        %1277 = vmatprep.subr.bf16.mxu0 0
        %1278 = vmatpush1.bf16.msra.mxu0 0
        %1279 = vmatprep.subr.bf16.mxu0 0
        %1280 = vmatpush1.bf16.msra.mxu0 0
        %1281 = vmatprep.subr.bf16.mxu0 0
        %1282 = vmatpush1.bf16.msra.mxu0 0
        %1283 = vmatprep.subr.bf16.mxu0 0
        %1284 = vmatpush1.bf16.msra.mxu0 0
        %1285 = vmatprep.subr.bf16.mxu0 0
        %1286 = vmatpush1.bf16.msra.mxu0 0
        %1287 = vmatprep.mubr.bf16.mxu0 0
        %1288 = vmatmul.mubr.bf16.gmra.mrb[0].mxu0 %v1253
        %v1289 = vpop.f32.mrb[0].mxu0
        %v1290 = vadd.f32 0.0, %v1289
        %v1291 = vpop.f32.mrb[0].mxu0
        %v1292 = vpop.f32.mrb[0].mxu0
        %v1293 = vadd.f32 0.0, %v1292
        %v1294 = vpop.f32.mrb[0].mxu0
        %1295 = vdwg.mxu0
        %v1296 = vadd.f32 %v1222, %v1290
        %v1297 = vadd.f32 %v1223, %v1293
        %s1298 = sadd.s32 %s173, 3
        %s1299 = smul.u32 %s1298, 3
        %s1300 = smul.addr %s1299, 4
        %s1301 = scalar_lea.vmem %s165, %s1300
        %v1302 = vld [vmem:[%s1301] sm:$0xf]
        %v1303 = vld [vmem:[%s1301 + $0x4] sm:$0xf]
        %s1304 = scalar_lea.vmem %s1, 240
        %v1305 = vld [vmem:[%s1304] sm:$0xf]
        %v1306 = vld [vmem:[%s1304 + $0x4] sm:$0xf]
        %v1307 = vld [vmem:[%s1304 + $0x8] sm:$0xf]
        %v1308 = vld [vmem:[%s1304 + $0xc] sm:$0xf]
        %v1311 = vunpack.c.l.b16 %v1302
        %v1312 = vunpack.c.l.b16 %v1303
        %v1313 = vpack.c.b16 %v1312, %v1311
        %v1318 = vunpack.c.l.b16 %v1305
        %v1319 = vunpack.c.l.b16 %v1306
        %v1320 = vunpack.c.l.b16 %v1307
        %v1321 = vunpack.c.l.b16 %v1308
        %v1322 = vpack.c.b16 %v1319, %v1318
        %v1323 = vpack.c.b16 %v1321, %v1320
        %v1327 = vsel %vm216, %v1313, 0
        %1329 = vmatprep.subr.bf16.mxu0 0
        %1330 = vmatpush1.bf16.msra.mxu0 %v1322
        %1331 = vmatprep.subr.bf16.mxu0 0
        %1332 = vmatpush1.bf16.msra.mxu0 %v1323
        %1333 = vmatprep.subr.bf16.mxu0 0
        %1334 = vmatpush1.bf16.msra.mxu0 0
        %1335 = vmatprep.subr.bf16.mxu0 0
        %1336 = vmatpush1.bf16.msra.mxu0 0
        %1337 = vmatprep.subr.bf16.mxu0 0
        %1338 = vmatpush1.bf16.msra.mxu0 0
        %1339 = vmatprep.subr.bf16.mxu0 0
        %1340 = vmatpush1.bf16.msra.mxu0 0
        %1341 = vmatprep.subr.bf16.mxu0 0
        %1342 = vmatpush1.bf16.msra.mxu0 0
        %1343 = vmatprep.subr.bf16.mxu0 0
        %1344 = vmatpush1.bf16.msra.mxu0 0
        %1345 = vmatprep.subr.bf16.mxu0 0
        %1346 = vmatpush1.bf16.msra.mxu0 0
        %1347 = vmatprep.subr.bf16.mxu0 0
        %1348 = vmatpush1.bf16.msra.mxu0 0
        %1349 = vmatprep.subr.bf16.mxu0 0
        %1350 = vmatpush1.bf16.msra.mxu0 0
        %1351 = vmatprep.subr.bf16.mxu0 0
        %1352 = vmatpush1.bf16.msra.mxu0 0
        %1353 = vmatprep.subr.bf16.mxu0 0
        %1354 = vmatpush1.bf16.msra.mxu0 0
        %1355 = vmatprep.subr.bf16.mxu0 0
        %1356 = vmatpush1.bf16.msra.mxu0 0
        %1357 = vmatprep.subr.bf16.mxu0 0
        %1358 = vmatpush1.bf16.msra.mxu0 0
        %1359 = vmatprep.subr.bf16.mxu0 0
        %1360 = vmatpush1.bf16.msra.mxu0 0
        %1361 = vmatprep.mubr.bf16.mxu0 0
        %1362 = vmatmul.mubr.bf16.gmra.mrb[0].mxu0 %v1327
        %v1363 = vpop.f32.mrb[0].mxu0
        %v1364 = vadd.f32 0.0, %v1363
        %v1365 = vpop.f32.mrb[0].mxu0
        %v1366 = vpop.f32.mrb[0].mxu0
        %v1367 = vadd.f32 0.0, %v1366
        %v1368 = vpop.f32.mrb[0].mxu0
        %1369 = vdwg.mxu0
        %v1370 = vadd.f32 %v1296, %v1364
        %v1371 = vadd.f32 %v1297, %v1367
        %s1372 = scalar_lea.vmem %s1, 256
        %v1373 = vld [vmem:[%s1372] sm:$0xf]
        %v1374 = vld [vmem:[%s1372 + $0x4] sm:$0xf]
        %v1375 = vld [vmem:[%s1372 + $0x8] sm:$0xf]
        %v1376 = vld [vmem:[%s1372 + $0xc] sm:$0xf]
        %v1377 = vshrl.u32 %v1313, 16
        %v1379 = vshll.u32 %v1313, 16
        %v1381 = vrot.slane %v1379, 1
        %v1382 = vor.u32 %v1377, %v1381
        %v1387 = vunpack.c.l.b16 %v1373
        %v1388 = vunpack.c.l.b16 %v1374
        %v1389 = vunpack.c.l.b16 %v1375
        %v1390 = vunpack.c.l.b16 %v1376
        %v1391 = vpack.c.b16 %v1388, %v1387
        %v1392 = vpack.c.b16 %v1390, %v1389
        %v1396 = vsel %vm216, %v1382, 0
        %1398 = vmatprep.subr.bf16.mxu0 0
        %1399 = vmatpush1.bf16.msra.mxu0 %v1391
        %1400 = vmatprep.subr.bf16.mxu0 0
        %1401 = vmatpush1.bf16.msra.mxu0 %v1392
        %1402 = vmatprep.subr.bf16.mxu0 0
        %1403 = vmatpush1.bf16.msra.mxu0 0
        %1404 = vmatprep.subr.bf16.mxu0 0
        %1405 = vmatpush1.bf16.msra.mxu0 0
        %1406 = vmatprep.subr.bf16.mxu0 0
        %1407 = vmatpush1.bf16.msra.mxu0 0
        %1408 = vmatprep.subr.bf16.mxu0 0
        %1409 = vmatpush1.bf16.msra.mxu0 0
        %1410 = vmatprep.subr.bf16.mxu0 0
        %1411 = vmatpush1.bf16.msra.mxu0 0
        %1412 = vmatprep.subr.bf16.mxu0 0
        %1413 = vmatpush1.bf16.msra.mxu0 0
        %1414 = vmatprep.subr.bf16.mxu0 0
        %1415 = vmatpush1.bf16.msra.mxu0 0
        %1416 = vmatprep.subr.bf16.mxu0 0
        %1417 = vmatpush1.bf16.msra.mxu0 0
        %1418 = vmatprep.subr.bf16.mxu0 0
        %1419 = vmatpush1.bf16.msra.mxu0 0
        %1420 = vmatprep.subr.bf16.mxu0 0
        %1421 = vmatpush1.bf16.msra.mxu0 0
        %1422 = vmatprep.subr.bf16.mxu0 0
        %1423 = vmatpush1.bf16.msra.mxu0 0
        %1424 = vmatprep.subr.bf16.mxu0 0
        %1425 = vmatpush1.bf16.msra.mxu0 0
        %1426 = vmatprep.subr.bf16.mxu0 0
        %1427 = vmatpush1.bf16.msra.mxu0 0
        %1428 = vmatprep.subr.bf16.mxu0 0
        %1429 = vmatpush1.bf16.msra.mxu0 0
        %1430 = vmatprep.mubr.bf16.mxu0 0
        %1431 = vmatmul.mubr.bf16.gmra.mrb[0].mxu0 %v1396
        %v1432 = vpop.f32.mrb[0].mxu0
        %v1433 = vadd.f32 0.0, %v1432
        %v1434 = vpop.f32.mrb[0].mxu0
        %v1435 = vpop.f32.mrb[0].mxu0
        %v1436 = vadd.f32 0.0, %v1435
        %v1437 = vpop.f32.mrb[0].mxu0
        %1438 = vdwg.mxu0
        %v1439 = vadd.f32 %v1370, %v1433
        %v1440 = vadd.f32 %v1371, %v1436
        %v1441 = vld [vmem:[%s1301] sm:$0xe]
        %v1442 = vld [vmem:[%s1301 + $0x4] sm:$0xf]
        %v1443 = vld [vmem:[%s1301 + $0x8] sm:$0x1]
        %s1444 = scalar_lea.vmem %s1, 272
        %v1445 = vld [vmem:[%s1444] sm:$0xf]
        %v1446 = vld [vmem:[%s1444 + $0x4] sm:$0xf]
        %v1447 = vld [vmem:[%s1444 + $0x8] sm:$0xf]
        %v1448 = vld [vmem:[%s1444 + $0xc] sm:$0xf]
        %v1452 = vunpack.c.l.b16 %v1441
        %v1453 = vunpack.c.l.b16 %v1442
        %v1454 = vunpack.c.l.b16 %v1443
        %v1455 = vpack.c.b16 %v1453, %v1452
        %v1456 = vpack.c.b16 %v1454, %v1454
        %v1457 = vrot.slane %v1455, 1
        %v1458 = vrot.slane %v1456, 1
        %v1459 = vsel %vm332, %v1457, %v1458
        %v1464 = vunpack.c.l.b16 %v1445
        %v1465 = vunpack.c.l.b16 %v1446
        %v1466 = vunpack.c.l.b16 %v1447
        %v1467 = vunpack.c.l.b16 %v1448
        %v1468 = vpack.c.b16 %v1465, %v1464
        %v1469 = vpack.c.b16 %v1467, %v1466
        %v1473 = vsel %vm216, %v1459, 0
        %1475 = vmatprep.subr.bf16.mxu0 0
        %1476 = vmatpush1.bf16.msra.mxu0 %v1468
        %1477 = vmatprep.subr.bf16.mxu0 0
        %1478 = vmatpush1.bf16.msra.mxu0 %v1469
        %1479 = vmatprep.subr.bf16.mxu0 0
        %1480 = vmatpush1.bf16.msra.mxu0 0
        %1481 = vmatprep.subr.bf16.mxu0 0
        %1482 = vmatpush1.bf16.msra.mxu0 0
        %1483 = vmatprep.subr.bf16.mxu0 0
        %1484 = vmatpush1.bf16.msra.mxu0 0
        %1485 = vmatprep.subr.bf16.mxu0 0
        %1486 = vmatpush1.bf16.msra.mxu0 0
        %1487 = vmatprep.subr.bf16.mxu0 0
        %1488 = vmatpush1.bf16.msra.mxu0 0
        %1489 = vmatprep.subr.bf16.mxu0 0
        %1490 = vmatpush1.bf16.msra.mxu0 0
        %1491 = vmatprep.subr.bf16.mxu0 0
        %1492 = vmatpush1.bf16.msra.mxu0 0
        %1493 = vmatprep.subr.bf16.mxu0 0
        %1494 = vmatpush1.bf16.msra.mxu0 0
        %1495 = vmatprep.subr.bf16.mxu0 0
        %1496 = vmatpush1.bf16.msra.mxu0 0
        %1497 = vmatprep.subr.bf16.mxu0 0
        %1498 = vmatpush1.bf16.msra.mxu0 0
        %1499 = vmatprep.subr.bf16.mxu0 0
        %1500 = vmatpush1.bf16.msra.mxu0 0
        %1501 = vmatprep.subr.bf16.mxu0 0
        %1502 = vmatpush1.bf16.msra.mxu0 0
        %1503 = vmatprep.subr.bf16.mxu0 0
        %1504 = vmatpush1.bf16.msra.mxu0 0
        %1505 = vmatprep.subr.bf16.mxu0 0
        %1506 = vmatpush1.bf16.msra.mxu0 0
        %1507 = vmatprep.mubr.bf16.mxu0 0
        %1508 = vmatmul.mubr.bf16.gmra.mrb[0].mxu0 %v1473
        %v1509 = vpop.f32.mrb[0].mxu0
        %v1510 = vadd.f32 0.0, %v1509
        %v1511 = vpop.f32.mrb[0].mxu0
        %v1512 = vpop.f32.mrb[0].mxu0
        %v1513 = vadd.f32 0.0, %v1512
        %v1514 = vpop.f32.mrb[0].mxu0
        %1515 = vdwg.mxu0
        %v1516 = vadd.f32 %v1439, %v1510
        %v1517 = vadd.f32 %v1440, %v1513
        %s1518 = scalar_lea.vmem %s1, 288
        %v1519 = vld [vmem:[%s1518] sm:$0xf]
        %v1520 = vld [vmem:[%s1518 + $0x4] sm:$0xf]
        %v1521 = vld [vmem:[%s1518 + $0x8] sm:$0xf]
        %v1522 = vld [vmem:[%s1518 + $0xc] sm:$0xf]
        %v1524 = vshrl.u32 %v1455, 16
        %v1526 = vrot.slane %v1524, 1
        %v1527 = vshll.u32 %v1455, 16
        %v1529 = vrot.slane %v1527, 2
        %v1530 = vor.u32 %v1526, %v1529
        %v1532 = vshrl.u32 %v1456, 16
        %v1534 = vrot.slane %v1532, 1
        %v1535 = vshll.u32 %v1456, 16
        %v1537 = vrot.slane %v1535, 2
        %v1538 = vor.u32 %v1534, %v1537
        %v1539 = vsel %vm399, %v1530, %v1538
        %v1544 = vunpack.c.l.b16 %v1519
        %v1545 = vunpack.c.l.b16 %v1520
        %v1546 = vunpack.c.l.b16 %v1521
        %v1547 = vunpack.c.l.b16 %v1522
        %v1548 = vpack.c.b16 %v1545, %v1544
        %v1549 = vpack.c.b16 %v1547, %v1546
        %v1553 = vsel %vm216, %v1539, 0
        %1555 = vmatprep.subr.bf16.mxu0 0
        %1556 = vmatpush1.bf16.msra.mxu0 %v1548
        %1557 = vmatprep.subr.bf16.mxu0 0
        %1558 = vmatpush1.bf16.msra.mxu0 %v1549
        %1559 = vmatprep.subr.bf16.mxu0 0
        %1560 = vmatpush1.bf16.msra.mxu0 0
        %1561 = vmatprep.subr.bf16.mxu0 0
        %1562 = vmatpush1.bf16.msra.mxu0 0
        %1563 = vmatprep.subr.bf16.mxu0 0
        %1564 = vmatpush1.bf16.msra.mxu0 0
        %1565 = vmatprep.subr.bf16.mxu0 0
        %1566 = vmatpush1.bf16.msra.mxu0 0
        %1567 = vmatprep.subr.bf16.mxu0 0
        %1568 = vmatpush1.bf16.msra.mxu0 0
        %1569 = vmatprep.subr.bf16.mxu0 0
        %1570 = vmatpush1.bf16.msra.mxu0 0
        %1571 = vmatprep.subr.bf16.mxu0 0
        %1572 = vmatpush1.bf16.msra.mxu0 0
        %1573 = vmatprep.subr.bf16.mxu0 0
        %1574 = vmatpush1.bf16.msra.mxu0 0
        %1575 = vmatprep.subr.bf16.mxu0 0
        %1576 = vmatpush1.bf16.msra.mxu0 0
        %1577 = vmatprep.subr.bf16.mxu0 0
        %1578 = vmatpush1.bf16.msra.mxu0 0
        %1579 = vmatprep.subr.bf16.mxu0 0
        %1580 = vmatpush1.bf16.msra.mxu0 0
        %1581 = vmatprep.subr.bf16.mxu0 0
        %1582 = vmatpush1.bf16.msra.mxu0 0
        %1583 = vmatprep.subr.bf16.mxu0 0
        %1584 = vmatpush1.bf16.msra.mxu0 0
        %1585 = vmatprep.subr.bf16.mxu0 0
        %1586 = vmatpush1.bf16.msra.mxu0 0
        %1587 = vmatprep.mubr.bf16.mxu0 0
        %1588 = vmatmul.mubr.bf16.gmra.mrb[0].mxu0 %v1553
        %v1589 = vpop.f32.mrb[0].mxu0
        %v1590 = vadd.f32 0.0, %v1589
        %v1591 = vpop.f32.mrb[0].mxu0
        %v1592 = vpop.f32.mrb[0].mxu0
        %v1593 = vadd.f32 0.0, %v1592
        %v1594 = vpop.f32.mrb[0].mxu0
        %1595 = vdwg.mxu0
        %v1596 = vadd.f32 %v1516, %v1590
        %v1597 = vadd.f32 %v1517, %v1593
        %v1598 = vld [vmem:[%s1301] sm:$0xc]
        %v1599 = vld [vmem:[%s1301 + $0x8] sm:$0x3]
        %s1600 = scalar_lea.vmem %s1, 304
        %v1601 = vld [vmem:[%s1600] sm:$0xf]
        %v1602 = vld [vmem:[%s1600 + $0x4] sm:$0xf]
        %v1603 = vld [vmem:[%s1600 + $0x8] sm:$0xf]
        %v1604 = vld [vmem:[%s1600 + $0xc] sm:$0xf]
        %v1607 = vunpack.c.l.b16 %v1598
        %v1608 = vunpack.c.l.b16 %v1599
        %v1609 = vpack.c.b16 %v1453, %v1607
        %v1610 = vpack.c.b16 %v1608, %v1608
        %v1611 = vrot.slane %v1609, 2
        %v1612 = vrot.slane %v1610, 2
        %v1613 = vsel %vm488, %v1611, %v1612
        %v1618 = vunpack.c.l.b16 %v1601
        %v1619 = vunpack.c.l.b16 %v1602
        %v1620 = vunpack.c.l.b16 %v1603
        %v1621 = vunpack.c.l.b16 %v1604
        %v1622 = vpack.c.b16 %v1619, %v1618
        %v1623 = vpack.c.b16 %v1621, %v1620
        %v1627 = vsel %vm216, %v1613, 0
        %1629 = vmatprep.subr.bf16.mxu0 0
        %1630 = vmatpush1.bf16.msra.mxu0 %v1622
        %1631 = vmatprep.subr.bf16.mxu0 0
        %1632 = vmatpush1.bf16.msra.mxu0 %v1623
        %1633 = vmatprep.subr.bf16.mxu0 0
        %1634 = vmatpush1.bf16.msra.mxu0 0
        %1635 = vmatprep.subr.bf16.mxu0 0
        %1636 = vmatpush1.bf16.msra.mxu0 0
        %1637 = vmatprep.subr.bf16.mxu0 0
        %1638 = vmatpush1.bf16.msra.mxu0 0
        %1639 = vmatprep.subr.bf16.mxu0 0
        %1640 = vmatpush1.bf16.msra.mxu0 0
        %1641 = vmatprep.subr.bf16.mxu0 0
        %1642 = vmatpush1.bf16.msra.mxu0 0
        %1643 = vmatprep.subr.bf16.mxu0 0
        %1644 = vmatpush1.bf16.msra.mxu0 0
        %1645 = vmatprep.subr.bf16.mxu0 0
        %1646 = vmatpush1.bf16.msra.mxu0 0
        %1647 = vmatprep.subr.bf16.mxu0 0
        %1648 = vmatpush1.bf16.msra.mxu0 0
        %1649 = vmatprep.subr.bf16.mxu0 0
        %1650 = vmatpush1.bf16.msra.mxu0 0
        %1651 = vmatprep.subr.bf16.mxu0 0
        %1652 = vmatpush1.bf16.msra.mxu0 0
        %1653 = vmatprep.subr.bf16.mxu0 0
        %1654 = vmatpush1.bf16.msra.mxu0 0
        %1655 = vmatprep.subr.bf16.mxu0 0
        %1656 = vmatpush1.bf16.msra.mxu0 0
        %1657 = vmatprep.subr.bf16.mxu0 0
        %1658 = vmatpush1.bf16.msra.mxu0 0
        %1659 = vmatprep.subr.bf16.mxu0 0
        %1660 = vmatpush1.bf16.msra.mxu0 0
        %1661 = vmatprep.mubr.bf16.mxu0 0
        %1662 = vmatmul.mubr.bf16.gmra.mrb[0].mxu0 %v1627
        %v1663 = vpop.f32.mrb[0].mxu0
        %v1664 = vadd.f32 0.0, %v1663
        %v1665 = vpop.f32.mrb[0].mxu0
        %v1666 = vpop.f32.mrb[0].mxu0
        %v1667 = vadd.f32 0.0, %v1666
        %v1668 = vpop.f32.mrb[0].mxu0
        %1669 = vdwg.mxu0
        %v1670 = vadd.f32 %v1596, %v1664
        %v1671 = vadd.f32 %v1597, %v1667
        %s1672 = sadd.s32 %s173, 4
        %s1673 = smul.u32 %s1672, 3
        %s1674 = smul.addr %s1673, 4
        %s1675 = scalar_lea.vmem %s165, %s1674
        %v1676 = vld [vmem:[%s1675] sm:$0xf]
        %v1677 = vld [vmem:[%s1675 + $0x4] sm:$0xf]
        %s1678 = scalar_lea.vmem %s1, 320
        %v1679 = vld [vmem:[%s1678] sm:$0xf]
        %v1680 = vld [vmem:[%s1678 + $0x4] sm:$0xf]
        %v1681 = vld [vmem:[%s1678 + $0x8] sm:$0xf]
        %v1682 = vld [vmem:[%s1678 + $0xc] sm:$0xf]
        %v1685 = vunpack.c.l.b16 %v1676
        %v1686 = vunpack.c.l.b16 %v1677
        %v1687 = vpack.c.b16 %v1686, %v1685
        %v1692 = vunpack.c.l.b16 %v1679
        %v1693 = vunpack.c.l.b16 %v1680
        %v1694 = vunpack.c.l.b16 %v1681
        %v1695 = vunpack.c.l.b16 %v1682
        %v1696 = vpack.c.b16 %v1693, %v1692
        %v1697 = vpack.c.b16 %v1695, %v1694
        %v1701 = vsel %vm216, %v1687, 0
        %1703 = vmatprep.subr.bf16.mxu0 0
        %1704 = vmatpush1.bf16.msra.mxu0 %v1696
        %1705 = vmatprep.subr.bf16.mxu0 0
        %1706 = vmatpush1.bf16.msra.mxu0 %v1697
        %1707 = vmatprep.subr.bf16.mxu0 0
        %1708 = vmatpush1.bf16.msra.mxu0 0
        %1709 = vmatprep.subr.bf16.mxu0 0
        %1710 = vmatpush1.bf16.msra.mxu0 0
        %1711 = vmatprep.subr.bf16.mxu0 0
        %1712 = vmatpush1.bf16.msra.mxu0 0
        %1713 = vmatprep.subr.bf16.mxu0 0
        %1714 = vmatpush1.bf16.msra.mxu0 0
        %1715 = vmatprep.subr.bf16.mxu0 0
        %1716 = vmatpush1.bf16.msra.mxu0 0
        %1717 = vmatprep.subr.bf16.mxu0 0
        %1718 = vmatpush1.bf16.msra.mxu0 0
        %1719 = vmatprep.subr.bf16.mxu0 0
        %1720 = vmatpush1.bf16.msra.mxu0 0
        %1721 = vmatprep.subr.bf16.mxu0 0
        %1722 = vmatpush1.bf16.msra.mxu0 0
        %1723 = vmatprep.subr.bf16.mxu0 0
        %1724 = vmatpush1.bf16.msra.mxu0 0
        %1725 = vmatprep.subr.bf16.mxu0 0
        %1726 = vmatpush1.bf16.msra.mxu0 0
        %1727 = vmatprep.subr.bf16.mxu0 0
        %1728 = vmatpush1.bf16.msra.mxu0 0
        %1729 = vmatprep.subr.bf16.mxu0 0
        %1730 = vmatpush1.bf16.msra.mxu0 0
        %1731 = vmatprep.subr.bf16.mxu0 0
        %1732 = vmatpush1.bf16.msra.mxu0 0
        %1733 = vmatprep.subr.bf16.mxu0 0
        %1734 = vmatpush1.bf16.msra.mxu0 0
        %1735 = vmatprep.mubr.bf16.mxu0 0
        %1736 = vmatmul.mubr.bf16.gmra.mrb[0].mxu0 %v1701
        %v1737 = vpop.f32.mrb[0].mxu0
        %v1738 = vadd.f32 0.0, %v1737
        %v1739 = vpop.f32.mrb[0].mxu0
        %v1740 = vpop.f32.mrb[0].mxu0
        %v1741 = vadd.f32 0.0, %v1740
        %v1742 = vpop.f32.mrb[0].mxu0
        %1743 = vdwg.mxu0
        %v1744 = vadd.f32 %v1670, %v1738
        %v1745 = vadd.f32 %v1671, %v1741
        %s1746 = scalar_lea.vmem %s1, 336
        %v1747 = vld [vmem:[%s1746] sm:$0xf]
        %v1748 = vld [vmem:[%s1746 + $0x4] sm:$0xf]
        %v1749 = vld [vmem:[%s1746 + $0x8] sm:$0xf]
        %v1750 = vld [vmem:[%s1746 + $0xc] sm:$0xf]
        %v1751 = vshrl.u32 %v1687, 16
        %v1753 = vshll.u32 %v1687, 16
        %v1755 = vrot.slane %v1753, 1
        %v1756 = vor.u32 %v1751, %v1755
        %v1761 = vunpack.c.l.b16 %v1747
        %v1762 = vunpack.c.l.b16 %v1748
        %v1763 = vunpack.c.l.b16 %v1749
        %v1764 = vunpack.c.l.b16 %v1750
        %v1765 = vpack.c.b16 %v1762, %v1761
        %v1766 = vpack.c.b16 %v1764, %v1763
        %v1770 = vsel %vm216, %v1756, 0
        %1772 = vmatprep.subr.bf16.mxu0 0
        %1773 = vmatpush1.bf16.msra.mxu0 %v1765
        %1774 = vmatprep.subr.bf16.mxu0 0
        %1775 = vmatpush1.bf16.msra.mxu0 %v1766
        %1776 = vmatprep.subr.bf16.mxu0 0
        %1777 = vmatpush1.bf16.msra.mxu0 0
        %1778 = vmatprep.subr.bf16.mxu0 0
        %1779 = vmatpush1.bf16.msra.mxu0 0
        %1780 = vmatprep.subr.bf16.mxu0 0
        %1781 = vmatpush1.bf16.msra.mxu0 0
        %1782 = vmatprep.subr.bf16.mxu0 0
        %1783 = vmatpush1.bf16.msra.mxu0 0
        %1784 = vmatprep.subr.bf16.mxu0 0
        %1785 = vmatpush1.bf16.msra.mxu0 0
        %1786 = vmatprep.subr.bf16.mxu0 0
        %1787 = vmatpush1.bf16.msra.mxu0 0
        %1788 = vmatprep.subr.bf16.mxu0 0
        %1789 = vmatpush1.bf16.msra.mxu0 0
        %1790 = vmatprep.subr.bf16.mxu0 0
        %1791 = vmatpush1.bf16.msra.mxu0 0
        %1792 = vmatprep.subr.bf16.mxu0 0
        %1793 = vmatpush1.bf16.msra.mxu0 0
        %1794 = vmatprep.subr.bf16.mxu0 0
        %1795 = vmatpush1.bf16.msra.mxu0 0
        %1796 = vmatprep.subr.bf16.mxu0 0
        %1797 = vmatpush1.bf16.msra.mxu0 0
        %1798 = vmatprep.subr.bf16.mxu0 0
        %1799 = vmatpush1.bf16.msra.mxu0 0
        %1800 = vmatprep.subr.bf16.mxu0 0
        %1801 = vmatpush1.bf16.msra.mxu0 0
        %1802 = vmatprep.subr.bf16.mxu0 0
        %1803 = vmatpush1.bf16.msra.mxu0 0
        %1804 = vmatprep.mubr.bf16.mxu0 0
        %1805 = vmatmul.mubr.bf16.gmra.mrb[0].mxu0 %v1770
        %v1806 = vpop.f32.mrb[0].mxu0
        %v1807 = vadd.f32 0.0, %v1806
        %v1808 = vpop.f32.mrb[0].mxu0
        %v1809 = vpop.f32.mrb[0].mxu0
        %v1810 = vadd.f32 0.0, %v1809
        %v1811 = vpop.f32.mrb[0].mxu0
        %1812 = vdwg.mxu0
        %v1813 = vadd.f32 %v1744, %v1807
        %v1814 = vadd.f32 %v1745, %v1810
        %v1815 = vld [vmem:[%s1675] sm:$0xe]
        %v1816 = vld [vmem:[%s1675 + $0x4] sm:$0xf]
        %v1817 = vld [vmem:[%s1675 + $0x8] sm:$0x1]
        %s1818 = scalar_lea.vmem %s1, 352
        %v1819 = vld [vmem:[%s1818] sm:$0xf]
        %v1820 = vld [vmem:[%s1818 + $0x4] sm:$0xf]
        %v1821 = vld [vmem:[%s1818 + $0x8] sm:$0xf]
        %v1822 = vld [vmem:[%s1818 + $0xc] sm:$0xf]
        %v1826 = vunpack.c.l.b16 %v1815
        %v1827 = vunpack.c.l.b16 %v1816
        %v1828 = vunpack.c.l.b16 %v1817
        %v1829 = vpack.c.b16 %v1827, %v1826
        %v1830 = vpack.c.b16 %v1828, %v1828
        %v1831 = vrot.slane %v1829, 1
        %v1832 = vrot.slane %v1830, 1
        %v1833 = vsel %vm332, %v1831, %v1832
        %v1838 = vunpack.c.l.b16 %v1819
        %v1839 = vunpack.c.l.b16 %v1820
        %v1840 = vunpack.c.l.b16 %v1821
        %v1841 = vunpack.c.l.b16 %v1822
        %v1842 = vpack.c.b16 %v1839, %v1838
        %v1843 = vpack.c.b16 %v1841, %v1840
        %v1847 = vsel %vm216, %v1833, 0
        %1849 = vmatprep.subr.bf16.mxu0 0
        %1850 = vmatpush1.bf16.msra.mxu0 %v1842
        %1851 = vmatprep.subr.bf16.mxu0 0
        %1852 = vmatpush1.bf16.msra.mxu0 %v1843
        %1853 = vmatprep.subr.bf16.mxu0 0
        %1854 = vmatpush1.bf16.msra.mxu0 0
        %1855 = vmatprep.subr.bf16.mxu0 0
        %1856 = vmatpush1.bf16.msra.mxu0 0
        %1857 = vmatprep.subr.bf16.mxu0 0
        %1858 = vmatpush1.bf16.msra.mxu0 0
        %1859 = vmatprep.subr.bf16.mxu0 0
        %1860 = vmatpush1.bf16.msra.mxu0 0
        %1861 = vmatprep.subr.bf16.mxu0 0
        %1862 = vmatpush1.bf16.msra.mxu0 0
        %1863 = vmatprep.subr.bf16.mxu0 0
        %1864 = vmatpush1.bf16.msra.mxu0 0
        %1865 = vmatprep.subr.bf16.mxu0 0
        %1866 = vmatpush1.bf16.msra.mxu0 0
        %1867 = vmatprep.subr.bf16.mxu0 0
        %1868 = vmatpush1.bf16.msra.mxu0 0
        %1869 = vmatprep.subr.bf16.mxu0 0
        %1870 = vmatpush1.bf16.msra.mxu0 0
        %1871 = vmatprep.subr.bf16.mxu0 0
        %1872 = vmatpush1.bf16.msra.mxu0 0
        %1873 = vmatprep.subr.bf16.mxu0 0
        %1874 = vmatpush1.bf16.msra.mxu0 0
        %1875 = vmatprep.subr.bf16.mxu0 0
        %1876 = vmatpush1.bf16.msra.mxu0 0
        %1877 = vmatprep.subr.bf16.mxu0 0
        %1878 = vmatpush1.bf16.msra.mxu0 0
        %1879 = vmatprep.subr.bf16.mxu0 0
        %1880 = vmatpush1.bf16.msra.mxu0 0
        %1881 = vmatprep.mubr.bf16.mxu0 0
        %1882 = vmatmul.mubr.bf16.gmra.mrb[0].mxu0 %v1847
        %v1883 = vpop.f32.mrb[0].mxu0
        %v1884 = vadd.f32 0.0, %v1883
        %v1885 = vpop.f32.mrb[0].mxu0
        %v1886 = vpop.f32.mrb[0].mxu0
        %v1887 = vadd.f32 0.0, %v1886
        %v1888 = vpop.f32.mrb[0].mxu0
        %1889 = vdwg.mxu0
        %v1890 = vadd.f32 %v1813, %v1884
        %v1891 = vadd.f32 %v1814, %v1887
        %s1892 = scalar_lea.vmem %s1, 368
        %v1893 = vld [vmem:[%s1892] sm:$0xf]
        %v1894 = vld [vmem:[%s1892 + $0x4] sm:$0xf]
        %v1895 = vld [vmem:[%s1892 + $0x8] sm:$0xf]
        %v1896 = vld [vmem:[%s1892 + $0xc] sm:$0xf]
        %v1898 = vshrl.u32 %v1829, 16
        %v1900 = vrot.slane %v1898, 1
        %v1901 = vshll.u32 %v1829, 16
        %v1903 = vrot.slane %v1901, 2
        %v1904 = vor.u32 %v1900, %v1903
        %v1906 = vshrl.u32 %v1830, 16
        %v1908 = vrot.slane %v1906, 1
        %v1909 = vshll.u32 %v1830, 16
        %v1911 = vrot.slane %v1909, 2
        %v1912 = vor.u32 %v1908, %v1911
        %v1913 = vsel %vm399, %v1904, %v1912
        %v1918 = vunpack.c.l.b16 %v1893
        %v1919 = vunpack.c.l.b16 %v1894
        %v1920 = vunpack.c.l.b16 %v1895
        %v1921 = vunpack.c.l.b16 %v1896
        %v1922 = vpack.c.b16 %v1919, %v1918
        %v1923 = vpack.c.b16 %v1921, %v1920
        %v1927 = vsel %vm216, %v1913, 0
        %1929 = vmatprep.subr.bf16.mxu0 0
        %1930 = vmatpush1.bf16.msra.mxu0 %v1922
        %1931 = vmatprep.subr.bf16.mxu0 0
        %1932 = vmatpush1.bf16.msra.mxu0 %v1923
        %1933 = vmatprep.subr.bf16.mxu0 0
        %1934 = vmatpush1.bf16.msra.mxu0 0
        %1935 = vmatprep.subr.bf16.mxu0 0
        %1936 = vmatpush1.bf16.msra.mxu0 0
        %1937 = vmatprep.subr.bf16.mxu0 0
        %1938 = vmatpush1.bf16.msra.mxu0 0
        %1939 = vmatprep.subr.bf16.mxu0 0
        %1940 = vmatpush1.bf16.msra.mxu0 0
        %1941 = vmatprep.subr.bf16.mxu0 0
        %1942 = vmatpush1.bf16.msra.mxu0 0
        %1943 = vmatprep.subr.bf16.mxu0 0
        %1944 = vmatpush1.bf16.msra.mxu0 0
        %1945 = vmatprep.subr.bf16.mxu0 0
        %1946 = vmatpush1.bf16.msra.mxu0 0
        %1947 = vmatprep.subr.bf16.mxu0 0
        %1948 = vmatpush1.bf16.msra.mxu0 0
        %1949 = vmatprep.subr.bf16.mxu0 0
        %1950 = vmatpush1.bf16.msra.mxu0 0
        %1951 = vmatprep.subr.bf16.mxu0 0
        %1952 = vmatpush1.bf16.msra.mxu0 0
        %1953 = vmatprep.subr.bf16.mxu0 0
        %1954 = vmatpush1.bf16.msra.mxu0 0
        %1955 = vmatprep.subr.bf16.mxu0 0
        %1956 = vmatpush1.bf16.msra.mxu0 0
        %1957 = vmatprep.subr.bf16.mxu0 0
        %1958 = vmatpush1.bf16.msra.mxu0 0
        %1959 = vmatprep.subr.bf16.mxu0 0
        %1960 = vmatpush1.bf16.msra.mxu0 0
        %1961 = vmatprep.mubr.bf16.mxu0 0
        %1962 = vmatmul.mubr.bf16.gmra.mrb[0].mxu0 %v1927
        %v1963 = vpop.f32.mrb[0].mxu0
        %v1964 = vadd.f32 0.0, %v1963
        %v1965 = vpop.f32.mrb[0].mxu0
        %v1966 = vpop.f32.mrb[0].mxu0
        %v1967 = vadd.f32 0.0, %v1966
        %v1968 = vpop.f32.mrb[0].mxu0
        %1969 = vdwg.mxu0
        %v1970 = vadd.f32 %v1890, %v1964
        %v1971 = vadd.f32 %v1891, %v1967
        %v1972 = vld [vmem:[%s1675] sm:$0xc]
        %v1973 = vld [vmem:[%s1675 + $0x8] sm:$0x3]
        %s1974 = scalar_lea.vmem %s1, 384
        %v1975 = vld [vmem:[%s1974] sm:$0xf]
        %v1976 = vld [vmem:[%s1974 + $0x4] sm:$0xf]
        %v1977 = vld [vmem:[%s1974 + $0x8] sm:$0xf]
        %v1978 = vld [vmem:[%s1974 + $0xc] sm:$0xf]
        %v1981 = vunpack.c.l.b16 %v1972
        %v1982 = vunpack.c.l.b16 %v1973
        %v1983 = vpack.c.b16 %v1827, %v1981
        %v1984 = vpack.c.b16 %v1982, %v1982
        %v1985 = vrot.slane %v1983, 2
        %v1986 = vrot.slane %v1984, 2
        %v1987 = vsel %vm488, %v1985, %v1986
        %v1992 = vunpack.c.l.b16 %v1975
        %v1993 = vunpack.c.l.b16 %v1976
        %v1994 = vunpack.c.l.b16 %v1977
        %v1995 = vunpack.c.l.b16 %v1978
        %v1996 = vpack.c.b16 %v1993, %v1992
        %v1997 = vpack.c.b16 %v1995, %v1994
        %v2001 = vsel %vm216, %v1987, 0
        %2003 = vmatprep.subr.bf16.mxu0 0
        %2004 = vmatpush1.bf16.msra.mxu0 %v1996
        %2005 = vmatprep.subr.bf16.mxu0 0
        %2006 = vmatpush1.bf16.msra.mxu0 %v1997
        %2007 = vmatprep.subr.bf16.mxu0 0
        %2008 = vmatpush1.bf16.msra.mxu0 0
        %2009 = vmatprep.subr.bf16.mxu0 0
        %2010 = vmatpush1.bf16.msra.mxu0 0
        %2011 = vmatprep.subr.bf16.mxu0 0
        %2012 = vmatpush1.bf16.msra.mxu0 0
        %2013 = vmatprep.subr.bf16.mxu0 0
        %2014 = vmatpush1.bf16.msra.mxu0 0
        %2015 = vmatprep.subr.bf16.mxu0 0
        %2016 = vmatpush1.bf16.msra.mxu0 0
        %2017 = vmatprep.subr.bf16.mxu0 0
        %2018 = vmatpush1.bf16.msra.mxu0 0
        %2019 = vmatprep.subr.bf16.mxu0 0
        %2020 = vmatpush1.bf16.msra.mxu0 0
        %2021 = vmatprep.subr.bf16.mxu0 0
        %2022 = vmatpush1.bf16.msra.mxu0 0
        %2023 = vmatprep.subr.bf16.mxu0 0
        %2024 = vmatpush1.bf16.msra.mxu0 0
        %2025 = vmatprep.subr.bf16.mxu0 0
        %2026 = vmatpush1.bf16.msra.mxu0 0
        %2027 = vmatprep.subr.bf16.mxu0 0
        %2028 = vmatpush1.bf16.msra.mxu0 0
        %2029 = vmatprep.subr.bf16.mxu0 0
        %2030 = vmatpush1.bf16.msra.mxu0 0
        %2031 = vmatprep.subr.bf16.mxu0 0
        %2032 = vmatpush1.bf16.msra.mxu0 0
        %2033 = vmatprep.subr.bf16.mxu0 0
        %2034 = vmatpush1.bf16.msra.mxu0 0
        %2035 = vmatprep.mubr.bf16.mxu0 0
        %2036 = vmatmul.mubr.bf16.gmra.mrb[0].mxu0 %v2001
        %v2037 = vpop.f32.mrb[0].mxu0
        %v2038 = vadd.f32 0.0, %v2037
        %v2039 = vpop.f32.mrb[0].mxu0
        %v2040 = vpop.f32.mrb[0].mxu0
        %v2041 = vadd.f32 0.0, %v2040
        %v2042 = vpop.f32.mrb[0].mxu0
        %2043 = vdwg.mxu0
        %v2044 = vadd.f32 %v1970, %v2038
        %v2045 = vadd.f32 %v1971, %v2041
        %v2046 = vld [vmem:[%s2] sm:$0x1]
        %v2048 = vlaneseq
        %v2049 = vshrl.u32 %v2048, 7
        %v2050 = vsub.s32 0, %v2049
        %v2051 = vrot.slane %v2046, %v2050
        %v2053 = vadd.f32 %v2044, %v2051
        %v2054 = vadd.f32 %v2045, %v2051
        %v2055 = vmax.f32 %v2053, 0.0
        %v2056 = vmax.f32 %v2054, 0.0
        %v2057 = vpack.c.bf16 %v2056, %v2055
        %v2059 = vunpack.c.l.b16 %v2057
        %v2060 = vunpack.c.h.b16 %v2057
        %v2061 = vpack.c.b16 %v2059, %v2059
        %v2062 = vpack.c.b16 %v2060, %v2060
        %s2065 = smul.u32 %s173, 2
        %s2066 = smul.addr %s2065, 4
        %s2067 = scalar_lea.vmem %s170, %s2066
        %vm2068 = vcmask 257024
        %2069 = vst.msk [vmem:[%s2067] sm:$0xf] %vm2068, %v2061
        %vm2070 = vcmask 257024
        %vm2071 = vsmask.f32 3328
        %vm2072 = vmand %vm2070, %vm2071
        %v2073 = vld [vmem:[%s2067 + $0x4] sm:$0xf]
        %v2074 = vsel %vm2072, %v2062, %v2073
        %2075 = vst [vmem:[%s2067 + $0x4] sm:$0xf] %v2074
      $region37: #{dsh_forward.5} parent=31 // loop_footer
        %s177 = sadd.s32 1, %s173
      $region38: #{dsh_forward.5} parent=31 // loop_footer_branch
        %172 = sbr.rel target = $region34
      $region39: #{dsh_forward.5} parent=31 // loop_exit
        _
      %p2076 = scmp.lt.s32.totalorder %s14, 1
      %s2077 = scalar_select %p2076, %s14, 1
      %s2078 = smul.addr %s2077, 30
      %s2079 = smul.addr %s2078, 4
      %s2080 = scalar_lea.vmem %s3, %s2079
      // Predicated region
      $region40: #{dsh_forward.5} parent=31 // pred_check
        %p2081 = pneg %p100
      $region41: #{dsh_forward.5} parent=31 // pred_check_branch
        %2083 = sbr.rel (%p2081) target = $region43
      $region42: #{dsh_forward.5} parent=31 // pred_region
        _
      $region43: #{dsh_forward.5} parent=31 // pred_fallthru
        _
    $region32: #{dsh_forward.5} parent=5 // pred_fallthru
      _
    %p2084 = scmp.le.s32.totalorder 2, %s9
    // Predicated region
    $region44: #{dsh_forward.5} parent=5 // pred_check
      %p2085 = pneg %p2084
    $region45: #{dsh_forward.5} parent=5 // pred_check_branch
      %2087 = sbr.rel (%p2085) target = $region47
    $region46: #{dsh_forward.5} parent=5 // pred_region
      %s2088 = ssub.s32 %s9, 2
      // Predicated region
      $region48: #{dsh_forward.5} parent=46 // pred_check
        %p2089 = pneg %p106
      $region49: #{dsh_forward.5} parent=46 // pred_check_branch
        %2091 = sbr.rel (%p2089) target = $region51
      $region50: #{dsh_forward.5} parent=46 // pred_region
        %p2092 = scmp.lt.s32.totalorder %s15, 1
        %s2093 = scalar_select %p2092, %s15, 1
        %s2094 = smul.addr %s2093, 30
        %s2095 = smul.addr %s2094, 4
        %s2096 = scalar_lea.vmem %s3, %s2095
      $region51: #{dsh_forward.5} parent=46 // pred_fallthru
        _
    $region47: #{dsh_forward.5} parent=5 // pred_fallthru
      _
  $region6: #{dsh_forward.5} parent=0 // loop_footer
    %s13 = sadd.s32 1, %s9
  $region7: #{dsh_forward.5} parent=0 // loop_footer_branch
    %8 = sbr.rel target = $region3
  $region8: #{dsh_forward.5} parent=0 // loop_exit
    _

// kernel: dsh_forward.6
$region0: #{dsh_forward.6}
  #allocation0 [shape = 'u32[]', space=smem, size = 0x4, offset = 0x4, fixed_abs, tag = 'smem constant byte address 0x4 - core index']
  #allocation1 [shape = 'u32[144,128]{1,0:T(1,128)}', space=vmem, size = 0x12000, scoped, tag = 'internal scratch']
  %s0 = inlined_call_operand.vmem [shape: bf16[2,11,11,32], index: 0, kind: input, shape index: {}]
  %s1 = inlined_call_operand.vmem [shape: bf16[25,32,64], index: 1, kind: input, shape index: {}]
  %s2 = inlined_call_operand.vmem [shape: f32[1,64], index: 2, kind: input, shape index: {}]
  %s3 = inlined_call_operand.vmem [shape: bf16[2,7,7,64], index: 3, kind: output, shape index: {}]
  %s4 = sld [smem:[#allocation0]]
  $region52: #{dsh_forward.6} parent=0
    _
  %s6 = ssub.s32 1, %s4
  %s7 = scalar_select 0, %s6, %s4
  loop: start=0, step=1, limit=4
  $region2: #{dsh_forward.6} parent=0 // loop_pre_header
    _
  $region3: #{dsh_forward.6} parent=0 // loop_header
    %s9 = sphi 0, %s13
    %p10 = scmp.ge.s32.totalorder %s9, 4
    %s19 = sphi 0, %s21
    %s22 = sphi 0, %s19
    %s23 = sphi 0, %s22
    %s39 = sphi 0, %s23
    %s43 = sphi 0, %s43
    %s45 = sphi 0, %s43
    %s46 = sphi 0, %s45
    %s60 = sphi 0, %s46
    %s64 = sphi 0, %s64
    %s66 = sphi 0, %s64
    %s67 = sphi 0, %s66
    %s81 = sphi 0, %s67
    %s87 = sphi 0, %s89
    %s90 = sphi 0, %s87
    %s91 = sphi 0, %s90
    %s107 = sphi 0, %s91
  $region4: #{dsh_forward.6} parent=0 // loop_header_branch
    %12 = sbr.rel (%p10) target = $region8
  $region5: #{dsh_forward.6} parent=0 // loop_body
    %s14 = ssub.s32 %s9, 1
    %s15 = ssub.s32 %s9, 2
    %s16 = sadd.s32 %s9, 1
    %s17 = ssub.s32 %s9, %s16
    %p18 = scmp.eq.s32.totalorder %s17, 0
    %s20 = sadd.s32 %s19, 1
    %s21 = scalar_select %p18, %s19, %s20
    %p24 = pneg %p18
    %p25 = scmp.eq.s32.totalorder %s9, 1
    %p26 = por %p24, %p25
    %p27 = scmp.ne.s32.totalorder %s19, %s22
    %p28 = scmp.eq.s32.totalorder %s9, 0
    %p29 = por %p27, %p28
    %p30 = scmp.ne.s32.totalorder %s19, %s22
    %p31 = scmp.eq.s32.totalorder %s14, 1
    %p32 = por %p30, %p31
    %p33 = scmp.ne.s32.totalorder %s22, %s23
    %p34 = scmp.eq.s32.totalorder %s14, 0
    %p35 = por %p33, %p34
    %p36 = scmp.ne.s32.totalorder %s22, %s23
    %p37 = scmp.eq.s32.totalorder %s15, 1
    %p38 = por %p36, %p37
    %p40 = scmp.ne.s32.totalorder %s23, %s39
    %p41 = scmp.eq.s32.totalorder %s15, 0
    %p42 = por %p40, %p41
    %s44 = sadd.s32 %s43, 1
    %p47 = scmp.eq.s32.totalorder %s9, 1
    %p48 = scmp.ne.s32.totalorder %s43, %s45
    %p49 = scmp.eq.s32.totalorder %s9, 0
    %p50 = por %p48, %p49
    %p51 = scmp.ne.s32.totalorder %s43, %s45
    %p52 = scmp.eq.s32.totalorder %s14, 1
    %p53 = por %p51, %p52
    %p54 = scmp.ne.s32.totalorder %s45, %s46
    %p55 = scmp.eq.s32.totalorder %s14, 0
    %p56 = por %p54, %p55
    %p57 = scmp.ne.s32.totalorder %s45, %s46
    %p58 = scmp.eq.s32.totalorder %s15, 1
    %p59 = por %p57, %p58
    %p61 = scmp.ne.s32.totalorder %s46, %s60
    %p62 = scmp.eq.s32.totalorder %s15, 0
    %p63 = por %p61, %p62
    %s65 = sadd.s32 %s64, 1
    %p68 = scmp.eq.s32.totalorder %s9, 1
    %p69 = scmp.ne.s32.totalorder %s64, %s66
    %p70 = scmp.eq.s32.totalorder %s9, 0
    %p71 = por %p69, %p70
    %p72 = scmp.ne.s32.totalorder %s64, %s66
    %p73 = scmp.eq.s32.totalorder %s14, 1
    %p74 = por %p72, %p73
    %p75 = scmp.ne.s32.totalorder %s66, %s67
    %p76 = scmp.eq.s32.totalorder %s14, 0
    %p77 = por %p75, %p76
    %p78 = scmp.ne.s32.totalorder %s66, %s67
    %p79 = scmp.eq.s32.totalorder %s15, 1
    %p80 = por %p78, %p79
    %p82 = scmp.ne.s32.totalorder %s67, %s81
    %p83 = scmp.eq.s32.totalorder %s15, 0
    %p84 = por %p82, %p83
    %s85 = ssub.s32 %s9, %s16
    %p86 = scmp.eq.s32.totalorder %s85, 0
    %s88 = sadd.s32 %s87, 1
    %s89 = scalar_select %p86, %s87, %s88
    %p92 = pneg %p86
    %p93 = scmp.eq.s32.totalorder %s9, 1
    %p94 = por %p92, %p93
    %p95 = scmp.ne.s32.totalorder %s87, %s90
    %p96 = scmp.eq.s32.totalorder %s9, 0
    %p97 = por %p95, %p96
    %p98 = scmp.ne.s32.totalorder %s87, %s90
    %p99 = scmp.eq.s32.totalorder %s14, 1
    %p100 = por %p98, %p99
    %p101 = scmp.ne.s32.totalorder %s90, %s91
    %p102 = scmp.eq.s32.totalorder %s14, 0
    %p103 = por %p101, %p102
    %p104 = scmp.ne.s32.totalorder %s90, %s91
    %p105 = scmp.eq.s32.totalorder %s15, 1
    %p106 = por %p104, %p105
    %p108 = scmp.ne.s32.totalorder %s91, %s107
    %p109 = scmp.eq.s32.totalorder %s15, 0
    %p110 = por %p108, %p109
    %p111 = scmp.le.s32.totalorder 1, %s9
    %p112 = scmp.lt.s32.totalorder %s9, 3
    %p113 = pnand %p111, %p112
    %p114 = pneg %p113
    // Predicated region
    $region9: #{dsh_forward.6} parent=5 // pred_check
      _
    $region10: #{dsh_forward.6} parent=5 // pred_check_branch
      %116 = sbr.rel (%p113) target = $region12
    $region11: #{dsh_forward.6} parent=5 // pred_region
      %s117 = ssub.s32 %s9, 1
      // Predicated region
      $region13: #{dsh_forward.6} parent=11 // pred_check
        %p118 = pneg %p56
      $region14: #{dsh_forward.6} parent=11 // pred_check_branch
        %120 = sbr.rel (%p118) target = $region16
      $region15: #{dsh_forward.6} parent=11 // pred_region
        _
      $region16: #{dsh_forward.6} parent=11 // pred_fallthru
        _
      // Predicated region
      $region17: #{dsh_forward.6} parent=11 // pred_check
        %p121 = pneg %p77
      $region18: #{dsh_forward.6} parent=11 // pred_check_branch
        %123 = sbr.rel (%p121) target = $region20
      $region19: #{dsh_forward.6} parent=11 // pred_region
        _
      $region20: #{dsh_forward.6} parent=11 // pred_fallthru
        _
    $region12: #{dsh_forward.6} parent=5 // pred_fallthru
      _
    %p124 = scmp.lt.s32.totalorder %s9, 2
    // Predicated region
    $region21: #{dsh_forward.6} parent=5 // pred_check
      %p125 = pneg %p124
    $region22: #{dsh_forward.6} parent=5 // pred_check_branch
      %127 = sbr.rel (%p125) target = $region24
    $region23: #{dsh_forward.6} parent=5 // pred_region
      // Predicated region
      $region25: #{dsh_forward.6} parent=23 // pred_check
        %p128 = pneg %p29
      $region26: #{dsh_forward.6} parent=23 // pred_check_branch
        %130 = sbr.rel (%p128) target = $region28
      $region27: #{dsh_forward.6} parent=23 // pred_region
        %p131 = scmp.lt.s32.totalorder %s9, 1
        %s132 = scalar_select %p131, %s9, 1
        %s133 = smul.addr %s132, 22
        %s134 = smul.addr %s133, 4
        %s135 = scalar_lea.vmem %s0, %s134
      $region28: #{dsh_forward.6} parent=23 // pred_fallthru
        _
    $region24: #{dsh_forward.6} parent=5 // pred_fallthru
      _
    %p136 = scmp.le.s32.totalorder 1, %s9
    %p137 = scmp.lt.s32.totalorder %s9, 3
    %p138 = pnand %p136, %p137
    %p139 = pneg %p138
    // Predicated region
    $region29: #{dsh_forward.6} parent=5 // pred_check
      _
    $region30: #{dsh_forward.6} parent=5 // pred_check_branch
      %141 = sbr.rel (%p138) target = $region32
    $region31: #{dsh_forward.6} parent=5 // pred_region
      %s142 = ssub.s32 %s9, 1
      %p143 = scmp.lt.s32.totalorder %s14, 1
      %s144 = scalar_select %p143, %s14, 1
      %s145 = smul.addr %s144, 22
      %s146 = smul.addr %s145, 4
      %s147 = scalar_lea.vmem %s0, %s146
      %p148 = pneg %p35
      %p149 = pneg %p32
      %p150 = pneg %p56
      %p151 = pneg %p53
      %p152 = pneg %p77
      %p153 = pneg %p74
      %p154 = pneg %p103
      %p155 = pneg %p100
      %p156 = scmp.lt.s32.totalorder %s14, 1
      %s157 = scalar_select %p156, %s14, 1
      %s158 = smul.addr %s157, 7
      %s159 = smul.addr %s158, 4
      %s160 = scalar_lea.vmem %s3, %s159
      %p161 = scmp.lt.s32.totalorder %s14, 1
      %s162 = scalar_select %p161, %s14, 1
      %s163 = smul.addr %s162, 22
      %s164 = smul.addr %s163, 4
      %s165 = scalar_lea.vmem %s0, %s164
      %p166 = scmp.lt.s32.totalorder %s14, 1
      %s167 = scalar_select %p166, %s14, 1
      %s168 = smul.addr %s167, 7
      %s169 = smul.addr %s168, 4
      %s170 = scalar_lea.vmem %s3, %s169
      loop: start=0, step=1, limit=7
      $region33: #{dsh_forward.6} parent=31 // loop_pre_header
        _
      $region34: #{dsh_forward.6} parent=31 // loop_header
        %s173 = sphi 0, %s177
        %p174 = scmp.ge.s32.totalorder %s173, 7
      $region35: #{dsh_forward.6} parent=31 // loop_header_branch
        %176 = sbr.rel (%p174) target = $region39
      $region36: #{dsh_forward.6} parent=31 // loop_body
        %s178 = smul.u32 %s173, 2
        %s179 = smul.addr %s178, 4
        %s180 = scalar_lea.vmem %s165, %s179
        %v181 = vld [vmem:[%s180] sm:$0xf]
        %v182 = vld [vmem:[%s1] sm:$0xf]
        %v183 = vld [vmem:[%s1 + $0x4] sm:$0xf]
        %v184 = vld [vmem:[%s1 + $0x8] sm:$0xf]
        %v185 = vld [vmem:[%s1 + $0xc] sm:$0xf]
        %s186 = scalar_lea.vmem %s1, 16
        %v187 = vld [vmem:[%s186] sm:$0xf]
        %v188 = vld [vmem:[%s186 + $0x4] sm:$0xf]
        %v189 = vld [vmem:[%s186 + $0x8] sm:$0xf]
        %v190 = vld [vmem:[%s186 + $0xc] sm:$0xf]
        %v192 = vunpack.c.l.b16 %v181
        %v193 = vpack.c.b16 %v192, %v192
        %v195 = vshrl.u32 %v193, 16
        %v197 = vshll.u32 %v193, 16
        %v199 = vrot.slane %v197, 1
        %v200 = vor.u32 %v195, %v199
        %v205 = vunpack.c.l.b16 %v187
        %v206 = vunpack.c.l.b16 %v188
        %v207 = vunpack.c.l.b16 %v189
        %v208 = vunpack.c.l.b16 %v190
        %v209 = vpack.c.b16 %v206, %v205
        %v210 = vpack.c.b16 %v208, %v207
        %vm213 = vcmask 261120
        %v215 = vsel %vm213, %v200, 0
        %217 = vmatprep.subr.bf16.mxu0 0
        %218 = vmatpush1.bf16.msra.mxu0 %v209
        %219 = vmatprep.subr.bf16.mxu0 0
        %220 = vmatpush1.bf16.msra.mxu0 %v210
        %221 = vmatprep.subr.bf16.mxu0 0
        %222 = vmatpush1.bf16.msra.mxu0 0
        %223 = vmatprep.subr.bf16.mxu0 0
        %224 = vmatpush1.bf16.msra.mxu0 0
        %225 = vmatprep.subr.bf16.mxu0 0
        %226 = vmatpush1.bf16.msra.mxu0 0
        %227 = vmatprep.subr.bf16.mxu0 0
        %228 = vmatpush1.bf16.msra.mxu0 0
        %229 = vmatprep.subr.bf16.mxu0 0
        %230 = vmatpush1.bf16.msra.mxu0 0
        %231 = vmatprep.subr.bf16.mxu0 0
        %232 = vmatpush1.bf16.msra.mxu0 0
        %233 = vmatprep.subr.bf16.mxu0 0
        %234 = vmatpush1.bf16.msra.mxu0 0
        %235 = vmatprep.subr.bf16.mxu0 0
        %236 = vmatpush1.bf16.msra.mxu0 0
        %237 = vmatprep.subr.bf16.mxu0 0
        %238 = vmatpush1.bf16.msra.mxu0 0
        %239 = vmatprep.subr.bf16.mxu0 0
        %240 = vmatpush1.bf16.msra.mxu0 0
        %241 = vmatprep.subr.bf16.mxu0 0
        %242 = vmatpush1.bf16.msra.mxu0 0
        %243 = vmatprep.subr.bf16.mxu0 0
        %244 = vmatpush1.bf16.msra.mxu0 0
        %245 = vmatprep.subr.bf16.mxu0 0
        %246 = vmatpush1.bf16.msra.mxu0 0
        %247 = vmatprep.subr.bf16.mxu0 0
        %248 = vmatpush1.bf16.msra.mxu0 0
        %249 = vmatprep.mubr.bf16.mxu0 0
        %250 = vmatmul.mubr.bf16.gmra.mrb[0].mxu0 %v215
        %v251 = vpop.f32.mrb[0].mxu0
        %v252 = vadd.f32 0.0, %v251
        %v253 = vpop.f32.mrb[0].mxu0
        %v254 = vpop.f32.mrb[0].mxu0
        %v255 = vpop.f32.mrb[0].mxu0
        %256 = vdwg.mxu0
        %v261 = vunpack.c.l.b16 %v182
        %v262 = vunpack.c.l.b16 %v183
        %v263 = vunpack.c.l.b16 %v184
        %v264 = vunpack.c.l.b16 %v185
        %v265 = vpack.c.b16 %v262, %v261
        %v266 = vpack.c.b16 %v264, %v263
        %v270 = vsel %vm213, %v181, 0
        %272 = vmatprep.subr.bf16.mxu0 0
        %273 = vmatpush1.bf16.msra.mxu0 %v265
        %274 = vmatprep.subr.bf16.mxu0 0
        %275 = vmatpush1.bf16.msra.mxu0 %v266
        %276 = vmatprep.subr.bf16.mxu0 0
        %277 = vmatpush1.bf16.msra.mxu0 0
        %278 = vmatprep.subr.bf16.mxu0 0
        %279 = vmatpush1.bf16.msra.mxu0 0
        %280 = vmatprep.subr.bf16.mxu0 0
        %281 = vmatpush1.bf16.msra.mxu0 0
        %282 = vmatprep.subr.bf16.mxu0 0
        %283 = vmatpush1.bf16.msra.mxu0 0
        %284 = vmatprep.subr.bf16.mxu0 0
        %285 = vmatpush1.bf16.msra.mxu0 0
        %286 = vmatprep.subr.bf16.mxu0 0
        %287 = vmatpush1.bf16.msra.mxu0 0
        %288 = vmatprep.subr.bf16.mxu0 0
        %289 = vmatpush1.bf16.msra.mxu0 0
        %290 = vmatprep.subr.bf16.mxu0 0
        %291 = vmatpush1.bf16.msra.mxu0 0
        %292 = vmatprep.subr.bf16.mxu0 0
        %293 = vmatpush1.bf16.msra.mxu0 0
        %294 = vmatprep.subr.bf16.mxu0 0
        %295 = vmatpush1.bf16.msra.mxu0 0
        %296 = vmatprep.subr.bf16.mxu0 0
        %297 = vmatpush1.bf16.msra.mxu0 0
        %298 = vmatprep.subr.bf16.mxu0 0
        %299 = vmatpush1.bf16.msra.mxu0 0
        %300 = vmatprep.subr.bf16.mxu0 0
        %301 = vmatpush1.bf16.msra.mxu0 0
        %302 = vmatprep.subr.bf16.mxu0 0
        %303 = vmatpush1.bf16.msra.mxu0 0
        %304 = vmatprep.mubr.bf16.mxu0 0
        %305 = vmatmul.mubr.bf16.gmra.mrb[0].mxu0 %v270
        %v306 = vpop.f32.mrb[0].mxu0
        %v307 = vadd.f32 %v252, %v306
        %v308 = vpop.f32.mrb[0].mxu0
        %v309 = vpop.f32.mrb[0].mxu0
        %v310 = vpop.f32.mrb[0].mxu0
        %311 = vdwg.mxu0
        %v312 = vld [vmem:[%s180] sm:$0xe]
        %v313 = vld [vmem:[%s180 + $0x4] sm:$0x1]
        %s314 = scalar_lea.vmem %s1, 32
        %v315 = vld [vmem:[%s314] sm:$0xf]
        %v316 = vld [vmem:[%s314 + $0x4] sm:$0xf]
        %v317 = vld [vmem:[%s314 + $0x8] sm:$0xf]
        %v318 = vld [vmem:[%s314 + $0xc] sm:$0xf]
        %v321 = vunpack.c.l.b16 %v312
        %v322 = vunpack.c.l.b16 %v313
        %v323 = vpack.c.b16 %v322, %v321
        %v324 = vrot.slane %v323, 1
        %v329 = vunpack.c.l.b16 %v315
        %v330 = vunpack.c.l.b16 %v316
        %v331 = vunpack.c.l.b16 %v317
        %v332 = vunpack.c.l.b16 %v318
        %v333 = vpack.c.b16 %v330, %v329
        %v334 = vpack.c.b16 %v332, %v331
        %v338 = vsel %vm213, %v324, 0
        %340 = vmatprep.subr.bf16.mxu0 0
        %341 = vmatpush1.bf16.msra.mxu0 %v333
        %342 = vmatprep.subr.bf16.mxu0 0
        %343 = vmatpush1.bf16.msra.mxu0 %v334
        %344 = vmatprep.subr.bf16.mxu0 0
        %345 = vmatpush1.bf16.msra.mxu0 0
        %346 = vmatprep.subr.bf16.mxu0 0
        %347 = vmatpush1.bf16.msra.mxu0 0
        %348 = vmatprep.subr.bf16.mxu0 0
        %349 = vmatpush1.bf16.msra.mxu0 0
        %350 = vmatprep.subr.bf16.mxu0 0
        %351 = vmatpush1.bf16.msra.mxu0 0
        %352 = vmatprep.subr.bf16.mxu0 0
        %353 = vmatpush1.bf16.msra.mxu0 0
        %354 = vmatprep.subr.bf16.mxu0 0
        %355 = vmatpush1.bf16.msra.mxu0 0
        %356 = vmatprep.subr.bf16.mxu0 0
        %357 = vmatpush1.bf16.msra.mxu0 0
        %358 = vmatprep.subr.bf16.mxu0 0
        %359 = vmatpush1.bf16.msra.mxu0 0
        %360 = vmatprep.subr.bf16.mxu0 0
        %361 = vmatpush1.bf16.msra.mxu0 0
        %362 = vmatprep.subr.bf16.mxu0 0
        %363 = vmatpush1.bf16.msra.mxu0 0
        %364 = vmatprep.subr.bf16.mxu0 0
        %365 = vmatpush1.bf16.msra.mxu0 0
        %366 = vmatprep.subr.bf16.mxu0 0
        %367 = vmatpush1.bf16.msra.mxu0 0
        %368 = vmatprep.subr.bf16.mxu0 0
        %369 = vmatpush1.bf16.msra.mxu0 0
        %370 = vmatprep.subr.bf16.mxu0 0
        %371 = vmatpush1.bf16.msra.mxu0 0
        %372 = vmatprep.mubr.bf16.mxu0 0
        %373 = vmatmul.mubr.bf16.gmra.mrb[0].mxu0 %v338
        %v374 = vpop.f32.mrb[0].mxu0
        %v375 = vadd.f32 0.0, %v374
        %v376 = vpop.f32.mrb[0].mxu0
        %v377 = vpop.f32.mrb[0].mxu0
        %v378 = vpop.f32.mrb[0].mxu0
        %379 = vdwg.mxu0
        %v380 = vadd.f32 %v307, %v375
        %s381 = scalar_lea.vmem %s1, 48
        %v382 = vld [vmem:[%s381] sm:$0xf]
        %v383 = vld [vmem:[%s381 + $0x4] sm:$0xf]
        %v384 = vld [vmem:[%s381 + $0x8] sm:$0xf]
        %v385 = vld [vmem:[%s381 + $0xc] sm:$0xf]
        %v387 = vshrl.u32 %v323, 16
        %v389 = vrot.slane %v387, 1
        %v390 = vshll.u32 %v323, 16
        %v392 = vrot.slane %v390, 2
        %v393 = vor.u32 %v389, %v392
        %v398 = vunpack.c.l.b16 %v382
        %v399 = vunpack.c.l.b16 %v383
        %v400 = vunpack.c.l.b16 %v384
        %v401 = vunpack.c.l.b16 %v385
        %v402 = vpack.c.b16 %v399, %v398
        %v403 = vpack.c.b16 %v401, %v400
        %v407 = vsel %vm213, %v393, 0
        %409 = vmatprep.subr.bf16.mxu0 0
        %410 = vmatpush1.bf16.msra.mxu0 %v402
        %411 = vmatprep.subr.bf16.mxu0 0
        %412 = vmatpush1.bf16.msra.mxu0 %v403
        %413 = vmatprep.subr.bf16.mxu0 0
        %414 = vmatpush1.bf16.msra.mxu0 0
        %415 = vmatprep.subr.bf16.mxu0 0
        %416 = vmatpush1.bf16.msra.mxu0 0
        %417 = vmatprep.subr.bf16.mxu0 0
        %418 = vmatpush1.bf16.msra.mxu0 0
        %419 = vmatprep.subr.bf16.mxu0 0
        %420 = vmatpush1.bf16.msra.mxu0 0
        %421 = vmatprep.subr.bf16.mxu0 0
        %422 = vmatpush1.bf16.msra.mxu0 0
        %423 = vmatprep.subr.bf16.mxu0 0
        %424 = vmatpush1.bf16.msra.mxu0 0
        %425 = vmatprep.subr.bf16.mxu0 0
        %426 = vmatpush1.bf16.msra.mxu0 0
        %427 = vmatprep.subr.bf16.mxu0 0
        %428 = vmatpush1.bf16.msra.mxu0 0
        %429 = vmatprep.subr.bf16.mxu0 0
        %430 = vmatpush1.bf16.msra.mxu0 0
        %431 = vmatprep.subr.bf16.mxu0 0
        %432 = vmatpush1.bf16.msra.mxu0 0
        %433 = vmatprep.subr.bf16.mxu0 0
        %434 = vmatpush1.bf16.msra.mxu0 0
        %435 = vmatprep.subr.bf16.mxu0 0
        %436 = vmatpush1.bf16.msra.mxu0 0
        %437 = vmatprep.subr.bf16.mxu0 0
        %438 = vmatpush1.bf16.msra.mxu0 0
        %439 = vmatprep.subr.bf16.mxu0 0
        %440 = vmatpush1.bf16.msra.mxu0 0
        %441 = vmatprep.mubr.bf16.mxu0 0
        %442 = vmatmul.mubr.bf16.gmra.mrb[0].mxu0 %v407
        %v443 = vpop.f32.mrb[0].mxu0
        %v444 = vadd.f32 0.0, %v443
        %v445 = vpop.f32.mrb[0].mxu0
        %v446 = vpop.f32.mrb[0].mxu0
        %v447 = vpop.f32.mrb[0].mxu0
        %448 = vdwg.mxu0
        %v449 = vadd.f32 %v380, %v444
        %v450 = vld [vmem:[%s180] sm:$0xc]
        %v451 = vld [vmem:[%s180 + $0x4] sm:$0x3]
        %s452 = scalar_lea.vmem %s1, 64
        %v453 = vld [vmem:[%s452] sm:$0xf]
        %v454 = vld [vmem:[%s452 + $0x4] sm:$0xf]
        %v455 = vld [vmem:[%s452 + $0x8] sm:$0xf]
        %v456 = vld [vmem:[%s452 + $0xc] sm:$0xf]
        %v459 = vunpack.c.l.b16 %v450
        %v460 = vunpack.c.l.b16 %v451
        %v461 = vpack.c.b16 %v460, %v459
        %v462 = vrot.slane %v461, 2
        %v467 = vunpack.c.l.b16 %v453
        %v468 = vunpack.c.l.b16 %v454
        %v469 = vunpack.c.l.b16 %v455
        %v470 = vunpack.c.l.b16 %v456
        %v471 = vpack.c.b16 %v468, %v467
        %v472 = vpack.c.b16 %v470, %v469
        %v476 = vsel %vm213, %v462, 0
        %478 = vmatprep.subr.bf16.mxu0 0
        %479 = vmatpush1.bf16.msra.mxu0 %v471
        %480 = vmatprep.subr.bf16.mxu0 0
        %481 = vmatpush1.bf16.msra.mxu0 %v472
        %482 = vmatprep.subr.bf16.mxu0 0
        %483 = vmatpush1.bf16.msra.mxu0 0
        %484 = vmatprep.subr.bf16.mxu0 0
        %485 = vmatpush1.bf16.msra.mxu0 0
        %486 = vmatprep.subr.bf16.mxu0 0
        %487 = vmatpush1.bf16.msra.mxu0 0
        %488 = vmatprep.subr.bf16.mxu0 0
        %489 = vmatpush1.bf16.msra.mxu0 0
        %490 = vmatprep.subr.bf16.mxu0 0
        %491 = vmatpush1.bf16.msra.mxu0 0
        %492 = vmatprep.subr.bf16.mxu0 0
        %493 = vmatpush1.bf16.msra.mxu0 0
        %494 = vmatprep.subr.bf16.mxu0 0
        %495 = vmatpush1.bf16.msra.mxu0 0
        %496 = vmatprep.subr.bf16.mxu0 0
        %497 = vmatpush1.bf16.msra.mxu0 0
        %498 = vmatprep.subr.bf16.mxu0 0
        %499 = vmatpush1.bf16.msra.mxu0 0
        %500 = vmatprep.subr.bf16.mxu0 0
        %501 = vmatpush1.bf16.msra.mxu0 0
        %502 = vmatprep.subr.bf16.mxu0 0
        %503 = vmatpush1.bf16.msra.mxu0 0
        %504 = vmatprep.subr.bf16.mxu0 0
        %505 = vmatpush1.bf16.msra.mxu0 0
        %506 = vmatprep.subr.bf16.mxu0 0
        %507 = vmatpush1.bf16.msra.mxu0 0
        %508 = vmatprep.subr.bf16.mxu0 0
        %509 = vmatpush1.bf16.msra.mxu0 0
        %510 = vmatprep.mubr.bf16.mxu0 0
        %511 = vmatmul.mubr.bf16.gmra.mrb[0].mxu0 %v476
        %v512 = vpop.f32.mrb[0].mxu0
        %v513 = vadd.f32 0.0, %v512
        %v514 = vpop.f32.mrb[0].mxu0
        %v515 = vpop.f32.mrb[0].mxu0
        %v516 = vpop.f32.mrb[0].mxu0
        %517 = vdwg.mxu0
        %v518 = vadd.f32 %v449, %v513
        %s519 = sadd.s32 %s173, 1
        %s520 = smul.u32 %s519, 2
        %s521 = smul.addr %s520, 4
        %s522 = scalar_lea.vmem %s165, %s521
        %v523 = vld [vmem:[%s522] sm:$0xf]
        %s524 = scalar_lea.vmem %s1, 80
        %v525 = vld [vmem:[%s524] sm:$0xf]
        %v526 = vld [vmem:[%s524 + $0x4] sm:$0xf]
        %v527 = vld [vmem:[%s524 + $0x8] sm:$0xf]
        %v528 = vld [vmem:[%s524 + $0xc] sm:$0xf]
        %v533 = vunpack.c.l.b16 %v525
        %v534 = vunpack.c.l.b16 %v526
        %v535 = vunpack.c.l.b16 %v527
        %v536 = vunpack.c.l.b16 %v528
        %v537 = vpack.c.b16 %v534, %v533
        %v538 = vpack.c.b16 %v536, %v535
        %v542 = vsel %vm213, %v523, 0
        %544 = vmatprep.subr.bf16.mxu0 0
        %545 = vmatpush1.bf16.msra.mxu0 %v537
        %546 = vmatprep.subr.bf16.mxu0 0
        %547 = vmatpush1.bf16.msra.mxu0 %v538
        %548 = vmatprep.subr.bf16.mxu0 0
        %549 = vmatpush1.bf16.msra.mxu0 0
        %550 = vmatprep.subr.bf16.mxu0 0
        %551 = vmatpush1.bf16.msra.mxu0 0
        %552 = vmatprep.subr.bf16.mxu0 0
        %553 = vmatpush1.bf16.msra.mxu0 0
        %554 = vmatprep.subr.bf16.mxu0 0
        %555 = vmatpush1.bf16.msra.mxu0 0
        %556 = vmatprep.subr.bf16.mxu0 0
        %557 = vmatpush1.bf16.msra.mxu0 0
        %558 = vmatprep.subr.bf16.mxu0 0
        %559 = vmatpush1.bf16.msra.mxu0 0
        %560 = vmatprep.subr.bf16.mxu0 0
        %561 = vmatpush1.bf16.msra.mxu0 0
        %562 = vmatprep.subr.bf16.mxu0 0
        %563 = vmatpush1.bf16.msra.mxu0 0
        %564 = vmatprep.subr.bf16.mxu0 0
        %565 = vmatpush1.bf16.msra.mxu0 0
        %566 = vmatprep.subr.bf16.mxu0 0
        %567 = vmatpush1.bf16.msra.mxu0 0
        %568 = vmatprep.subr.bf16.mxu0 0
        %569 = vmatpush1.bf16.msra.mxu0 0
        %570 = vmatprep.subr.bf16.mxu0 0
        %571 = vmatpush1.bf16.msra.mxu0 0
        %572 = vmatprep.subr.bf16.mxu0 0
        %573 = vmatpush1.bf16.msra.mxu0 0
        %574 = vmatprep.subr.bf16.mxu0 0
        %575 = vmatpush1.bf16.msra.mxu0 0
        %576 = vmatprep.mubr.bf16.mxu0 0
        %577 = vmatmul.mubr.bf16.gmra.mrb[0].mxu0 %v542
        %v578 = vpop.f32.mrb[0].mxu0
        %v579 = vadd.f32 0.0, %v578
        %v580 = vpop.f32.mrb[0].mxu0
        %v581 = vpop.f32.mrb[0].mxu0
        %v582 = vpop.f32.mrb[0].mxu0
        %583 = vdwg.mxu0
        %v584 = vadd.f32 %v518, %v579
        %s585 = scalar_lea.vmem %s1, 96
        %v586 = vld [vmem:[%s585] sm:$0xf]
        %v587 = vld [vmem:[%s585 + $0x4] sm:$0xf]
        %v588 = vld [vmem:[%s585 + $0x8] sm:$0xf]
        %v589 = vld [vmem:[%s585 + $0xc] sm:$0xf]
        %v591 = vunpack.c.l.b16 %v523
        %v592 = vpack.c.b16 %v591, %v591
        %v594 = vshrl.u32 %v592, 16
        %v596 = vshll.u32 %v592, 16
        %v598 = vrot.slane %v596, 1
        %v599 = vor.u32 %v594, %v598
        %v604 = vunpack.c.l.b16 %v586
        %v605 = vunpack.c.l.b16 %v587
        %v606 = vunpack.c.l.b16 %v588
        %v607 = vunpack.c.l.b16 %v589
        %v608 = vpack.c.b16 %v605, %v604
        %v609 = vpack.c.b16 %v607, %v606
        %v613 = vsel %vm213, %v599, 0
        %615 = vmatprep.subr.bf16.mxu0 0
        %616 = vmatpush1.bf16.msra.mxu0 %v608
        %617 = vmatprep.subr.bf16.mxu0 0
        %618 = vmatpush1.bf16.msra.mxu0 %v609
        %619 = vmatprep.subr.bf16.mxu0 0
        %620 = vmatpush1.bf16.msra.mxu0 0
        %621 = vmatprep.subr.bf16.mxu0 0
        %622 = vmatpush1.bf16.msra.mxu0 0
        %623 = vmatprep.subr.bf16.mxu0 0
        %624 = vmatpush1.bf16.msra.mxu0 0
        %625 = vmatprep.subr.bf16.mxu0 0
        %626 = vmatpush1.bf16.msra.mxu0 0
        %627 = vmatprep.subr.bf16.mxu0 0
        %628 = vmatpush1.bf16.msra.mxu0 0
        %629 = vmatprep.subr.bf16.mxu0 0
        %630 = vmatpush1.bf16.msra.mxu0 0
        %631 = vmatprep.subr.bf16.mxu0 0
        %632 = vmatpush1.bf16.msra.mxu0 0
        %633 = vmatprep.subr.bf16.mxu0 0
        %634 = vmatpush1.bf16.msra.mxu0 0
        %635 = vmatprep.subr.bf16.mxu0 0
        %636 = vmatpush1.bf16.msra.mxu0 0
        %637 = vmatprep.subr.bf16.mxu0 0
        %638 = vmatpush1.bf16.msra.mxu0 0
        %639 = vmatprep.subr.bf16.mxu0 0
        %640 = vmatpush1.bf16.msra.mxu0 0
        %641 = vmatprep.subr.bf16.mxu0 0
        %642 = vmatpush1.bf16.msra.mxu0 0
        %643 = vmatprep.subr.bf16.mxu0 0
        %644 = vmatpush1.bf16.msra.mxu0 0
        %645 = vmatprep.subr.bf16.mxu0 0
        %646 = vmatpush1.bf16.msra.mxu0 0
        %647 = vmatprep.mubr.bf16.mxu0 0
        %648 = vmatmul.mubr.bf16.gmra.mrb[0].mxu0 %v613
        %v649 = vpop.f32.mrb[0].mxu0
        %v650 = vadd.f32 0.0, %v649
        %v651 = vpop.f32.mrb[0].mxu0
        %v652 = vpop.f32.mrb[0].mxu0
        %v653 = vpop.f32.mrb[0].mxu0
        %654 = vdwg.mxu0
        %v655 = vadd.f32 %v584, %v650
        %v656 = vld [vmem:[%s522] sm:$0xe]
        %v657 = vld [vmem:[%s522 + $0x4] sm:$0x1]
        %s658 = scalar_lea.vmem %s1, 112
        %v659 = vld [vmem:[%s658] sm:$0xf]
        %v660 = vld [vmem:[%s658 + $0x4] sm:$0xf]
        %v661 = vld [vmem:[%s658 + $0x8] sm:$0xf]
        %v662 = vld [vmem:[%s658 + $0xc] sm:$0xf]
        %v665 = vunpack.c.l.b16 %v656
        %v666 = vunpack.c.l.b16 %v657
        %v667 = vpack.c.b16 %v666, %v665
        %v668 = vrot.slane %v667, 1
        %v673 = vunpack.c.l.b16 %v659
        %v674 = vunpack.c.l.b16 %v660
        %v675 = vunpack.c.l.b16 %v661
        %v676 = vunpack.c.l.b16 %v662
        %v677 = vpack.c.b16 %v674, %v673
        %v678 = vpack.c.b16 %v676, %v675
        %v682 = vsel %vm213, %v668, 0
        %684 = vmatprep.subr.bf16.mxu0 0
        %685 = vmatpush1.bf16.msra.mxu0 %v677
        %686 = vmatprep.subr.bf16.mxu0 0
        %687 = vmatpush1.bf16.msra.mxu0 %v678
        %688 = vmatprep.subr.bf16.mxu0 0
        %689 = vmatpush1.bf16.msra.mxu0 0
        %690 = vmatprep.subr.bf16.mxu0 0
        %691 = vmatpush1.bf16.msra.mxu0 0
        %692 = vmatprep.subr.bf16.mxu0 0
        %693 = vmatpush1.bf16.msra.mxu0 0
        %694 = vmatprep.subr.bf16.mxu0 0
        %695 = vmatpush1.bf16.msra.mxu0 0
        %696 = vmatprep.subr.bf16.mxu0 0
        %697 = vmatpush1.bf16.msra.mxu0 0
        %698 = vmatprep.subr.bf16.mxu0 0
        %699 = vmatpush1.bf16.msra.mxu0 0
        %700 = vmatprep.subr.bf16.mxu0 0
        %701 = vmatpush1.bf16.msra.mxu0 0
        %702 = vmatprep.subr.bf16.mxu0 0
        %703 = vmatpush1.bf16.msra.mxu0 0
        %704 = vmatprep.subr.bf16.mxu0 0
        %705 = vmatpush1.bf16.msra.mxu0 0
        %706 = vmatprep.subr.bf16.mxu0 0
        %707 = vmatpush1.bf16.msra.mxu0 0
        %708 = vmatprep.subr.bf16.mxu0 0
        %709 = vmatpush1.bf16.msra.mxu0 0
        %710 = vmatprep.subr.bf16.mxu0 0
        %711 = vmatpush1.bf16.msra.mxu0 0
        %712 = vmatprep.subr.bf16.mxu0 0
        %713 = vmatpush1.bf16.msra.mxu0 0
        %714 = vmatprep.subr.bf16.mxu0 0
        %715 = vmatpush1.bf16.msra.mxu0 0
        %716 = vmatprep.mubr.bf16.mxu0 0
        %717 = vmatmul.mubr.bf16.gmra.mrb[0].mxu0 %v682
        %v718 = vpop.f32.mrb[0].mxu0
        %v719 = vadd.f32 0.0, %v718
        %v720 = vpop.f32.mrb[0].mxu0
        %v721 = vpop.f32.mrb[0].mxu0
        %v722 = vpop.f32.mrb[0].mxu0
        %723 = vdwg.mxu0
        %v724 = vadd.f32 %v655, %v719
        %s725 = scalar_lea.vmem %s1, 128
        %v726 = vld [vmem:[%s725] sm:$0xf]
        %v727 = vld [vmem:[%s725 + $0x4] sm:$0xf]
        %v728 = vld [vmem:[%s725 + $0x8] sm:$0xf]
        %v729 = vld [vmem:[%s725 + $0xc] sm:$0xf]
        %v731 = vshrl.u32 %v667, 16
        %v733 = vrot.slane %v731, 1
        %v734 = vshll.u32 %v667, 16
        %v736 = vrot.slane %v734, 2
        %v737 = vor.u32 %v733, %v736
        %v742 = vunpack.c.l.b16 %v726
        %v743 = vunpack.c.l.b16 %v727
        %v744 = vunpack.c.l.b16 %v728
        %v745 = vunpack.c.l.b16 %v729
        %v746 = vpack.c.b16 %v743, %v742
        %v747 = vpack.c.b16 %v745, %v744
        %v751 = vsel %vm213, %v737, 0
        %753 = vmatprep.subr.bf16.mxu0 0
        %754 = vmatpush1.bf16.msra.mxu0 %v746
        %755 = vmatprep.subr.bf16.mxu0 0
        %756 = vmatpush1.bf16.msra.mxu0 %v747
        %757 = vmatprep.subr.bf16.mxu0 0
        %758 = vmatpush1.bf16.msra.mxu0 0
        %759 = vmatprep.subr.bf16.mxu0 0
        %760 = vmatpush1.bf16.msra.mxu0 0
        %761 = vmatprep.subr.bf16.mxu0 0
        %762 = vmatpush1.bf16.msra.mxu0 0
        %763 = vmatprep.subr.bf16.mxu0 0
        %764 = vmatpush1.bf16.msra.mxu0 0
        %765 = vmatprep.subr.bf16.mxu0 0
        %766 = vmatpush1.bf16.msra.mxu0 0
        %767 = vmatprep.subr.bf16.mxu0 0
        %768 = vmatpush1.bf16.msra.mxu0 0
        %769 = vmatprep.subr.bf16.mxu0 0
        %770 = vmatpush1.bf16.msra.mxu0 0
        %771 = vmatprep.subr.bf16.mxu0 0
        %772 = vmatpush1.bf16.msra.mxu0 0
        %773 = vmatprep.subr.bf16.mxu0 0
        %774 = vmatpush1.bf16.msra.mxu0 0
        %775 = vmatprep.subr.bf16.mxu0 0
        %776 = vmatpush1.bf16.msra.mxu0 0
        %777 = vmatprep.subr.bf16.mxu0 0
        %778 = vmatpush1.bf16.msra.mxu0 0
        %779 = vmatprep.subr.bf16.mxu0 0
        %780 = vmatpush1.bf16.msra.mxu0 0
        %781 = vmatprep.subr.bf16.mxu0 0
        %782 = vmatpush1.bf16.msra.mxu0 0
        %783 = vmatprep.subr.bf16.mxu0 0
        %784 = vmatpush1.bf16.msra.mxu0 0
        %785 = vmatprep.mubr.bf16.mxu0 0
        %786 = vmatmul.mubr.bf16.gmra.mrb[0].mxu0 %v751
        %v787 = vpop.f32.mrb[0].mxu0
        %v788 = vadd.f32 0.0, %v787
        %v789 = vpop.f32.mrb[0].mxu0
        %v790 = vpop.f32.mrb[0].mxu0
        %v791 = vpop.f32.mrb[0].mxu0
        %792 = vdwg.mxu0
        %v793 = vadd.f32 %v724, %v788
        %v794 = vld [vmem:[%s522] sm:$0xc]
        %v795 = vld [vmem:[%s522 + $0x4] sm:$0x3]
        %s796 = scalar_lea.vmem %s1, 144
        %v797 = vld [vmem:[%s796] sm:$0xf]
        %v798 = vld [vmem:[%s796 + $0x4] sm:$0xf]
        %v799 = vld [vmem:[%s796 + $0x8] sm:$0xf]
        %v800 = vld [vmem:[%s796 + $0xc] sm:$0xf]
        %v803 = vunpack.c.l.b16 %v794
        %v804 = vunpack.c.l.b16 %v795
        %v805 = vpack.c.b16 %v804, %v803
        %v806 = vrot.slane %v805, 2
        %v811 = vunpack.c.l.b16 %v797
        %v812 = vunpack.c.l.b16 %v798
        %v813 = vunpack.c.l.b16 %v799
        %v814 = vunpack.c.l.b16 %v800
        %v815 = vpack.c.b16 %v812, %v811
        %v816 = vpack.c.b16 %v814, %v813
        %v820 = vsel %vm213, %v806, 0
        %822 = vmatprep.subr.bf16.mxu0 0
        %823 = vmatpush1.bf16.msra.mxu0 %v815
        %824 = vmatprep.subr.bf16.mxu0 0
        %825 = vmatpush1.bf16.msra.mxu0 %v816
        %826 = vmatprep.subr.bf16.mxu0 0
        %827 = vmatpush1.bf16.msra.mxu0 0
        %828 = vmatprep.subr.bf16.mxu0 0
        %829 = vmatpush1.bf16.msra.mxu0 0
        %830 = vmatprep.subr.bf16.mxu0 0
        %831 = vmatpush1.bf16.msra.mxu0 0
        %832 = vmatprep.subr.bf16.mxu0 0
        %833 = vmatpush1.bf16.msra.mxu0 0
        %834 = vmatprep.subr.bf16.mxu0 0
        %835 = vmatpush1.bf16.msra.mxu0 0
        %836 = vmatprep.subr.bf16.mxu0 0
        %837 = vmatpush1.bf16.msra.mxu0 0
        %838 = vmatprep.subr.bf16.mxu0 0
        %839 = vmatpush1.bf16.msra.mxu0 0
        %840 = vmatprep.subr.bf16.mxu0 0
        %841 = vmatpush1.bf16.msra.mxu0 0
        %842 = vmatprep.subr.bf16.mxu0 0
        %843 = vmatpush1.bf16.msra.mxu0 0
        %844 = vmatprep.subr.bf16.mxu0 0
        %845 = vmatpush1.bf16.msra.mxu0 0
        %846 = vmatprep.subr.bf16.mxu0 0
        %847 = vmatpush1.bf16.msra.mxu0 0
        %848 = vmatprep.subr.bf16.mxu0 0
        %849 = vmatpush1.bf16.msra.mxu0 0
        %850 = vmatprep.subr.bf16.mxu0 0
        %851 = vmatpush1.bf16.msra.mxu0 0
        %852 = vmatprep.subr.bf16.mxu0 0
        %853 = vmatpush1.bf16.msra.mxu0 0
        %854 = vmatprep.mubr.bf16.mxu0 0
        %855 = vmatmul.mubr.bf16.gmra.mrb[0].mxu0 %v820
        %v856 = vpop.f32.mrb[0].mxu0
        %v857 = vadd.f32 0.0, %v856
        %v858 = vpop.f32.mrb[0].mxu0
        %v859 = vpop.f32.mrb[0].mxu0
        %v860 = vpop.f32.mrb[0].mxu0
        %861 = vdwg.mxu0
        %v862 = vadd.f32 %v793, %v857
        %s863 = sadd.s32 %s173, 2
        %s864 = smul.u32 %s863, 2
        %s865 = smul.addr %s864, 4
        %s866 = scalar_lea.vmem %s165, %s865
        %v867 = vld [vmem:[%s866] sm:$0xf]
        %s868 = scalar_lea.vmem %s1, 160
        %v869 = vld [vmem:[%s868] sm:$0xf]
        %v870 = vld [vmem:[%s868 + $0x4] sm:$0xf]
        %v871 = vld [vmem:[%s868 + $0x8] sm:$0xf]
        %v872 = vld [vmem:[%s868 + $0xc] sm:$0xf]
        %v877 = vunpack.c.l.b16 %v869
        %v878 = vunpack.c.l.b16 %v870
        %v879 = vunpack.c.l.b16 %v871
        %v880 = vunpack.c.l.b16 %v872
        %v881 = vpack.c.b16 %v878, %v877
        %v882 = vpack.c.b16 %v880, %v879
        %v886 = vsel %vm213, %v867, 0
        %888 = vmatprep.subr.bf16.mxu0 0
        %889 = vmatpush1.bf16.msra.mxu0 %v881
        %890 = vmatprep.subr.bf16.mxu0 0
        %891 = vmatpush1.bf16.msra.mxu0 %v882
        %892 = vmatprep.subr.bf16.mxu0 0
        %893 = vmatpush1.bf16.msra.mxu0 0
        %894 = vmatprep.subr.bf16.mxu0 0
        %895 = vmatpush1.bf16.msra.mxu0 0
        %896 = vmatprep.subr.bf16.mxu0 0
        %897 = vmatpush1.bf16.msra.mxu0 0
        %898 = vmatprep.subr.bf16.mxu0 0
        %899 = vmatpush1.bf16.msra.mxu0 0
        %900 = vmatprep.subr.bf16.mxu0 0
        %901 = vmatpush1.bf16.msra.mxu0 0
        %902 = vmatprep.subr.bf16.mxu0 0
        %903 = vmatpush1.bf16.msra.mxu0 0
        %904 = vmatprep.subr.bf16.mxu0 0
        %905 = vmatpush1.bf16.msra.mxu0 0
        %906 = vmatprep.subr.bf16.mxu0 0
        %907 = vmatpush1.bf16.msra.mxu0 0
        %908 = vmatprep.subr.bf16.mxu0 0
        %909 = vmatpush1.bf16.msra.mxu0 0
        %910 = vmatprep.subr.bf16.mxu0 0
        %911 = vmatpush1.bf16.msra.mxu0 0
        %912 = vmatprep.subr.bf16.mxu0 0
        %913 = vmatpush1.bf16.msra.mxu0 0
        %914 = vmatprep.subr.bf16.mxu0 0
        %915 = vmatpush1.bf16.msra.mxu0 0
        %916 = vmatprep.subr.bf16.mxu0 0
        %917 = vmatpush1.bf16.msra.mxu0 0
        %918 = vmatprep.subr.bf16.mxu0 0
        %919 = vmatpush1.bf16.msra.mxu0 0
        %920 = vmatprep.mubr.bf16.mxu0 0
        %921 = vmatmul.mubr.bf16.gmra.mrb[0].mxu0 %v886
        %v922 = vpop.f32.mrb[0].mxu0
        %v923 = vadd.f32 0.0, %v922
        %v924 = vpop.f32.mrb[0].mxu0
        %v925 = vpop.f32.mrb[0].mxu0
        %v926 = vpop.f32.mrb[0].mxu0
        %927 = vdwg.mxu0
        %v928 = vadd.f32 %v862, %v923
        %s929 = scalar_lea.vmem %s1, 176
        %v930 = vld [vmem:[%s929] sm:$0xf]
        %v931 = vld [vmem:[%s929 + $0x4] sm:$0xf]
        %v932 = vld [vmem:[%s929 + $0x8] sm:$0xf]
        %v933 = vld [vmem:[%s929 + $0xc] sm:$0xf]
        %v935 = vunpack.c.l.b16 %v867
        %v936 = vpack.c.b16 %v935, %v935
        %v938 = vshrl.u32 %v936, 16
        %v940 = vshll.u32 %v936, 16
        %v942 = vrot.slane %v940, 1
        %v943 = vor.u32 %v938, %v942
        %v948 = vunpack.c.l.b16 %v930
        %v949 = vunpack.c.l.b16 %v931
        %v950 = vunpack.c.l.b16 %v932
        %v951 = vunpack.c.l.b16 %v933
        %v952 = vpack.c.b16 %v949, %v948
        %v953 = vpack.c.b16 %v951, %v950
        %v957 = vsel %vm213, %v943, 0
        %959 = vmatprep.subr.bf16.mxu0 0
        %960 = vmatpush1.bf16.msra.mxu0 %v952
        %961 = vmatprep.subr.bf16.mxu0 0
        %962 = vmatpush1.bf16.msra.mxu0 %v953
        %963 = vmatprep.subr.bf16.mxu0 0
        %964 = vmatpush1.bf16.msra.mxu0 0
        %965 = vmatprep.subr.bf16.mxu0 0
        %966 = vmatpush1.bf16.msra.mxu0 0
        %967 = vmatprep.subr.bf16.mxu0 0
        %968 = vmatpush1.bf16.msra.mxu0 0
        %969 = vmatprep.subr.bf16.mxu0 0
        %970 = vmatpush1.bf16.msra.mxu0 0
        %971 = vmatprep.subr.bf16.mxu0 0
        %972 = vmatpush1.bf16.msra.mxu0 0
        %973 = vmatprep.subr.bf16.mxu0 0
        %974 = vmatpush1.bf16.msra.mxu0 0
        %975 = vmatprep.subr.bf16.mxu0 0
        %976 = vmatpush1.bf16.msra.mxu0 0
        %977 = vmatprep.subr.bf16.mxu0 0
        %978 = vmatpush1.bf16.msra.mxu0 0
        %979 = vmatprep.subr.bf16.mxu0 0
        %980 = vmatpush1.bf16.msra.mxu0 0
        %981 = vmatprep.subr.bf16.mxu0 0
        %982 = vmatpush1.bf16.msra.mxu0 0
        %983 = vmatprep.subr.bf16.mxu0 0
        %984 = vmatpush1.bf16.msra.mxu0 0
        %985 = vmatprep.subr.bf16.mxu0 0
        %986 = vmatpush1.bf16.msra.mxu0 0
        %987 = vmatprep.subr.bf16.mxu0 0
        %988 = vmatpush1.bf16.msra.mxu0 0
        %989 = vmatprep.subr.bf16.mxu0 0
        %990 = vmatpush1.bf16.msra.mxu0 0
        %991 = vmatprep.mubr.bf16.mxu0 0
        %992 = vmatmul.mubr.bf16.gmra.mrb[0].mxu0 %v957
        %v993 = vpop.f32.mrb[0].mxu0
        %v994 = vadd.f32 0.0, %v993
        %v995 = vpop.f32.mrb[0].mxu0
        %v996 = vpop.f32.mrb[0].mxu0
        %v997 = vpop.f32.mrb[0].mxu0
        %998 = vdwg.mxu0
        %v999 = vadd.f32 %v928, %v994
        %v1000 = vld [vmem:[%s866] sm:$0xe]
        %v1001 = vld [vmem:[%s866 + $0x4] sm:$0x1]
        %s1002 = scalar_lea.vmem %s1, 192
        %v1003 = vld [vmem:[%s1002] sm:$0xf]
        %v1004 = vld [vmem:[%s1002 + $0x4] sm:$0xf]
        %v1005 = vld [vmem:[%s1002 + $0x8] sm:$0xf]
        %v1006 = vld [vmem:[%s1002 + $0xc] sm:$0xf]
        %v1009 = vunpack.c.l.b16 %v1000
        %v1010 = vunpack.c.l.b16 %v1001
        %v1011 = vpack.c.b16 %v1010, %v1009
        %v1012 = vrot.slane %v1011, 1
        %v1017 = vunpack.c.l.b16 %v1003
        %v1018 = vunpack.c.l.b16 %v1004
        %v1019 = vunpack.c.l.b16 %v1005
        %v1020 = vunpack.c.l.b16 %v1006
        %v1021 = vpack.c.b16 %v1018, %v1017
        %v1022 = vpack.c.b16 %v1020, %v1019
        %v1026 = vsel %vm213, %v1012, 0
        %1028 = vmatprep.subr.bf16.mxu0 0
        %1029 = vmatpush1.bf16.msra.mxu0 %v1021
        %1030 = vmatprep.subr.bf16.mxu0 0
        %1031 = vmatpush1.bf16.msra.mxu0 %v1022
        %1032 = vmatprep.subr.bf16.mxu0 0
        %1033 = vmatpush1.bf16.msra.mxu0 0
        %1034 = vmatprep.subr.bf16.mxu0 0
        %1035 = vmatpush1.bf16.msra.mxu0 0
        %1036 = vmatprep.subr.bf16.mxu0 0
        %1037 = vmatpush1.bf16.msra.mxu0 0
        %1038 = vmatprep.subr.bf16.mxu0 0
        %1039 = vmatpush1.bf16.msra.mxu0 0
        %1040 = vmatprep.subr.bf16.mxu0 0
        %1041 = vmatpush1.bf16.msra.mxu0 0
        %1042 = vmatprep.subr.bf16.mxu0 0
        %1043 = vmatpush1.bf16.msra.mxu0 0
        %1044 = vmatprep.subr.bf16.mxu0 0
        %1045 = vmatpush1.bf16.msra.mxu0 0
        %1046 = vmatprep.subr.bf16.mxu0 0
        %1047 = vmatpush1.bf16.msra.mxu0 0
        %1048 = vmatprep.subr.bf16.mxu0 0
        %1049 = vmatpush1.bf16.msra.mxu0 0
        %1050 = vmatprep.subr.bf16.mxu0 0
        %1051 = vmatpush1.bf16.msra.mxu0 0
        %1052 = vmatprep.subr.bf16.mxu0 0
        %1053 = vmatpush1.bf16.msra.mxu0 0
        %1054 = vmatprep.subr.bf16.mxu0 0
        %1055 = vmatpush1.bf16.msra.mxu0 0
        %1056 = vmatprep.subr.bf16.mxu0 0
        %1057 = vmatpush1.bf16.msra.mxu0 0
        %1058 = vmatprep.subr.bf16.mxu0 0
        %1059 = vmatpush1.bf16.msra.mxu0 0
        %1060 = vmatprep.mubr.bf16.mxu0 0
        %1061 = vmatmul.mubr.bf16.gmra.mrb[0].mxu0 %v1026
        %v1062 = vpop.f32.mrb[0].mxu0
        %v1063 = vadd.f32 0.0, %v1062
        %v1064 = vpop.f32.mrb[0].mxu0
        %v1065 = vpop.f32.mrb[0].mxu0
        %v1066 = vpop.f32.mrb[0].mxu0
        %1067 = vdwg.mxu0
        %v1068 = vadd.f32 %v999, %v1063
        %s1069 = scalar_lea.vmem %s1, 208
        %v1070 = vld [vmem:[%s1069] sm:$0xf]
        %v1071 = vld [vmem:[%s1069 + $0x4] sm:$0xf]
        %v1072 = vld [vmem:[%s1069 + $0x8] sm:$0xf]
        %v1073 = vld [vmem:[%s1069 + $0xc] sm:$0xf]
        %v1075 = vshrl.u32 %v1011, 16
        %v1077 = vrot.slane %v1075, 1
        %v1078 = vshll.u32 %v1011, 16
        %v1080 = vrot.slane %v1078, 2
        %v1081 = vor.u32 %v1077, %v1080
        %v1086 = vunpack.c.l.b16 %v1070
        %v1087 = vunpack.c.l.b16 %v1071
        %v1088 = vunpack.c.l.b16 %v1072
        %v1089 = vunpack.c.l.b16 %v1073
        %v1090 = vpack.c.b16 %v1087, %v1086
        %v1091 = vpack.c.b16 %v1089, %v1088
        %v1095 = vsel %vm213, %v1081, 0
        %1097 = vmatprep.subr.bf16.mxu0 0
        %1098 = vmatpush1.bf16.msra.mxu0 %v1090
        %1099 = vmatprep.subr.bf16.mxu0 0
        %1100 = vmatpush1.bf16.msra.mxu0 %v1091
        %1101 = vmatprep.subr.bf16.mxu0 0
        %1102 = vmatpush1.bf16.msra.mxu0 0
        %1103 = vmatprep.subr.bf16.mxu0 0
        %1104 = vmatpush1.bf16.msra.mxu0 0
        %1105 = vmatprep.subr.bf16.mxu0 0
        %1106 = vmatpush1.bf16.msra.mxu0 0
        %1107 = vmatprep.subr.bf16.mxu0 0
        %1108 = vmatpush1.bf16.msra.mxu0 0
        %1109 = vmatprep.subr.bf16.mxu0 0
        %1110 = vmatpush1.bf16.msra.mxu0 0
        %1111 = vmatprep.subr.bf16.mxu0 0
        %1112 = vmatpush1.bf16.msra.mxu0 0
        %1113 = vmatprep.subr.bf16.mxu0 0
        %1114 = vmatpush1.bf16.msra.mxu0 0
        %1115 = vmatprep.subr.bf16.mxu0 0
        %1116 = vmatpush1.bf16.msra.mxu0 0
        %1117 = vmatprep.subr.bf16.mxu0 0
        %1118 = vmatpush1.bf16.msra.mxu0 0
        %1119 = vmatprep.subr.bf16.mxu0 0
        %1120 = vmatpush1.bf16.msra.mxu0 0
        %1121 = vmatprep.subr.bf16.mxu0 0
        %1122 = vmatpush1.bf16.msra.mxu0 0
        %1123 = vmatprep.subr.bf16.mxu0 0
        %1124 = vmatpush1.bf16.msra.mxu0 0
        %1125 = vmatprep.subr.bf16.mxu0 0
        %1126 = vmatpush1.bf16.msra.mxu0 0
        %1127 = vmatprep.subr.bf16.mxu0 0
        %1128 = vmatpush1.bf16.msra.mxu0 0
        %1129 = vmatprep.mubr.bf16.mxu0 0
        %1130 = vmatmul.mubr.bf16.gmra.mrb[0].mxu0 %v1095
        %v1131 = vpop.f32.mrb[0].mxu0
        %v1132 = vadd.f32 0.0, %v1131
        %v1133 = vpop.f32.mrb[0].mxu0
        %v1134 = vpop.f32.mrb[0].mxu0
        %v1135 = vpop.f32.mrb[0].mxu0
        %1136 = vdwg.mxu0
        %v1137 = vadd.f32 %v1068, %v1132
        %v1138 = vld [vmem:[%s866] sm:$0xc]
        %v1139 = vld [vmem:[%s866 + $0x4] sm:$0x3]
        %s1140 = scalar_lea.vmem %s1, 224
        %v1141 = vld [vmem:[%s1140] sm:$0xf]
        %v1142 = vld [vmem:[%s1140 + $0x4] sm:$0xf]
        %v1143 = vld [vmem:[%s1140 + $0x8] sm:$0xf]
        %v1144 = vld [vmem:[%s1140 + $0xc] sm:$0xf]
        %v1147 = vunpack.c.l.b16 %v1138
        %v1148 = vunpack.c.l.b16 %v1139
        %v1149 = vpack.c.b16 %v1148, %v1147
        %v1150 = vrot.slane %v1149, 2
        %v1155 = vunpack.c.l.b16 %v1141
        %v1156 = vunpack.c.l.b16 %v1142
        %v1157 = vunpack.c.l.b16 %v1143
        %v1158 = vunpack.c.l.b16 %v1144
        %v1159 = vpack.c.b16 %v1156, %v1155
        %v1160 = vpack.c.b16 %v1158, %v1157
        %v1164 = vsel %vm213, %v1150, 0
        %1166 = vmatprep.subr.bf16.mxu0 0
        %1167 = vmatpush1.bf16.msra.mxu0 %v1159
        %1168 = vmatprep.subr.bf16.mxu0 0
        %1169 = vmatpush1.bf16.msra.mxu0 %v1160
        %1170 = vmatprep.subr.bf16.mxu0 0
        %1171 = vmatpush1.bf16.msra.mxu0 0
        %1172 = vmatprep.subr.bf16.mxu0 0
        %1173 = vmatpush1.bf16.msra.mxu0 0
        %1174 = vmatprep.subr.bf16.mxu0 0
        %1175 = vmatpush1.bf16.msra.mxu0 0
        %1176 = vmatprep.subr.bf16.mxu0 0
        %1177 = vmatpush1.bf16.msra.mxu0 0
        %1178 = vmatprep.subr.bf16.mxu0 0
        %1179 = vmatpush1.bf16.msra.mxu0 0
        %1180 = vmatprep.subr.bf16.mxu0 0
        %1181 = vmatpush1.bf16.msra.mxu0 0
        %1182 = vmatprep.subr.bf16.mxu0 0
        %1183 = vmatpush1.bf16.msra.mxu0 0
        %1184 = vmatprep.subr.bf16.mxu0 0
        %1185 = vmatpush1.bf16.msra.mxu0 0
        %1186 = vmatprep.subr.bf16.mxu0 0
        %1187 = vmatpush1.bf16.msra.mxu0 0
        %1188 = vmatprep.subr.bf16.mxu0 0
        %1189 = vmatpush1.bf16.msra.mxu0 0
        %1190 = vmatprep.subr.bf16.mxu0 0
        %1191 = vmatpush1.bf16.msra.mxu0 0
        %1192 = vmatprep.subr.bf16.mxu0 0
        %1193 = vmatpush1.bf16.msra.mxu0 0
        %1194 = vmatprep.subr.bf16.mxu0 0
        %1195 = vmatpush1.bf16.msra.mxu0 0
        %1196 = vmatprep.subr.bf16.mxu0 0
        %1197 = vmatpush1.bf16.msra.mxu0 0
        %1198 = vmatprep.mubr.bf16.mxu0 0
        %1199 = vmatmul.mubr.bf16.gmra.mrb[0].mxu0 %v1164
        %v1200 = vpop.f32.mrb[0].mxu0
        %v1201 = vadd.f32 0.0, %v1200
        %v1202 = vpop.f32.mrb[0].mxu0
        %v1203 = vpop.f32.mrb[0].mxu0
        %v1204 = vpop.f32.mrb[0].mxu0
        %1205 = vdwg.mxu0
        %v1206 = vadd.f32 %v1137, %v1201
        %s1207 = sadd.s32 %s173, 3
        %s1208 = smul.u32 %s1207, 2
        %s1209 = smul.addr %s1208, 4
        %s1210 = scalar_lea.vmem %s165, %s1209
        %v1211 = vld [vmem:[%s1210] sm:$0xf]
        %s1212 = scalar_lea.vmem %s1, 240
        %v1213 = vld [vmem:[%s1212] sm:$0xf]
        %v1214 = vld [vmem:[%s1212 + $0x4] sm:$0xf]
        %v1215 = vld [vmem:[%s1212 + $0x8] sm:$0xf]
        %v1216 = vld [vmem:[%s1212 + $0xc] sm:$0xf]
        %v1221 = vunpack.c.l.b16 %v1213
        %v1222 = vunpack.c.l.b16 %v1214
        %v1223 = vunpack.c.l.b16 %v1215
        %v1224 = vunpack.c.l.b16 %v1216
        %v1225 = vpack.c.b16 %v1222, %v1221
        %v1226 = vpack.c.b16 %v1224, %v1223
        %v1230 = vsel %vm213, %v1211, 0
        %1232 = vmatprep.subr.bf16.mxu0 0
        %1233 = vmatpush1.bf16.msra.mxu0 %v1225
        %1234 = vmatprep.subr.bf16.mxu0 0
        %1235 = vmatpush1.bf16.msra.mxu0 %v1226
        %1236 = vmatprep.subr.bf16.mxu0 0
        %1237 = vmatpush1.bf16.msra.mxu0 0
        %1238 = vmatprep.subr.bf16.mxu0 0
        %1239 = vmatpush1.bf16.msra.mxu0 0
        %1240 = vmatprep.subr.bf16.mxu0 0
        %1241 = vmatpush1.bf16.msra.mxu0 0
        %1242 = vmatprep.subr.bf16.mxu0 0
        %1243 = vmatpush1.bf16.msra.mxu0 0
        %1244 = vmatprep.subr.bf16.mxu0 0
        %1245 = vmatpush1.bf16.msra.mxu0 0
        %1246 = vmatprep.subr.bf16.mxu0 0
        %1247 = vmatpush1.bf16.msra.mxu0 0
        %1248 = vmatprep.subr.bf16.mxu0 0
        %1249 = vmatpush1.bf16.msra.mxu0 0
        %1250 = vmatprep.subr.bf16.mxu0 0
        %1251 = vmatpush1.bf16.msra.mxu0 0
        %1252 = vmatprep.subr.bf16.mxu0 0
        %1253 = vmatpush1.bf16.msra.mxu0 0
        %1254 = vmatprep.subr.bf16.mxu0 0
        %1255 = vmatpush1.bf16.msra.mxu0 0
        %1256 = vmatprep.subr.bf16.mxu0 0
        %1257 = vmatpush1.bf16.msra.mxu0 0
        %1258 = vmatprep.subr.bf16.mxu0 0
        %1259 = vmatpush1.bf16.msra.mxu0 0
        %1260 = vmatprep.subr.bf16.mxu0 0
        %1261 = vmatpush1.bf16.msra.mxu0 0
        %1262 = vmatprep.subr.bf16.mxu0 0
        %1263 = vmatpush1.bf16.msra.mxu0 0
        %1264 = vmatprep.mubr.bf16.mxu0 0
        %1265 = vmatmul.mubr.bf16.gmra.mrb[0].mxu0 %v1230
        %v1266 = vpop.f32.mrb[0].mxu0
        %v1267 = vadd.f32 0.0, %v1266
        %v1268 = vpop.f32.mrb[0].mxu0
        %v1269 = vpop.f32.mrb[0].mxu0
        %v1270 = vpop.f32.mrb[0].mxu0
        %1271 = vdwg.mxu0
        %v1272 = vadd.f32 %v1206, %v1267
        %s1273 = scalar_lea.vmem %s1, 256
        %v1274 = vld [vmem:[%s1273] sm:$0xf]
        %v1275 = vld [vmem:[%s1273 + $0x4] sm:$0xf]
        %v1276 = vld [vmem:[%s1273 + $0x8] sm:$0xf]
        %v1277 = vld [vmem:[%s1273 + $0xc] sm:$0xf]
        %v1279 = vunpack.c.l.b16 %v1211
        %v1280 = vpack.c.b16 %v1279, %v1279
        %v1282 = vshrl.u32 %v1280, 16
        %v1284 = vshll.u32 %v1280, 16
        %v1286 = vrot.slane %v1284, 1
        %v1287 = vor.u32 %v1282, %v1286
        %v1292 = vunpack.c.l.b16 %v1274
        %v1293 = vunpack.c.l.b16 %v1275
        %v1294 = vunpack.c.l.b16 %v1276
        %v1295 = vunpack.c.l.b16 %v1277
        %v1296 = vpack.c.b16 %v1293, %v1292
        %v1297 = vpack.c.b16 %v1295, %v1294
        %v1301 = vsel %vm213, %v1287, 0
        %1303 = vmatprep.subr.bf16.mxu0 0
        %1304 = vmatpush1.bf16.msra.mxu0 %v1296
        %1305 = vmatprep.subr.bf16.mxu0 0
        %1306 = vmatpush1.bf16.msra.mxu0 %v1297
        %1307 = vmatprep.subr.bf16.mxu0 0
        %1308 = vmatpush1.bf16.msra.mxu0 0
        %1309 = vmatprep.subr.bf16.mxu0 0
        %1310 = vmatpush1.bf16.msra.mxu0 0
        %1311 = vmatprep.subr.bf16.mxu0 0
        %1312 = vmatpush1.bf16.msra.mxu0 0
        %1313 = vmatprep.subr.bf16.mxu0 0
        %1314 = vmatpush1.bf16.msra.mxu0 0
        %1315 = vmatprep.subr.bf16.mxu0 0
        %1316 = vmatpush1.bf16.msra.mxu0 0
        %1317 = vmatprep.subr.bf16.mxu0 0
        %1318 = vmatpush1.bf16.msra.mxu0 0
        %1319 = vmatprep.subr.bf16.mxu0 0
        %1320 = vmatpush1.bf16.msra.mxu0 0
        %1321 = vmatprep.subr.bf16.mxu0 0
        %1322 = vmatpush1.bf16.msra.mxu0 0
        %1323 = vmatprep.subr.bf16.mxu0 0
        %1324 = vmatpush1.bf16.msra.mxu0 0
        %1325 = vmatprep.subr.bf16.mxu0 0
        %1326 = vmatpush1.bf16.msra.mxu0 0
        %1327 = vmatprep.subr.bf16.mxu0 0
        %1328 = vmatpush1.bf16.msra.mxu0 0
        %1329 = vmatprep.subr.bf16.mxu0 0
        %1330 = vmatpush1.bf16.msra.mxu0 0
        %1331 = vmatprep.subr.bf16.mxu0 0
        %1332 = vmatpush1.bf16.msra.mxu0 0
        %1333 = vmatprep.subr.bf16.mxu0 0
        %1334 = vmatpush1.bf16.msra.mxu0 0
        %1335 = vmatprep.mubr.bf16.mxu0 0
        %1336 = vmatmul.mubr.bf16.gmra.mrb[0].mxu0 %v1301
        %v1337 = vpop.f32.mrb[0].mxu0
        %v1338 = vadd.f32 0.0, %v1337
        %v1339 = vpop.f32.mrb[0].mxu0
        %v1340 = vpop.f32.mrb[0].mxu0
        %v1341 = vpop.f32.mrb[0].mxu0
        %1342 = vdwg.mxu0
        %v1343 = vadd.f32 %v1272, %v1338
        %v1344 = vld [vmem:[%s1210] sm:$0xe]
        %v1345 = vld [vmem:[%s1210 + $0x4] sm:$0x1]
        %s1346 = scalar_lea.vmem %s1, 272
        %v1347 = vld [vmem:[%s1346] sm:$0xf]
        %v1348 = vld [vmem:[%s1346 + $0x4] sm:$0xf]
        %v1349 = vld [vmem:[%s1346 + $0x8] sm:$0xf]
        %v1350 = vld [vmem:[%s1346 + $0xc] sm:$0xf]
        %v1353 = vunpack.c.l.b16 %v1344
        %v1354 = vunpack.c.l.b16 %v1345
        %v1355 = vpack.c.b16 %v1354, %v1353
        %v1356 = vrot.slane %v1355, 1
        %v1361 = vunpack.c.l.b16 %v1347
        %v1362 = vunpack.c.l.b16 %v1348
        %v1363 = vunpack.c.l.b16 %v1349
        %v1364 = vunpack.c.l.b16 %v1350
        %v1365 = vpack.c.b16 %v1362, %v1361
        %v1366 = vpack.c.b16 %v1364, %v1363
        %v1370 = vsel %vm213, %v1356, 0
        %1372 = vmatprep.subr.bf16.mxu0 0
        %1373 = vmatpush1.bf16.msra.mxu0 %v1365
        %1374 = vmatprep.subr.bf16.mxu0 0
        %1375 = vmatpush1.bf16.msra.mxu0 %v1366
        %1376 = vmatprep.subr.bf16.mxu0 0
        %1377 = vmatpush1.bf16.msra.mxu0 0
        %1378 = vmatprep.subr.bf16.mxu0 0
        %1379 = vmatpush1.bf16.msra.mxu0 0
        %1380 = vmatprep.subr.bf16.mxu0 0
        %1381 = vmatpush1.bf16.msra.mxu0 0
        %1382 = vmatprep.subr.bf16.mxu0 0
        %1383 = vmatpush1.bf16.msra.mxu0 0
        %1384 = vmatprep.subr.bf16.mxu0 0
        %1385 = vmatpush1.bf16.msra.mxu0 0
        %1386 = vmatprep.subr.bf16.mxu0 0
        %1387 = vmatpush1.bf16.msra.mxu0 0
        %1388 = vmatprep.subr.bf16.mxu0 0
        %1389 = vmatpush1.bf16.msra.mxu0 0
        %1390 = vmatprep.subr.bf16.mxu0 0
        %1391 = vmatpush1.bf16.msra.mxu0 0
        %1392 = vmatprep.subr.bf16.mxu0 0
        %1393 = vmatpush1.bf16.msra.mxu0 0
        %1394 = vmatprep.subr.bf16.mxu0 0
        %1395 = vmatpush1.bf16.msra.mxu0 0
        %1396 = vmatprep.subr.bf16.mxu0 0
        %1397 = vmatpush1.bf16.msra.mxu0 0
        %1398 = vmatprep.subr.bf16.mxu0 0
        %1399 = vmatpush1.bf16.msra.mxu0 0
        %1400 = vmatprep.subr.bf16.mxu0 0
        %1401 = vmatpush1.bf16.msra.mxu0 0
        %1402 = vmatprep.subr.bf16.mxu0 0
        %1403 = vmatpush1.bf16.msra.mxu0 0
        %1404 = vmatprep.mubr.bf16.mxu0 0
        %1405 = vmatmul.mubr.bf16.gmra.mrb[0].mxu0 %v1370
        %v1406 = vpop.f32.mrb[0].mxu0
        %v1407 = vadd.f32 0.0, %v1406
        %v1408 = vpop.f32.mrb[0].mxu0
        %v1409 = vpop.f32.mrb[0].mxu0
        %v1410 = vpop.f32.mrb[0].mxu0
        %1411 = vdwg.mxu0
        %v1412 = vadd.f32 %v1343, %v1407
        %s1413 = scalar_lea.vmem %s1, 288
        %v1414 = vld [vmem:[%s1413] sm:$0xf]
        %v1415 = vld [vmem:[%s1413 + $0x4] sm:$0xf]
        %v1416 = vld [vmem:[%s1413 + $0x8] sm:$0xf]
        %v1417 = vld [vmem:[%s1413 + $0xc] sm:$0xf]
        %v1419 = vshrl.u32 %v1355, 16
        %v1421 = vrot.slane %v1419, 1
        %v1422 = vshll.u32 %v1355, 16
        %v1424 = vrot.slane %v1422, 2
        %v1425 = vor.u32 %v1421, %v1424
        %v1430 = vunpack.c.l.b16 %v1414
        %v1431 = vunpack.c.l.b16 %v1415
        %v1432 = vunpack.c.l.b16 %v1416
        %v1433 = vunpack.c.l.b16 %v1417
        %v1434 = vpack.c.b16 %v1431, %v1430
        %v1435 = vpack.c.b16 %v1433, %v1432
        %v1439 = vsel %vm213, %v1425, 0
        %1441 = vmatprep.subr.bf16.mxu0 0
        %1442 = vmatpush1.bf16.msra.mxu0 %v1434
        %1443 = vmatprep.subr.bf16.mxu0 0
        %1444 = vmatpush1.bf16.msra.mxu0 %v1435
        %1445 = vmatprep.subr.bf16.mxu0 0
        %1446 = vmatpush1.bf16.msra.mxu0 0
        %1447 = vmatprep.subr.bf16.mxu0 0
        %1448 = vmatpush1.bf16.msra.mxu0 0
        %1449 = vmatprep.subr.bf16.mxu0 0
        %1450 = vmatpush1.bf16.msra.mxu0 0
        %1451 = vmatprep.subr.bf16.mxu0 0
        %1452 = vmatpush1.bf16.msra.mxu0 0
        %1453 = vmatprep.subr.bf16.mxu0 0
        %1454 = vmatpush1.bf16.msra.mxu0 0
        %1455 = vmatprep.subr.bf16.mxu0 0
        %1456 = vmatpush1.bf16.msra.mxu0 0
        %1457 = vmatprep.subr.bf16.mxu0 0
        %1458 = vmatpush1.bf16.msra.mxu0 0
        %1459 = vmatprep.subr.bf16.mxu0 0
        %1460 = vmatpush1.bf16.msra.mxu0 0
        %1461 = vmatprep.subr.bf16.mxu0 0
        %1462 = vmatpush1.bf16.msra.mxu0 0
        %1463 = vmatprep.subr.bf16.mxu0 0
        %1464 = vmatpush1.bf16.msra.mxu0 0
        %1465 = vmatprep.subr.bf16.mxu0 0
        %1466 = vmatpush1.bf16.msra.mxu0 0
        %1467 = vmatprep.subr.bf16.mxu0 0
        %1468 = vmatpush1.bf16.msra.mxu0 0
        %1469 = vmatprep.subr.bf16.mxu0 0
        %1470 = vmatpush1.bf16.msra.mxu0 0
        %1471 = vmatprep.subr.bf16.mxu0 0
        %1472 = vmatpush1.bf16.msra.mxu0 0
        %1473 = vmatprep.mubr.bf16.mxu0 0
        %1474 = vmatmul.mubr.bf16.gmra.mrb[0].mxu0 %v1439
        %v1475 = vpop.f32.mrb[0].mxu0
        %v1476 = vadd.f32 0.0, %v1475
        %v1477 = vpop.f32.mrb[0].mxu0
        %v1478 = vpop.f32.mrb[0].mxu0
        %v1479 = vpop.f32.mrb[0].mxu0
        %1480 = vdwg.mxu0
        %v1481 = vadd.f32 %v1412, %v1476
        %v1482 = vld [vmem:[%s1210] sm:$0xc]
        %v1483 = vld [vmem:[%s1210 + $0x4] sm:$0x3]
        %s1484 = scalar_lea.vmem %s1, 304
        %v1485 = vld [vmem:[%s1484] sm:$0xf]
        %v1486 = vld [vmem:[%s1484 + $0x4] sm:$0xf]
        %v1487 = vld [vmem:[%s1484 + $0x8] sm:$0xf]
        %v1488 = vld [vmem:[%s1484 + $0xc] sm:$0xf]
        %v1491 = vunpack.c.l.b16 %v1482
        %v1492 = vunpack.c.l.b16 %v1483
        %v1493 = vpack.c.b16 %v1492, %v1491
        %v1494 = vrot.slane %v1493, 2
        %v1499 = vunpack.c.l.b16 %v1485
        %v1500 = vunpack.c.l.b16 %v1486
        %v1501 = vunpack.c.l.b16 %v1487
        %v1502 = vunpack.c.l.b16 %v1488
        %v1503 = vpack.c.b16 %v1500, %v1499
        %v1504 = vpack.c.b16 %v1502, %v1501
        %v1508 = vsel %vm213, %v1494, 0
        %1510 = vmatprep.subr.bf16.mxu0 0
        %1511 = vmatpush1.bf16.msra.mxu0 %v1503
        %1512 = vmatprep.subr.bf16.mxu0 0
        %1513 = vmatpush1.bf16.msra.mxu0 %v1504
        %1514 = vmatprep.subr.bf16.mxu0 0
        %1515 = vmatpush1.bf16.msra.mxu0 0
        %1516 = vmatprep.subr.bf16.mxu0 0
        %1517 = vmatpush1.bf16.msra.mxu0 0
        %1518 = vmatprep.subr.bf16.mxu0 0
        %1519 = vmatpush1.bf16.msra.mxu0 0
        %1520 = vmatprep.subr.bf16.mxu0 0
        %1521 = vmatpush1.bf16.msra.mxu0 0
        %1522 = vmatprep.subr.bf16.mxu0 0
        %1523 = vmatpush1.bf16.msra.mxu0 0
        %1524 = vmatprep.subr.bf16.mxu0 0
        %1525 = vmatpush1.bf16.msra.mxu0 0
        %1526 = vmatprep.subr.bf16.mxu0 0
        %1527 = vmatpush1.bf16.msra.mxu0 0
        %1528 = vmatprep.subr.bf16.mxu0 0
        %1529 = vmatpush1.bf16.msra.mxu0 0
        %1530 = vmatprep.subr.bf16.mxu0 0
        %1531 = vmatpush1.bf16.msra.mxu0 0
        %1532 = vmatprep.subr.bf16.mxu0 0
        %1533 = vmatpush1.bf16.msra.mxu0 0
        %1534 = vmatprep.subr.bf16.mxu0 0
        %1535 = vmatpush1.bf16.msra.mxu0 0
        %1536 = vmatprep.subr.bf16.mxu0 0
        %1537 = vmatpush1.bf16.msra.mxu0 0
        %1538 = vmatprep.subr.bf16.mxu0 0
        %1539 = vmatpush1.bf16.msra.mxu0 0
        %1540 = vmatprep.subr.bf16.mxu0 0
        %1541 = vmatpush1.bf16.msra.mxu0 0
        %1542 = vmatprep.mubr.bf16.mxu0 0
        %1543 = vmatmul.mubr.bf16.gmra.mrb[0].mxu0 %v1508
        %v1544 = vpop.f32.mrb[0].mxu0
        %v1545 = vadd.f32 0.0, %v1544
        %v1546 = vpop.f32.mrb[0].mxu0
        %v1547 = vpop.f32.mrb[0].mxu0
        %v1548 = vpop.f32.mrb[0].mxu0
        %1549 = vdwg.mxu0
        %v1550 = vadd.f32 %v1481, %v1545
        %s1551 = sadd.s32 %s173, 4
        %s1552 = smul.u32 %s1551, 2
        %s1553 = smul.addr %s1552, 4
        %s1554 = scalar_lea.vmem %s165, %s1553
        %v1555 = vld [vmem:[%s1554] sm:$0xf]
        %s1556 = scalar_lea.vmem %s1, 320
        %v1557 = vld [vmem:[%s1556] sm:$0xf]
        %v1558 = vld [vmem:[%s1556 + $0x4] sm:$0xf]
        %v1559 = vld [vmem:[%s1556 + $0x8] sm:$0xf]
        %v1560 = vld [vmem:[%s1556 + $0xc] sm:$0xf]
        %v1565 = vunpack.c.l.b16 %v1557
        %v1566 = vunpack.c.l.b16 %v1558
        %v1567 = vunpack.c.l.b16 %v1559
        %v1568 = vunpack.c.l.b16 %v1560
        %v1569 = vpack.c.b16 %v1566, %v1565
        %v1570 = vpack.c.b16 %v1568, %v1567
        %v1574 = vsel %vm213, %v1555, 0
        %1576 = vmatprep.subr.bf16.mxu0 0
        %1577 = vmatpush1.bf16.msra.mxu0 %v1569
        %1578 = vmatprep.subr.bf16.mxu0 0
        %1579 = vmatpush1.bf16.msra.mxu0 %v1570
        %1580 = vmatprep.subr.bf16.mxu0 0
        %1581 = vmatpush1.bf16.msra.mxu0 0
        %1582 = vmatprep.subr.bf16.mxu0 0
        %1583 = vmatpush1.bf16.msra.mxu0 0
        %1584 = vmatprep.subr.bf16.mxu0 0
        %1585 = vmatpush1.bf16.msra.mxu0 0
        %1586 = vmatprep.subr.bf16.mxu0 0
        %1587 = vmatpush1.bf16.msra.mxu0 0
        %1588 = vmatprep.subr.bf16.mxu0 0
        %1589 = vmatpush1.bf16.msra.mxu0 0
        %1590 = vmatprep.subr.bf16.mxu0 0
        %1591 = vmatpush1.bf16.msra.mxu0 0
        %1592 = vmatprep.subr.bf16.mxu0 0
        %1593 = vmatpush1.bf16.msra.mxu0 0
        %1594 = vmatprep.subr.bf16.mxu0 0
        %1595 = vmatpush1.bf16.msra.mxu0 0
        %1596 = vmatprep.subr.bf16.mxu0 0
        %1597 = vmatpush1.bf16.msra.mxu0 0
        %1598 = vmatprep.subr.bf16.mxu0 0
        %1599 = vmatpush1.bf16.msra.mxu0 0
        %1600 = vmatprep.subr.bf16.mxu0 0
        %1601 = vmatpush1.bf16.msra.mxu0 0
        %1602 = vmatprep.subr.bf16.mxu0 0
        %1603 = vmatpush1.bf16.msra.mxu0 0
        %1604 = vmatprep.subr.bf16.mxu0 0
        %1605 = vmatpush1.bf16.msra.mxu0 0
        %1606 = vmatprep.subr.bf16.mxu0 0
        %1607 = vmatpush1.bf16.msra.mxu0 0
        %1608 = vmatprep.mubr.bf16.mxu0 0
        %1609 = vmatmul.mubr.bf16.gmra.mrb[0].mxu0 %v1574
        %v1610 = vpop.f32.mrb[0].mxu0
        %v1611 = vadd.f32 0.0, %v1610
        %v1612 = vpop.f32.mrb[0].mxu0
        %v1613 = vpop.f32.mrb[0].mxu0
        %v1614 = vpop.f32.mrb[0].mxu0
        %1615 = vdwg.mxu0
        %v1616 = vadd.f32 %v1550, %v1611
        %s1617 = scalar_lea.vmem %s1, 336
        %v1618 = vld [vmem:[%s1617] sm:$0xf]
        %v1619 = vld [vmem:[%s1617 + $0x4] sm:$0xf]
        %v1620 = vld [vmem:[%s1617 + $0x8] sm:$0xf]
        %v1621 = vld [vmem:[%s1617 + $0xc] sm:$0xf]
        %v1623 = vunpack.c.l.b16 %v1555
        %v1624 = vpack.c.b16 %v1623, %v1623
        %v1626 = vshrl.u32 %v1624, 16
        %v1628 = vshll.u32 %v1624, 16
        %v1630 = vrot.slane %v1628, 1
        %v1631 = vor.u32 %v1626, %v1630
        %v1636 = vunpack.c.l.b16 %v1618
        %v1637 = vunpack.c.l.b16 %v1619
        %v1638 = vunpack.c.l.b16 %v1620
        %v1639 = vunpack.c.l.b16 %v1621
        %v1640 = vpack.c.b16 %v1637, %v1636
        %v1641 = vpack.c.b16 %v1639, %v1638
        %v1645 = vsel %vm213, %v1631, 0
        %1647 = vmatprep.subr.bf16.mxu0 0
        %1648 = vmatpush1.bf16.msra.mxu0 %v1640
        %1649 = vmatprep.subr.bf16.mxu0 0
        %1650 = vmatpush1.bf16.msra.mxu0 %v1641
        %1651 = vmatprep.subr.bf16.mxu0 0
        %1652 = vmatpush1.bf16.msra.mxu0 0
        %1653 = vmatprep.subr.bf16.mxu0 0
        %1654 = vmatpush1.bf16.msra.mxu0 0
        %1655 = vmatprep.subr.bf16.mxu0 0
        %1656 = vmatpush1.bf16.msra.mxu0 0
        %1657 = vmatprep.subr.bf16.mxu0 0
        %1658 = vmatpush1.bf16.msra.mxu0 0
        %1659 = vmatprep.subr.bf16.mxu0 0
        %1660 = vmatpush1.bf16.msra.mxu0 0
        %1661 = vmatprep.subr.bf16.mxu0 0
        %1662 = vmatpush1.bf16.msra.mxu0 0
        %1663 = vmatprep.subr.bf16.mxu0 0
        %1664 = vmatpush1.bf16.msra.mxu0 0
        %1665 = vmatprep.subr.bf16.mxu0 0
        %1666 = vmatpush1.bf16.msra.mxu0 0
        %1667 = vmatprep.subr.bf16.mxu0 0
        %1668 = vmatpush1.bf16.msra.mxu0 0
        %1669 = vmatprep.subr.bf16.mxu0 0
        %1670 = vmatpush1.bf16.msra.mxu0 0
        %1671 = vmatprep.subr.bf16.mxu0 0
        %1672 = vmatpush1.bf16.msra.mxu0 0
        %1673 = vmatprep.subr.bf16.mxu0 0
        %1674 = vmatpush1.bf16.msra.mxu0 0
        %1675 = vmatprep.subr.bf16.mxu0 0
        %1676 = vmatpush1.bf16.msra.mxu0 0
        %1677 = vmatprep.subr.bf16.mxu0 0
        %1678 = vmatpush1.bf16.msra.mxu0 0
        %1679 = vmatprep.mubr.bf16.mxu0 0
        %1680 = vmatmul.mubr.bf16.gmra.mrb[0].mxu0 %v1645
        %v1681 = vpop.f32.mrb[0].mxu0
        %v1682 = vadd.f32 0.0, %v1681
        %v1683 = vpop.f32.mrb[0].mxu0
        %v1684 = vpop.f32.mrb[0].mxu0
        %v1685 = vpop.f32.mrb[0].mxu0
        %1686 = vdwg.mxu0
        %v1687 = vadd.f32 %v1616, %v1682
        %v1688 = vld [vmem:[%s1554] sm:$0xe]
        %v1689 = vld [vmem:[%s1554 + $0x4] sm:$0x1]
        %s1690 = scalar_lea.vmem %s1, 352
        %v1691 = vld [vmem:[%s1690] sm:$0xf]
        %v1692 = vld [vmem:[%s1690 + $0x4] sm:$0xf]
        %v1693 = vld [vmem:[%s1690 + $0x8] sm:$0xf]
        %v1694 = vld [vmem:[%s1690 + $0xc] sm:$0xf]
        %v1697 = vunpack.c.l.b16 %v1688
        %v1698 = vunpack.c.l.b16 %v1689
        %v1699 = vpack.c.b16 %v1698, %v1697
        %v1700 = vrot.slane %v1699, 1
        %v1705 = vunpack.c.l.b16 %v1691
        %v1706 = vunpack.c.l.b16 %v1692
        %v1707 = vunpack.c.l.b16 %v1693
        %v1708 = vunpack.c.l.b16 %v1694
        %v1709 = vpack.c.b16 %v1706, %v1705
        %v1710 = vpack.c.b16 %v1708, %v1707
        %v1714 = vsel %vm213, %v1700, 0
        %1716 = vmatprep.subr.bf16.mxu0 0
        %1717 = vmatpush1.bf16.msra.mxu0 %v1709
        %1718 = vmatprep.subr.bf16.mxu0 0
        %1719 = vmatpush1.bf16.msra.mxu0 %v1710
        %1720 = vmatprep.subr.bf16.mxu0 0
        %1721 = vmatpush1.bf16.msra.mxu0 0
        %1722 = vmatprep.subr.bf16.mxu0 0
        %1723 = vmatpush1.bf16.msra.mxu0 0
        %1724 = vmatprep.subr.bf16.mxu0 0
        %1725 = vmatpush1.bf16.msra.mxu0 0
        %1726 = vmatprep.subr.bf16.mxu0 0
        %1727 = vmatpush1.bf16.msra.mxu0 0
        %1728 = vmatprep.subr.bf16.mxu0 0
        %1729 = vmatpush1.bf16.msra.mxu0 0
        %1730 = vmatprep.subr.bf16.mxu0 0
        %1731 = vmatpush1.bf16.msra.mxu0 0
        %1732 = vmatprep.subr.bf16.mxu0 0
        %1733 = vmatpush1.bf16.msra.mxu0 0
        %1734 = vmatprep.subr.bf16.mxu0 0
        %1735 = vmatpush1.bf16.msra.mxu0 0
        %1736 = vmatprep.subr.bf16.mxu0 0
        %1737 = vmatpush1.bf16.msra.mxu0 0
        %1738 = vmatprep.subr.bf16.mxu0 0
        %1739 = vmatpush1.bf16.msra.mxu0 0
        %1740 = vmatprep.subr.bf16.mxu0 0
        %1741 = vmatpush1.bf16.msra.mxu0 0
        %1742 = vmatprep.subr.bf16.mxu0 0
        %1743 = vmatpush1.bf16.msra.mxu0 0
        %1744 = vmatprep.subr.bf16.mxu0 0
        %1745 = vmatpush1.bf16.msra.mxu0 0
        %1746 = vmatprep.subr.bf16.mxu0 0
        %1747 = vmatpush1.bf16.msra.mxu0 0
        %1748 = vmatprep.mubr.bf16.mxu0 0
        %1749 = vmatmul.mubr.bf16.gmra.mrb[0].mxu0 %v1714
        %v1750 = vpop.f32.mrb[0].mxu0
        %v1751 = vadd.f32 0.0, %v1750
        %v1752 = vpop.f32.mrb[0].mxu0
        %v1753 = vpop.f32.mrb[0].mxu0
        %v1754 = vpop.f32.mrb[0].mxu0
        %1755 = vdwg.mxu0
        %v1756 = vadd.f32 %v1687, %v1751
        %s1757 = scalar_lea.vmem %s1, 368
        %v1758 = vld [vmem:[%s1757] sm:$0xf]
        %v1759 = vld [vmem:[%s1757 + $0x4] sm:$0xf]
        %v1760 = vld [vmem:[%s1757 + $0x8] sm:$0xf]
        %v1761 = vld [vmem:[%s1757 + $0xc] sm:$0xf]
        %v1763 = vshrl.u32 %v1699, 16
        %v1765 = vrot.slane %v1763, 1
        %v1766 = vshll.u32 %v1699, 16
        %v1768 = vrot.slane %v1766, 2
        %v1769 = vor.u32 %v1765, %v1768
        %v1774 = vunpack.c.l.b16 %v1758
        %v1775 = vunpack.c.l.b16 %v1759
        %v1776 = vunpack.c.l.b16 %v1760
        %v1777 = vunpack.c.l.b16 %v1761
        %v1778 = vpack.c.b16 %v1775, %v1774
        %v1779 = vpack.c.b16 %v1777, %v1776
        %v1783 = vsel %vm213, %v1769, 0
        %1785 = vmatprep.subr.bf16.mxu0 0
        %1786 = vmatpush1.bf16.msra.mxu0 %v1778
        %1787 = vmatprep.subr.bf16.mxu0 0
        %1788 = vmatpush1.bf16.msra.mxu0 %v1779
        %1789 = vmatprep.subr.bf16.mxu0 0
        %1790 = vmatpush1.bf16.msra.mxu0 0
        %1791 = vmatprep.subr.bf16.mxu0 0
        %1792 = vmatpush1.bf16.msra.mxu0 0
        %1793 = vmatprep.subr.bf16.mxu0 0
        %1794 = vmatpush1.bf16.msra.mxu0 0
        %1795 = vmatprep.subr.bf16.mxu0 0
        %1796 = vmatpush1.bf16.msra.mxu0 0
        %1797 = vmatprep.subr.bf16.mxu0 0
        %1798 = vmatpush1.bf16.msra.mxu0 0
        %1799 = vmatprep.subr.bf16.mxu0 0
        %1800 = vmatpush1.bf16.msra.mxu0 0
        %1801 = vmatprep.subr.bf16.mxu0 0
        %1802 = vmatpush1.bf16.msra.mxu0 0
        %1803 = vmatprep.subr.bf16.mxu0 0
        %1804 = vmatpush1.bf16.msra.mxu0 0
        %1805 = vmatprep.subr.bf16.mxu0 0
        %1806 = vmatpush1.bf16.msra.mxu0 0
        %1807 = vmatprep.subr.bf16.mxu0 0
        %1808 = vmatpush1.bf16.msra.mxu0 0
        %1809 = vmatprep.subr.bf16.mxu0 0
        %1810 = vmatpush1.bf16.msra.mxu0 0
        %1811 = vmatprep.subr.bf16.mxu0 0
        %1812 = vmatpush1.bf16.msra.mxu0 0
        %1813 = vmatprep.subr.bf16.mxu0 0
        %1814 = vmatpush1.bf16.msra.mxu0 0
        %1815 = vmatprep.subr.bf16.mxu0 0
        %1816 = vmatpush1.bf16.msra.mxu0 0
        %1817 = vmatprep.mubr.bf16.mxu0 0
        %1818 = vmatmul.mubr.bf16.gmra.mrb[0].mxu0 %v1783
        %v1819 = vpop.f32.mrb[0].mxu0
        %v1820 = vadd.f32 0.0, %v1819
        %v1821 = vpop.f32.mrb[0].mxu0
        %v1822 = vpop.f32.mrb[0].mxu0
        %v1823 = vpop.f32.mrb[0].mxu0
        %1824 = vdwg.mxu0
        %v1825 = vadd.f32 %v1756, %v1820
        %v1826 = vld [vmem:[%s1554] sm:$0xc]
        %v1827 = vld [vmem:[%s1554 + $0x4] sm:$0x3]
        %s1828 = scalar_lea.vmem %s1, 384
        %v1829 = vld [vmem:[%s1828] sm:$0xf]
        %v1830 = vld [vmem:[%s1828 + $0x4] sm:$0xf]
        %v1831 = vld [vmem:[%s1828 + $0x8] sm:$0xf]
        %v1832 = vld [vmem:[%s1828 + $0xc] sm:$0xf]
        %v1835 = vunpack.c.l.b16 %v1826
        %v1836 = vunpack.c.l.b16 %v1827
        %v1837 = vpack.c.b16 %v1836, %v1835
        %v1838 = vrot.slane %v1837, 2
        %v1843 = vunpack.c.l.b16 %v1829
        %v1844 = vunpack.c.l.b16 %v1830
        %v1845 = vunpack.c.l.b16 %v1831
        %v1846 = vunpack.c.l.b16 %v1832
        %v1847 = vpack.c.b16 %v1844, %v1843
        %v1848 = vpack.c.b16 %v1846, %v1845
        %v1852 = vsel %vm213, %v1838, 0
        %1854 = vmatprep.subr.bf16.mxu0 0
        %1855 = vmatpush1.bf16.msra.mxu0 %v1847
        %1856 = vmatprep.subr.bf16.mxu0 0
        %1857 = vmatpush1.bf16.msra.mxu0 %v1848
        %1858 = vmatprep.subr.bf16.mxu0 0
        %1859 = vmatpush1.bf16.msra.mxu0 0
        %1860 = vmatprep.subr.bf16.mxu0 0
        %1861 = vmatpush1.bf16.msra.mxu0 0
        %1862 = vmatprep.subr.bf16.mxu0 0
        %1863 = vmatpush1.bf16.msra.mxu0 0
        %1864 = vmatprep.subr.bf16.mxu0 0
        %1865 = vmatpush1.bf16.msra.mxu0 0
        %1866 = vmatprep.subr.bf16.mxu0 0
        %1867 = vmatpush1.bf16.msra.mxu0 0
        %1868 = vmatprep.subr.bf16.mxu0 0
        %1869 = vmatpush1.bf16.msra.mxu0 0
        %1870 = vmatprep.subr.bf16.mxu0 0
        %1871 = vmatpush1.bf16.msra.mxu0 0
        %1872 = vmatprep.subr.bf16.mxu0 0
        %1873 = vmatpush1.bf16.msra.mxu0 0
        %1874 = vmatprep.subr.bf16.mxu0 0
        %1875 = vmatpush1.bf16.msra.mxu0 0
        %1876 = vmatprep.subr.bf16.mxu0 0
        %1877 = vmatpush1.bf16.msra.mxu0 0
        %1878 = vmatprep.subr.bf16.mxu0 0
        %1879 = vmatpush1.bf16.msra.mxu0 0
        %1880 = vmatprep.subr.bf16.mxu0 0
        %1881 = vmatpush1.bf16.msra.mxu0 0
        %1882 = vmatprep.subr.bf16.mxu0 0
        %1883 = vmatpush1.bf16.msra.mxu0 0
        %1884 = vmatprep.subr.bf16.mxu0 0
        %1885 = vmatpush1.bf16.msra.mxu0 0
        %1886 = vmatprep.mubr.bf16.mxu0 0
        %1887 = vmatmul.mubr.bf16.gmra.mrb[0].mxu0 %v1852
        %v1888 = vpop.f32.mrb[0].mxu0
        %v1889 = vadd.f32 0.0, %v1888
        %v1890 = vpop.f32.mrb[0].mxu0
        %v1891 = vpop.f32.mrb[0].mxu0
        %v1892 = vpop.f32.mrb[0].mxu0
        %1893 = vdwg.mxu0
        %v1894 = vadd.f32 %v1825, %v1889
        %v1895 = vld [vmem:[%s2] sm:$0x1]
        %v1897 = vlaneseq
        %v1898 = vshrl.u32 %v1897, 7
        %v1899 = vsub.s32 0, %v1898
        %v1900 = vrot.slane %v1895, %v1899
        %v1902 = vadd.f32 %v1894, %v1900
        %v1903 = vmax.f32 %v1902, 0.0
        %v1904 = vpack.c.bf16 %v1903, %v1903
        %s1905 = smul.addr %s173, 4
        %s1906 = scalar_lea.vmem %s170, %s1905
        %vm1907 = vcmask 519168
        %vm1908 = vsmask.f32 3328
        %vm1909 = vmand %vm1907, %vm1908
        %v1910 = vld [vmem:[%s1906] sm:$0xf]
        %v1911 = vsel %vm1909, %v1904, %v1910
        %1912 = vst [vmem:[%s1906] sm:$0xf] %v1911
      $region37: #{dsh_forward.6} parent=31 // loop_footer
        %s177 = sadd.s32 1, %s173
      $region38: #{dsh_forward.6} parent=31 // loop_footer_branch
        %172 = sbr.rel target = $region34
      $region39: #{dsh_forward.6} parent=31 // loop_exit
        _
      %p1913 = scmp.lt.s32.totalorder %s14, 1
      %s1914 = scalar_select %p1913, %s14, 1
      %s1915 = smul.addr %s1914, 7
      %s1916 = smul.addr %s1915, 4
      %s1917 = scalar_lea.vmem %s3, %s1916
      // Predicated region
      $region40: #{dsh_forward.6} parent=31 // pred_check
        %p1918 = pneg %p100
      $region41: #{dsh_forward.6} parent=31 // pred_check_branch
        %1920 = sbr.rel (%p1918) target = $region43
      $region42: #{dsh_forward.6} parent=31 // pred_region
        _
      $region43: #{dsh_forward.6} parent=31 // pred_fallthru
        _
    $region32: #{dsh_forward.6} parent=5 // pred_fallthru
      _
    %p1921 = scmp.le.s32.totalorder 2, %s9
    // Predicated region
    $region44: #{dsh_forward.6} parent=5 // pred_check
      %p1922 = pneg %p1921
    $region45: #{dsh_forward.6} parent=5 // pred_check_branch
      %1924 = sbr.rel (%p1922) target = $region47
    $region46: #{dsh_forward.6} parent=5 // pred_region
      %s1925 = ssub.s32 %s9, 2
      // Predicated region
      $region48: #{dsh_forward.6} parent=46 // pred_check
        %p1926 = pneg %p106
      $region49: #{dsh_forward.6} parent=46 // pred_check_branch
        %1928 = sbr.rel (%p1926) target = $region51
      $region50: #{dsh_forward.6} parent=46 // pred_region
        %p1929 = scmp.lt.s32.totalorder %s15, 1
        %s1930 = scalar_select %p1929, %s15, 1
        %s1931 = smul.addr %s1930, 7
        %s1932 = smul.addr %s1931, 4
        %s1933 = scalar_lea.vmem %s3, %s1932
      $region51: #{dsh_forward.6} parent=46 // pred_fallthru
        _
    $region47: #{dsh_forward.6} parent=5 // pred_fallthru
      _
  $region6: #{dsh_forward.6} parent=0 // loop_footer
    %s13 = sadd.s32 1, %s9
  $region7: #{dsh_forward.6} parent=0 // loop_footer_branch
    %8 = sbr.rel target = $region3
  $region8: #{dsh_forward.6} parent=0 // loop_exit
    _

// kernel: dsh_forward.7
$region0: #{dsh_forward.7}
  #allocation0 [shape = 'u32[]', space=smem, size = 0x4, offset = 0x4, fixed_abs, tag = 'smem constant byte address 0x4 - core index']
  #allocation1 [shape = 'u32[144,128]{1,0:T(1,128)}', space=vmem, size = 0x12000, scoped, tag = 'internal scratch']
  %s0 = inlined_call_operand.vmem [shape: bf16[2,576], index: 0, kind: input, shape index: {}]
  %s1 = inlined_call_operand.vmem [shape: bf16[576,512], index: 1, kind: input, shape index: {}]
  %s2 = inlined_call_operand.vmem [shape: f32[1,512], index: 2, kind: input, shape index: {}]
  %s3 = inlined_call_operand.vmem [shape: bf16[512,128], index: 3, kind: input, shape index: {}]
  %s4 = inlined_call_operand.vmem [shape: f32[1,128], index: 4, kind: input, shape index: {}]
  %s5 = inlined_call_operand.hbm [shape: f32[2,128], index: 5, kind: output, shape index: {}]
  %s6 = sld [smem:[#allocation0]]
  $region30: #{dsh_forward.7} parent=0
    _
  %s8 = ssub.s32 1, %s6
  %s9 = scalar_select 0, %s8, %s6
  $region1: #{dsh_forward.7} parent=0
    #allocation2 [shape = 'u8[1024]{0}', space=vmem, size = 0x400, scoped, tag = 'output window, operand 0, single buffered']
    #allocation3 [shape = 's32[1]{0}', space=sflag, size = 0x4, scoped, tag = 'scoped memory for dsh_forward.7']
    %10 = vsyncpa [#allocation3], 0
    // Predicated region
    $region2: #{dsh_forward.7} parent=1 // pred_check
      _
    $region3: #{dsh_forward.7} parent=1 // pred_check_branch
      %12 = sbr.rel (0) target = $region5
    $region4: #{dsh_forward.7} parent=1 // pred_region
      _
    $region5: #{dsh_forward.7} parent=1 // pred_fallthru
      _
    // Predicated region
    $region6: #{dsh_forward.7} parent=1 // pred_check
      _
    $region7: #{dsh_forward.7} parent=1 // pred_check_branch
      %14 = sbr.rel (0) target = $region9
    $region8: #{dsh_forward.7} parent=1 // pred_region
      _
    $region9: #{dsh_forward.7} parent=1 // pred_fallthru
      _
    // Predicated region
    $region10: #{dsh_forward.7} parent=1 // pred_check
      _
    $region11: #{dsh_forward.7} parent=1 // pred_check_branch
      %16 = sbr.rel (0) target = $region13
    $region12: #{dsh_forward.7} parent=1 // pred_region
      _
    $region13: #{dsh_forward.7} parent=1 // pred_fallthru
      _
    // Predicated region
    $region14: #{dsh_forward.7} parent=1 // pred_check
      _
    $region15: #{dsh_forward.7} parent=1 // pred_check_branch
      %18 = sbr.rel (0) target = $region17
    $region16: #{dsh_forward.7} parent=1 // pred_region
      _
    $region17: #{dsh_forward.7} parent=1 // pred_fallthru
      _
    // Predicated region
    $region18: #{dsh_forward.7} parent=1 // pred_check
      _
    $region19: #{dsh_forward.7} parent=1 // pred_check_branch
      %20 = sbr.rel (0) target = $region21
    $region20: #{dsh_forward.7} parent=1 // pred_region
      _
    $region21: #{dsh_forward.7} parent=1 // pred_fallthru
      _
    %v22 = vld [vmem:[%s0] sm:$0x1f]
    %v23 = vld [vmem:[%s1] sm:$0xff]
    %v24 = vld [vmem:[%s1 + $0x8] sm:$0xff]
    %v25 = vld [vmem:[%s1 + $0x10] sm:$0xff]
    %v26 = vld [vmem:[%s1 + $0x18] sm:$0xff]
    %v27 = vld [vmem:[%s1 + $0x20] sm:$0xff]
    %v28 = vld [vmem:[%s1 + $0x28] sm:$0xff]
    %v29 = vld [vmem:[%s1 + $0x30] sm:$0xff]
    %v30 = vld [vmem:[%s1 + $0x38] sm:$0xff]
    %v31 = vld [vmem:[%s1 + $0x40] sm:$0xff]
    %v32 = vld [vmem:[%s1 + $0x48] sm:$0xff]
    %v33 = vld [vmem:[%s1 + $0x50] sm:$0xff]
    %v34 = vld [vmem:[%s1 + $0x58] sm:$0xff]
    %v35 = vld [vmem:[%s1 + $0x60] sm:$0xff]
    %v36 = vld [vmem:[%s1 + $0x68] sm:$0xff]
    %v37 = vld [vmem:[%s1 + $0x70] sm:$0xff]
    %v38 = vld [vmem:[%s1 + $0x78] sm:$0xff]
    %v39 = vld [vmem:[%s1 + $0x80] sm:$0xff]
    %v40 = vld [vmem:[%s1 + $0x88] sm:$0xff]
    %v41 = vld [vmem:[%s1 + $0x90] sm:$0xff]
    %v42 = vld [vmem:[%s1 + $0x98] sm:$0xff]
    %v43 = vld [vmem:[%s1 + $0xa0] sm:$0xff]
    %v44 = vld [vmem:[%s1 + $0xa8] sm:$0xff]
    %v45 = vld [vmem:[%s1 + $0xb0] sm:$0xff]
    %v46 = vld [vmem:[%s1 + $0xb8] sm:$0xff]
    %v47 = vld [vmem:[%s1 + $0xc0] sm:$0xff]
    %v48 = vld [vmem:[%s1 + $0xc8] sm:$0xff]
    %v49 = vld [vmem:[%s1 + $0xd0] sm:$0xff]
    %v50 = vld [vmem:[%s1 + $0xd8] sm:$0xff]
    %v51 = vld [vmem:[%s1 + $0xe0] sm:$0xff]
    %v52 = vld [vmem:[%s1 + $0xe8] sm:$0xff]
    %v53 = vld [vmem:[%s1 + $0xf0] sm:$0xff]
    %v54 = vld [vmem:[%s1 + $0xf8] sm:$0xff]
    %v55 = vld [vmem:[%s1 + $0x100] sm:$0xff]
    %v56 = vld [vmem:[%s1 + $0x108] sm:$0xff]
    %v57 = vld [vmem:[%s1 + $0x110] sm:$0xff]
    %v58 = vld [vmem:[%s1 + $0x118] sm:$0xff]
    %v59 = vld [vmem:[%s1 + $0x120] sm:$0xff]
    %v60 = vld [vmem:[%s1 + $0x128] sm:$0xff]
    %v61 = vld [vmem:[%s1 + $0x130] sm:$0xff]
    %v62 = vld [vmem:[%s1 + $0x138] sm:$0xff]
    %v63 = vld [vmem:[%s1 + $0x140] sm:$0xff]
    %v64 = vld [vmem:[%s1 + $0x148] sm:$0xff]
    %v65 = vld [vmem:[%s1 + $0x150] sm:$0xff]
    %v66 = vld [vmem:[%s1 + $0x158] sm:$0xff]
    %v67 = vld [vmem:[%s1 + $0x160] sm:$0xff]
    %v68 = vld [vmem:[%s1 + $0x168] sm:$0xff]
    %v69 = vld [vmem:[%s1 + $0x170] sm:$0xff]
    %v70 = vld [vmem:[%s1 + $0x178] sm:$0xff]
    %v71 = vld [vmem:[%s1 + $0x180] sm:$0xff]
    %v72 = vld [vmem:[%s1 + $0x188] sm:$0xff]
    %v73 = vld [vmem:[%s1 + $0x190] sm:$0xff]
    %v74 = vld [vmem:[%s1 + $0x198] sm:$0xff]
    %v75 = vld [vmem:[%s1 + $0x1a0] sm:$0xff]
    %v76 = vld [vmem:[%s1 + $0x1a8] sm:$0xff]
    %v77 = vld [vmem:[%s1 + $0x1b0] sm:$0xff]
    %v78 = vld [vmem:[%s1 + $0x1b8] sm:$0xff]
    %v79 = vld [vmem:[%s1 + $0x1c0] sm:$0xff]
    %v80 = vld [vmem:[%s1 + $0x1c8] sm:$0xff]
    %v81 = vld [vmem:[%s1 + $0x1d0] sm:$0xff]
    %v82 = vld [vmem:[%s1 + $0x1d8] sm:$0xff]
    %v83 = vld [vmem:[%s1 + $0x1e0] sm:$0xff]
    %v84 = vld [vmem:[%s1 + $0x1e8] sm:$0xff]
    %v85 = vld [vmem:[%s1 + $0x1f0] sm:$0xff]
    %v86 = vld [vmem:[%s1 + $0x1f8] sm:$0xff]
    %v87 = vld [vmem:[%s1 + $0x200] sm:$0xff]
    %v88 = vld [vmem:[%s1 + $0x208] sm:$0xff]
    %v89 = vld [vmem:[%s1 + $0x210] sm:$0xff]
    %v90 = vld [vmem:[%s1 + $0x218] sm:$0xff]
    %v91 = vld [vmem:[%s1 + $0x220] sm:$0xff]
    %v92 = vld [vmem:[%s1 + $0x228] sm:$0xff]
    %v93 = vld [vmem:[%s1 + $0x230] sm:$0xff]
    %v94 = vld [vmem:[%s1 + $0x238] sm:$0xff]
    %v95 = vld [vmem:[%s1 + $0x240] sm:$0xff]
    %v96 = vld [vmem:[%s1 + $0x248] sm:$0xff]
    %v97 = vld [vmem:[%s1 + $0x250] sm:$0xff]
    %v98 = vld [vmem:[%s1 + $0x258] sm:$0xff]
    %v99 = vld [vmem:[%s1 + $0x260] sm:$0xff]
    %v100 = vld [vmem:[%s1 + $0x268] sm:$0xff]
    %v101 = vld [vmem:[%s1 + $0x270] sm:$0xff]
    %v102 = vld [vmem:[%s1 + $0x278] sm:$0xff]
    %v103 = vld [vmem:[%s1 + $0x280] sm:$0xff]
    %v104 = vld [vmem:[%s1 + $0x288] sm:$0xff]
    %v105 = vld [vmem:[%s1 + $0x290] sm:$0xff]
    %v106 = vld [vmem:[%s1 + $0x298] sm:$0xff]
    %v107 = vld [vmem:[%s1 + $0x2a0] sm:$0xff]
    %v108 = vld [vmem:[%s1 + $0x2a8] sm:$0xff]
    %v109 = vld [vmem:[%s1 + $0x2b0] sm:$0xff]
    %v110 = vld [vmem:[%s1 + $0x2b8] sm:$0xff]
    %v111 = vld [vmem:[%s1 + $0x2c0] sm:$0xff]
    %v112 = vld [vmem:[%s1 + $0x2c8] sm:$0xff]
    %v113 = vld [vmem:[%s1 + $0x2d0] sm:$0xff]
    %v114 = vld [vmem:[%s1 + $0x2d8] sm:$0xff]
    %v115 = vld [vmem:[%s1 + $0x2e0] sm:$0xff]
    %v116 = vld [vmem:[%s1 + $0x2e8] sm:$0xff]
    %v117 = vld [vmem:[%s1 + $0x2f0] sm:$0xff]
    %v118 = vld [vmem:[%s1 + $0x2f8] sm:$0xff]
    %v119 = vld [vmem:[%s1 + $0x300] sm:$0xff]
    %v120 = vld [vmem:[%s1 + $0x308] sm:$0xff]
    %v121 = vld [vmem:[%s1 + $0x310] sm:$0xff]
    %v122 = vld [vmem:[%s1 + $0x318] sm:$0xff]
    %v123 = vld [vmem:[%s1 + $0x320] sm:$0xff]
    %v124 = vld [vmem:[%s1 + $0x328] sm:$0xff]
    %v125 = vld [vmem:[%s1 + $0x330] sm:$0xff]
    %v126 = vld [vmem:[%s1 + $0x338] sm:$0xff]
    %v127 = vld [vmem:[%s1 + $0x340] sm:$0xff]
    %v128 = vld [vmem:[%s1 + $0x348] sm:$0xff]
    %v129 = vld [vmem:[%s1 + $0x350] sm:$0xff]
    %v130 = vld [vmem:[%s1 + $0x358] sm:$0xff]
    %v131 = vld [vmem:[%s1 + $0x360] sm:$0xff]
    %v132 = vld [vmem:[%s1 + $0x368] sm:$0xff]
    %v133 = vld [vmem:[%s1 + $0x370] sm:$0xff]
    %v134 = vld [vmem:[%s1 + $0x378] sm:$0xff]
    %v135 = vld [vmem:[%s1 + $0x380] sm:$0xff]
    %v136 = vld [vmem:[%s1 + $0x388] sm:$0xff]
    %v137 = vld [vmem:[%s1 + $0x390] sm:$0xff]
    %v138 = vld [vmem:[%s1 + $0x398] sm:$0xff]
    %v139 = vld [vmem:[%s1 + $0x3a0] sm:$0xff]
    %v140 = vld [vmem:[%s1 + $0x3a8] sm:$0xff]
    %v141 = vld [vmem:[%s1 + $0x3b0] sm:$0xff]
    %v142 = vld [vmem:[%s1 + $0x3b8] sm:$0xff]
    %v143 = vld [vmem:[%s1 + $0x3c0] sm:$0xff]
    %v144 = vld [vmem:[%s1 + $0x3c8] sm:$0xff]
    %v145 = vld [vmem:[%s1 + $0x3d0] sm:$0xff]
    %v146 = vld [vmem:[%s1 + $0x3d8] sm:$0xff]
    %v147 = vld [vmem:[%s1 + $0x3e0] sm:$0xff]
    %v148 = vld [vmem:[%s1 + $0x3e8] sm:$0xff]
    %v149 = vld [vmem:[%s1 + $0x3f0] sm:$0xff]
    %v150 = vld [vmem:[%s1 + $0x3f8] sm:$0xff]
    %v151 = vld [vmem:[%s1 + $0x400] sm:$0xff]
    %v152 = vld [vmem:[%s1 + $0x408] sm:$0xff]
    %v153 = vld [vmem:[%s1 + $0x410] sm:$0xff]
    %v154 = vld [vmem:[%s1 + $0x418] sm:$0xff]
    %v155 = vld [vmem:[%s1 + $0x420] sm:$0xff]
    %v156 = vld [vmem:[%s1 + $0x428] sm:$0xff]
    %v157 = vld [vmem:[%s1 + $0x430] sm:$0xff]
    %v158 = vld [vmem:[%s1 + $0x438] sm:$0xff]
    %v159 = vld [vmem:[%s1 + $0x440] sm:$0xff]
    %v160 = vld [vmem:[%s1 + $0x448] sm:$0xff]
    %v161 = vld [vmem:[%s1 + $0x450] sm:$0xff]
    %v162 = vld [vmem:[%s1 + $0x458] sm:$0xff]
    %v163 = vld [vmem:[%s1 + $0x460] sm:$0xff]
    %v164 = vld [vmem:[%s1 + $0x468] sm:$0xff]
    %v165 = vld [vmem:[%s1 + $0x470] sm:$0xff]
    %v166 = vld [vmem:[%s1 + $0x478] sm:$0xff]
    %v167 = vld [vmem:[%s2] sm:$0xf]
    %v169 = vlaneseq
    %v170 = vshrl.u32 %v169, 7
    %v171 = vsub.s32 0, %v170
    %v172 = vrot.slane %v167, %v171
    %v173 = vlaneseq
    %v174 = vshrl.u32 %v173, 7
    %v175 = vsub.s32 1, %v174
    %v176 = vrot.slane %v167, %v175
    %v177 = vlaneseq
    %v178 = vshrl.u32 %v177, 7
    %v179 = vsub.s32 2, %v178
    %v180 = vrot.slane %v167, %v179
    %v181 = vlaneseq
    %v182 = vshrl.u32 %v181, 7
    %v183 = vsub.s32 3, %v182
    %v184 = vrot.slane %v167, %v183
    %v190 = vcombine.high %v22, %v22
    %v192 = vunpack.c.l.s4 1966171168
    %v193 = vunpack.c.0.s8 %v192
    %v194 = vlaneseq
    %v195 = vshrl.u32 %v194, 7
    %v196 = vsub.s32 %v193, %v195
    %v197 = vrot.slane %v22, %v196
    %v199 = vunpack.c.l.s4 1966171168
    %v200 = vunpack.c.0.s8 %v199
    %v201 = vlaneseq
    %v202 = vshrl.u32 %v201, 7
    %v203 = vsub.s32 %v200, %v202
    %v204 = vrot.slane %v190, %v203
    %v205 = vcombine.high %v197, %v197
    %v207 = vunpack.c.l.s4 1966171168
    %v208 = vunpack.c.0.s8 %v207
    %v209 = vlaneseq
    %v210 = vshrl.u32 %v209, 7
    %v211 = vsub.s32 %v208, %v210
    %v212 = vrot.slane %v197, %v211
    %v214 = vunpack.c.l.s4 1966171168
    %v215 = vunpack.c.0.s8 %v214
    %v216 = vlaneseq
    %v217 = vshrl.u32 %v216, 7
    %v218 = vsub.s32 %v215, %v217
    %v219 = vrot.slane %v204, %v218
    %v221 = vunpack.c.l.s4 1966171168
    %v222 = vunpack.c.0.s8 %v221
    %v223 = vlaneseq
    %v224 = vshrl.u32 %v223, 7
    %v225 = vsub.s32 %v222, %v224
    %v226 = vrot.slane %v205, %v225
    %v227 = vcombine.high %v212, %v212
    %v228 = vcombine.high %v226, %v226
    %v377 = vunpack.c.l.b16 %v23
    %v378 = vunpack.c.h.b16 %v23
    %v379 = vunpack.c.l.b16 %v24
    %v380 = vunpack.c.h.b16 %v24
    %v381 = vunpack.c.l.b16 %v25
    %v382 = vunpack.c.h.b16 %v25
    %v383 = vunpack.c.l.b16 %v26
    %v384 = vunpack.c.h.b16 %v26
    %v385 = vunpack.c.l.b16 %v27
    %v386 = vunpack.c.h.b16 %v27
    %v387 = vunpack.c.l.b16 %v28
    %v388 = vunpack.c.h.b16 %v28
    %v389 = vunpack.c.l.b16 %v29
    %v390 = vunpack.c.h.b16 %v29
    %v391 = vunpack.c.l.b16 %v30
    %v392 = vunpack.c.h.b16 %v30
    %v393 = vunpack.c.l.b16 %v31
    %v394 = vunpack.c.h.b16 %v31
    %v395 = vunpack.c.l.b16 %v32
    %v396 = vunpack.c.h.b16 %v32
    %v397 = vunpack.c.l.b16 %v33
    %v398 = vunpack.c.h.b16 %v33
    %v399 = vunpack.c.l.b16 %v34
    %v400 = vunpack.c.h.b16 %v34
    %v401 = vunpack.c.l.b16 %v35
    %v402 = vunpack.c.h.b16 %v35
    %v403 = vunpack.c.l.b16 %v36
    %v404 = vunpack.c.h.b16 %v36
    %v405 = vunpack.c.l.b16 %v37
    %v406 = vunpack.c.h.b16 %v37
    %v407 = vunpack.c.l.b16 %v38
    %v408 = vunpack.c.h.b16 %v38
    %v409 = vunpack.c.l.b16 %v39
    %v410 = vunpack.c.h.b16 %v39
    %v411 = vunpack.c.l.b16 %v40
    %v412 = vunpack.c.h.b16 %v40
    %v413 = vunpack.c.l.b16 %v41
    %v414 = vunpack.c.h.b16 %v41
    %v415 = vunpack.c.l.b16 %v42
    %v416 = vunpack.c.h.b16 %v42
    %v417 = vunpack.c.l.b16 %v43
    %v418 = vunpack.c.h.b16 %v43
    %v419 = vunpack.c.l.b16 %v44
    %v420 = vunpack.c.h.b16 %v44
    %v421 = vunpack.c.l.b16 %v45
    %v422 = vunpack.c.h.b16 %v45
    %v423 = vunpack.c.l.b16 %v46
    %v424 = vunpack.c.h.b16 %v46
    %v425 = vunpack.c.l.b16 %v47
    %v426 = vunpack.c.h.b16 %v47
    %v427 = vunpack.c.l.b16 %v48
    %v428 = vunpack.c.h.b16 %v48
    %v429 = vunpack.c.l.b16 %v49
    %v430 = vunpack.c.h.b16 %v49
    %v431 = vunpack.c.l.b16 %v50
    %v432 = vunpack.c.h.b16 %v50
    %v433 = vunpack.c.l.b16 %v51
    %v434 = vunpack.c.h.b16 %v51
    %v435 = vunpack.c.l.b16 %v52
    %v436 = vunpack.c.h.b16 %v52
    %v437 = vunpack.c.l.b16 %v53
    %v438 = vunpack.c.h.b16 %v53
    %v439 = vunpack.c.l.b16 %v54
    %v440 = vunpack.c.h.b16 %v54
    %v441 = vunpack.c.l.b16 %v55
    %v442 = vunpack.c.h.b16 %v55
    %v443 = vunpack.c.l.b16 %v56
    %v444 = vunpack.c.h.b16 %v56
    %v445 = vunpack.c.l.b16 %v57
    %v446 = vunpack.c.h.b16 %v57
    %v447 = vunpack.c.l.b16 %v58
    %v448 = vunpack.c.h.b16 %v58
    %v449 = vunpack.c.l.b16 %v59
    %v450 = vunpack.c.h.b16 %v59
    %v451 = vunpack.c.l.b16 %v60
    %v452 = vunpack.c.h.b16 %v60
    %v453 = vunpack.c.l.b16 %v61
    %v454 = vunpack.c.h.b16 %v61
    %v455 = vunpack.c.l.b16 %v62
    %v456 = vunpack.c.h.b16 %v62
    %v457 = vunpack.c.l.b16 %v63
    %v458 = vunpack.c.h.b16 %v63
    %v459 = vunpack.c.l.b16 %v64
    %v460 = vunpack.c.h.b16 %v64
    %v461 = vunpack.c.l.b16 %v65
    %v462 = vunpack.c.h.b16 %v65
    %v463 = vunpack.c.l.b16 %v66
    %v464 = vunpack.c.h.b16 %v66
    %v465 = vunpack.c.l.b16 %v67
    %v466 = vunpack.c.h.b16 %v67
    %v467 = vunpack.c.l.b16 %v68
    %v468 = vunpack.c.h.b16 %v68
    %v469 = vunpack.c.l.b16 %v69
    %v470 = vunpack.c.h.b16 %v69
    %v471 = vunpack.c.l.b16 %v70
    %v472 = vunpack.c.h.b16 %v70
    %v473 = vunpack.c.l.b16 %v71
    %v474 = vunpack.c.h.b16 %v71
    %v475 = vunpack.c.l.b16 %v72
    %v476 = vunpack.c.h.b16 %v72
    %v477 = vunpack.c.l.b16 %v73
    %v478 = vunpack.c.h.b16 %v73
    %v479 = vunpack.c.l.b16 %v74
    %v480 = vunpack.c.h.b16 %v74
    %v481 = vunpack.c.l.b16 %v75
    %v482 = vunpack.c.h.b16 %v75
    %v483 = vunpack.c.l.b16 %v76
    %v484 = vunpack.c.h.b16 %v76
    %v485 = vunpack.c.l.b16 %v77
    %v486 = vunpack.c.h.b16 %v77
    %v487 = vunpack.c.l.b16 %v78
    %v488 = vunpack.c.h.b16 %v78
    %v489 = vunpack.c.l.b16 %v79
    %v490 = vunpack.c.h.b16 %v79
    %v491 = vunpack.c.l.b16 %v80
    %v492 = vunpack.c.h.b16 %v80
    %v493 = vunpack.c.l.b16 %v81
    %v494 = vunpack.c.h.b16 %v81
    %v495 = vunpack.c.l.b16 %v82
    %v496 = vunpack.c.h.b16 %v82
    %v497 = vunpack.c.l.b16 %v83
    %v498 = vunpack.c.h.b16 %v83
    %v499 = vunpack.c.l.b16 %v84
    %v500 = vunpack.c.h.b16 %v84
    %v501 = vunpack.c.l.b16 %v85
    %v502 = vunpack.c.h.b16 %v85
    %v503 = vunpack.c.l.b16 %v86
    %v504 = vunpack.c.h.b16 %v86
    %v505 = vunpack.c.l.b16 %v87
    %v506 = vunpack.c.h.b16 %v87
    %v507 = vunpack.c.l.b16 %v88
    %v508 = vunpack.c.h.b16 %v88
    %v509 = vunpack.c.l.b16 %v89
    %v510 = vunpack.c.h.b16 %v89
    %v511 = vunpack.c.l.b16 %v90
    %v512 = vunpack.c.h.b16 %v90
    %v513 = vunpack.c.l.b16 %v91
    %v514 = vunpack.c.h.b16 %v91
    %v515 = vunpack.c.l.b16 %v92
    %v516 = vunpack.c.h.b16 %v92
    %v517 = vunpack.c.l.b16 %v93
    %v518 = vunpack.c.h.b16 %v93
    %v519 = vunpack.c.l.b16 %v94
    %v520 = vunpack.c.h.b16 %v94
    %v521 = vunpack.c.l.b16 %v95
    %v522 = vunpack.c.h.b16 %v95
    %v523 = vunpack.c.l.b16 %v96
    %v524 = vunpack.c.h.b16 %v96
    %v525 = vunpack.c.l.b16 %v97
    %v526 = vunpack.c.h.b16 %v97
    %v527 = vunpack.c.l.b16 %v98
    %v528 = vunpack.c.h.b16 %v98
    %v529 = vunpack.c.l.b16 %v99
    %v530 = vunpack.c.h.b16 %v99
    %v531 = vunpack.c.l.b16 %v100
    %v532 = vunpack.c.h.b16 %v100
    %v533 = vunpack.c.l.b16 %v101
    %v534 = vunpack.c.h.b16 %v101
    %v535 = vunpack.c.l.b16 %v102
    %v536 = vunpack.c.h.b16 %v102
    %v537 = vunpack.c.l.b16 %v103
    %v538 = vunpack.c.h.b16 %v103
    %v539 = vunpack.c.l.b16 %v104
    %v540 = vunpack.c.h.b16 %v104
    %v541 = vunpack.c.l.b16 %v105
    %v542 = vunpack.c.h.b16 %v105
    %v543 = vunpack.c.l.b16 %v106
    %v544 = vunpack.c.h.b16 %v106
    %v545 = vunpack.c.l.b16 %v107
    %v546 = vunpack.c.h.b16 %v107
    %v547 = vunpack.c.l.b16 %v108
    %v548 = vunpack.c.h.b16 %v108
    %v549 = vunpack.c.l.b16 %v109
    %v550 = vunpack.c.h.b16 %v109
    %v551 = vunpack.c.l.b16 %v110
    %v552 = vunpack.c.h.b16 %v110
    %v553 = vunpack.c.l.b16 %v111
    %v554 = vunpack.c.h.b16 %v111
    %v555 = vunpack.c.l.b16 %v112
    %v556 = vunpack.c.h.b16 %v112
    %v557 = vunpack.c.l.b16 %v113
    %v558 = vunpack.c.h.b16 %v113
    %v559 = vunpack.c.l.b16 %v114
    %v560 = vunpack.c.h.b16 %v114
    %v561 = vunpack.c.l.b16 %v115
    %v562 = vunpack.c.h.b16 %v115
    %v563 = vunpack.c.l.b16 %v116
    %v564 = vunpack.c.h.b16 %v116
    %v565 = vunpack.c.l.b16 %v117
    %v566 = vunpack.c.h.b16 %v117
    %v567 = vunpack.c.l.b16 %v118
    %v568 = vunpack.c.h.b16 %v118
    %v569 = vunpack.c.l.b16 %v119
    %v570 = vunpack.c.h.b16 %v119
    %v571 = vunpack.c.l.b16 %v120
    %v572 = vunpack.c.h.b16 %v120
    %v573 = vunpack.c.l.b16 %v121
    %v574 = vunpack.c.h.b16 %v121
    %v575 = vunpack.c.l.b16 %v122
    %v576 = vunpack.c.h.b16 %v122
    %v577 = vunpack.c.l.b16 %v123
    %v578 = vunpack.c.h.b16 %v123
    %v579 = vunpack.c.l.b16 %v124
    %v580 = vunpack.c.h.b16 %v124
    %v581 = vunpack.c.l.b16 %v125
    %v582 = vunpack.c.h.b16 %v125
    %v583 = vunpack.c.l.b16 %v126
    %v584 = vunpack.c.h.b16 %v126
    %v585 = vunpack.c.l.b16 %v127
    %v586 = vunpack.c.h.b16 %v127
    %v587 = vunpack.c.l.b16 %v128
    %v588 = vunpack.c.h.b16 %v128
    %v589 = vunpack.c.l.b16 %v129
    %v590 = vunpack.c.h.b16 %v129
    %v591 = vunpack.c.l.b16 %v130
    %v592 = vunpack.c.h.b16 %v130
    %v593 = vunpack.c.l.b16 %v131
    %v594 = vunpack.c.h.b16 %v131
    %v595 = vunpack.c.l.b16 %v132
    %v596 = vunpack.c.h.b16 %v132
    %v597 = vunpack.c.l.b16 %v133
    %v598 = vunpack.c.h.b16 %v133
    %v599 = vunpack.c.l.b16 %v134
    %v600 = vunpack.c.h.b16 %v134
    %v601 = vunpack.c.l.b16 %v135
    %v602 = vunpack.c.h.b16 %v135
    %v603 = vunpack.c.l.b16 %v136
    %v604 = vunpack.c.h.b16 %v136
    %v605 = vunpack.c.l.b16 %v137
    %v606 = vunpack.c.h.b16 %v137
    %v607 = vunpack.c.l.b16 %v138
    %v608 = vunpack.c.h.b16 %v138
    %v609 = vunpack.c.l.b16 %v139
    %v610 = vunpack.c.h.b16 %v139
    %v611 = vunpack.c.l.b16 %v140
    %v612 = vunpack.c.h.b16 %v140
    %v613 = vunpack.c.l.b16 %v141
    %v614 = vunpack.c.h.b16 %v141
    %v615 = vunpack.c.l.b16 %v142
    %v616 = vunpack.c.h.b16 %v142
    %v617 = vunpack.c.l.b16 %v143
    %v618 = vunpack.c.h.b16 %v143
    %v619 = vunpack.c.l.b16 %v144
    %v620 = vunpack.c.h.b16 %v144
    %v621 = vunpack.c.l.b16 %v145
    %v622 = vunpack.c.h.b16 %v145
    %v623 = vunpack.c.l.b16 %v146
    %v624 = vunpack.c.h.b16 %v146
    %v625 = vunpack.c.l.b16 %v147
    %v626 = vunpack.c.h.b16 %v147
    %v627 = vunpack.c.l.b16 %v148
    %v628 = vunpack.c.h.b16 %v148
    %v629 = vunpack.c.l.b16 %v149
    %v630 = vunpack.c.h.b16 %v149
    %v631 = vunpack.c.l.b16 %v150
    %v632 = vunpack.c.h.b16 %v150
    %v633 = vunpack.c.l.b16 %v151
    %v634 = vunpack.c.h.b16 %v151
    %v635 = vunpack.c.l.b16 %v152
    %v636 = vunpack.c.h.b16 %v152
    %v637 = vunpack.c.l.b16 %v153
    %v638 = vunpack.c.h.b16 %v153
    %v639 = vunpack.c.l.b16 %v154
    %v640 = vunpack.c.h.b16 %v154
    %v641 = vunpack.c.l.b16 %v155
    %v642 = vunpack.c.h.b16 %v155
    %v643 = vunpack.c.l.b16 %v156
    %v644 = vunpack.c.h.b16 %v156
    %v645 = vunpack.c.l.b16 %v157
    %v646 = vunpack.c.h.b16 %v157
    %v647 = vunpack.c.l.b16 %v158
    %v648 = vunpack.c.h.b16 %v158
    %v649 = vunpack.c.l.b16 %v159
    %v650 = vunpack.c.h.b16 %v159
    %v651 = vunpack.c.l.b16 %v160
    %v652 = vunpack.c.h.b16 %v160
    %v653 = vunpack.c.l.b16 %v161
    %v654 = vunpack.c.h.b16 %v161
    %v655 = vunpack.c.l.b16 %v162
    %v656 = vunpack.c.h.b16 %v162
    %v657 = vunpack.c.l.b16 %v163
    %v658 = vunpack.c.h.b16 %v163
    %v659 = vunpack.c.l.b16 %v164
    %v660 = vunpack.c.h.b16 %v164
    %v661 = vunpack.c.l.b16 %v165
    %v662 = vunpack.c.h.b16 %v165
    %v663 = vunpack.c.l.b16 %v166
    %v664 = vunpack.c.h.b16 %v166
    %v665 = vpack.c.b16 %v381, %v377
    %v666 = vpack.c.b16 %v382, %v378
    %v667 = vpack.c.b16 %v383, %v379
    %v668 = vpack.c.b16 %v384, %v380
    %v669 = vpack.c.b16 %v389, %v385
    %v670 = vpack.c.b16 %v390, %v386
    %v671 = vpack.c.b16 %v391, %v387
    %v672 = vpack.c.b16 %v392, %v388
    %v673 = vpack.c.b16 %v397, %v393
    %v674 = vpack.c.b16 %v398, %v394
    %v675 = vpack.c.b16 %v399, %v395
    %v676 = vpack.c.b16 %v400, %v396
    %v677 = vpack.c.b16 %v405, %v401
    %v678 = vpack.c.b16 %v406, %v402
    %v679 = vpack.c.b16 %v407, %v403
    %v680 = vpack.c.b16 %v408, %v404
    %v681 = vpack.c.b16 %v413, %v409
    %v682 = vpack.c.b16 %v414, %v410
    %v683 = vpack.c.b16 %v415, %v411
    %v684 = vpack.c.b16 %v416, %v412
    %v685 = vpack.c.b16 %v421, %v417
    %v686 = vpack.c.b16 %v422, %v418
    %v687 = vpack.c.b16 %v423, %v419
    %v688 = vpack.c.b16 %v424, %v420
    %v689 = vpack.c.b16 %v429, %v425
    %v690 = vpack.c.b16 %v430, %v426
    %v691 = vpack.c.b16 %v431, %v427
    %v692 = vpack.c.b16 %v432, %v428
    %v693 = vpack.c.b16 %v437, %v433
    %v694 = vpack.c.b16 %v438, %v434
    %v695 = vpack.c.b16 %v439, %v435
    %v696 = vpack.c.b16 %v440, %v436
    %v697 = vpack.c.b16 %v445, %v441
    %v698 = vpack.c.b16 %v446, %v442
    %v699 = vpack.c.b16 %v447, %v443
    %v700 = vpack.c.b16 %v448, %v444
    %v701 = vpack.c.b16 %v453, %v449
    %v702 = vpack.c.b16 %v454, %v450
    %v703 = vpack.c.b16 %v455, %v451
    %v704 = vpack.c.b16 %v456, %v452
    %v705 = vpack.c.b16 %v461, %v457
    %v706 = vpack.c.b16 %v462, %v458
    %v707 = vpack.c.b16 %v463, %v459
    %v708 = vpack.c.b16 %v464, %v460
    %v709 = vpack.c.b16 %v469, %v465
    %v710 = vpack.c.b16 %v470, %v466
    %v711 = vpack.c.b16 %v471, %v467
    %v712 = vpack.c.b16 %v472, %v468
    %v713 = vpack.c.b16 %v477, %v473
    %v714 = vpack.c.b16 %v478, %v474
    %v715 = vpack.c.b16 %v479, %v475
    %v716 = vpack.c.b16 %v480, %v476
    %v717 = vpack.c.b16 %v485, %v481
    %v718 = vpack.c.b16 %v486, %v482
    %v719 = vpack.c.b16 %v487, %v483
    %v720 = vpack.c.b16 %v488, %v484
    %v721 = vpack.c.b16 %v493, %v489
    %v722 = vpack.c.b16 %v494, %v490
    %v723 = vpack.c.b16 %v495, %v491
    %v724 = vpack.c.b16 %v496, %v492
    %v725 = vpack.c.b16 %v501, %v497
    %v726 = vpack.c.b16 %v502, %v498
    %v727 = vpack.c.b16 %v503, %v499
    %v728 = vpack.c.b16 %v504, %v500
    %v729 = vpack.c.b16 %v509, %v505
    %v730 = vpack.c.b16 %v510, %v506
    %v731 = vpack.c.b16 %v511, %v507
    %v732 = vpack.c.b16 %v512, %v508
    %v733 = vpack.c.b16 %v517, %v513
    %v734 = vpack.c.b16 %v518, %v514
    %v735 = vpack.c.b16 %v519, %v515
    %v736 = vpack.c.b16 %v520, %v516
    %v737 = vpack.c.b16 %v525, %v521
    %v738 = vpack.c.b16 %v526, %v522
    %v739 = vpack.c.b16 %v527, %v523
    %v740 = vpack.c.b16 %v528, %v524
    %v741 = vpack.c.b16 %v533, %v529
    %v742 = vpack.c.b16 %v534, %v530
    %v743 = vpack.c.b16 %v535, %v531
    %v744 = vpack.c.b16 %v536, %v532
    %v745 = vpack.c.b16 %v541, %v537
    %v746 = vpack.c.b16 %v542, %v538
    %v747 = vpack.c.b16 %v543, %v539
    %v748 = vpack.c.b16 %v544, %v540
    %v749 = vpack.c.b16 %v549, %v545
    %v750 = vpack.c.b16 %v550, %v546
    %v751 = vpack.c.b16 %v551, %v547
    %v752 = vpack.c.b16 %v552, %v548
    %v753 = vpack.c.b16 %v557, %v553
    %v754 = vpack.c.b16 %v558, %v554
    %v755 = vpack.c.b16 %v559, %v555
    %v756 = vpack.c.b16 %v560, %v556
    %v757 = vpack.c.b16 %v565, %v561
    %v758 = vpack.c.b16 %v566, %v562
    %v759 = vpack.c.b16 %v567, %v563
    %v760 = vpack.c.b16 %v568, %v564
    %v761 = vpack.c.b16 %v573, %v569
    %v762 = vpack.c.b16 %v574, %v570
    %v763 = vpack.c.b16 %v575, %v571
    %v764 = vpack.c.b16 %v576, %v572
    %v765 = vpack.c.b16 %v581, %v577
    %v766 = vpack.c.b16 %v582, %v578
    %v767 = vpack.c.b16 %v583, %v579
    %v768 = vpack.c.b16 %v584, %v580
    %v769 = vpack.c.b16 %v589, %v585
    %v770 = vpack.c.b16 %v590, %v586
    %v771 = vpack.c.b16 %v591, %v587
    %v772 = vpack.c.b16 %v592, %v588
    %v773 = vpack.c.b16 %v597, %v593
    %v774 = vpack.c.b16 %v598, %v594
    %v775 = vpack.c.b16 %v599, %v595
    %v776 = vpack.c.b16 %v600, %v596
    %v777 = vpack.c.b16 %v605, %v601
    %v778 = vpack.c.b16 %v606, %v602
    %v779 = vpack.c.b16 %v607, %v603
    %v780 = vpack.c.b16 %v608, %v604
    %v781 = vpack.c.b16 %v613, %v609
    %v782 = vpack.c.b16 %v614, %v610
    %v783 = vpack.c.b16 %v615, %v611
    %v784 = vpack.c.b16 %v616, %v612
    %v785 = vpack.c.b16 %v621, %v617
    %v786 = vpack.c.b16 %v622, %v618
    %v787 = vpack.c.b16 %v623, %v619
    %v788 = vpack.c.b16 %v624, %v620
    %v789 = vpack.c.b16 %v629, %v625
    %v790 = vpack.c.b16 %v630, %v626
    %v791 = vpack.c.b16 %v631, %v627
    %v792 = vpack.c.b16 %v632, %v628
    %v793 = vpack.c.b16 %v637, %v633
    %v794 = vpack.c.b16 %v638, %v634
    %v795 = vpack.c.b16 %v639, %v635
    %v796 = vpack.c.b16 %v640, %v636
    %v797 = vpack.c.b16 %v645, %v641
    %v798 = vpack.c.b16 %v646, %v642
    %v799 = vpack.c.b16 %v647, %v643
    %v800 = vpack.c.b16 %v648, %v644
    %v801 = vpack.c.b16 %v653, %v649
    %v802 = vpack.c.b16 %v654, %v650
    %v803 = vpack.c.b16 %v655, %v651
    %v804 = vpack.c.b16 %v656, %v652
    %v805 = vpack.c.b16 %v661, %v657
    %v806 = vpack.c.b16 %v662, %v658
    %v807 = vpack.c.b16 %v663, %v659
    %v808 = vpack.c.b16 %v664, %v660
    %vm953 = vcmask 523264
    %v955 = vsel %vm953, %v219, 0
    %957 = vmatprep.subr.bf16.mxu0 %v666
    %958 = vmatpush1.bf16.msra.mxu0 %v665
    %959 = vmatprep.subr.bf16.mxu0 %v670
    %960 = vmatpush1.bf16.msra.mxu0 %v669
    %961 = vmatprep.subr.bf16.mxu0 %v674
    %962 = vmatpush1.bf16.msra.mxu0 %v673
    %963 = vmatprep.subr.bf16.mxu0 %v678
    %964 = vmatpush1.bf16.msra.mxu0 %v677
    %965 = vmatprep.subr.bf16.mxu0 %v682
    %966 = vmatpush1.bf16.msra.mxu0 %v681
    %967 = vmatprep.subr.bf16.mxu0 %v686
    %968 = vmatpush1.bf16.msra.mxu0 %v685
    %969 = vmatprep.subr.bf16.mxu0 %v690
    %970 = vmatpush1.bf16.msra.mxu0 %v689
    %971 = vmatprep.subr.bf16.mxu0 %v694
    %972 = vmatpush1.bf16.msra.mxu0 %v693
    %973 = vmatprep.subr.bf16.mxu0 %v698
    %974 = vmatpush1.bf16.msra.mxu0 %v697
    %975 = vmatprep.subr.bf16.mxu0 %v702
    %976 = vmatpush1.bf16.msra.mxu0 %v701
    %977 = vmatprep.subr.bf16.mxu0 %v706
    %978 = vmatpush1.bf16.msra.mxu0 %v705
    %979 = vmatprep.subr.bf16.mxu0 %v710
    %980 = vmatpush1.bf16.msra.mxu0 %v709
    %981 = vmatprep.subr.bf16.mxu0 %v714
    %982 = vmatpush1.bf16.msra.mxu0 %v713
    %983 = vmatprep.subr.bf16.mxu0 %v718
    %984 = vmatpush1.bf16.msra.mxu0 %v717
    %985 = vmatprep.subr.bf16.mxu0 %v722
    %986 = vmatpush1.bf16.msra.mxu0 %v721
    %987 = vmatprep.subr.bf16.mxu0 %v726
    %988 = vmatpush1.bf16.msra.mxu0 %v725
    %989 = vmatprep.mubr.bf16.mxu0 %v226
    %990 = vmatmul.mubr.bf16.gmra.mrb[0].mxu0 %v212
    %v991 = vpop.f32.mrb[0].mxu0
    %v992 = vadd.f32 %v172, %v991
    %v993 = vpop.f32.mrb[0].mxu0
    %v994 = vadd.f32 %v176, %v993
    %v995 = vpop.f32.mrb[0].mxu0
    %v996 = vpop.f32.mrb[0].mxu0
    %997 = vdwg.mxu0
    %998 = vmatprep.subr.bf16.mxu0 %v730
    %999 = vmatpush1.bf16.msra.mxu0 %v729
    %1000 = vmatprep.subr.bf16.mxu0 %v734
    %1001 = vmatpush1.bf16.msra.mxu0 %v733
    %1002 = vmatprep.subr.bf16.mxu0 %v738
    %1003 = vmatpush1.bf16.msra.mxu0 %v737
    %1004 = vmatprep.subr.bf16.mxu0 %v742
    %1005 = vmatpush1.bf16.msra.mxu0 %v741
    %1006 = vmatprep.subr.bf16.mxu0 %v746
    %1007 = vmatpush1.bf16.msra.mxu0 %v745
    %1008 = vmatprep.subr.bf16.mxu0 %v750
    %1009 = vmatpush1.bf16.msra.mxu0 %v749
    %1010 = vmatprep.subr.bf16.mxu0 %v754
    %1011 = vmatpush1.bf16.msra.mxu0 %v753
    %1012 = vmatprep.subr.bf16.mxu0 %v758
    %1013 = vmatpush1.bf16.msra.mxu0 %v757
    %1014 = vmatprep.subr.bf16.mxu0 %v762
    %1015 = vmatpush1.bf16.msra.mxu0 %v761
    %1016 = vmatprep.subr.bf16.mxu0 %v766
    %1017 = vmatpush1.bf16.msra.mxu0 %v765
    %1018 = vmatprep.subr.bf16.mxu0 %v770
    %1019 = vmatpush1.bf16.msra.mxu0 %v769
    %1020 = vmatprep.subr.bf16.mxu0 %v774
    %1021 = vmatpush1.bf16.msra.mxu0 %v773
    %1022 = vmatprep.subr.bf16.mxu0 %v778
    %1023 = vmatpush1.bf16.msra.mxu0 %v777
    %1024 = vmatprep.subr.bf16.mxu0 %v782
    %1025 = vmatpush1.bf16.msra.mxu0 %v781
    %1026 = vmatprep.subr.bf16.mxu0 %v786
    %1027 = vmatpush1.bf16.msra.mxu0 %v785
    %1028 = vmatprep.subr.bf16.mxu0 %v790
    %1029 = vmatpush1.bf16.msra.mxu0 %v789
    %1030 = vmatprep.mubr.bf16.mxu0 %v228
    %1031 = vmatmul.mubr.bf16.gmra.mrb[0].mxu0 %v227
    %v1032 = vpop.f32.mrb[0].mxu0
    %v1033 = vadd.f32 %v992, %v1032
    %v1034 = vpop.f32.mrb[0].mxu0
    %v1035 = vadd.f32 %v994, %v1034
    %v1036 = vpop.f32.mrb[0].mxu0
    %v1037 = vpop.f32.mrb[0].mxu0
    %1038 = vdwg.mxu0
    %1039 = vmatprep.subr.bf16.mxu0 %v794
    %1040 = vmatpush1.bf16.msra.mxu0 %v793
    %1041 = vmatprep.subr.bf16.mxu0 %v798
    %1042 = vmatpush1.bf16.msra.mxu0 %v797
    %1043 = vmatprep.subr.bf16.mxu0 %v802
    %1044 = vmatpush1.bf16.msra.mxu0 %v801
    %1045 = vmatprep.subr.bf16.mxu0 %v806
    %1046 = vmatpush1.bf16.msra.mxu0 %v805
    %1047 = vmatprep.subr.bf16.mxu0 0
    %1048 = vmatpush1.bf16.msra.mxu0 0
    %1049 = vmatprep.subr.bf16.mxu0 0
    %1050 = vmatpush1.bf16.msra.mxu0 0
    %1051 = vmatprep.subr.bf16.mxu0 0
    %1052 = vmatpush1.bf16.msra.mxu0 0
    %1053 = vmatprep.subr.bf16.mxu0 0
    %1054 = vmatpush1.bf16.msra.mxu0 0
    %1055 = vmatprep.subr.bf16.mxu0 0
    %1056 = vmatpush1.bf16.msra.mxu0 0
    %1057 = vmatprep.subr.bf16.mxu0 0
    %1058 = vmatpush1.bf16.msra.mxu0 0
    %1059 = vmatprep.subr.bf16.mxu0 0
    %1060 = vmatpush1.bf16.msra.mxu0 0
    %1061 = vmatprep.subr.bf16.mxu0 0
    %1062 = vmatpush1.bf16.msra.mxu0 0
    %1063 = vmatprep.subr.bf16.mxu0 0
    %1064 = vmatpush1.bf16.msra.mxu0 0
    %1065 = vmatprep.subr.bf16.mxu0 0
    %1066 = vmatpush1.bf16.msra.mxu0 0
    %1067 = vmatprep.subr.bf16.mxu0 0
    %1068 = vmatpush1.bf16.msra.mxu0 0
    %1069 = vmatprep.subr.bf16.mxu0 0
    %1070 = vmatpush1.bf16.msra.mxu0 0
    %1071 = vmatprep.mubr.bf16.mxu0 0
    %1072 = vmatmul.mubr.bf16.gmra.mrb[0].mxu0 %v955
    %v1073 = vpop.f32.mrb[0].mxu0
    %v1074 = vadd.f32 %v1033, %v1073
    %v1075 = vpop.f32.mrb[0].mxu0
    %v1076 = vadd.f32 %v1035, %v1075
    %v1077 = vpop.f32.mrb[0].mxu0
    %v1078 = vpop.f32.mrb[0].mxu0
    %1079 = vdwg.mxu0
    %1080 = vmatprep.subr.bf16.mxu0 %v668
    %1081 = vmatpush1.bf16.msra.mxu0 %v667
    %1082 = vmatprep.subr.bf16.mxu0 %v672
    %1083 = vmatpush1.bf16.msra.mxu0 %v671
    %1084 = vmatprep.subr.bf16.mxu0 %v676
    %1085 = vmatpush1.bf16.msra.mxu0 %v675
    %1086 = vmatprep.subr.bf16.mxu0 %v680
    %1087 = vmatpush1.bf16.msra.mxu0 %v679
    %1088 = vmatprep.subr.bf16.mxu0 %v684
    %1089 = vmatpush1.bf16.msra.mxu0 %v683
    %1090 = vmatprep.subr.bf16.mxu0 %v688
    %1091 = vmatpush1.bf16.msra.mxu0 %v687
    %1092 = vmatprep.subr.bf16.mxu0 %v692
    %1093 = vmatpush1.bf16.msra.mxu0 %v691
    %1094 = vmatprep.subr.bf16.mxu0 %v696
    %1095 = vmatpush1.bf16.msra.mxu0 %v695
    %1096 = vmatprep.subr.bf16.mxu0 %v700
    %1097 = vmatpush1.bf16.msra.mxu0 %v699
    %1098 = vmatprep.subr.bf16.mxu0 %v704
    %1099 = vmatpush1.bf16.msra.mxu0 %v703
    %1100 = vmatprep.subr.bf16.mxu0 %v708
    %1101 = vmatpush1.bf16.msra.mxu0 %v707
    %1102 = vmatprep.subr.bf16.mxu0 %v712
    %1103 = vmatpush1.bf16.msra.mxu0 %v711
    %1104 = vmatprep.subr.bf16.mxu0 %v716
    %1105 = vmatpush1.bf16.msra.mxu0 %v715
    %1106 = vmatprep.subr.bf16.mxu0 %v720
    %1107 = vmatpush1.bf16.msra.mxu0 %v719
    %1108 = vmatprep.subr.bf16.mxu0 %v724
    %1109 = vmatpush1.bf16.msra.mxu0 %v723
    %1110 = vmatprep.subr.bf16.mxu0 %v728
    %1111 = vmatpush1.bf16.msra.mxu0 %v727
    %1112 = vmatprep.mubr.bf16.mxu0 %v226
    %1113 = vmatmul.mubr.bf16.gmra.mrb[0].mxu0 %v212
    %v1114 = vpop.f32.mrb[0].mxu0
    %v1115 = vadd.f32 %v180, %v1114
    %v1116 = vpop.f32.mrb[0].mxu0
    %v1117 = vadd.f32 %v184, %v1116
    %v1118 = vpop.f32.mrb[0].mxu0
    %v1119 = vpop.f32.mrb[0].mxu0
    %1120 = vdwg.mxu0
    %1121 = vmatprep.subr.bf16.mxu0 %v732
    %1122 = vmatpush1.bf16.msra.mxu0 %v731
    %1123 = vmatprep.subr.bf16.mxu0 %v736
    %1124 = vmatpush1.bf16.msra.mxu0 %v735
    %1125 = vmatprep.subr.bf16.mxu0 %v740
    %1126 = vmatpush1.bf16.msra.mxu0 %v739
    %1127 = vmatprep.subr.bf16.mxu0 %v744
    %1128 = vmatpush1.bf16.msra.mxu0 %v743
    %1129 = vmatprep.subr.bf16.mxu0 %v748
    %1130 = vmatpush1.bf16.msra.mxu0 %v747
    %1131 = vmatprep.subr.bf16.mxu0 %v752
    %1132 = vmatpush1.bf16.msra.mxu0 %v751
    %1133 = vmatprep.subr.bf16.mxu0 %v756
    %1134 = vmatpush1.bf16.msra.mxu0 %v755
    %1135 = vmatprep.subr.bf16.mxu0 %v760
    %1136 = vmatpush1.bf16.msra.mxu0 %v759
    %1137 = vmatprep.subr.bf16.mxu0 %v764
    %1138 = vmatpush1.bf16.msra.mxu0 %v763
    %1139 = vmatprep.subr.bf16.mxu0 %v768
    %1140 = vmatpush1.bf16.msra.mxu0 %v767
    %1141 = vmatprep.subr.bf16.mxu0 %v772
    %1142 = vmatpush1.bf16.msra.mxu0 %v771
    %1143 = vmatprep.subr.bf16.mxu0 %v776
    %1144 = vmatpush1.bf16.msra.mxu0 %v775
    %1145 = vmatprep.subr.bf16.mxu0 %v780
    %1146 = vmatpush1.bf16.msra.mxu0 %v779
    %1147 = vmatprep.subr.bf16.mxu0 %v784
    %1148 = vmatpush1.bf16.msra.mxu0 %v783
    %1149 = vmatprep.subr.bf16.mxu0 %v788
    %1150 = vmatpush1.bf16.msra.mxu0 %v787
    %1151 = vmatprep.subr.bf16.mxu0 %v792
    %1152 = vmatpush1.bf16.msra.mxu0 %v791
    %1153 = vmatprep.mubr.bf16.mxu0 %v228
    %1154 = vmatmul.mubr.bf16.gmra.mrb[0].mxu0 %v227
    %v1155 = vpop.f32.mrb[0].mxu0
    %v1156 = vadd.f32 %v1115, %v1155
    %v1157 = vpop.f32.mrb[0].mxu0
    %v1158 = vadd.f32 %v1117, %v1157
    %v1159 = vpop.f32.mrb[0].mxu0
    %v1160 = vpop.f32.mrb[0].mxu0
    %1161 = vdwg.mxu0
    %1162 = vmatprep.subr.bf16.mxu0 %v796
    %1163 = vmatpush1.bf16.msra.mxu0 %v795
    %1164 = vmatprep.subr.bf16.mxu0 %v800
    %1165 = vmatpush1.bf16.msra.mxu0 %v799
    %1166 = vmatprep.subr.bf16.mxu0 %v804
    %1167 = vmatpush1.bf16.msra.mxu0 %v803
    %1168 = vmatprep.subr.bf16.mxu0 %v808
    %1169 = vmatpush1.bf16.msra.mxu0 %v807
    %1170 = vmatprep.subr.bf16.mxu0 0
    %1171 = vmatpush1.bf16.msra.mxu0 0
    %1172 = vmatprep.subr.bf16.mxu0 0
    %1173 = vmatpush1.bf16.msra.mxu0 0
    %1174 = vmatprep.subr.bf16.mxu0 0
    %1175 = vmatpush1.bf16.msra.mxu0 0
    %1176 = vmatprep.subr.bf16.mxu0 0
    %1177 = vmatpush1.bf16.msra.mxu0 0
    %1178 = vmatprep.subr.bf16.mxu0 0
    %1179 = vmatpush1.bf16.msra.mxu0 0
    %1180 = vmatprep.subr.bf16.mxu0 0
    %1181 = vmatpush1.bf16.msra.mxu0 0
    %1182 = vmatprep.subr.bf16.mxu0 0
    %1183 = vmatpush1.bf16.msra.mxu0 0
    %1184 = vmatprep.subr.bf16.mxu0 0
    %1185 = vmatpush1.bf16.msra.mxu0 0
    %1186 = vmatprep.subr.bf16.mxu0 0
    %1187 = vmatpush1.bf16.msra.mxu0 0
    %1188 = vmatprep.subr.bf16.mxu0 0
    %1189 = vmatpush1.bf16.msra.mxu0 0
    %1190 = vmatprep.subr.bf16.mxu0 0
    %1191 = vmatpush1.bf16.msra.mxu0 0
    %1192 = vmatprep.subr.bf16.mxu0 0
    %1193 = vmatpush1.bf16.msra.mxu0 0
    %1194 = vmatprep.mubr.bf16.mxu0 0
    %1195 = vmatmul.mubr.bf16.gmra.mrb[0].mxu0 %v955
    %v1196 = vpop.f32.mrb[0].mxu0
    %v1197 = vadd.f32 %v1156, %v1196
    %v1198 = vpop.f32.mrb[0].mxu0
    %v1199 = vadd.f32 %v1158, %v1198
    %v1200 = vpop.f32.mrb[0].mxu0
    %v1201 = vpop.f32.mrb[0].mxu0
    %1202 = vdwg.mxu0
    %v1203 = vmax.f32 %v1074, 0.0
    %v1204 = vmax.f32 %v1076, 0.0
    %v1205 = vmax.f32 %v1197, 0.0
    %v1206 = vmax.f32 %v1199, 0.0
    %v1207 = vpack.c.bf16 %v1203, %v1203
    %v1208 = vpack.c.bf16 %v1204, %v1204
    %v1209 = vpack.c.bf16 %v1205, %v1205
    %v1210 = vpack.c.bf16 %v1206, %v1206
    %v1211 = vld [vmem:[%s3] sm:$0xf]
    %v1212 = vld [vmem:[%s3 + $0x4] sm:$0xf]
    %v1213 = vld [vmem:[%s3 + $0x8] sm:$0xf]
    %v1214 = vld [vmem:[%s3 + $0xc] sm:$0xf]
    %v1215 = vld [vmem:[%s3 + $0x10] sm:$0xf]
    %v1216 = vld [vmem:[%s3 + $0x14] sm:$0xf]
    %v1217 = vld [vmem:[%s3 + $0x18] sm:$0xf]
    %v1218 = vld [vmem:[%s3 + $0x1c] sm:$0xf]
    %v1219 = vld [vmem:[%s3 + $0x20] sm:$0xf]
    %v1220 = vld [vmem:[%s3 + $0x24] sm:$0xf]
    %v1221 = vld [vmem:[%s3 + $0x28] sm:$0xf]
    %v1222 = vld [vmem:[%s3 + $0x2c] sm:$0xf]
    %v1223 = vld [vmem:[%s3 + $0x30] sm:$0xf]
    %v1224 = vld [vmem:[%s3 + $0x34] sm:$0xf]
    %v1225 = vld [vmem:[%s3 + $0x38] sm:$0xf]
    %v1226 = vld [vmem:[%s3 + $0x3c] sm:$0xf]
    %v1227 = vld [vmem:[%s3 + $0x40] sm:$0xf]
    %v1228 = vld [vmem:[%s3 + $0x44] sm:$0xf]
    %v1229 = vld [vmem:[%s3 + $0x48] sm:$0xf]
    %v1230 = vld [vmem:[%s3 + $0x4c] sm:$0xf]
    %v1231 = vld [vmem:[%s3 + $0x50] sm:$0xf]
    %v1232 = vld [vmem:[%s3 + $0x54] sm:$0xf]
    %v1233 = vld [vmem:[%s3 + $0x58] sm:$0xf]
    %v1234 = vld [vmem:[%s3 + $0x5c] sm:$0xf]
    %v1235 = vld [vmem:[%s3 + $0x60] sm:$0xf]
    %v1236 = vld [vmem:[%s3 + $0x64] sm:$0xf]
    %v1237 = vld [vmem:[%s3 + $0x68] sm:$0xf]
    %v1238 = vld [vmem:[%s3 + $0x6c] sm:$0xf]
    %v1239 = vld [vmem:[%s3 + $0x70] sm:$0xf]
    %v1240 = vld [vmem:[%s3 + $0x74] sm:$0xf]
    %v1241 = vld [vmem:[%s3 + $0x78] sm:$0xf]
    %v1242 = vld [vmem:[%s3 + $0x7c] sm:$0xf]
    %v1243 = vld [vmem:[%s3 + $0x80] sm:$0xf]
    %v1244 = vld [vmem:[%s3 + $0x84] sm:$0xf]
    %v1245 = vld [vmem:[%s3 + $0x88] sm:$0xf]
    %v1246 = vld [vmem:[%s3 + $0x8c] sm:$0xf]
    %v1247 = vld [vmem:[%s3 + $0x90] sm:$0xf]
    %v1248 = vld [vmem:[%s3 + $0x94] sm:$0xf]
    %v1249 = vld [vmem:[%s3 + $0x98] sm:$0xf]
    %v1250 = vld [vmem:[%s3 + $0x9c] sm:$0xf]
    %v1251 = vld [vmem:[%s3 + $0xa0] sm:$0xf]
    %v1252 = vld [vmem:[%s3 + $0xa4] sm:$0xf]
    %v1253 = vld [vmem:[%s3 + $0xa8] sm:$0xf]
    %v1254 = vld [vmem:[%s3 + $0xac] sm:$0xf]
    %v1255 = vld [vmem:[%s3 + $0xb0] sm:$0xf]
    %v1256 = vld [vmem:[%s3 + $0xb4] sm:$0xf]
    %v1257 = vld [vmem:[%s3 + $0xb8] sm:$0xf]
    %v1258 = vld [vmem:[%s3 + $0xbc] sm:$0xf]
    %v1259 = vld [vmem:[%s3 + $0xc0] sm:$0xf]
    %v1260 = vld [vmem:[%s3 + $0xc4] sm:$0xf]
    %v1261 = vld [vmem:[%s3 + $0xc8] sm:$0xf]
    %v1262 = vld [vmem:[%s3 + $0xcc] sm:$0xf]
    %v1263 = vld [vmem:[%s3 + $0xd0] sm:$0xf]
    %v1264 = vld [vmem:[%s3 + $0xd4] sm:$0xf]
    %v1265 = vld [vmem:[%s3 + $0xd8] sm:$0xf]
    %v1266 = vld [vmem:[%s3 + $0xdc] sm:$0xf]
    %v1267 = vld [vmem:[%s3 + $0xe0] sm:$0xf]
    %v1268 = vld [vmem:[%s3 + $0xe4] sm:$0xf]
    %v1269 = vld [vmem:[%s3 + $0xe8] sm:$0xf]
    %v1270 = vld [vmem:[%s3 + $0xec] sm:$0xf]
    %v1271 = vld [vmem:[%s3 + $0xf0] sm:$0xf]
    %v1272 = vld [vmem:[%s3 + $0xf4] sm:$0xf]
    %v1273 = vld [vmem:[%s3 + $0xf8] sm:$0xf]
    %v1274 = vld [vmem:[%s3 + $0xfc] sm:$0xf]
    %v1275 = vld [vmem:[%s4] sm:$0x1]
    %v1277 = vlaneseq
    %v1278 = vshrl.u32 %v1277, 7
    %v1279 = vsub.s32 0, %v1278
    %v1280 = vrot.slane %v1275, %v1279
    %v1346 = vunpack.c.l.b16 %v1211
    %v1347 = vunpack.c.l.b16 %v1212
    %v1348 = vunpack.c.l.b16 %v1213
    %v1349 = vunpack.c.l.b16 %v1214
    %v1350 = vunpack.c.l.b16 %v1215
    %v1351 = vunpack.c.l.b16 %v1216
    %v1352 = vunpack.c.l.b16 %v1217
    %v1353 = vunpack.c.l.b16 %v1218
    %v1354 = vunpack.c.l.b16 %v1219
    %v1355 = vunpack.c.l.b16 %v1220
    %v1356 = vunpack.c.l.b16 %v1221
    %v1357 = vunpack.c.l.b16 %v1222
    %v1358 = vunpack.c.l.b16 %v1223
    %v1359 = vunpack.c.l.b16 %v1224
    %v1360 = vunpack.c.l.b16 %v1225
    %v1361 = vunpack.c.l.b16 %v1226
    %v1362 = vunpack.c.l.b16 %v1227
    %v1363 = vunpack.c.l.b16 %v1228
    %v1364 = vunpack.c.l.b16 %v1229
    %v1365 = vunpack.c.l.b16 %v1230
    %v1366 = vunpack.c.l.b16 %v1231
    %v1367 = vunpack.c.l.b16 %v1232
    %v1368 = vunpack.c.l.b16 %v1233
    %v1369 = vunpack.c.l.b16 %v1234
    %v1370 = vunpack.c.l.b16 %v1235
    %v1371 = vunpack.c.l.b16 %v1236
    %v1372 = vunpack.c.l.b16 %v1237
    %v1373 = vunpack.c.l.b16 %v1238
    %v1374 = vunpack.c.l.b16 %v1239
    %v1375 = vunpack.c.l.b16 %v1240
    %v1376 = vunpack.c.l.b16 %v1241
    %v1377 = vunpack.c.l.b16 %v1242
    %v1378 = vunpack.c.l.b16 %v1243
    %v1379 = vunpack.c.l.b16 %v1244
    %v1380 = vunpack.c.l.b16 %v1245
    %v1381 = vunpack.c.l.b16 %v1246
    %v1382 = vunpack.c.l.b16 %v1247
    %v1383 = vunpack.c.l.b16 %v1248
    %v1384 = vunpack.c.l.b16 %v1249
    %v1385 = vunpack.c.l.b16 %v1250
    %v1386 = vunpack.c.l.b16 %v1251
    %v1387 = vunpack.c.l.b16 %v1252
    %v1388 = vunpack.c.l.b16 %v1253
    %v1389 = vunpack.c.l.b16 %v1254
    %v1390 = vunpack.c.l.b16 %v1255
    %v1391 = vunpack.c.l.b16 %v1256
    %v1392 = vunpack.c.l.b16 %v1257
    %v1393 = vunpack.c.l.b16 %v1258
    %v1394 = vunpack.c.l.b16 %v1259
    %v1395 = vunpack.c.l.b16 %v1260
    %v1396 = vunpack.c.l.b16 %v1261
    %v1397 = vunpack.c.l.b16 %v1262
    %v1398 = vunpack.c.l.b16 %v1263
    %v1399 = vunpack.c.l.b16 %v1264
    %v1400 = vunpack.c.l.b16 %v1265
    %v1401 = vunpack.c.l.b16 %v1266
    %v1402 = vunpack.c.l.b16 %v1267
    %v1403 = vunpack.c.l.b16 %v1268
    %v1404 = vunpack.c.l.b16 %v1269
    %v1405 = vunpack.c.l.b16 %v1270
    %v1406 = vunpack.c.l.b16 %v1271
    %v1407 = vunpack.c.l.b16 %v1272
    %v1408 = vunpack.c.l.b16 %v1273
    %v1409 = vunpack.c.l.b16 %v1274
    %v1410 = vpack.c.b16 %v1347, %v1346
    %v1411 = vpack.c.b16 %v1349, %v1348
    %v1412 = vpack.c.b16 %v1351, %v1350
    %v1413 = vpack.c.b16 %v1353, %v1352
    %v1414 = vpack.c.b16 %v1355, %v1354
    %v1415 = vpack.c.b16 %v1357, %v1356
    %v1416 = vpack.c.b16 %v1359, %v1358
    %v1417 = vpack.c.b16 %v1361, %v1360
    %v1418 = vpack.c.b16 %v1363, %v1362
    %v1419 = vpack.c.b16 %v1365, %v1364
    %v1420 = vpack.c.b16 %v1367, %v1366
    %v1421 = vpack.c.b16 %v1369, %v1368
    %v1422 = vpack.c.b16 %v1371, %v1370
    %v1423 = vpack.c.b16 %v1373, %v1372
    %v1424 = vpack.c.b16 %v1375, %v1374
    %v1425 = vpack.c.b16 %v1377, %v1376
    %v1426 = vpack.c.b16 %v1379, %v1378
    %v1427 = vpack.c.b16 %v1381, %v1380
    %v1428 = vpack.c.b16 %v1383, %v1382
    %v1429 = vpack.c.b16 %v1385, %v1384
    %v1430 = vpack.c.b16 %v1387, %v1386
    %v1431 = vpack.c.b16 %v1389, %v1388
    %v1432 = vpack.c.b16 %v1391, %v1390
    %v1433 = vpack.c.b16 %v1393, %v1392
    %v1434 = vpack.c.b16 %v1395, %v1394
    %v1435 = vpack.c.b16 %v1397, %v1396
    %v1436 = vpack.c.b16 %v1399, %v1398
    %v1437 = vpack.c.b16 %v1401, %v1400
    %v1438 = vpack.c.b16 %v1403, %v1402
    %v1439 = vpack.c.b16 %v1405, %v1404
    %v1440 = vpack.c.b16 %v1407, %v1406
    %v1441 = vpack.c.b16 %v1409, %v1408
    %1474 = vmatprep.subr.bf16.mxu0 0
    %1475 = vmatpush1.bf16.msra.mxu0 %v1410
    %1476 = vmatprep.subr.bf16.mxu0 0
    %1477 = vmatpush1.bf16.msra.mxu0 %v1411
    %1478 = vmatprep.subr.bf16.mxu0 0
    %1479 = vmatpush1.bf16.msra.mxu0 %v1412
    %1480 = vmatprep.subr.bf16.mxu0 0
    %1481 = vmatpush1.bf16.msra.mxu0 %v1413
    %1482 = vmatprep.subr.bf16.mxu0 0
    %1483 = vmatpush1.bf16.msra.mxu0 %v1414
    %1484 = vmatprep.subr.bf16.mxu0 0
    %1485 = vmatpush1.bf16.msra.mxu0 %v1415
    %1486 = vmatprep.subr.bf16.mxu0 0
    %1487 = vmatpush1.bf16.msra.mxu0 %v1416
    %1488 = vmatprep.subr.bf16.mxu0 0
    %1489 = vmatpush1.bf16.msra.mxu0 %v1417
    %1490 = vmatprep.subr.bf16.mxu0 0
    %1491 = vmatpush1.bf16.msra.mxu0 %v1418
    %1492 = vmatprep.subr.bf16.mxu0 0
    %1493 = vmatpush1.bf16.msra.mxu0 %v1419
    %1494 = vmatprep.subr.bf16.mxu0 0
    %1495 = vmatpush1.bf16.msra.mxu0 %v1420
    %1496 = vmatprep.subr.bf16.mxu0 0
    %1497 = vmatpush1.bf16.msra.mxu0 %v1421
    %1498 = vmatprep.subr.bf16.mxu0 0
    %1499 = vmatpush1.bf16.msra.mxu0 %v1422
    %1500 = vmatprep.subr.bf16.mxu0 0
    %1501 = vmatpush1.bf16.msra.mxu0 %v1423
    %1502 = vmatprep.subr.bf16.mxu0 0
    %1503 = vmatpush1.bf16.msra.mxu0 %v1424
    %1504 = vmatprep.subr.bf16.mxu0 0
    %1505 = vmatpush1.bf16.msra.mxu0 %v1425
    %1506 = vmatprep.mubr.bf16.mxu0 %v1208
    %1507 = vmatmul.mubr.bf16.gmra.mrb[0].mxu0 %v1207
    %v1508 = vpop.f32.mrb[0].mxu0
    %v1509 = vadd.f32 %v1280, %v1508
    %v1510 = vpop.f32.mrb[0].mxu0
    %v1511 = vpop.f32.mrb[0].mxu0
    %v1512 = vpop.f32.mrb[0].mxu0
    %1513 = vdwg.mxu0
    %1514 = vmatprep.subr.bf16.mxu0 0
    %1515 = vmatpush1.bf16.msra.mxu0 %v1426
    %1516 = vmatprep.subr.bf16.mxu0 0
    %1517 = vmatpush1.bf16.msra.mxu0 %v1427
    %1518 = vmatprep.subr.bf16.mxu0 0
    %1519 = vmatpush1.bf16.msra.mxu0 %v1428
    %1520 = vmatprep.subr.bf16.mxu0 0
    %1521 = vmatpush1.bf16.msra.mxu0 %v1429
    %1522 = vmatprep.subr.bf16.mxu0 0
    %1523 = vmatpush1.bf16.msra.mxu0 %v1430
    %1524 = vmatprep.subr.bf16.mxu0 0
    %1525 = vmatpush1.bf16.msra.mxu0 %v1431
    %1526 = vmatprep.subr.bf16.mxu0 0
    %1527 = vmatpush1.bf16.msra.mxu0 %v1432
    %1528 = vmatprep.subr.bf16.mxu0 0
    %1529 = vmatpush1.bf16.msra.mxu0 %v1433
    %1530 = vmatprep.subr.bf16.mxu0 0
    %1531 = vmatpush1.bf16.msra.mxu0 %v1434
    %1532 = vmatprep.subr.bf16.mxu0 0
    %1533 = vmatpush1.bf16.msra.mxu0 %v1435
    %1534 = vmatprep.subr.bf16.mxu0 0
    %1535 = vmatpush1.bf16.msra.mxu0 %v1436
    %1536 = vmatprep.subr.bf16.mxu0 0
    %1537 = vmatpush1.bf16.msra.mxu0 %v1437
    %1538 = vmatprep.subr.bf16.mxu0 0
    %1539 = vmatpush1.bf16.msra.mxu0 %v1438
    %1540 = vmatprep.subr.bf16.mxu0 0
    %1541 = vmatpush1.bf16.msra.mxu0 %v1439
    %1542 = vmatprep.subr.bf16.mxu0 0
    %1543 = vmatpush1.bf16.msra.mxu0 %v1440
    %1544 = vmatprep.subr.bf16.mxu0 0
    %1545 = vmatpush1.bf16.msra.mxu0 %v1441
    %1546 = vmatprep.mubr.bf16.mxu0 %v1210
    %1547 = vmatmul.mubr.bf16.gmra.mrb[0].mxu0 %v1209
    %v1548 = vpop.f32.mrb[0].mxu0
    %v1549 = vadd.f32 %v1509, %v1548
    %v1550 = vpop.f32.mrb[0].mxu0
    %v1551 = vpop.f32.mrb[0].mxu0
    %v1552 = vpop.f32.mrb[0].mxu0
    %1553 = vdwg.mxu0
    %1554 = vst [vmem:[#allocation2] sm:$0x3] %v1549
    // Predicated region
    $region22: #{dsh_forward.7} parent=1 // pred_check
      _
    $region23: #{dsh_forward.7} parent=1 // pred_check_branch
      %1556 = sbr.rel (0) target = $region25
    $region24: #{dsh_forward.7} parent=1 // pred_region
      %s1558 = ssub.s32 32, 32
      %1559 = vsyncadd [#allocation3], %s1558
      %s1561 = sshll.u32 [#allocation2], 4
      %s1562 = int_to_ptr.vmem [resolvable:$true] %s1561
      %1564 = dma.vmem_to_hbm [thread:$0]  %s1562, 32, %s5, [#allocation3]
    $region25: #{dsh_forward.7} parent=1 // pred_fallthru
      _
    // Predicated region
    $region26: #{dsh_forward.7} parent=1 // pred_check
      _
    $region27: #{dsh_forward.7} parent=1 // pred_check_branch
      %1566 = sbr.rel (0) target = $region29
    $region28: #{dsh_forward.7} parent=1 // pred_region
      %1567 = dma.done [#allocation3], 32
    $region29: #{dsh_forward.7} parent=1 // pred_fallthru
      _
    %1568 = vsyncpa [#allocation3], 1

</llo_original>
